<compile_context>
chip_gen: v7x
topology: tpu7x:2x2x1
jax: 0.10.0
libtpu: 0.0.40
codegen_flags: <defaults>
</compile_context>

<pallas_src>
import math
import functools

import jax
import jax.numpy as jnp
from jax.experimental import pallas as pl
from jax.experimental.pallas import tpu as pltpu

D = 256          # hidden / embedding dim (GraphConv(256, 256))
RATIO = 0.8      # TopKPooling ratio
_NEG = -3.0e38   # "minus infinity" that stays finite in f32


# ----------------------------------------------------------------------------
# In-kernel TopK keep-mask: boolean [N,1] mask of the k largest scores.
# k is a static Python int; ties are broken toward the lowest index.
# ----------------------------------------------------------------------------
def _topk_keep_mask(score, k):
    n = score.shape[0]
    idx = jax.lax.broadcasted_iota(jnp.int32, score.shape, 0).astype(jnp.float32)

    def body(_, carry):
        keep, elig = carry
        sm = jnp.where(elig, score, _NEG)                 # mask already-picked nodes
        m = jnp.max(sm, axis=0, keepdims=True)            # [1,1] current max
        cand = jnp.where(sm == m, idx, float(n))          # indices attaining the max
        first = jnp.min(cand, axis=0, keepdims=True)      # first (lowest) such index
        sel = idx == first
        return jnp.logical_or(keep, sel), jnp.logical_and(elig, jnp.logical_not(sel))

    keep0 = jnp.zeros(score.shape, jnp.bool_)
    elig0 = jnp.ones(score.shape, jnp.bool_)
    keep, _ = jax.lax.fori_loop(0, k, body, (keep0, elig0), unroll=True)
    return keep


# ----------------------------------------------------------------------------
# Single fused kernel: whole Rec2 forward for one graph per grid step.
# ----------------------------------------------------------------------------
def _rec2_kernel(x_ref, adj_ref,
                 wr1_ref, we1_ref, cb1_ref, p1_ref,
                 wr2_ref, we2_ref, cb2_ref, p2_ref,
                 wr3_ref, we3_ref, cb3_ref, p3_ref,
                 wr4_ref, we4_ref, cb4_ref, p4_ref,
                 w1_ref, b1_ref, w2_ref, b2_ref, w3_ref, b3_ref,
                 o_ref, *, ks):
    n = x_ref.shape[1]
    x = x_ref[0]                        # [N, D] f32, this graph's node features
    adj = adj_ref[0]                    # [N, N] bf16, adj[i, j] = edge j -> i

    layers = ((wr1_ref, we1_ref, cb1_ref, p1_ref),
              (wr2_ref, we2_ref, cb2_ref, p2_ref),
              (wr3_ref, we3_ref, cb3_ref, p3_ref),
              (wr4_ref, we4_ref, cb4_ref, p4_ref))

    keep = jnp.ones((n, 1), dtype=jnp.bool_)        # surviving nodes (cumulative)
    acc_mx = jnp.zeros((1, D), jnp.float32)         # sum over layers of gmp readouts
    acc_mn = jnp.zeros((1, D), jnp.float32)         # sum over layers of gap readouts

    for (wr_ref, we_ref, cb_ref, p_ref), k in zip(layers, ks):
        # --- GraphConv(256,256,aggr='add') + ReLU ----------------------------
        # relu( x @ W_root + (adj @ x) @ W_rel + bias ).  Dropped nodes have
        # x == 0, so adj's columns need no masking; their own rows produce
        # garbage that `keep` excludes from scores and readouts below.
        xb = x.astype(jnp.bfloat16)
        agg = jnp.dot(adj, xb, preferred_element_type=jnp.float32)      # [N, D]
        h = (jnp.dot(xb, wr_ref[...], preferred_element_type=jnp.float32)
             + jnp.dot(agg.astype(jnp.bfloat16), we_ref[...],
                       preferred_element_type=jnp.float32)
             + cb_ref[...])
        x = jnp.maximum(h, 0.0)                                         # [N, D] f32

        # --- TopKPooling(ratio=0.8), static k = ceil(0.8 * n_valid) ----------
        p = p_ref[...]                                                  # [1, D]
        score = jnp.tanh(jnp.sum(x * p, axis=-1, keepdims=True)
                         * jax.lax.rsqrt(jnp.sum(p * p)))               # [N, 1]
        score_v = jnp.where(keep, score, _NEG)      # never re-select dropped nodes
        keep = _topk_keep_mask(score_v, k)
        x = x * jnp.where(keep, score, 0.0)         # scale survivors, zero the rest

        # --- readout of the pooled x: [gmp || gap], accumulated --------------
        acc_mx = acc_mx + jnp.max(jnp.where(keep, x, _NEG), axis=0, keepdims=True)
        acc_mn = acc_mn + jnp.sum(x, axis=0, keepdims=True) * (1.0 / float(k))

    # --- MLP head: lin1 -> ReLU -> lin2 -> ReLU -> dropout(eval)=id -> lin3 -> sigmoid
    # Broadcast the single readout row to 8 sublanes so each matmul has a
    # well-formed (8, K) LHS tile; row 0 is extracted at the very end.
    mrow = jnp.broadcast_to(acc_mx, (8, D)).astype(jnp.bfloat16)
    arow = jnp.broadcast_to(acc_mn, (8, D)).astype(jnp.bfloat16)
    h = (jnp.dot(mrow, w1_ref[:D, :], preferred_element_type=jnp.float32)
         + jnp.dot(arow, w1_ref[D:, :], preferred_element_type=jnp.float32)
         + b1_ref[...])
    h = jnp.maximum(h, 0.0)                                             # act1
    h = jnp.dot(h.astype(jnp.bfloat16), w2_ref[...],
                preferred_element_type=jnp.float32) + b2_ref[...]
    h = jnp.maximum(h, 0.0)                                             # act2
    # F.dropout(p=0.5, training=False) -> identity (inference semantics)
    logit = jnp.sum(h * w3_ref[...], axis=-1, keepdims=True) + b3_ref[...]   # [8,1]
    o_ref[0] = jax.nn.sigmoid(logit[0:1, :])


# ----------------------------------------------------------------------------
# Full forward (mirrors Rec2.forward; bn1/bn2 are defined but unused in torch)
# ----------------------------------------------------------------------------
@jax.jit
def rec2_forward(params, node_ids, adj):
    # item_embedding(x).squeeze(1) -- embedding gather kept in plain JAX
    x = jnp.take(params['emb'], node_ids, axis=0)          # [B, N, D] f32
    B, N, _ = x.shape
    adj_b = adj.astype(jnp.bfloat16)                        # exact for 0/1 edge values

    # static pooled-node counts: 16 -> 13 -> 11 -> 9 -> 8, baked into the kernel
    ks, nv = [], N
    for _ in range(4):
        nv = int(math.ceil(RATIO * nv))
        ks.append(nv)

    weights = []
    for i in range(1, 5):
        weights += [params[f'conv{i}_wr'], params[f'conv{i}_we'],
                    params[f'conv{i}_b'], params[f'pool{i}_w']]
    weights += [params['lin1_w'], params['lin1_b'],
                params['lin2_w'], params['lin2_b'],
                params['lin3_w'], params['lin3_b']]

    def _wspec(w):  # whole array, constant index_map -> resident across grid steps
        nd = w.ndim
        return pl.BlockSpec(w.shape, lambda b, _nd=nd: (0,) * _nd)

    out = pl.pallas_call(
        functools.partial(_rec2_kernel, ks=tuple(ks)),
        out_shape=jax.ShapeDtypeStruct((B, 1, 1), jnp.float32),
        grid=(B,),
        in_specs=[pl.BlockSpec((1, N, D), lambda b: (b, 0, 0)),
                  pl.BlockSpec((1, N, N), lambda b: (b, 0, 0))]
                 + [_wspec(w) for w in weights],
        out_specs=pl.BlockSpec((1, 1, 1), lambda b: (b, 0, 0)),
        compiler_params=pltpu.CompilerParams(
            dimension_semantics=("parallel",)),
    )(x, adj_b, *weights)
    return out[:, 0, 0]                                     # .squeeze(1)


# ----------------------------------------------------------------------------
# Deterministic parameter construction (synthetic; weights stored as [in, out],
# matmul weights in bf16, conv root/rel weights kept separate -> two dots)
# ----------------------------------------------------------------------------
def make_params(key, num_items):
    keys = jax.random.split(key, 40)
    ki = iter(keys)

    def dense(k, fan_in, fan_out, dtype=jnp.bfloat16):
        w = jax.random.normal(k, (fan_in, fan_out), jnp.float32) / jnp.sqrt(float(fan_in))
        return w.astype(dtype)

    params = {'emb': jax.random.normal(next(ki), (num_items, D), jnp.float32) * 0.1}
    for i in range(1, 5):
        params[f'conv{i}_wr'] = dense(next(ki), D, D)                       # W_root, bf16
        params[f'conv{i}_we'] = dense(next(ki), D, D)                       # W_rel,  bf16
        params[f'conv{i}_b'] = jax.random.normal(next(ki), (1, D), jnp.float32) * 0.01
        params[f'pool{i}_w'] = jax.random.normal(next(ki), (1, D), jnp.float32)
    params['lin1_w'] = dense(next(ki), 2 * D, 256)
    params['lin1_b'] = jax.random.normal(next(ki), (1, 256), jnp.float32) * 0.01
    params['lin2_w'] = dense(next(ki), 256, 64)
    params['lin2_b'] = jax.random.normal(next(ki), (1, 64), jnp.float32) * 0.01
    params['lin3_w'] = dense(next(ki), 64, 1, dtype=jnp.float32).T          # [1, 64], VPU
    params['lin3_b'] = jax.random.normal(next(ki), (1, 1), jnp.float32) * 0.01
    return params


if __name__ == "__main__":
    B, N, NUM_ITEMS = 2, 16, 50          # 2 graphs, 16 nodes each, synthetic item vocab

    key = jax.random.PRNGKey(0)
    k_param, k_ids, k_adj = jax.random.split(key, 3)

    params = make_params(k_param, NUM_ITEMS)
    node_ids = jax.random.randint(k_ids, (B, N), 0, NUM_ITEMS)               # data.x (item ids)
    adj = jax.random.bernoulli(k_adj, 0.25, (B, N, N)).astype(jnp.float32)   # dense edge_index

    out = rec2_forward(params, node_ids, adj)
    out = jax.block_until_ready(out)

    assert out.shape == (B,)
    assert bool(jnp.all(jnp.isfinite(out)))
    assert bool(jnp.all((out >= 0.0) & (out <= 1.0)))   # sigmoid output
    print("KERNEL_OK")
</pallas_src>

<mosaic_0001>
module attributes {stable_mosaic.version = 11 : i64} {
  func.func @_rec2_kernel(%arg0: i32, %arg1: memref<1x16x256xf32, #tpu.memory_space<vmem>>, %arg2: memref<1x16x16xbf16, #tpu.memory_space<vmem>>, %arg3: memref<256x256xbf16, #tpu.memory_space<vmem>>, %arg4: memref<256x256xbf16, #tpu.memory_space<vmem>>, %arg5: memref<1x256xf32, #tpu.memory_space<vmem>>, %arg6: memref<1x256xf32, #tpu.memory_space<vmem>>, %arg7: memref<256x256xbf16, #tpu.memory_space<vmem>>, %arg8: memref<256x256xbf16, #tpu.memory_space<vmem>>, %arg9: memref<1x256xf32, #tpu.memory_space<vmem>>, %arg10: memref<1x256xf32, #tpu.memory_space<vmem>>, %arg11: memref<256x256xbf16, #tpu.memory_space<vmem>>, %arg12: memref<256x256xbf16, #tpu.memory_space<vmem>>, %arg13: memref<1x256xf32, #tpu.memory_space<vmem>>, %arg14: memref<1x256xf32, #tpu.memory_space<vmem>>, %arg15: memref<256x256xbf16, #tpu.memory_space<vmem>>, %arg16: memref<256x256xbf16, #tpu.memory_space<vmem>>, %arg17: memref<1x256xf32, #tpu.memory_space<vmem>>, %arg18: memref<1x256xf32, #tpu.memory_space<vmem>>, %arg19: memref<512x256xbf16, #tpu.memory_space<vmem>>, %arg20: memref<1x256xf32, #tpu.memory_space<vmem>>, %arg21: memref<256x64xbf16, #tpu.memory_space<vmem>>, %arg22: memref<1x64xf32, #tpu.memory_space<vmem>>, %arg23: memref<1x64xf32, #tpu.memory_space<vmem>>, %arg24: memref<1x1xf32, #tpu.memory_space<vmem>>, %arg25: memref<1x1x1xf32, #tpu.memory_space<vmem>>) attributes {dimension_semantics = [#tpu.dimension_semantics<parallel>], iteration_bounds = array<i64: 2>, scalar_prefetch = 0 : i64, scratch_operands = 0 : i64, tpu.core_type = #tpu.core_type<tc>, window_params = [{transform_indices = @transform_0, window_bounds = array<i64: 1, 16, 256>}, {transform_indices = @transform_1, window_bounds = array<i64: 1, 16, 16>}, {pipeline_mode = #tpu.pipeline_mode<synchronous>, transform_indices = @transform_2, window_bounds = array<i64: 256, 256>}, {pipeline_mode = #tpu.pipeline_mode<synchronous>, transform_indices = @transform_3, window_bounds = array<i64: 256, 256>}, {pipeline_mode = #tpu.pipeline_mode<synchronous>, transform_indices = @transform_4, window_bounds = array<i64: 1, 256>}, {pipeline_mode = #tpu.pipeline_mode<synchronous>, transform_indices = @transform_5, window_bounds = array<i64: 1, 256>}, {pipeline_mode = #tpu.pipeline_mode<synchronous>, transform_indices = @transform_6, window_bounds = array<i64: 256, 256>}, {pipeline_mode = #tpu.pipeline_mode<synchronous>, transform_indices = @transform_7, window_bounds = array<i64: 256, 256>}, {pipeline_mode = #tpu.pipeline_mode<synchronous>, transform_indices = @transform_8, window_bounds = array<i64: 1, 256>}, {pipeline_mode = #tpu.pipeline_mode<synchronous>, transform_indices = @transform_9, window_bounds = array<i64: 1, 256>}, {pipeline_mode = #tpu.pipeline_mode<synchronous>, transform_indices = @transform_10, window_bounds = array<i64: 256, 256>}, {pipeline_mode = #tpu.pipeline_mode<synchronous>, transform_indices = @transform_11, window_bounds = array<i64: 256, 256>}, {pipeline_mode = #tpu.pipeline_mode<synchronous>, transform_indices = @transform_12, window_bounds = array<i64: 1, 256>}, {pipeline_mode = #tpu.pipeline_mode<synchronous>, transform_indices = @transform_13, window_bounds = array<i64: 1, 256>}, {pipeline_mode = #tpu.pipeline_mode<synchronous>, transform_indices = @transform_14, window_bounds = array<i64: 256, 256>}, {pipeline_mode = #tpu.pipeline_mode<synchronous>, transform_indices = @transform_15, window_bounds = array<i64: 256, 256>}, {pipeline_mode = #tpu.pipeline_mode<synchronous>, transform_indices = @transform_16, window_bounds = array<i64: 1, 256>}, {pipeline_mode = #tpu.pipeline_mode<synchronous>, transform_indices = @transform_17, window_bounds = array<i64: 1, 256>}, {pipeline_mode = #tpu.pipeline_mode<synchronous>, transform_indices = @transform_18, window_bounds = array<i64: 512, 256>}, {pipeline_mode = #tpu.pipeline_mode<synchronous>, transform_indices = @transform_19, window_bounds = array<i64: 1, 256>}, {pipeline_mode = #tpu.pipeline_mode<synchronous>, transform_indices = @transform_20, window_bounds = array<i64: 256, 64>}, {pipeline_mode = #tpu.pipeline_mode<synchronous>, transform_indices = @transform_21, window_bounds = array<i64: 1, 64>}, {pipeline_mode = #tpu.pipeline_mode<synchronous>, transform_indices = @transform_22, window_bounds = array<i64: 1, 64>}, {pipeline_mode = #tpu.pipeline_mode<synchronous>, transform_indices = @transform_23, window_bounds = array<i64: 1, 1>}, {transform_indices = @transform_24, window_bounds = array<i64: 1, 1, 1>}]} {
    %c0 = arith.constant 0 : index
    %c0_0 = arith.constant 0 : index
    %c0_1 = arith.constant 0 : index
    %0 = vector.load %arg1[%c0, %c0_0, %c0_1] : memref<1x16x256xf32, #tpu.memory_space<vmem>>, vector<1x16x256xf32>
    %1 = vector.shape_cast %0 : vector<1x16x256xf32> to vector<16x256xf32>
    %c0_2 = arith.constant 0 : index
    %c0_3 = arith.constant 0 : index
    %c0_4 = arith.constant 0 : index
    %2 = vector.load %arg2[%c0_2, %c0_3, %c0_4] : memref<1x16x16xbf16, #tpu.memory_space<vmem>>, vector<1x16x16xbf16>
    %3 = vector.shape_cast %2 : vector<1x16x16xbf16> to vector<16x16xbf16>
    %true = arith.constant true
    %4 = vector.broadcast %true : i1 to vector<16x1xi1>
    %cst = arith.constant 0.000000e+00 : f32
    %5 = vector.broadcast %cst : f32 to vector<1x256xf32>
    %cst_5 = arith.constant 0.000000e+00 : f32
    %6 = vector.broadcast %cst_5 : f32 to vector<1x256xf32>
    %7 = arith.truncf %1 : vector<16x256xf32> to vector<16x256xbf16>
    %cst_6 = arith.constant dense<0.000000e+00> : vector<16x256xf32>
    %8 = tpu.matmul %3, %7, %cst_6 {dimension_numbers = #tpu.dot_dimension_numbers<[1], [0], [0], [1], [0, 0, 1, 1], [], []>} : vector<16x16xbf16>, vector<16x256xbf16>, vector<16x256xf32> -> vector<16x256xf32>
    %c0_7 = arith.constant 0 : index
    %c0_8 = arith.constant 0 : index
    %9 = vector.load %arg3[%c0_7, %c0_8] : memref<256x256xbf16, #tpu.memory_space<vmem>>, vector<256x256xbf16>
    %cst_9 = arith.constant dense<0.000000e+00> : vector<16x256xf32>
    %10 = tpu.matmul %7, %9, %cst_9 {dimension_numbers = #tpu.dot_dimension_numbers<[1], [0], [0], [1], [0, 0, 1, 1], [], []>} : vector<16x256xbf16>, vector<256x256xbf16>, vector<16x256xf32> -> vector<16x256xf32>
    %11 = arith.truncf %8 : vector<16x256xf32> to vector<16x256xbf16>
    %c0_10 = arith.constant 0 : index
    %c0_11 = arith.constant 0 : index
    %12 = vector.load %arg4[%c0_10, %c0_11] : memref<256x256xbf16, #tpu.memory_space<vmem>>, vector<256x256xbf16>
    %cst_12 = arith.constant dense<0.000000e+00> : vector<16x256xf32>
    %13 = tpu.matmul %11, %12, %cst_12 {dimension_numbers = #tpu.dot_dimension_numbers<[1], [0], [0], [1], [0, 0, 1, 1], [], []>} : vector<16x256xbf16>, vector<256x256xbf16>, vector<16x256xf32> -> vector<16x256xf32>
    %14 = arith.addf %10, %13 : vector<16x256xf32>
    %c0_13 = arith.constant 0 : index
    %c0_14 = arith.constant 0 : index
    %15 = vector.load %arg5[%c0_13, %c0_14] : memref<1x256xf32, #tpu.memory_space<vmem>>, vector<1x256xf32>
    %16 = vector.broadcast %15 : vector<1x256xf32> to vector<16x256xf32>
    %17 = arith.addf %14, %16 : vector<16x256xf32>
    %cst_15 = arith.constant 0.000000e+00 : f32
    %18 = vector.broadcast %cst_15 : f32 to vector<16x256xf32>
    %19 = arith.maximumf %17, %18 : vector<16x256xf32>
    %c0_16 = arith.constant 0 : index
    %c0_17 = arith.constant 0 : index
    %20 = vector.load %arg6[%c0_16, %c0_17] : memref<1x256xf32, #tpu.memory_space<vmem>>, vector<1x256xf32>
    %21 = vector.broadcast %20 : vector<1x256xf32> to vector<16x256xf32>
    %22 = arith.mulf %19, %21 : vector<16x256xf32>
    %cst_18 = arith.constant dense<0.000000e+00> : vector<16xf32>
    %23 = vector.multi_reduction <add>, %22, %cst_18 [1] : vector<16x256xf32> to vector<16xf32>
    %24 = vector.shape_cast %23 : vector<16xf32> to vector<16x1xf32>
    %25 = arith.mulf %20, %20 : vector<1x256xf32>
    %26 = vector.shape_cast %25 : vector<1x256xf32> to vector<1x1x256xf32>
    %cst_19 = arith.constant dense<0.000000e+00> : vector<1xf32>
    %27 = vector.multi_reduction <add>, %26, %cst_19 [1, 2] : vector<1x1x256xf32> to vector<1xf32>
    %28 = vector.shape_cast %27 : vector<1xf32> to vector<1x1x1xf32>
    %29 = vector.extract %28[0, 0, 0] : f32 from vector<1x1x1xf32>
    %30 = math.rsqrt %29 : f32
    %31 = vector.broadcast %30 : f32 to vector<16x1xf32>
    %32 = arith.mulf %24, %31 : vector<16x1xf32>
    %33 = math.tanh %32 : vector<16x1xf32>
    %cst_20 = arith.constant -3.000000e+38 : f32
    %34 = vector.broadcast %cst_20 : f32 to vector<16x1xf32>
    %35 = arith.select %4, %33, %34 : vector<16x1xi1>, vector<16x1xf32>
    %36 = tpu.iota {dimensions = array<i32: 0>} : vector<16x1xi32>
    %37 = arith.sitofp %36 : vector<16x1xi32> to vector<16x1xf32>
    %false = arith.constant false
    %38 = vector.broadcast %false : i1 to vector<16x1xi1>
    %true_21 = arith.constant true
    %39 = vector.broadcast %true_21 : i1 to vector<16x1xi1>
    %c0_i32 = arith.constant 0 : i32
    %cst_22 = arith.constant -3.000000e+38 : f32
    %40 = vector.broadcast %cst_22 : f32 to vector<16x1xf32>
    %41 = arith.select %39, %35, %40 : vector<16x1xi1>, vector<16x1xf32>
    %cst_23 = arith.constant dense<0xFF800000> : vector<1xf32>
    %42 = vector.multi_reduction <maximumf>, %41, %cst_23 [0] : vector<16x1xf32> to vector<1xf32>
    %43 = vector.shape_cast %42 : vector<1xf32> to vector<1x1xf32>
    %44 = vector.broadcast %43 : vector<1x1xf32> to vector<16x1xf32>
    %45 = arith.cmpf oeq, %41, %44 : vector<16x1xf32>
    %cst_24 = arith.constant 1.600000e+01 : f32
    %46 = vector.broadcast %cst_24 : f32 to vector<16x1xf32>
    %47 = arith.select %45, %37, %46 : vector<16x1xi1>, vector<16x1xf32>
    %cst_25 = arith.constant dense<0x7F800000> : vector<1xf32>
    %48 = vector.multi_reduction <minimumf>, %47, %cst_25 [0] : vector<16x1xf32> to vector<1xf32>
    %49 = vector.shape_cast %48 : vector<1xf32> to vector<1x1xf32>
    %50 = vector.broadcast %49 : vector<1x1xf32> to vector<16x1xf32>
    %51 = arith.cmpf oeq, %37, %50 : vector<16x1xf32>
    %52 = arith.ori %38, %51 : vector<16x1xi1>
    %cst_26 = arith.constant dense<true> : vector<16x1xi1>
    %53 = arith.xori %51, %cst_26 : vector<16x1xi1>
    %54 = arith.andi %39, %53 : vector<16x1xi1>
    %c1_i32 = arith.constant 1 : i32
    %cst_27 = arith.constant -3.000000e+38 : f32
    %55 = vector.broadcast %cst_27 : f32 to vector<16x1xf32>
    %56 = arith.select %54, %35, %55 : vector<16x1xi1>, vector<16x1xf32>
    %cst_28 = arith.constant dense<0xFF800000> : vector<1xf32>
    %57 = vector.multi_reduction <maximumf>, %56, %cst_28 [0] : vector<16x1xf32> to vector<1xf32>
    %58 = vector.shape_cast %57 : vector<1xf32> to vector<1x1xf32>
    %59 = vector.broadcast %58 : vector<1x1xf32> to vector<16x1xf32>
    %60 = arith.cmpf oeq, %56, %59 : vector<16x1xf32>
    %cst_29 = arith.constant 1.600000e+01 : f32
    %61 = vector.broadcast %cst_29 : f32 to vector<16x1xf32>
    %62 = arith.select %60, %37, %61 : vector<16x1xi1>, vector<16x1xf32>
    %cst_30 = arith.constant dense<0x7F800000> : vector<1xf32>
    %63 = vector.multi_reduction <minimumf>, %62, %cst_30 [0] : vector<16x1xf32> to vector<1xf32>
    %64 = vector.shape_cast %63 : vector<1xf32> to vector<1x1xf32>
    %65 = vector.broadcast %64 : vector<1x1xf32> to vector<16x1xf32>
    %66 = arith.cmpf oeq, %37, %65 : vector<16x1xf32>
    %67 = arith.ori %52, %66 : vector<16x1xi1>
    %cst_31 = arith.constant dense<true> : vector<16x1xi1>
    %68 = arith.xori %66, %cst_31 : vector<16x1xi1>
    %69 = arith.andi %54, %68 : vector<16x1xi1>
    %c2_i32 = arith.constant 2 : i32
    %cst_32 = arith.constant -3.000000e+38 : f32
    %70 = vector.broadcast %cst_32 : f32 to vector<16x1xf32>
    %71 = arith.select %69, %35, %70 : vector<16x1xi1>, vector<16x1xf32>
    %cst_33 = arith.constant dense<0xFF800000> : vector<1xf32>
    %72 = vector.multi_reduction <maximumf>, %71, %cst_33 [0] : vector<16x1xf32> to vector<1xf32>
    %73 = vector.shape_cast %72 : vector<1xf32> to vector<1x1xf32>
    %74 = vector.broadcast %73 : vector<1x1xf32> to vector<16x1xf32>
    %75 = arith.cmpf oeq, %71, %74 : vector<16x1xf32>
    %cst_34 = arith.constant 1.600000e+01 : f32
    %76 = vector.broadcast %cst_34 : f32 to vector<16x1xf32>
    %77 = arith.select %75, %37, %76 : vector<16x1xi1>, vector<16x1xf32>
    %cst_35 = arith.constant dense<0x7F800000> : vector<1xf32>
    %78 = vector.multi_reduction <minimumf>, %77, %cst_35 [0] : vector<16x1xf32> to vector<1xf32>
    %79 = vector.shape_cast %78 : vector<1xf32> to vector<1x1xf32>
    %80 = vector.broadcast %79 : vector<1x1xf32> to vector<16x1xf32>
    %81 = arith.cmpf oeq, %37, %80 : vector<16x1xf32>
    %82 = arith.ori %67, %81 : vector<16x1xi1>
    %cst_36 = arith.constant dense<true> : vector<16x1xi1>
    %83 = arith.xori %81, %cst_36 : vector<16x1xi1>
    %84 = arith.andi %69, %83 : vector<16x1xi1>
    %c3_i32 = arith.constant 3 : i32
    %cst_37 = arith.constant -3.000000e+38 : f32
    %85 = vector.broadcast %cst_37 : f32 to vector<16x1xf32>
    %86 = arith.select %84, %35, %85 : vector<16x1xi1>, vector<16x1xf32>
    %cst_38 = arith.constant dense<0xFF800000> : vector<1xf32>
    %87 = vector.multi_reduction <maximumf>, %86, %cst_38 [0] : vector<16x1xf32> to vector<1xf32>
    %88 = vector.shape_cast %87 : vector<1xf32> to vector<1x1xf32>
    %89 = vector.broadcast %88 : vector<1x1xf32> to vector<16x1xf32>
    %90 = arith.cmpf oeq, %86, %89 : vector<16x1xf32>
    %cst_39 = arith.constant 1.600000e+01 : f32
    %91 = vector.broadcast %cst_39 : f32 to vector<16x1xf32>
    %92 = arith.select %90, %37, %91 : vector<16x1xi1>, vector<16x1xf32>
    %cst_40 = arith.constant dense<0x7F800000> : vector<1xf32>
    %93 = vector.multi_reduction <minimumf>, %92, %cst_40 [0] : vector<16x1xf32> to vector<1xf32>
    %94 = vector.shape_cast %93 : vector<1xf32> to vector<1x1xf32>
    %95 = vector.broadcast %94 : vector<1x1xf32> to vector<16x1xf32>
    %96 = arith.cmpf oeq, %37, %95 : vector<16x1xf32>
    %97 = arith.ori %82, %96 : vector<16x1xi1>
    %cst_41 = arith.constant dense<true> : vector<16x1xi1>
    %98 = arith.xori %96, %cst_41 : vector<16x1xi1>
    %99 = arith.andi %84, %98 : vector<16x1xi1>
    %c4_i32 = arith.constant 4 : i32
    %cst_42 = arith.constant -3.000000e+38 : f32
    %100 = vector.broadcast %cst_42 : f32 to vector<16x1xf32>
    %101 = arith.select %99, %35, %100 : vector<16x1xi1>, vector<16x1xf32>
    %cst_43 = arith.constant dense<0xFF800000> : vector<1xf32>
    %102 = vector.multi_reduction <maximumf>, %101, %cst_43 [0] : vector<16x1xf32> to vector<1xf32>
    %103 = vector.shape_cast %102 : vector<1xf32> to vector<1x1xf32>
    %104 = vector.broadcast %103 : vector<1x1xf32> to vector<16x1xf32>
    %105 = arith.cmpf oeq, %101, %104 : vector<16x1xf32>
    %cst_44 = arith.constant 1.600000e+01 : f32
    %106 = vector.broadcast %cst_44 : f32 to vector<16x1xf32>
    %107 = arith.select %105, %37, %106 : vector<16x1xi1>, vector<16x1xf32>
    %cst_45 = arith.constant dense<0x7F800000> : vector<1xf32>
    %108 = vector.multi_reduction <minimumf>, %107, %cst_45 [0] : vector<16x1xf32> to vector<1xf32>
    %109 = vector.shape_cast %108 : vector<1xf32> to vector<1x1xf32>
    %110 = vector.broadcast %109 : vector<1x1xf32> to vector<16x1xf32>
    %111 = arith.cmpf oeq, %37, %110 : vector<16x1xf32>
    %112 = arith.ori %97, %111 : vector<16x1xi1>
    %cst_46 = arith.constant dense<true> : vector<16x1xi1>
    %113 = arith.xori %111, %cst_46 : vector<16x1xi1>
    %114 = arith.andi %99, %113 : vector<16x1xi1>
    %c5_i32 = arith.constant 5 : i32
    %cst_47 = arith.constant -3.000000e+38 : f32
    %115 = vector.broadcast %cst_47 : f32 to vector<16x1xf32>
    %116 = arith.select %114, %35, %115 : vector<16x1xi1>, vector<16x1xf32>
    %cst_48 = arith.constant dense<0xFF800000> : vector<1xf32>
    %117 = vector.multi_reduction <maximumf>, %116, %cst_48 [0] : vector<16x1xf32> to vector<1xf32>
    %118 = vector.shape_cast %117 : vector<1xf32> to vector<1x1xf32>
    %119 = vector.broadcast %118 : vector<1x1xf32> to vector<16x1xf32>
    %120 = arith.cmpf oeq, %116, %119 : vector<16x1xf32>
    %cst_49 = arith.constant 1.600000e+01 : f32
    %121 = vector.broadcast %cst_49 : f32 to vector<16x1xf32>
    %122 = arith.select %120, %37, %121 : vector<16x1xi1>, vector<16x1xf32>
    %cst_50 = arith.constant dense<0x7F800000> : vector<1xf32>
    %123 = vector.multi_reduction <minimumf>, %122, %cst_50 [0] : vector<16x1xf32> to vector<1xf32>
    %124 = vector.shape_cast %123 : vector<1xf32> to vector<1x1xf32>
    %125 = vector.broadcast %124 : vector<1x1xf32> to vector<16x1xf32>
    %126 = arith.cmpf oeq, %37, %125 : vector<16x1xf32>
    %127 = arith.ori %112, %126 : vector<16x1xi1>
    %cst_51 = arith.constant dense<true> : vector<16x1xi1>
    %128 = arith.xori %126, %cst_51 : vector<16x1xi1>
    %129 = arith.andi %114, %128 : vector<16x1xi1>
    %c6_i32 = arith.constant 6 : i32
    %cst_52 = arith.constant -3.000000e+38 : f32
    %130 = vector.broadcast %cst_52 : f32 to vector<16x1xf32>
    %131 = arith.select %129, %35, %130 : vector<16x1xi1>, vector<16x1xf32>
    %cst_53 = arith.constant dense<0xFF800000> : vector<1xf32>
    %132 = vector.multi_reduction <maximumf>, %131, %cst_53 [0] : vector<16x1xf32> to vector<1xf32>
    %133 = vector.shape_cast %132 : vector<1xf32> to vector<1x1xf32>
    %134 = vector.broadcast %133 : vector<1x1xf32> to vector<16x1xf32>
    %135 = arith.cmpf oeq, %131, %134 : vector<16x1xf32>
    %cst_54 = arith.constant 1.600000e+01 : f32
    %136 = vector.broadcast %cst_54 : f32 to vector<16x1xf32>
    %137 = arith.select %135, %37, %136 : vector<16x1xi1>, vector<16x1xf32>
    %cst_55 = arith.constant dense<0x7F800000> : vector<1xf32>
    %138 = vector.multi_reduction <minimumf>, %137, %cst_55 [0] : vector<16x1xf32> to vector<1xf32>
    %139 = vector.shape_cast %138 : vector<1xf32> to vector<1x1xf32>
    %140 = vector.broadcast %139 : vector<1x1xf32> to vector<16x1xf32>
    %141 = arith.cmpf oeq, %37, %140 : vector<16x1xf32>
    %142 = arith.ori %127, %141 : vector<16x1xi1>
    %cst_56 = arith.constant dense<true> : vector<16x1xi1>
    %143 = arith.xori %141, %cst_56 : vector<16x1xi1>
    %144 = arith.andi %129, %143 : vector<16x1xi1>
    %c7_i32 = arith.constant 7 : i32
    %cst_57 = arith.constant -3.000000e+38 : f32
    %145 = vector.broadcast %cst_57 : f32 to vector<16x1xf32>
    %146 = arith.select %144, %35, %145 : vector<16x1xi1>, vector<16x1xf32>
    %cst_58 = arith.constant dense<0xFF800000> : vector<1xf32>
    %147 = vector.multi_reduction <maximumf>, %146, %cst_58 [0] : vector<16x1xf32> to vector<1xf32>
    %148 = vector.shape_cast %147 : vector<1xf32> to vector<1x1xf32>
    %149 = vector.broadcast %148 : vector<1x1xf32> to vector<16x1xf32>
    %150 = arith.cmpf oeq, %146, %149 : vector<16x1xf32>
    %cst_59 = arith.constant 1.600000e+01 : f32
    %151 = vector.broadcast %cst_59 : f32 to vector<16x1xf32>
    %152 = arith.select %150, %37, %151 : vector<16x1xi1>, vector<16x1xf32>
    %cst_60 = arith.constant dense<0x7F800000> : vector<1xf32>
    %153 = vector.multi_reduction <minimumf>, %152, %cst_60 [0] : vector<16x1xf32> to vector<1xf32>
    %154 = vector.shape_cast %153 : vector<1xf32> to vector<1x1xf32>
    %155 = vector.broadcast %154 : vector<1x1xf32> to vector<16x1xf32>
    %156 = arith.cmpf oeq, %37, %155 : vector<16x1xf32>
    %157 = arith.ori %142, %156 : vector<16x1xi1>
    %cst_61 = arith.constant dense<true> : vector<16x1xi1>
    %158 = arith.xori %156, %cst_61 : vector<16x1xi1>
    %159 = arith.andi %144, %158 : vector<16x1xi1>
    %c8_i32 = arith.constant 8 : i32
    %cst_62 = arith.constant -3.000000e+38 : f32
    %160 = vector.broadcast %cst_62 : f32 to vector<16x1xf32>
    %161 = arith.select %159, %35, %160 : vector<16x1xi1>, vector<16x1xf32>
    %cst_63 = arith.constant dense<0xFF800000> : vector<1xf32>
    %162 = vector.multi_reduction <maximumf>, %161, %cst_63 [0] : vector<16x1xf32> to vector<1xf32>
    %163 = vector.shape_cast %162 : vector<1xf32> to vector<1x1xf32>
    %164 = vector.broadcast %163 : vector<1x1xf32> to vector<16x1xf32>
    %165 = arith.cmpf oeq, %161, %164 : vector<16x1xf32>
    %cst_64 = arith.constant 1.600000e+01 : f32
    %166 = vector.broadcast %cst_64 : f32 to vector<16x1xf32>
    %167 = arith.select %165, %37, %166 : vector<16x1xi1>, vector<16x1xf32>
    %cst_65 = arith.constant dense<0x7F800000> : vector<1xf32>
    %168 = vector.multi_reduction <minimumf>, %167, %cst_65 [0] : vector<16x1xf32> to vector<1xf32>
    %169 = vector.shape_cast %168 : vector<1xf32> to vector<1x1xf32>
    %170 = vector.broadcast %169 : vector<1x1xf32> to vector<16x1xf32>
    %171 = arith.cmpf oeq, %37, %170 : vector<16x1xf32>
    %172 = arith.ori %157, %171 : vector<16x1xi1>
    %cst_66 = arith.constant dense<true> : vector<16x1xi1>
    %173 = arith.xori %171, %cst_66 : vector<16x1xi1>
    %174 = arith.andi %159, %173 : vector<16x1xi1>
    %c9_i32 = arith.constant 9 : i32
    %cst_67 = arith.constant -3.000000e+38 : f32
    %175 = vector.broadcast %cst_67 : f32 to vector<16x1xf32>
    %176 = arith.select %174, %35, %175 : vector<16x1xi1>, vector<16x1xf32>
    %cst_68 = arith.constant dense<0xFF800000> : vector<1xf32>
    %177 = vector.multi_reduction <maximumf>, %176, %cst_68 [0] : vector<16x1xf32> to vector<1xf32>
    %178 = vector.shape_cast %177 : vector<1xf32> to vector<1x1xf32>
    %179 = vector.broadcast %178 : vector<1x1xf32> to vector<16x1xf32>
    %180 = arith.cmpf oeq, %176, %179 : vector<16x1xf32>
    %cst_69 = arith.constant 1.600000e+01 : f32
    %181 = vector.broadcast %cst_69 : f32 to vector<16x1xf32>
    %182 = arith.select %180, %37, %181 : vector<16x1xi1>, vector<16x1xf32>
    %cst_70 = arith.constant dense<0x7F800000> : vector<1xf32>
    %183 = vector.multi_reduction <minimumf>, %182, %cst_70 [0] : vector<16x1xf32> to vector<1xf32>
    %184 = vector.shape_cast %183 : vector<1xf32> to vector<1x1xf32>
    %185 = vector.broadcast %184 : vector<1x1xf32> to vector<16x1xf32>
    %186 = arith.cmpf oeq, %37, %185 : vector<16x1xf32>
    %187 = arith.ori %172, %186 : vector<16x1xi1>
    %cst_71 = arith.constant dense<true> : vector<16x1xi1>
    %188 = arith.xori %186, %cst_71 : vector<16x1xi1>
    %189 = arith.andi %174, %188 : vector<16x1xi1>
    %c10_i32 = arith.constant 10 : i32
    %cst_72 = arith.constant -3.000000e+38 : f32
    %190 = vector.broadcast %cst_72 : f32 to vector<16x1xf32>
    %191 = arith.select %189, %35, %190 : vector<16x1xi1>, vector<16x1xf32>
    %cst_73 = arith.constant dense<0xFF800000> : vector<1xf32>
    %192 = vector.multi_reduction <maximumf>, %191, %cst_73 [0] : vector<16x1xf32> to vector<1xf32>
    %193 = vector.shape_cast %192 : vector<1xf32> to vector<1x1xf32>
    %194 = vector.broadcast %193 : vector<1x1xf32> to vector<16x1xf32>
    %195 = arith.cmpf oeq, %191, %194 : vector<16x1xf32>
    %cst_74 = arith.constant 1.600000e+01 : f32
    %196 = vector.broadcast %cst_74 : f32 to vector<16x1xf32>
    %197 = arith.select %195, %37, %196 : vector<16x1xi1>, vector<16x1xf32>
    %cst_75 = arith.constant dense<0x7F800000> : vector<1xf32>
    %198 = vector.multi_reduction <minimumf>, %197, %cst_75 [0] : vector<16x1xf32> to vector<1xf32>
    %199 = vector.shape_cast %198 : vector<1xf32> to vector<1x1xf32>
    %200 = vector.broadcast %199 : vector<1x1xf32> to vector<16x1xf32>
    %201 = arith.cmpf oeq, %37, %200 : vector<16x1xf32>
    %202 = arith.ori %187, %201 : vector<16x1xi1>
    %cst_76 = arith.constant dense<true> : vector<16x1xi1>
    %203 = arith.xori %201, %cst_76 : vector<16x1xi1>
    %204 = arith.andi %189, %203 : vector<16x1xi1>
    %c11_i32 = arith.constant 11 : i32
    %cst_77 = arith.constant -3.000000e+38 : f32
    %205 = vector.broadcast %cst_77 : f32 to vector<16x1xf32>
    %206 = arith.select %204, %35, %205 : vector<16x1xi1>, vector<16x1xf32>
    %cst_78 = arith.constant dense<0xFF800000> : vector<1xf32>
    %207 = vector.multi_reduction <maximumf>, %206, %cst_78 [0] : vector<16x1xf32> to vector<1xf32>
    %208 = vector.shape_cast %207 : vector<1xf32> to vector<1x1xf32>
    %209 = vector.broadcast %208 : vector<1x1xf32> to vector<16x1xf32>
    %210 = arith.cmpf oeq, %206, %209 : vector<16x1xf32>
    %cst_79 = arith.constant 1.600000e+01 : f32
    %211 = vector.broadcast %cst_79 : f32 to vector<16x1xf32>
    %212 = arith.select %210, %37, %211 : vector<16x1xi1>, vector<16x1xf32>
    %cst_80 = arith.constant dense<0x7F800000> : vector<1xf32>
    %213 = vector.multi_reduction <minimumf>, %212, %cst_80 [0] : vector<16x1xf32> to vector<1xf32>
    %214 = vector.shape_cast %213 : vector<1xf32> to vector<1x1xf32>
    %215 = vector.broadcast %214 : vector<1x1xf32> to vector<16x1xf32>
    %216 = arith.cmpf oeq, %37, %215 : vector<16x1xf32>
    %217 = arith.ori %202, %216 : vector<16x1xi1>
    %cst_81 = arith.constant dense<true> : vector<16x1xi1>
    %218 = arith.xori %216, %cst_81 : vector<16x1xi1>
    %219 = arith.andi %204, %218 : vector<16x1xi1>
    %c12_i32 = arith.constant 12 : i32
    %cst_82 = arith.constant -3.000000e+38 : f32
    %220 = vector.broadcast %cst_82 : f32 to vector<16x1xf32>
    %221 = arith.select %219, %35, %220 : vector<16x1xi1>, vector<16x1xf32>
    %cst_83 = arith.constant dense<0xFF800000> : vector<1xf32>
    %222 = vector.multi_reduction <maximumf>, %221, %cst_83 [0] : vector<16x1xf32> to vector<1xf32>
    %223 = vector.shape_cast %222 : vector<1xf32> to vector<1x1xf32>
    %224 = vector.broadcast %223 : vector<1x1xf32> to vector<16x1xf32>
    %225 = arith.cmpf oeq, %221, %224 : vector<16x1xf32>
    %cst_84 = arith.constant 1.600000e+01 : f32
    %226 = vector.broadcast %cst_84 : f32 to vector<16x1xf32>
    %227 = arith.select %225, %37, %226 : vector<16x1xi1>, vector<16x1xf32>
    %cst_85 = arith.constant dense<0x7F800000> : vector<1xf32>
    %228 = vector.multi_reduction <minimumf>, %227, %cst_85 [0] : vector<16x1xf32> to vector<1xf32>
    %229 = vector.shape_cast %228 : vector<1xf32> to vector<1x1xf32>
    %230 = vector.broadcast %229 : vector<1x1xf32> to vector<16x1xf32>
    %231 = arith.cmpf oeq, %37, %230 : vector<16x1xf32>
    %232 = arith.ori %217, %231 : vector<16x1xi1>
    %cst_86 = arith.constant dense<true> : vector<16x1xi1>
    %233 = arith.xori %231, %cst_86 : vector<16x1xi1>
    %234 = arith.andi %219, %233 : vector<16x1xi1>
    %cst_87 = arith.constant 0.000000e+00 : f32
    %235 = vector.broadcast %cst_87 : f32 to vector<16x1xf32>
    %236 = arith.select %232, %33, %235 : vector<16x1xi1>, vector<16x1xf32>
    %237 = vector.broadcast %236 : vector<16x1xf32> to vector<16x256xf32>
    %238 = arith.mulf %19, %237 : vector<16x256xf32>
    %cst_88 = arith.constant -3.000000e+38 : f32
    %239 = vector.shape_cast %232 : vector<16x1xi1> to vector<16x1xi1>
    %240 = vector.broadcast %239 : vector<16x1xi1> to vector<16x256xi1>
    %241 = vector.broadcast %cst_88 : f32 to vector<16x256xf32>
    %242 = arith.select %240, %238, %241 : vector<16x256xi1>, vector<16x256xf32>
    %cst_89 = arith.constant dense<0xFF800000> : vector<256xf32>
    %243 = vector.multi_reduction <maximumf>, %242, %cst_89 [0] : vector<16x256xf32> to vector<256xf32>
    %244 = vector.shape_cast %243 : vector<256xf32> to vector<1x256xf32>
    %245 = arith.addf %5, %244 : vector<1x256xf32>
    %cst_90 = arith.constant dense<0.000000e+00> : vector<256xf32>
    %246 = vector.multi_reduction <add>, %238, %cst_90 [0] : vector<16x256xf32> to vector<256xf32>
    %247 = vector.shape_cast %246 : vector<256xf32> to vector<1x256xf32>
    %cst_91 = arith.constant 0.0769230798 : f32
    %248 = vector.broadcast %cst_91 : f32 to vector<1x256xf32>
    %249 = arith.mulf %247, %248 : vector<1x256xf32>
    %250 = arith.addf %6, %249 : vector<1x256xf32>
    %251 = arith.truncf %238 : vector<16x256xf32> to vector<16x256xbf16>
    %cst_92 = arith.constant dense<0.000000e+00> : vector<16x256xf32>
    %252 = tpu.matmul %3, %251, %cst_92 {dimension_numbers = #tpu.dot_dimension_numbers<[1], [0], [0], [1], [0, 0, 1, 1], [], []>} : vector<16x16xbf16>, vector<16x256xbf16>, vector<16x256xf32> -> vector<16x256xf32>
    %c0_93 = arith.constant 0 : index
    %c0_94 = arith.constant 0 : index
    %253 = vector.load %arg7[%c0_93, %c0_94] : memref<256x256xbf16, #tpu.memory_space<vmem>>, vector<256x256xbf16>
    %cst_95 = arith.constant dense<0.000000e+00> : vector<16x256xf32>
    %254 = tpu.matmul %251, %253, %cst_95 {dimension_numbers = #tpu.dot_dimension_numbers<[1], [0], [0], [1], [0, 0, 1, 1], [], []>} : vector<16x256xbf16>, vector<256x256xbf16>, vector<16x256xf32> -> vector<16x256xf32>
    %255 = arith.truncf %252 : vector<16x256xf32> to vector<16x256xbf16>
    %c0_96 = arith.constant 0 : index
    %c0_97 = arith.constant 0 : index
    %256 = vector.load %arg8[%c0_96, %c0_97] : memref<256x256xbf16, #tpu.memory_space<vmem>>, vector<256x256xbf16>
    %cst_98 = arith.constant dense<0.000000e+00> : vector<16x256xf32>
    %257 = tpu.matmul %255, %256, %cst_98 {dimension_numbers = #tpu.dot_dimension_numbers<[1], [0], [0], [1], [0, 0, 1, 1], [], []>} : vector<16x256xbf16>, vector<256x256xbf16>, vector<16x256xf32> -> vector<16x256xf32>
    %258 = arith.addf %254, %257 : vector<16x256xf32>
    %c0_99 = arith.constant 0 : index
    %c0_100 = arith.constant 0 : index
    %259 = vector.load %arg9[%c0_99, %c0_100] : memref<1x256xf32, #tpu.memory_space<vmem>>, vector<1x256xf32>
    %260 = vector.broadcast %259 : vector<1x256xf32> to vector<16x256xf32>
    %261 = arith.addf %258, %260 : vector<16x256xf32>
    %cst_101 = arith.constant 0.000000e+00 : f32
    %262 = vector.broadcast %cst_101 : f32 to vector<16x256xf32>
    %263 = arith.maximumf %261, %262 : vector<16x256xf32>
    %c0_102 = arith.constant 0 : index
    %c0_103 = arith.constant 0 : index
    %264 = vector.load %arg10[%c0_102, %c0_103] : memref<1x256xf32, #tpu.memory_space<vmem>>, vector<1x256xf32>
    %265 = vector.broadcast %264 : vector<1x256xf32> to vector<16x256xf32>
    %266 = arith.mulf %263, %265 : vector<16x256xf32>
    %cst_104 = arith.constant dense<0.000000e+00> : vector<16xf32>
    %267 = vector.multi_reduction <add>, %266, %cst_104 [1] : vector<16x256xf32> to vector<16xf32>
    %268 = vector.shape_cast %267 : vector<16xf32> to vector<16x1xf32>
    %269 = arith.mulf %264, %264 : vector<1x256xf32>
    %270 = vector.shape_cast %269 : vector<1x256xf32> to vector<1x1x256xf32>
    %cst_105 = arith.constant dense<0.000000e+00> : vector<1xf32>
    %271 = vector.multi_reduction <add>, %270, %cst_105 [1, 2] : vector<1x1x256xf32> to vector<1xf32>
    %272 = vector.shape_cast %271 : vector<1xf32> to vector<1x1x1xf32>
    %273 = vector.extract %272[0, 0, 0] : f32 from vector<1x1x1xf32>
    %274 = math.rsqrt %273 : f32
    %275 = vector.broadcast %274 : f32 to vector<16x1xf32>
    %276 = arith.mulf %268, %275 : vector<16x1xf32>
    %277 = math.tanh %276 : vector<16x1xf32>
    %cst_106 = arith.constant -3.000000e+38 : f32
    %278 = vector.broadcast %cst_106 : f32 to vector<16x1xf32>
    %279 = arith.select %232, %277, %278 : vector<16x1xi1>, vector<16x1xf32>
    %280 = tpu.iota {dimensions = array<i32: 0>} : vector<16x1xi32>
    %281 = arith.sitofp %280 : vector<16x1xi32> to vector<16x1xf32>
    %false_107 = arith.constant false
    %282 = vector.broadcast %false_107 : i1 to vector<16x1xi1>
    %true_108 = arith.constant true
    %283 = vector.broadcast %true_108 : i1 to vector<16x1xi1>
    %c0_i32_109 = arith.constant 0 : i32
    %cst_110 = arith.constant -3.000000e+38 : f32
    %284 = vector.broadcast %cst_110 : f32 to vector<16x1xf32>
    %285 = arith.select %283, %279, %284 : vector<16x1xi1>, vector<16x1xf32>
    %cst_111 = arith.constant dense<0xFF800000> : vector<1xf32>
    %286 = vector.multi_reduction <maximumf>, %285, %cst_111 [0] : vector<16x1xf32> to vector<1xf32>
    %287 = vector.shape_cast %286 : vector<1xf32> to vector<1x1xf32>
    %288 = vector.broadcast %287 : vector<1x1xf32> to vector<16x1xf32>
    %289 = arith.cmpf oeq, %285, %288 : vector<16x1xf32>
    %cst_112 = arith.constant 1.600000e+01 : f32
    %290 = vector.broadcast %cst_112 : f32 to vector<16x1xf32>
    %291 = arith.select %289, %281, %290 : vector<16x1xi1>, vector<16x1xf32>
    %cst_113 = arith.constant dense<0x7F800000> : vector<1xf32>
    %292 = vector.multi_reduction <minimumf>, %291, %cst_113 [0] : vector<16x1xf32> to vector<1xf32>
    %293 = vector.shape_cast %292 : vector<1xf32> to vector<1x1xf32>
    %294 = vector.broadcast %293 : vector<1x1xf32> to vector<16x1xf32>
    %295 = arith.cmpf oeq, %281, %294 : vector<16x1xf32>
    %296 = arith.ori %282, %295 : vector<16x1xi1>
    %cst_114 = arith.constant dense<true> : vector<16x1xi1>
    %297 = arith.xori %295, %cst_114 : vector<16x1xi1>
    %298 = arith.andi %283, %297 : vector<16x1xi1>
    %c1_i32_115 = arith.constant 1 : i32
    %cst_116 = arith.constant -3.000000e+38 : f32
    %299 = vector.broadcast %cst_116 : f32 to vector<16x1xf32>
    %300 = arith.select %298, %279, %299 : vector<16x1xi1>, vector<16x1xf32>
    %cst_117 = arith.constant dense<0xFF800000> : vector<1xf32>
    %301 = vector.multi_reduction <maximumf>, %300, %cst_117 [0] : vector<16x1xf32> to vector<1xf32>
    %302 = vector.shape_cast %301 : vector<1xf32> to vector<1x1xf32>
    %303 = vector.broadcast %302 : vector<1x1xf32> to vector<16x1xf32>
    %304 = arith.cmpf oeq, %300, %303 : vector<16x1xf32>
    %cst_118 = arith.constant 1.600000e+01 : f32
    %305 = vector.broadcast %cst_118 : f32 to vector<16x1xf32>
    %306 = arith.select %304, %281, %305 : vector<16x1xi1>, vector<16x1xf32>
    %cst_119 = arith.constant dense<0x7F800000> : vector<1xf32>
    %307 = vector.multi_reduction <minimumf>, %306, %cst_119 [0] : vector<16x1xf32> to vector<1xf32>
    %308 = vector.shape_cast %307 : vector<1xf32> to vector<1x1xf32>
    %309 = vector.broadcast %308 : vector<1x1xf32> to vector<16x1xf32>
    %310 = arith.cmpf oeq, %281, %309 : vector<16x1xf32>
    %311 = arith.ori %296, %310 : vector<16x1xi1>
    %cst_120 = arith.constant dense<true> : vector<16x1xi1>
    %312 = arith.xori %310, %cst_120 : vector<16x1xi1>
    %313 = arith.andi %298, %312 : vector<16x1xi1>
    %c2_i32_121 = arith.constant 2 : i32
    %cst_122 = arith.constant -3.000000e+38 : f32
    %314 = vector.broadcast %cst_122 : f32 to vector<16x1xf32>
    %315 = arith.select %313, %279, %314 : vector<16x1xi1>, vector<16x1xf32>
    %cst_123 = arith.constant dense<0xFF800000> : vector<1xf32>
    %316 = vector.multi_reduction <maximumf>, %315, %cst_123 [0] : vector<16x1xf32> to vector<1xf32>
    %317 = vector.shape_cast %316 : vector<1xf32> to vector<1x1xf32>
    %318 = vector.broadcast %317 : vector<1x1xf32> to vector<16x1xf32>
    %319 = arith.cmpf oeq, %315, %318 : vector<16x1xf32>
    %cst_124 = arith.constant 1.600000e+01 : f32
    %320 = vector.broadcast %cst_124 : f32 to vector<16x1xf32>
    %321 = arith.select %319, %281, %320 : vector<16x1xi1>, vector<16x1xf32>
    %cst_125 = arith.constant dense<0x7F800000> : vector<1xf32>
    %322 = vector.multi_reduction <minimumf>, %321, %cst_125 [0] : vector<16x1xf32> to vector<1xf32>
    %323 = vector.shape_cast %322 : vector<1xf32> to vector<1x1xf32>
    %324 = vector.broadcast %323 : vector<1x1xf32> to vector<16x1xf32>
    %325 = arith.cmpf oeq, %281, %324 : vector<16x1xf32>
    %326 = arith.ori %311, %325 : vector<16x1xi1>
    %cst_126 = arith.constant dense<true> : vector<16x1xi1>
    %327 = arith.xori %325, %cst_126 : vector<16x1xi1>
    %328 = arith.andi %313, %327 : vector<16x1xi1>
    %c3_i32_127 = arith.constant 3 : i32
    %cst_128 = arith.constant -3.000000e+38 : f32
    %329 = vector.broadcast %cst_128 : f32 to vector<16x1xf32>
    %330 = arith.select %328, %279, %329 : vector<16x1xi1>, vector<16x1xf32>
    %cst_129 = arith.constant dense<0xFF800000> : vector<1xf32>
    %331 = vector.multi_reduction <maximumf>, %330, %cst_129 [0] : vector<16x1xf32> to vector<1xf32>
    %332 = vector.shape_cast %331 : vector<1xf32> to vector<1x1xf32>
    %333 = vector.broadcast %332 : vector<1x1xf32> to vector<16x1xf32>
    %334 = arith.cmpf oeq, %330, %333 : vector<16x1xf32>
    %cst_130 = arith.constant 1.600000e+01 : f32
    %335 = vector.broadcast %cst_130 : f32 to vector<16x1xf32>
    %336 = arith.select %334, %281, %335 : vector<16x1xi1>, vector<16x1xf32>
    %cst_131 = arith.constant dense<0x7F800000> : vector<1xf32>
    %337 = vector.multi_reduction <minimumf>, %336, %cst_131 [0] : vector<16x1xf32> to vector<1xf32>
    %338 = vector.shape_cast %337 : vector<1xf32> to vector<1x1xf32>
    %339 = vector.broadcast %338 : vector<1x1xf32> to vector<16x1xf32>
    %340 = arith.cmpf oeq, %281, %339 : vector<16x1xf32>
    %341 = arith.ori %326, %340 : vector<16x1xi1>
    %cst_132 = arith.constant dense<true> : vector<16x1xi1>
    %342 = arith.xori %340, %cst_132 : vector<16x1xi1>
    %343 = arith.andi %328, %342 : vector<16x1xi1>
    %c4_i32_133 = arith.constant 4 : i32
    %cst_134 = arith.constant -3.000000e+38 : f32
    %344 = vector.broadcast %cst_134 : f32 to vector<16x1xf32>
    %345 = arith.select %343, %279, %344 : vector<16x1xi1>, vector<16x1xf32>
    %cst_135 = arith.constant dense<0xFF800000> : vector<1xf32>
    %346 = vector.multi_reduction <maximumf>, %345, %cst_135 [0] : vector<16x1xf32> to vector<1xf32>
    %347 = vector.shape_cast %346 : vector<1xf32> to vector<1x1xf32>
    %348 = vector.broadcast %347 : vector<1x1xf32> to vector<16x1xf32>
    %349 = arith.cmpf oeq, %345, %348 : vector<16x1xf32>
    %cst_136 = arith.constant 1.600000e+01 : f32
    %350 = vector.broadcast %cst_136 : f32 to vector<16x1xf32>
    %351 = arith.select %349, %281, %350 : vector<16x1xi1>, vector<16x1xf32>
    %cst_137 = arith.constant dense<0x7F800000> : vector<1xf32>
    %352 = vector.multi_reduction <minimumf>, %351, %cst_137 [0] : vector<16x1xf32> to vector<1xf32>
    %353 = vector.shape_cast %352 : vector<1xf32> to vector<1x1xf32>
    %354 = vector.broadcast %353 : vector<1x1xf32> to vector<16x1xf32>
    %355 = arith.cmpf oeq, %281, %354 : vector<16x1xf32>
    %356 = arith.ori %341, %355 : vector<16x1xi1>
    %cst_138 = arith.constant dense<true> : vector<16x1xi1>
    %357 = arith.xori %355, %cst_138 : vector<16x1xi1>
    %358 = arith.andi %343, %357 : vector<16x1xi1>
    %c5_i32_139 = arith.constant 5 : i32
    %cst_140 = arith.constant -3.000000e+38 : f32
    %359 = vector.broadcast %cst_140 : f32 to vector<16x1xf32>
    %360 = arith.select %358, %279, %359 : vector<16x1xi1>, vector<16x1xf32>
    %cst_141 = arith.constant dense<0xFF800000> : vector<1xf32>
    %361 = vector.multi_reduction <maximumf>, %360, %cst_141 [0] : vector<16x1xf32> to vector<1xf32>
    %362 = vector.shape_cast %361 : vector<1xf32> to vector<1x1xf32>
    %363 = vector.broadcast %362 : vector<1x1xf32> to vector<16x1xf32>
    %364 = arith.cmpf oeq, %360, %363 : vector<16x1xf32>
    %cst_142 = arith.constant 1.600000e+01 : f32
    %365 = vector.broadcast %cst_142 : f32 to vector<16x1xf32>
    %366 = arith.select %364, %281, %365 : vector<16x1xi1>, vector<16x1xf32>
    %cst_143 = arith.constant dense<0x7F800000> : vector<1xf32>
    %367 = vector.multi_reduction <minimumf>, %366, %cst_143 [0] : vector<16x1xf32> to vector<1xf32>
    %368 = vector.shape_cast %367 : vector<1xf32> to vector<1x1xf32>
    %369 = vector.broadcast %368 : vector<1x1xf32> to vector<16x1xf32>
    %370 = arith.cmpf oeq, %281, %369 : vector<16x1xf32>
    %371 = arith.ori %356, %370 : vector<16x1xi1>
    %cst_144 = arith.constant dense<true> : vector<16x1xi1>
    %372 = arith.xori %370, %cst_144 : vector<16x1xi1>
    %373 = arith.andi %358, %372 : vector<16x1xi1>
    %c6_i32_145 = arith.constant 6 : i32
    %cst_146 = arith.constant -3.000000e+38 : f32
    %374 = vector.broadcast %cst_146 : f32 to vector<16x1xf32>
    %375 = arith.select %373, %279, %374 : vector<16x1xi1>, vector<16x1xf32>
    %cst_147 = arith.constant dense<0xFF800000> : vector<1xf32>
    %376 = vector.multi_reduction <maximumf>, %375, %cst_147 [0] : vector<16x1xf32> to vector<1xf32>
    %377 = vector.shape_cast %376 : vector<1xf32> to vector<1x1xf32>
    %378 = vector.broadcast %377 : vector<1x1xf32> to vector<16x1xf32>
    %379 = arith.cmpf oeq, %375, %378 : vector<16x1xf32>
    %cst_148 = arith.constant 1.600000e+01 : f32
    %380 = vector.broadcast %cst_148 : f32 to vector<16x1xf32>
    %381 = arith.select %379, %281, %380 : vector<16x1xi1>, vector<16x1xf32>
    %cst_149 = arith.constant dense<0x7F800000> : vector<1xf32>
    %382 = vector.multi_reduction <minimumf>, %381, %cst_149 [0] : vector<16x1xf32> to vector<1xf32>
    %383 = vector.shape_cast %382 : vector<1xf32> to vector<1x1xf32>
    %384 = vector.broadcast %383 : vector<1x1xf32> to vector<16x1xf32>
    %385 = arith.cmpf oeq, %281, %384 : vector<16x1xf32>
    %386 = arith.ori %371, %385 : vector<16x1xi1>
    %cst_150 = arith.constant dense<true> : vector<16x1xi1>
    %387 = arith.xori %385, %cst_150 : vector<16x1xi1>
    %388 = arith.andi %373, %387 : vector<16x1xi1>
    %c7_i32_151 = arith.constant 7 : i32
    %cst_152 = arith.constant -3.000000e+38 : f32
    %389 = vector.broadcast %cst_152 : f32 to vector<16x1xf32>
    %390 = arith.select %388, %279, %389 : vector<16x1xi1>, vector<16x1xf32>
    %cst_153 = arith.constant dense<0xFF800000> : vector<1xf32>
    %391 = vector.multi_reduction <maximumf>, %390, %cst_153 [0] : vector<16x1xf32> to vector<1xf32>
    %392 = vector.shape_cast %391 : vector<1xf32> to vector<1x1xf32>
    %393 = vector.broadcast %392 : vector<1x1xf32> to vector<16x1xf32>
    %394 = arith.cmpf oeq, %390, %393 : vector<16x1xf32>
    %cst_154 = arith.constant 1.600000e+01 : f32
    %395 = vector.broadcast %cst_154 : f32 to vector<16x1xf32>
    %396 = arith.select %394, %281, %395 : vector<16x1xi1>, vector<16x1xf32>
    %cst_155 = arith.constant dense<0x7F800000> : vector<1xf32>
    %397 = vector.multi_reduction <minimumf>, %396, %cst_155 [0] : vector<16x1xf32> to vector<1xf32>
    %398 = vector.shape_cast %397 : vector<1xf32> to vector<1x1xf32>
    %399 = vector.broadcast %398 : vector<1x1xf32> to vector<16x1xf32>
    %400 = arith.cmpf oeq, %281, %399 : vector<16x1xf32>
    %401 = arith.ori %386, %400 : vector<16x1xi1>
    %cst_156 = arith.constant dense<true> : vector<16x1xi1>
    %402 = arith.xori %400, %cst_156 : vector<16x1xi1>
    %403 = arith.andi %388, %402 : vector<16x1xi1>
    %c8_i32_157 = arith.constant 8 : i32
    %cst_158 = arith.constant -3.000000e+38 : f32
    %404 = vector.broadcast %cst_158 : f32 to vector<16x1xf32>
    %405 = arith.select %403, %279, %404 : vector<16x1xi1>, vector<16x1xf32>
    %cst_159 = arith.constant dense<0xFF800000> : vector<1xf32>
    %406 = vector.multi_reduction <maximumf>, %405, %cst_159 [0] : vector<16x1xf32> to vector<1xf32>
    %407 = vector.shape_cast %406 : vector<1xf32> to vector<1x1xf32>
    %408 = vector.broadcast %407 : vector<1x1xf32> to vector<16x1xf32>
    %409 = arith.cmpf oeq, %405, %408 : vector<16x1xf32>
    %cst_160 = arith.constant 1.600000e+01 : f32
    %410 = vector.broadcast %cst_160 : f32 to vector<16x1xf32>
    %411 = arith.select %409, %281, %410 : vector<16x1xi1>, vector<16x1xf32>
    %cst_161 = arith.constant dense<0x7F800000> : vector<1xf32>
    %412 = vector.multi_reduction <minimumf>, %411, %cst_161 [0] : vector<16x1xf32> to vector<1xf32>
    %413 = vector.shape_cast %412 : vector<1xf32> to vector<1x1xf32>
    %414 = vector.broadcast %413 : vector<1x1xf32> to vector<16x1xf32>
    %415 = arith.cmpf oeq, %281, %414 : vector<16x1xf32>
    %416 = arith.ori %401, %415 : vector<16x1xi1>
    %cst_162 = arith.constant dense<true> : vector<16x1xi1>
    %417 = arith.xori %415, %cst_162 : vector<16x1xi1>
    %418 = arith.andi %403, %417 : vector<16x1xi1>
    %c9_i32_163 = arith.constant 9 : i32
    %cst_164 = arith.constant -3.000000e+38 : f32
    %419 = vector.broadcast %cst_164 : f32 to vector<16x1xf32>
    %420 = arith.select %418, %279, %419 : vector<16x1xi1>, vector<16x1xf32>
    %cst_165 = arith.constant dense<0xFF800000> : vector<1xf32>
    %421 = vector.multi_reduction <maximumf>, %420, %cst_165 [0] : vector<16x1xf32> to vector<1xf32>
    %422 = vector.shape_cast %421 : vector<1xf32> to vector<1x1xf32>
    %423 = vector.broadcast %422 : vector<1x1xf32> to vector<16x1xf32>
    %424 = arith.cmpf oeq, %420, %423 : vector<16x1xf32>
    %cst_166 = arith.constant 1.600000e+01 : f32
    %425 = vector.broadcast %cst_166 : f32 to vector<16x1xf32>
    %426 = arith.select %424, %281, %425 : vector<16x1xi1>, vector<16x1xf32>
    %cst_167 = arith.constant dense<0x7F800000> : vector<1xf32>
    %427 = vector.multi_reduction <minimumf>, %426, %cst_167 [0] : vector<16x1xf32> to vector<1xf32>
    %428 = vector.shape_cast %427 : vector<1xf32> to vector<1x1xf32>
    %429 = vector.broadcast %428 : vector<1x1xf32> to vector<16x1xf32>
    %430 = arith.cmpf oeq, %281, %429 : vector<16x1xf32>
    %431 = arith.ori %416, %430 : vector<16x1xi1>
    %cst_168 = arith.constant dense<true> : vector<16x1xi1>
    %432 = arith.xori %430, %cst_168 : vector<16x1xi1>
    %433 = arith.andi %418, %432 : vector<16x1xi1>
    %c10_i32_169 = arith.constant 10 : i32
    %cst_170 = arith.constant -3.000000e+38 : f32
    %434 = vector.broadcast %cst_170 : f32 to vector<16x1xf32>
    %435 = arith.select %433, %279, %434 : vector<16x1xi1>, vector<16x1xf32>
    %cst_171 = arith.constant dense<0xFF800000> : vector<1xf32>
    %436 = vector.multi_reduction <maximumf>, %435, %cst_171 [0] : vector<16x1xf32> to vector<1xf32>
    %437 = vector.shape_cast %436 : vector<1xf32> to vector<1x1xf32>
    %438 = vector.broadcast %437 : vector<1x1xf32> to vector<16x1xf32>
    %439 = arith.cmpf oeq, %435, %438 : vector<16x1xf32>
    %cst_172 = arith.constant 1.600000e+01 : f32
    %440 = vector.broadcast %cst_172 : f32 to vector<16x1xf32>
    %441 = arith.select %439, %281, %440 : vector<16x1xi1>, vector<16x1xf32>
    %cst_173 = arith.constant dense<0x7F800000> : vector<1xf32>
    %442 = vector.multi_reduction <minimumf>, %441, %cst_173 [0] : vector<16x1xf32> to vector<1xf32>
    %443 = vector.shape_cast %442 : vector<1xf32> to vector<1x1xf32>
    %444 = vector.broadcast %443 : vector<1x1xf32> to vector<16x1xf32>
    %445 = arith.cmpf oeq, %281, %444 : vector<16x1xf32>
    %446 = arith.ori %431, %445 : vector<16x1xi1>
    %cst_174 = arith.constant dense<true> : vector<16x1xi1>
    %447 = arith.xori %445, %cst_174 : vector<16x1xi1>
    %448 = arith.andi %433, %447 : vector<16x1xi1>
    %cst_175 = arith.constant 0.000000e+00 : f32
    %449 = vector.broadcast %cst_175 : f32 to vector<16x1xf32>
    %450 = arith.select %446, %277, %449 : vector<16x1xi1>, vector<16x1xf32>
    %451 = vector.broadcast %450 : vector<16x1xf32> to vector<16x256xf32>
    %452 = arith.mulf %263, %451 : vector<16x256xf32>
    %cst_176 = arith.constant -3.000000e+38 : f32
    %453 = vector.shape_cast %446 : vector<16x1xi1> to vector<16x1xi1>
    %454 = vector.broadcast %453 : vector<16x1xi1> to vector<16x256xi1>
    %455 = vector.broadcast %cst_176 : f32 to vector<16x256xf32>
    %456 = arith.select %454, %452, %455 : vector<16x256xi1>, vector<16x256xf32>
    %cst_177 = arith.constant dense<0xFF800000> : vector<256xf32>
    %457 = vector.multi_reduction <maximumf>, %456, %cst_177 [0] : vector<16x256xf32> to vector<256xf32>
    %458 = vector.shape_cast %457 : vector<256xf32> to vector<1x256xf32>
    %459 = arith.addf %245, %458 : vector<1x256xf32>
    %cst_178 = arith.constant dense<0.000000e+00> : vector<256xf32>
    %460 = vector.multi_reduction <add>, %452, %cst_178 [0] : vector<16x256xf32> to vector<256xf32>
    %461 = vector.shape_cast %460 : vector<256xf32> to vector<1x256xf32>
    %cst_179 = arith.constant 0.0909090936 : f32
    %462 = vector.broadcast %cst_179 : f32 to vector<1x256xf32>
    %463 = arith.mulf %461, %462 : vector<1x256xf32>
    %464 = arith.addf %250, %463 : vector<1x256xf32>
    %465 = arith.truncf %452 : vector<16x256xf32> to vector<16x256xbf16>
    %cst_180 = arith.constant dense<0.000000e+00> : vector<16x256xf32>
    %466 = tpu.matmul %3, %465, %cst_180 {dimension_numbers = #tpu.dot_dimension_numbers<[1], [0], [0], [1], [0, 0, 1, 1], [], []>} : vector<16x16xbf16>, vector<16x256xbf16>, vector<16x256xf32> -> vector<16x256xf32>
    %c0_181 = arith.constant 0 : index
    %c0_182 = arith.constant 0 : index
    %467 = vector.load %arg11[%c0_181, %c0_182] : memref<256x256xbf16, #tpu.memory_space<vmem>>, vector<256x256xbf16>
    %cst_183 = arith.constant dense<0.000000e+00> : vector<16x256xf32>
    %468 = tpu.matmul %465, %467, %cst_183 {dimension_numbers = #tpu.dot_dimension_numbers<[1], [0], [0], [1], [0, 0, 1, 1], [], []>} : vector<16x256xbf16>, vector<256x256xbf16>, vector<16x256xf32> -> vector<16x256xf32>
    %469 = arith.truncf %466 : vector<16x256xf32> to vector<16x256xbf16>
    %c0_184 = arith.constant 0 : index
    %c0_185 = arith.constant 0 : index
    %470 = vector.load %arg12[%c0_184, %c0_185] : memref<256x256xbf16, #tpu.memory_space<vmem>>, vector<256x256xbf16>
    %cst_186 = arith.constant dense<0.000000e+00> : vector<16x256xf32>
    %471 = tpu.matmul %469, %470, %cst_186 {dimension_numbers = #tpu.dot_dimension_numbers<[1], [0], [0], [1], [0, 0, 1, 1], [], []>} : vector<16x256xbf16>, vector<256x256xbf16>, vector<16x256xf32> -> vector<16x256xf32>
    %472 = arith.addf %468, %471 : vector<16x256xf32>
    %c0_187 = arith.constant 0 : index
    %c0_188 = arith.constant 0 : index
    %473 = vector.load %arg13[%c0_187, %c0_188] : memref<1x256xf32, #tpu.memory_space<vmem>>, vector<1x256xf32>
    %474 = vector.broadcast %473 : vector<1x256xf32> to vector<16x256xf32>
    %475 = arith.addf %472, %474 : vector<16x256xf32>
    %cst_189 = arith.constant 0.000000e+00 : f32
    %476 = vector.broadcast %cst_189 : f32 to vector<16x256xf32>
    %477 = arith.maximumf %475, %476 : vector<16x256xf32>
    %c0_190 = arith.constant 0 : index
    %c0_191 = arith.constant 0 : index
    %478 = vector.load %arg14[%c0_190, %c0_191] : memref<1x256xf32, #tpu.memory_space<vmem>>, vector<1x256xf32>
    %479 = vector.broadcast %478 : vector<1x256xf32> to vector<16x256xf32>
    %480 = arith.mulf %477, %479 : vector<16x256xf32>
    %cst_192 = arith.constant dense<0.000000e+00> : vector<16xf32>
    %481 = vector.multi_reduction <add>, %480, %cst_192 [1] : vector<16x256xf32> to vector<16xf32>
    %482 = vector.shape_cast %481 : vector<16xf32> to vector<16x1xf32>
    %483 = arith.mulf %478, %478 : vector<1x256xf32>
    %484 = vector.shape_cast %483 : vector<1x256xf32> to vector<1x1x256xf32>
    %cst_193 = arith.constant dense<0.000000e+00> : vector<1xf32>
    %485 = vector.multi_reduction <add>, %484, %cst_193 [1, 2] : vector<1x1x256xf32> to vector<1xf32>
    %486 = vector.shape_cast %485 : vector<1xf32> to vector<1x1x1xf32>
    %487 = vector.extract %486[0, 0, 0] : f32 from vector<1x1x1xf32>
    %488 = math.rsqrt %487 : f32
    %489 = vector.broadcast %488 : f32 to vector<16x1xf32>
    %490 = arith.mulf %482, %489 : vector<16x1xf32>
    %491 = math.tanh %490 : vector<16x1xf32>
    %cst_194 = arith.constant -3.000000e+38 : f32
    %492 = vector.broadcast %cst_194 : f32 to vector<16x1xf32>
    %493 = arith.select %446, %491, %492 : vector<16x1xi1>, vector<16x1xf32>
    %494 = tpu.iota {dimensions = array<i32: 0>} : vector<16x1xi32>
    %495 = arith.sitofp %494 : vector<16x1xi32> to vector<16x1xf32>
    %false_195 = arith.constant false
    %496 = vector.broadcast %false_195 : i1 to vector<16x1xi1>
    %true_196 = arith.constant true
    %497 = vector.broadcast %true_196 : i1 to vector<16x1xi1>
    %c0_i32_197 = arith.constant 0 : i32
    %cst_198 = arith.constant -3.000000e+38 : f32
    %498 = vector.broadcast %cst_198 : f32 to vector<16x1xf32>
    %499 = arith.select %497, %493, %498 : vector<16x1xi1>, vector<16x1xf32>
    %cst_199 = arith.constant dense<0xFF800000> : vector<1xf32>
    %500 = vector.multi_reduction <maximumf>, %499, %cst_199 [0] : vector<16x1xf32> to vector<1xf32>
    %501 = vector.shape_cast %500 : vector<1xf32> to vector<1x1xf32>
    %502 = vector.broadcast %501 : vector<1x1xf32> to vector<16x1xf32>
    %503 = arith.cmpf oeq, %499, %502 : vector<16x1xf32>
    %cst_200 = arith.constant 1.600000e+01 : f32
    %504 = vector.broadcast %cst_200 : f32 to vector<16x1xf32>
    %505 = arith.select %503, %495, %504 : vector<16x1xi1>, vector<16x1xf32>
    %cst_201 = arith.constant dense<0x7F800000> : vector<1xf32>
    %506 = vector.multi_reduction <minimumf>, %505, %cst_201 [0] : vector<16x1xf32> to vector<1xf32>
    %507 = vector.shape_cast %506 : vector<1xf32> to vector<1x1xf32>
    %508 = vector.broadcast %507 : vector<1x1xf32> to vector<16x1xf32>
    %509 = arith.cmpf oeq, %495, %508 : vector<16x1xf32>
    %510 = arith.ori %496, %509 : vector<16x1xi1>
    %cst_202 = arith.constant dense<true> : vector<16x1xi1>
    %511 = arith.xori %509, %cst_202 : vector<16x1xi1>
    %512 = arith.andi %497, %511 : vector<16x1xi1>
    %c1_i32_203 = arith.constant 1 : i32
    %cst_204 = arith.constant -3.000000e+38 : f32
    %513 = vector.broadcast %cst_204 : f32 to vector<16x1xf32>
    %514 = arith.select %512, %493, %513 : vector<16x1xi1>, vector<16x1xf32>
    %cst_205 = arith.constant dense<0xFF800000> : vector<1xf32>
    %515 = vector.multi_reduction <maximumf>, %514, %cst_205 [0] : vector<16x1xf32> to vector<1xf32>
    %516 = vector.shape_cast %515 : vector<1xf32> to vector<1x1xf32>
    %517 = vector.broadcast %516 : vector<1x1xf32> to vector<16x1xf32>
    %518 = arith.cmpf oeq, %514, %517 : vector<16x1xf32>
    %cst_206 = arith.constant 1.600000e+01 : f32
    %519 = vector.broadcast %cst_206 : f32 to vector<16x1xf32>
    %520 = arith.select %518, %495, %519 : vector<16x1xi1>, vector<16x1xf32>
    %cst_207 = arith.constant dense<0x7F800000> : vector<1xf32>
    %521 = vector.multi_reduction <minimumf>, %520, %cst_207 [0] : vector<16x1xf32> to vector<1xf32>
    %522 = vector.shape_cast %521 : vector<1xf32> to vector<1x1xf32>
    %523 = vector.broadcast %522 : vector<1x1xf32> to vector<16x1xf32>
    %524 = arith.cmpf oeq, %495, %523 : vector<16x1xf32>
    %525 = arith.ori %510, %524 : vector<16x1xi1>
    %cst_208 = arith.constant dense<true> : vector<16x1xi1>
    %526 = arith.xori %524, %cst_208 : vector<16x1xi1>
    %527 = arith.andi %512, %526 : vector<16x1xi1>
    %c2_i32_209 = arith.constant 2 : i32
    %cst_210 = arith.constant -3.000000e+38 : f32
    %528 = vector.broadcast %cst_210 : f32 to vector<16x1xf32>
    %529 = arith.select %527, %493, %528 : vector<16x1xi1>, vector<16x1xf32>
    %cst_211 = arith.constant dense<0xFF800000> : vector<1xf32>
    %530 = vector.multi_reduction <maximumf>, %529, %cst_211 [0] : vector<16x1xf32> to vector<1xf32>
    %531 = vector.shape_cast %530 : vector<1xf32> to vector<1x1xf32>
    %532 = vector.broadcast %531 : vector<1x1xf32> to vector<16x1xf32>
    %533 = arith.cmpf oeq, %529, %532 : vector<16x1xf32>
    %cst_212 = arith.constant 1.600000e+01 : f32
    %534 = vector.broadcast %cst_212 : f32 to vector<16x1xf32>
    %535 = arith.select %533, %495, %534 : vector<16x1xi1>, vector<16x1xf32>
    %cst_213 = arith.constant dense<0x7F800000> : vector<1xf32>
    %536 = vector.multi_reduction <minimumf>, %535, %cst_213 [0] : vector<16x1xf32> to vector<1xf32>
    %537 = vector.shape_cast %536 : vector<1xf32> to vector<1x1xf32>
    %538 = vector.broadcast %537 : vector<1x1xf32> to vector<16x1xf32>
    %539 = arith.cmpf oeq, %495, %538 : vector<16x1xf32>
    %540 = arith.ori %525, %539 : vector<16x1xi1>
    %cst_214 = arith.constant dense<true> : vector<16x1xi1>
    %541 = arith.xori %539, %cst_214 : vector<16x1xi1>
    %542 = arith.andi %527, %541 : vector<16x1xi1>
    %c3_i32_215 = arith.constant 3 : i32
    %cst_216 = arith.constant -3.000000e+38 : f32
    %543 = vector.broadcast %cst_216 : f32 to vector<16x1xf32>
    %544 = arith.select %542, %493, %543 : vector<16x1xi1>, vector<16x1xf32>
    %cst_217 = arith.constant dense<0xFF800000> : vector<1xf32>
    %545 = vector.multi_reduction <maximumf>, %544, %cst_217 [0] : vector<16x1xf32> to vector<1xf32>
    %546 = vector.shape_cast %545 : vector<1xf32> to vector<1x1xf32>
    %547 = vector.broadcast %546 : vector<1x1xf32> to vector<16x1xf32>
    %548 = arith.cmpf oeq, %544, %547 : vector<16x1xf32>
    %cst_218 = arith.constant 1.600000e+01 : f32
    %549 = vector.broadcast %cst_218 : f32 to vector<16x1xf32>
    %550 = arith.select %548, %495, %549 : vector<16x1xi1>, vector<16x1xf32>
    %cst_219 = arith.constant dense<0x7F800000> : vector<1xf32>
    %551 = vector.multi_reduction <minimumf>, %550, %cst_219 [0] : vector<16x1xf32> to vector<1xf32>
    %552 = vector.shape_cast %551 : vector<1xf32> to vector<1x1xf32>
    %553 = vector.broadcast %552 : vector<1x1xf32> to vector<16x1xf32>
    %554 = arith.cmpf oeq, %495, %553 : vector<16x1xf32>
    %555 = arith.ori %540, %554 : vector<16x1xi1>
    %cst_220 = arith.constant dense<true> : vector<16x1xi1>
    %556 = arith.xori %554, %cst_220 : vector<16x1xi1>
    %557 = arith.andi %542, %556 : vector<16x1xi1>
    %c4_i32_221 = arith.constant 4 : i32
    %cst_222 = arith.constant -3.000000e+38 : f32
    %558 = vector.broadcast %cst_222 : f32 to vector<16x1xf32>
    %559 = arith.select %557, %493, %558 : vector<16x1xi1>, vector<16x1xf32>
    %cst_223 = arith.constant dense<0xFF800000> : vector<1xf32>
    %560 = vector.multi_reduction <maximumf>, %559, %cst_223 [0] : vector<16x1xf32> to vector<1xf32>
    %561 = vector.shape_cast %560 : vector<1xf32> to vector<1x1xf32>
    %562 = vector.broadcast %561 : vector<1x1xf32> to vector<16x1xf32>
    %563 = arith.cmpf oeq, %559, %562 : vector<16x1xf32>
    %cst_224 = arith.constant 1.600000e+01 : f32
    %564 = vector.broadcast %cst_224 : f32 to vector<16x1xf32>
    %565 = arith.select %563, %495, %564 : vector<16x1xi1>, vector<16x1xf32>
    %cst_225 = arith.constant dense<0x7F800000> : vector<1xf32>
    %566 = vector.multi_reduction <minimumf>, %565, %cst_225 [0] : vector<16x1xf32> to vector<1xf32>
    %567 = vector.shape_cast %566 : vector<1xf32> to vector<1x1xf32>
    %568 = vector.broadcast %567 : vector<1x1xf32> to vector<16x1xf32>
    %569 = arith.cmpf oeq, %495, %568 : vector<16x1xf32>
    %570 = arith.ori %555, %569 : vector<16x1xi1>
    %cst_226 = arith.constant dense<true> : vector<16x1xi1>
    %571 = arith.xori %569, %cst_226 : vector<16x1xi1>
    %572 = arith.andi %557, %571 : vector<16x1xi1>
    %c5_i32_227 = arith.constant 5 : i32
    %cst_228 = arith.constant -3.000000e+38 : f32
    %573 = vector.broadcast %cst_228 : f32 to vector<16x1xf32>
    %574 = arith.select %572, %493, %573 : vector<16x1xi1>, vector<16x1xf32>
    %cst_229 = arith.constant dense<0xFF800000> : vector<1xf32>
    %575 = vector.multi_reduction <maximumf>, %574, %cst_229 [0] : vector<16x1xf32> to vector<1xf32>
    %576 = vector.shape_cast %575 : vector<1xf32> to vector<1x1xf32>
    %577 = vector.broadcast %576 : vector<1x1xf32> to vector<16x1xf32>
    %578 = arith.cmpf oeq, %574, %577 : vector<16x1xf32>
    %cst_230 = arith.constant 1.600000e+01 : f32
    %579 = vector.broadcast %cst_230 : f32 to vector<16x1xf32>
    %580 = arith.select %578, %495, %579 : vector<16x1xi1>, vector<16x1xf32>
    %cst_231 = arith.constant dense<0x7F800000> : vector<1xf32>
    %581 = vector.multi_reduction <minimumf>, %580, %cst_231 [0] : vector<16x1xf32> to vector<1xf32>
    %582 = vector.shape_cast %581 : vector<1xf32> to vector<1x1xf32>
    %583 = vector.broadcast %582 : vector<1x1xf32> to vector<16x1xf32>
    %584 = arith.cmpf oeq, %495, %583 : vector<16x1xf32>
    %585 = arith.ori %570, %584 : vector<16x1xi1>
    %cst_232 = arith.constant dense<true> : vector<16x1xi1>
    %586 = arith.xori %584, %cst_232 : vector<16x1xi1>
    %587 = arith.andi %572, %586 : vector<16x1xi1>
    %c6_i32_233 = arith.constant 6 : i32
    %cst_234 = arith.constant -3.000000e+38 : f32
    %588 = vector.broadcast %cst_234 : f32 to vector<16x1xf32>
    %589 = arith.select %587, %493, %588 : vector<16x1xi1>, vector<16x1xf32>
    %cst_235 = arith.constant dense<0xFF800000> : vector<1xf32>
    %590 = vector.multi_reduction <maximumf>, %589, %cst_235 [0] : vector<16x1xf32> to vector<1xf32>
    %591 = vector.shape_cast %590 : vector<1xf32> to vector<1x1xf32>
    %592 = vector.broadcast %591 : vector<1x1xf32> to vector<16x1xf32>
    %593 = arith.cmpf oeq, %589, %592 : vector<16x1xf32>
    %cst_236 = arith.constant 1.600000e+01 : f32
    %594 = vector.broadcast %cst_236 : f32 to vector<16x1xf32>
    %595 = arith.select %593, %495, %594 : vector<16x1xi1>, vector<16x1xf32>
    %cst_237 = arith.constant dense<0x7F800000> : vector<1xf32>
    %596 = vector.multi_reduction <minimumf>, %595, %cst_237 [0] : vector<16x1xf32> to vector<1xf32>
    %597 = vector.shape_cast %596 : vector<1xf32> to vector<1x1xf32>
    %598 = vector.broadcast %597 : vector<1x1xf32> to vector<16x1xf32>
    %599 = arith.cmpf oeq, %495, %598 : vector<16x1xf32>
    %600 = arith.ori %585, %599 : vector<16x1xi1>
    %cst_238 = arith.constant dense<true> : vector<16x1xi1>
    %601 = arith.xori %599, %cst_238 : vector<16x1xi1>
    %602 = arith.andi %587, %601 : vector<16x1xi1>
    %c7_i32_239 = arith.constant 7 : i32
    %cst_240 = arith.constant -3.000000e+38 : f32
    %603 = vector.broadcast %cst_240 : f32 to vector<16x1xf32>
    %604 = arith.select %602, %493, %603 : vector<16x1xi1>, vector<16x1xf32>
    %cst_241 = arith.constant dense<0xFF800000> : vector<1xf32>
    %605 = vector.multi_reduction <maximumf>, %604, %cst_241 [0] : vector<16x1xf32> to vector<1xf32>
    %606 = vector.shape_cast %605 : vector<1xf32> to vector<1x1xf32>
    %607 = vector.broadcast %606 : vector<1x1xf32> to vector<16x1xf32>
    %608 = arith.cmpf oeq, %604, %607 : vector<16x1xf32>
    %cst_242 = arith.constant 1.600000e+01 : f32
    %609 = vector.broadcast %cst_242 : f32 to vector<16x1xf32>
    %610 = arith.select %608, %495, %609 : vector<16x1xi1>, vector<16x1xf32>
    %cst_243 = arith.constant dense<0x7F800000> : vector<1xf32>
    %611 = vector.multi_reduction <minimumf>, %610, %cst_243 [0] : vector<16x1xf32> to vector<1xf32>
    %612 = vector.shape_cast %611 : vector<1xf32> to vector<1x1xf32>
    %613 = vector.broadcast %612 : vector<1x1xf32> to vector<16x1xf32>
    %614 = arith.cmpf oeq, %495, %613 : vector<16x1xf32>
    %615 = arith.ori %600, %614 : vector<16x1xi1>
    %cst_244 = arith.constant dense<true> : vector<16x1xi1>
    %616 = arith.xori %614, %cst_244 : vector<16x1xi1>
    %617 = arith.andi %602, %616 : vector<16x1xi1>
    %c8_i32_245 = arith.constant 8 : i32
    %cst_246 = arith.constant -3.000000e+38 : f32
    %618 = vector.broadcast %cst_246 : f32 to vector<16x1xf32>
    %619 = arith.select %617, %493, %618 : vector<16x1xi1>, vector<16x1xf32>
    %cst_247 = arith.constant dense<0xFF800000> : vector<1xf32>
    %620 = vector.multi_reduction <maximumf>, %619, %cst_247 [0] : vector<16x1xf32> to vector<1xf32>
    %621 = vector.shape_cast %620 : vector<1xf32> to vector<1x1xf32>
    %622 = vector.broadcast %621 : vector<1x1xf32> to vector<16x1xf32>
    %623 = arith.cmpf oeq, %619, %622 : vector<16x1xf32>
    %cst_248 = arith.constant 1.600000e+01 : f32
    %624 = vector.broadcast %cst_248 : f32 to vector<16x1xf32>
    %625 = arith.select %623, %495, %624 : vector<16x1xi1>, vector<16x1xf32>
    %cst_249 = arith.constant dense<0x7F800000> : vector<1xf32>
    %626 = vector.multi_reduction <minimumf>, %625, %cst_249 [0] : vector<16x1xf32> to vector<1xf32>
    %627 = vector.shape_cast %626 : vector<1xf32> to vector<1x1xf32>
    %628 = vector.broadcast %627 : vector<1x1xf32> to vector<16x1xf32>
    %629 = arith.cmpf oeq, %495, %628 : vector<16x1xf32>
    %630 = arith.ori %615, %629 : vector<16x1xi1>
    %cst_250 = arith.constant dense<true> : vector<16x1xi1>
    %631 = arith.xori %629, %cst_250 : vector<16x1xi1>
    %632 = arith.andi %617, %631 : vector<16x1xi1>
    %cst_251 = arith.constant 0.000000e+00 : f32
    %633 = vector.broadcast %cst_251 : f32 to vector<16x1xf32>
    %634 = arith.select %630, %491, %633 : vector<16x1xi1>, vector<16x1xf32>
    %635 = vector.broadcast %634 : vector<16x1xf32> to vector<16x256xf32>
    %636 = arith.mulf %477, %635 : vector<16x256xf32>
    %cst_252 = arith.constant -3.000000e+38 : f32
    %637 = vector.shape_cast %630 : vector<16x1xi1> to vector<16x1xi1>
    %638 = vector.broadcast %637 : vector<16x1xi1> to vector<16x256xi1>
    %639 = vector.broadcast %cst_252 : f32 to vector<16x256xf32>
    %640 = arith.select %638, %636, %639 : vector<16x256xi1>, vector<16x256xf32>
    %cst_253 = arith.constant dense<0xFF800000> : vector<256xf32>
    %641 = vector.multi_reduction <maximumf>, %640, %cst_253 [0] : vector<16x256xf32> to vector<256xf32>
    %642 = vector.shape_cast %641 : vector<256xf32> to vector<1x256xf32>
    %643 = arith.addf %459, %642 : vector<1x256xf32>
    %cst_254 = arith.constant dense<0.000000e+00> : vector<256xf32>
    %644 = vector.multi_reduction <add>, %636, %cst_254 [0] : vector<16x256xf32> to vector<256xf32>
    %645 = vector.shape_cast %644 : vector<256xf32> to vector<1x256xf32>
    %cst_255 = arith.constant 0.111111112 : f32
    %646 = vector.broadcast %cst_255 : f32 to vector<1x256xf32>
    %647 = arith.mulf %645, %646 : vector<1x256xf32>
    %648 = arith.addf %464, %647 : vector<1x256xf32>
    %649 = arith.truncf %636 : vector<16x256xf32> to vector<16x256xbf16>
    %cst_256 = arith.constant dense<0.000000e+00> : vector<16x256xf32>
    %650 = tpu.matmul %3, %649, %cst_256 {dimension_numbers = #tpu.dot_dimension_numbers<[1], [0], [0], [1], [0, 0, 1, 1], [], []>} : vector<16x16xbf16>, vector<16x256xbf16>, vector<16x256xf32> -> vector<16x256xf32>
    %c0_257 = arith.constant 0 : index
    %c0_258 = arith.constant 0 : index
    %651 = vector.load %arg15[%c0_257, %c0_258] : memref<256x256xbf16, #tpu.memory_space<vmem>>, vector<256x256xbf16>
    %cst_259 = arith.constant dense<0.000000e+00> : vector<16x256xf32>
    %652 = tpu.matmul %649, %651, %cst_259 {dimension_numbers = #tpu.dot_dimension_numbers<[1], [0], [0], [1], [0, 0, 1, 1], [], []>} : vector<16x256xbf16>, vector<256x256xbf16>, vector<16x256xf32> -> vector<16x256xf32>
    %653 = arith.truncf %650 : vector<16x256xf32> to vector<16x256xbf16>
    %c0_260 = arith.constant 0 : index
    %c0_261 = arith.constant 0 : index
    %654 = vector.load %arg16[%c0_260, %c0_261] : memref<256x256xbf16, #tpu.memory_space<vmem>>, vector<256x256xbf16>
    %cst_262 = arith.constant dense<0.000000e+00> : vector<16x256xf32>
    %655 = tpu.matmul %653, %654, %cst_262 {dimension_numbers = #tpu.dot_dimension_numbers<[1], [0], [0], [1], [0, 0, 1, 1], [], []>} : vector<16x256xbf16>, vector<256x256xbf16>, vector<16x256xf32> -> vector<16x256xf32>
    %656 = arith.addf %652, %655 : vector<16x256xf32>
    %c0_263 = arith.constant 0 : index
    %c0_264 = arith.constant 0 : index
    %657 = vector.load %arg17[%c0_263, %c0_264] : memref<1x256xf32, #tpu.memory_space<vmem>>, vector<1x256xf32>
    %658 = vector.broadcast %657 : vector<1x256xf32> to vector<16x256xf32>
    %659 = arith.addf %656, %658 : vector<16x256xf32>
    %cst_265 = arith.constant 0.000000e+00 : f32
    %660 = vector.broadcast %cst_265 : f32 to vector<16x256xf32>
    %661 = arith.maximumf %659, %660 : vector<16x256xf32>
    %c0_266 = arith.constant 0 : index
    %c0_267 = arith.constant 0 : index
    %662 = vector.load %arg18[%c0_266, %c0_267] : memref<1x256xf32, #tpu.memory_space<vmem>>, vector<1x256xf32>
    %663 = vector.broadcast %662 : vector<1x256xf32> to vector<16x256xf32>
    %664 = arith.mulf %661, %663 : vector<16x256xf32>
    %cst_268 = arith.constant dense<0.000000e+00> : vector<16xf32>
    %665 = vector.multi_reduction <add>, %664, %cst_268 [1] : vector<16x256xf32> to vector<16xf32>
    %666 = vector.shape_cast %665 : vector<16xf32> to vector<16x1xf32>
    %667 = arith.mulf %662, %662 : vector<1x256xf32>
    %668 = vector.shape_cast %667 : vector<1x256xf32> to vector<1x1x256xf32>
    %cst_269 = arith.constant dense<0.000000e+00> : vector<1xf32>
    %669 = vector.multi_reduction <add>, %668, %cst_269 [1, 2] : vector<1x1x256xf32> to vector<1xf32>
    %670 = vector.shape_cast %669 : vector<1xf32> to vector<1x1x1xf32>
    %671 = vector.extract %670[0, 0, 0] : f32 from vector<1x1x1xf32>
    %672 = math.rsqrt %671 : f32
    %673 = vector.broadcast %672 : f32 to vector<16x1xf32>
    %674 = arith.mulf %666, %673 : vector<16x1xf32>
    %675 = math.tanh %674 : vector<16x1xf32>
    %cst_270 = arith.constant -3.000000e+38 : f32
    %676 = vector.broadcast %cst_270 : f32 to vector<16x1xf32>
    %677 = arith.select %630, %675, %676 : vector<16x1xi1>, vector<16x1xf32>
    %678 = tpu.iota {dimensions = array<i32: 0>} : vector<16x1xi32>
    %679 = arith.sitofp %678 : vector<16x1xi32> to vector<16x1xf32>
    %false_271 = arith.constant false
    %680 = vector.broadcast %false_271 : i1 to vector<16x1xi1>
    %true_272 = arith.constant true
    %681 = vector.broadcast %true_272 : i1 to vector<16x1xi1>
    %c0_i32_273 = arith.constant 0 : i32
    %cst_274 = arith.constant -3.000000e+38 : f32
    %682 = vector.broadcast %cst_274 : f32 to vector<16x1xf32>
    %683 = arith.select %681, %677, %682 : vector<16x1xi1>, vector<16x1xf32>
    %cst_275 = arith.constant dense<0xFF800000> : vector<1xf32>
    %684 = vector.multi_reduction <maximumf>, %683, %cst_275 [0] : vector<16x1xf32> to vector<1xf32>
    %685 = vector.shape_cast %684 : vector<1xf32> to vector<1x1xf32>
    %686 = vector.broadcast %685 : vector<1x1xf32> to vector<16x1xf32>
    %687 = arith.cmpf oeq, %683, %686 : vector<16x1xf32>
    %cst_276 = arith.constant 1.600000e+01 : f32
    %688 = vector.broadcast %cst_276 : f32 to vector<16x1xf32>
    %689 = arith.select %687, %679, %688 : vector<16x1xi1>, vector<16x1xf32>
    %cst_277 = arith.constant dense<0x7F800000> : vector<1xf32>
    %690 = vector.multi_reduction <minimumf>, %689, %cst_277 [0] : vector<16x1xf32> to vector<1xf32>
    %691 = vector.shape_cast %690 : vector<1xf32> to vector<1x1xf32>
    %692 = vector.broadcast %691 : vector<1x1xf32> to vector<16x1xf32>
    %693 = arith.cmpf oeq, %679, %692 : vector<16x1xf32>
    %694 = arith.ori %680, %693 : vector<16x1xi1>
    %cst_278 = arith.constant dense<true> : vector<16x1xi1>
    %695 = arith.xori %693, %cst_278 : vector<16x1xi1>
    %696 = arith.andi %681, %695 : vector<16x1xi1>
    %c1_i32_279 = arith.constant 1 : i32
    %cst_280 = arith.constant -3.000000e+38 : f32
    %697 = vector.broadcast %cst_280 : f32 to vector<16x1xf32>
    %698 = arith.select %696, %677, %697 : vector<16x1xi1>, vector<16x1xf32>
    %cst_281 = arith.constant dense<0xFF800000> : vector<1xf32>
    %699 = vector.multi_reduction <maximumf>, %698, %cst_281 [0] : vector<16x1xf32> to vector<1xf32>
    %700 = vector.shape_cast %699 : vector<1xf32> to vector<1x1xf32>
    %701 = vector.broadcast %700 : vector<1x1xf32> to vector<16x1xf32>
    %702 = arith.cmpf oeq, %698, %701 : vector<16x1xf32>
    %cst_282 = arith.constant 1.600000e+01 : f32
    %703 = vector.broadcast %cst_282 : f32 to vector<16x1xf32>
    %704 = arith.select %702, %679, %703 : vector<16x1xi1>, vector<16x1xf32>
    %cst_283 = arith.constant dense<0x7F800000> : vector<1xf32>
    %705 = vector.multi_reduction <minimumf>, %704, %cst_283 [0] : vector<16x1xf32> to vector<1xf32>
    %706 = vector.shape_cast %705 : vector<1xf32> to vector<1x1xf32>
    %707 = vector.broadcast %706 : vector<1x1xf32> to vector<16x1xf32>
    %708 = arith.cmpf oeq, %679, %707 : vector<16x1xf32>
    %709 = arith.ori %694, %708 : vector<16x1xi1>
    %cst_284 = arith.constant dense<true> : vector<16x1xi1>
    %710 = arith.xori %708, %cst_284 : vector<16x1xi1>
    %711 = arith.andi %696, %710 : vector<16x1xi1>
    %c2_i32_285 = arith.constant 2 : i32
    %cst_286 = arith.constant -3.000000e+38 : f32
    %712 = vector.broadcast %cst_286 : f32 to vector<16x1xf32>
    %713 = arith.select %711, %677, %712 : vector<16x1xi1>, vector<16x1xf32>
    %cst_287 = arith.constant dense<0xFF800000> : vector<1xf32>
    %714 = vector.multi_reduction <maximumf>, %713, %cst_287 [0] : vector<16x1xf32> to vector<1xf32>
    %715 = vector.shape_cast %714 : vector<1xf32> to vector<1x1xf32>
    %716 = vector.broadcast %715 : vector<1x1xf32> to vector<16x1xf32>
    %717 = arith.cmpf oeq, %713, %716 : vector<16x1xf32>
    %cst_288 = arith.constant 1.600000e+01 : f32
    %718 = vector.broadcast %cst_288 : f32 to vector<16x1xf32>
    %719 = arith.select %717, %679, %718 : vector<16x1xi1>, vector<16x1xf32>
    %cst_289 = arith.constant dense<0x7F800000> : vector<1xf32>
    %720 = vector.multi_reduction <minimumf>, %719, %cst_289 [0] : vector<16x1xf32> to vector<1xf32>
    %721 = vector.shape_cast %720 : vector<1xf32> to vector<1x1xf32>
    %722 = vector.broadcast %721 : vector<1x1xf32> to vector<16x1xf32>
    %723 = arith.cmpf oeq, %679, %722 : vector<16x1xf32>
    %724 = arith.ori %709, %723 : vector<16x1xi1>
    %cst_290 = arith.constant dense<true> : vector<16x1xi1>
    %725 = arith.xori %723, %cst_290 : vector<16x1xi1>
    %726 = arith.andi %711, %725 : vector<16x1xi1>
    %c3_i32_291 = arith.constant 3 : i32
    %cst_292 = arith.constant -3.000000e+38 : f32
    %727 = vector.broadcast %cst_292 : f32 to vector<16x1xf32>
    %728 = arith.select %726, %677, %727 : vector<16x1xi1>, vector<16x1xf32>
    %cst_293 = arith.constant dense<0xFF800000> : vector<1xf32>
    %729 = vector.multi_reduction <maximumf>, %728, %cst_293 [0] : vector<16x1xf32> to vector<1xf32>
    %730 = vector.shape_cast %729 : vector<1xf32> to vector<1x1xf32>
    %731 = vector.broadcast %730 : vector<1x1xf32> to vector<16x1xf32>
    %732 = arith.cmpf oeq, %728, %731 : vector<16x1xf32>
    %cst_294 = arith.constant 1.600000e+01 : f32
    %733 = vector.broadcast %cst_294 : f32 to vector<16x1xf32>
    %734 = arith.select %732, %679, %733 : vector<16x1xi1>, vector<16x1xf32>
    %cst_295 = arith.constant dense<0x7F800000> : vector<1xf32>
    %735 = vector.multi_reduction <minimumf>, %734, %cst_295 [0] : vector<16x1xf32> to vector<1xf32>
    %736 = vector.shape_cast %735 : vector<1xf32> to vector<1x1xf32>
    %737 = vector.broadcast %736 : vector<1x1xf32> to vector<16x1xf32>
    %738 = arith.cmpf oeq, %679, %737 : vector<16x1xf32>
    %739 = arith.ori %724, %738 : vector<16x1xi1>
    %cst_296 = arith.constant dense<true> : vector<16x1xi1>
    %740 = arith.xori %738, %cst_296 : vector<16x1xi1>
    %741 = arith.andi %726, %740 : vector<16x1xi1>
    %c4_i32_297 = arith.constant 4 : i32
    %cst_298 = arith.constant -3.000000e+38 : f32
    %742 = vector.broadcast %cst_298 : f32 to vector<16x1xf32>
    %743 = arith.select %741, %677, %742 : vector<16x1xi1>, vector<16x1xf32>
    %cst_299 = arith.constant dense<0xFF800000> : vector<1xf32>
    %744 = vector.multi_reduction <maximumf>, %743, %cst_299 [0] : vector<16x1xf32> to vector<1xf32>
    %745 = vector.shape_cast %744 : vector<1xf32> to vector<1x1xf32>
    %746 = vector.broadcast %745 : vector<1x1xf32> to vector<16x1xf32>
    %747 = arith.cmpf oeq, %743, %746 : vector<16x1xf32>
    %cst_300 = arith.constant 1.600000e+01 : f32
    %748 = vector.broadcast %cst_300 : f32 to vector<16x1xf32>
    %749 = arith.select %747, %679, %748 : vector<16x1xi1>, vector<16x1xf32>
    %cst_301 = arith.constant dense<0x7F800000> : vector<1xf32>
    %750 = vector.multi_reduction <minimumf>, %749, %cst_301 [0] : vector<16x1xf32> to vector<1xf32>
    %751 = vector.shape_cast %750 : vector<1xf32> to vector<1x1xf32>
    %752 = vector.broadcast %751 : vector<1x1xf32> to vector<16x1xf32>
    %753 = arith.cmpf oeq, %679, %752 : vector<16x1xf32>
    %754 = arith.ori %739, %753 : vector<16x1xi1>
    %cst_302 = arith.constant dense<true> : vector<16x1xi1>
    %755 = arith.xori %753, %cst_302 : vector<16x1xi1>
    %756 = arith.andi %741, %755 : vector<16x1xi1>
    %c5_i32_303 = arith.constant 5 : i32
    %cst_304 = arith.constant -3.000000e+38 : f32
    %757 = vector.broadcast %cst_304 : f32 to vector<16x1xf32>
    %758 = arith.select %756, %677, %757 : vector<16x1xi1>, vector<16x1xf32>
    %cst_305 = arith.constant dense<0xFF800000> : vector<1xf32>
    %759 = vector.multi_reduction <maximumf>, %758, %cst_305 [0] : vector<16x1xf32> to vector<1xf32>
    %760 = vector.shape_cast %759 : vector<1xf32> to vector<1x1xf32>
    %761 = vector.broadcast %760 : vector<1x1xf32> to vector<16x1xf32>
    %762 = arith.cmpf oeq, %758, %761 : vector<16x1xf32>
    %cst_306 = arith.constant 1.600000e+01 : f32
    %763 = vector.broadcast %cst_306 : f32 to vector<16x1xf32>
    %764 = arith.select %762, %679, %763 : vector<16x1xi1>, vector<16x1xf32>
    %cst_307 = arith.constant dense<0x7F800000> : vector<1xf32>
    %765 = vector.multi_reduction <minimumf>, %764, %cst_307 [0] : vector<16x1xf32> to vector<1xf32>
    %766 = vector.shape_cast %765 : vector<1xf32> to vector<1x1xf32>
    %767 = vector.broadcast %766 : vector<1x1xf32> to vector<16x1xf32>
    %768 = arith.cmpf oeq, %679, %767 : vector<16x1xf32>
    %769 = arith.ori %754, %768 : vector<16x1xi1>
    %cst_308 = arith.constant dense<true> : vector<16x1xi1>
    %770 = arith.xori %768, %cst_308 : vector<16x1xi1>
    %771 = arith.andi %756, %770 : vector<16x1xi1>
    %c6_i32_309 = arith.constant 6 : i32
    %cst_310 = arith.constant -3.000000e+38 : f32
    %772 = vector.broadcast %cst_310 : f32 to vector<16x1xf32>
    %773 = arith.select %771, %677, %772 : vector<16x1xi1>, vector<16x1xf32>
    %cst_311 = arith.constant dense<0xFF800000> : vector<1xf32>
    %774 = vector.multi_reduction <maximumf>, %773, %cst_311 [0] : vector<16x1xf32> to vector<1xf32>
    %775 = vector.shape_cast %774 : vector<1xf32> to vector<1x1xf32>
    %776 = vector.broadcast %775 : vector<1x1xf32> to vector<16x1xf32>
    %777 = arith.cmpf oeq, %773, %776 : vector<16x1xf32>
    %cst_312 = arith.constant 1.600000e+01 : f32
    %778 = vector.broadcast %cst_312 : f32 to vector<16x1xf32>
    %779 = arith.select %777, %679, %778 : vector<16x1xi1>, vector<16x1xf32>
    %cst_313 = arith.constant dense<0x7F800000> : vector<1xf32>
    %780 = vector.multi_reduction <minimumf>, %779, %cst_313 [0] : vector<16x1xf32> to vector<1xf32>
    %781 = vector.shape_cast %780 : vector<1xf32> to vector<1x1xf32>
    %782 = vector.broadcast %781 : vector<1x1xf32> to vector<16x1xf32>
    %783 = arith.cmpf oeq, %679, %782 : vector<16x1xf32>
    %784 = arith.ori %769, %783 : vector<16x1xi1>
    %cst_314 = arith.constant dense<true> : vector<16x1xi1>
    %785 = arith.xori %783, %cst_314 : vector<16x1xi1>
    %786 = arith.andi %771, %785 : vector<16x1xi1>
    %c7_i32_315 = arith.constant 7 : i32
    %cst_316 = arith.constant -3.000000e+38 : f32
    %787 = vector.broadcast %cst_316 : f32 to vector<16x1xf32>
    %788 = arith.select %786, %677, %787 : vector<16x1xi1>, vector<16x1xf32>
    %cst_317 = arith.constant dense<0xFF800000> : vector<1xf32>
    %789 = vector.multi_reduction <maximumf>, %788, %cst_317 [0] : vector<16x1xf32> to vector<1xf32>
    %790 = vector.shape_cast %789 : vector<1xf32> to vector<1x1xf32>
    %791 = vector.broadcast %790 : vector<1x1xf32> to vector<16x1xf32>
    %792 = arith.cmpf oeq, %788, %791 : vector<16x1xf32>
    %cst_318 = arith.constant 1.600000e+01 : f32
    %793 = vector.broadcast %cst_318 : f32 to vector<16x1xf32>
    %794 = arith.select %792, %679, %793 : vector<16x1xi1>, vector<16x1xf32>
    %cst_319 = arith.constant dense<0x7F800000> : vector<1xf32>
    %795 = vector.multi_reduction <minimumf>, %794, %cst_319 [0] : vector<16x1xf32> to vector<1xf32>
    %796 = vector.shape_cast %795 : vector<1xf32> to vector<1x1xf32>
    %797 = vector.broadcast %796 : vector<1x1xf32> to vector<16x1xf32>
    %798 = arith.cmpf oeq, %679, %797 : vector<16x1xf32>
    %799 = arith.ori %784, %798 : vector<16x1xi1>
    %cst_320 = arith.constant dense<true> : vector<16x1xi1>
    %800 = arith.xori %798, %cst_320 : vector<16x1xi1>
    %801 = arith.andi %786, %800 : vector<16x1xi1>
    %cst_321 = arith.constant 0.000000e+00 : f32
    %802 = vector.broadcast %cst_321 : f32 to vector<16x1xf32>
    %803 = arith.select %799, %675, %802 : vector<16x1xi1>, vector<16x1xf32>
    %804 = vector.broadcast %803 : vector<16x1xf32> to vector<16x256xf32>
    %805 = arith.mulf %661, %804 : vector<16x256xf32>
    %cst_322 = arith.constant -3.000000e+38 : f32
    %806 = vector.shape_cast %799 : vector<16x1xi1> to vector<16x1xi1>
    %807 = vector.broadcast %806 : vector<16x1xi1> to vector<16x256xi1>
    %808 = vector.broadcast %cst_322 : f32 to vector<16x256xf32>
    %809 = arith.select %807, %805, %808 : vector<16x256xi1>, vector<16x256xf32>
    %cst_323 = arith.constant dense<0xFF800000> : vector<256xf32>
    %810 = vector.multi_reduction <maximumf>, %809, %cst_323 [0] : vector<16x256xf32> to vector<256xf32>
    %811 = vector.shape_cast %810 : vector<256xf32> to vector<1x256xf32>
    %812 = arith.addf %643, %811 : vector<1x256xf32>
    %cst_324 = arith.constant dense<0.000000e+00> : vector<256xf32>
    %813 = vector.multi_reduction <add>, %805, %cst_324 [0] : vector<16x256xf32> to vector<256xf32>
    %814 = vector.shape_cast %813 : vector<256xf32> to vector<1x256xf32>
    %cst_325 = arith.constant 1.250000e-01 : f32
    %815 = vector.broadcast %cst_325 : f32 to vector<1x256xf32>
    %816 = arith.mulf %814, %815 : vector<1x256xf32>
    %817 = arith.addf %648, %816 : vector<1x256xf32>
    %818 = vector.shape_cast %812 : vector<1x256xf32> to vector<1x256xf32>
    %819 = vector.broadcast %818 : vector<1x256xf32> to vector<8x256xf32>
    %820 = arith.truncf %819 : vector<8x256xf32> to vector<8x256xbf16>
    %821 = vector.shape_cast %817 : vector<1x256xf32> to vector<1x256xf32>
    %822 = vector.broadcast %821 : vector<1x256xf32> to vector<8x256xf32>
    %823 = arith.truncf %822 : vector<8x256xf32> to vector<8x256xbf16>
    %c0_326 = arith.constant 0 : index
    %c0_327 = arith.constant 0 : index
    %824 = vector.load %arg19[%c0_326, %c0_327] : memref<512x256xbf16, #tpu.memory_space<vmem>>, vector<256x256xbf16>
    %cst_328 = arith.constant dense<0.000000e+00> : vector<8x256xf32>
    %825 = tpu.matmul %820, %824, %cst_328 {dimension_numbers = #tpu.dot_dimension_numbers<[1], [0], [0], [1], [0, 0, 1, 1], [], []>} : vector<8x256xbf16>, vector<256x256xbf16>, vector<8x256xf32> -> vector<8x256xf32>
    %c256 = arith.constant 256 : index
    %c0_329 = arith.constant 0 : index
    %826 = vector.load %arg19[%c256, %c0_329] : memref<512x256xbf16, #tpu.memory_space<vmem>>, vector<256x256xbf16>
    %cst_330 = arith.constant dense<0.000000e+00> : vector<8x256xf32>
    %827 = tpu.matmul %823, %826, %cst_330 {dimension_numbers = #tpu.dot_dimension_numbers<[1], [0], [0], [1], [0, 0, 1, 1], [], []>} : vector<8x256xbf16>, vector<256x256xbf16>, vector<8x256xf32> -> vector<8x256xf32>
    %828 = arith.addf %825, %827 : vector<8x256xf32>
    %c0_331 = arith.constant 0 : index
    %c0_332 = arith.constant 0 : index
    %829 = vector.load %arg20[%c0_331, %c0_332] : memref<1x256xf32, #tpu.memory_space<vmem>>, vector<1x256xf32>
    %830 = vector.broadcast %829 : vector<1x256xf32> to vector<8x256xf32>
    %831 = arith.addf %828, %830 : vector<8x256xf32>
    %cst_333 = arith.constant 0.000000e+00 : f32
    %832 = vector.broadcast %cst_333 : f32 to vector<8x256xf32>
    %833 = arith.maximumf %831, %832 : vector<8x256xf32>
    %834 = arith.truncf %833 : vector<8x256xf32> to vector<8x256xbf16>
    %c0_334 = arith.constant 0 : index
    %c0_335 = arith.constant 0 : index
    %835 = vector.load %arg21[%c0_334, %c0_335] : memref<256x64xbf16, #tpu.memory_space<vmem>>, vector<256x64xbf16>
    %cst_336 = arith.constant dense<0.000000e+00> : vector<8x64xf32>
    %836 = tpu.matmul %834, %835, %cst_336 {dimension_numbers = #tpu.dot_dimension_numbers<[1], [0], [0], [1], [0, 0, 1, 1], [], []>} : vector<8x256xbf16>, vector<256x64xbf16>, vector<8x64xf32> -> vector<8x64xf32>
    %c0_337 = arith.constant 0 : index
    %c0_338 = arith.constant 0 : index
    %837 = vector.load %arg22[%c0_337, %c0_338] : memref<1x64xf32, #tpu.memory_space<vmem>>, vector<1x64xf32>
    %838 = vector.broadcast %837 : vector<1x64xf32> to vector<8x64xf32>
    %839 = arith.addf %836, %838 : vector<8x64xf32>
    %cst_339 = arith.constant 0.000000e+00 : f32
    %840 = vector.broadcast %cst_339 : f32 to vector<8x64xf32>
    %841 = arith.maximumf %839, %840 : vector<8x64xf32>
    %c0_340 = arith.constant 0 : index
    %c0_341 = arith.constant 0 : index
    %842 = vector.load %arg23[%c0_340, %c0_341] : memref<1x64xf32, #tpu.memory_space<vmem>>, vector<1x64xf32>
    %843 = vector.broadcast %842 : vector<1x64xf32> to vector<8x64xf32>
    %844 = arith.mulf %841, %843 : vector<8x64xf32>
    %cst_342 = arith.constant dense<0.000000e+00> : vector<8xf32>
    %845 = vector.multi_reduction <add>, %844, %cst_342 [1] : vector<8x64xf32> to vector<8xf32>
    %846 = vector.shape_cast %845 : vector<8xf32> to vector<8x1xf32>
    %c0_343 = arith.constant 0 : index
    %c0_344 = arith.constant 0 : index
    %847 = vector.load %arg24[%c0_343, %c0_344] : memref<1x1xf32, #tpu.memory_space<vmem>>, vector<1x1xf32>
    %848 = vector.broadcast %847 : vector<1x1xf32> to vector<8x1xf32>
    %849 = arith.addf %846, %848 : vector<8x1xf32>
    %850 = vector.extract_strided_slice %849 {offsets = [0, 0], sizes = [1, 1], strides = [1, 1]} : vector<8x1xf32> to vector<1x1xf32>
    %851 = arith.negf %850 : vector<1x1xf32>
    %852 = math.exp %851 : vector<1x1xf32>
    %cst_345 = arith.constant 1.000000e+00 : f32
    %853 = vector.broadcast %cst_345 : f32 to vector<1x1xf32>
    %854 = arith.addf %853, %852 : vector<1x1xf32>
    %855 = arith.divf %853, %854 : vector<1x1xf32>
    %c0_346 = arith.constant 0 : index
    %c0_347 = arith.constant 0 : index
    %c0_348 = arith.constant 0 : index
    %856 = vector.load %arg25[%c0_346, %c0_347, %c0_348] : memref<1x1x1xf32, #tpu.memory_space<vmem>>, vector<1x1x1xf32>
    %857 = vector.shape_cast %856 : vector<1x1x1xf32> to vector<1x1xf32>
    %858 = vector.shape_cast %855 : vector<1x1xf32> to vector<1x1x1xf32>
    tpu.vector_store %arg25[%c0_346, %c0_347, %c0_348], %858 {strides = array<i32>} : memref<1x1x1xf32, #tpu.memory_space<vmem>>, vector<1x1x1xf32>,
    return
  }
  func.func @transform_0(%arg0: i32) -> (i32, i32, i32) {
    %c0_i32 = arith.constant 0 : i32
    %c0_i32_0 = arith.constant 0 : i32
    %c0_i32_1 = arith.constant 0 : i32
    return %arg0, %c0_i32, %c0_i32_0 : i32, i32, i32
  }
  func.func @transform_1(%arg0: i32) -> (i32, i32, i32) {
    %c0_i32 = arith.constant 0 : i32
    %c0_i32_0 = arith.constant 0 : i32
    %c0_i32_1 = arith.constant 0 : i32
    return %arg0, %c0_i32, %c0_i32_0 : i32, i32, i32
  }
  func.func @transform_2(%arg0: i32) -> (i32, i32) {
    %c0_i32 = arith.constant 0 : i32
    %c0_i32_0 = arith.constant 0 : i32
    %c0_i32_1 = arith.constant 0 : i32
    return %c0_i32, %c0_i32_0 : i32, i32
  }
  func.func @transform_3(%arg0: i32) -> (i32, i32) {
    %c0_i32 = arith.constant 0 : i32
    %c0_i32_0 = arith.constant 0 : i32
    %c0_i32_1 = arith.constant 0 : i32
    return %c0_i32, %c0_i32_0 : i32, i32
  }
  func.func @transform_4(%arg0: i32) -> (i32, i32) {
    %c0_i32 = arith.constant 0 : i32
    %c0_i32_0 = arith.constant 0 : i32
    %c0_i32_1 = arith.constant 0 : i32
    return %c0_i32, %c0_i32_0 : i32, i32
  }
  func.func @transform_5(%arg0: i32) -> (i32, i32) {
    %c0_i32 = arith.constant 0 : i32
    %c0_i32_0 = arith.constant 0 : i32
    %c0_i32_1 = arith.constant 0 : i32
    return %c0_i32, %c0_i32_0 : i32, i32
  }
  func.func @transform_6(%arg0: i32) -> (i32, i32) {
    %c0_i32 = arith.constant 0 : i32
    %c0_i32_0 = arith.constant 0 : i32
    %c0_i32_1 = arith.constant 0 : i32
    return %c0_i32, %c0_i32_0 : i32, i32
  }
  func.func @transform_7(%arg0: i32) -> (i32, i32) {
    %c0_i32 = arith.constant 0 : i32
    %c0_i32_0 = arith.constant 0 : i32
    %c0_i32_1 = arith.constant 0 : i32
    return %c0_i32, %c0_i32_0 : i32, i32
  }
  func.func @transform_8(%arg0: i32) -> (i32, i32) {
    %c0_i32 = arith.constant 0 : i32
    %c0_i32_0 = arith.constant 0 : i32
    %c0_i32_1 = arith.constant 0 : i32
    return %c0_i32, %c0_i32_0 : i32, i32
  }
  func.func @transform_9(%arg0: i32) -> (i32, i32) {
    %c0_i32 = arith.constant 0 : i32
    %c0_i32_0 = arith.constant 0 : i32
    %c0_i32_1 = arith.constant 0 : i32
    return %c0_i32, %c0_i32_0 : i32, i32
  }
  func.func @transform_10(%arg0: i32) -> (i32, i32) {
    %c0_i32 = arith.constant 0 : i32
    %c0_i32_0 = arith.constant 0 : i32
    %c0_i32_1 = arith.constant 0 : i32
    return %c0_i32, %c0_i32_0 : i32, i32
  }
  func.func @transform_11(%arg0: i32) -> (i32, i32) {
    %c0_i32 = arith.constant 0 : i32
    %c0_i32_0 = arith.constant 0 : i32
    %c0_i32_1 = arith.constant 0 : i32
    return %c0_i32, %c0_i32_0 : i32, i32
  }
  func.func @transform_12(%arg0: i32) -> (i32, i32) {
    %c0_i32 = arith.constant 0 : i32
    %c0_i32_0 = arith.constant 0 : i32
    %c0_i32_1 = arith.constant 0 : i32
    return %c0_i32, %c0_i32_0 : i32, i32
  }
  func.func @transform_13(%arg0: i32) -> (i32, i32) {
    %c0_i32 = arith.constant 0 : i32
    %c0_i32_0 = arith.constant 0 : i32
    %c0_i32_1 = arith.constant 0 : i32
    return %c0_i32, %c0_i32_0 : i32, i32
  }
  func.func @transform_14(%arg0: i32) -> (i32, i32) {
    %c0_i32 = arith.constant 0 : i32
    %c0_i32_0 = arith.constant 0 : i32
    %c0_i32_1 = arith.constant 0 : i32
    return %c0_i32, %c0_i32_0 : i32, i32
  }
  func.func @transform_15(%arg0: i32) -> (i32, i32) {
    %c0_i32 = arith.constant 0 : i32
    %c0_i32_0 = arith.constant 0 : i32
    %c0_i32_1 = arith.constant 0 : i32
    return %c0_i32, %c0_i32_0 : i32, i32
  }
  func.func @transform_16(%arg0: i32) -> (i32, i32) {
    %c0_i32 = arith.constant 0 : i32
    %c0_i32_0 = arith.constant 0 : i32
    %c0_i32_1 = arith.constant 0 : i32
    return %c0_i32, %c0_i32_0 : i32, i32
  }
  func.func @transform_17(%arg0: i32) -> (i32, i32) {
    %c0_i32 = arith.constant 0 : i32
    %c0_i32_0 = arith.constant 0 : i32
    %c0_i32_1 = arith.constant 0 : i32
    return %c0_i32, %c0_i32_0 : i32, i32
  }
  func.func @transform_18(%arg0: i32) -> (i32, i32) {
    %c0_i32 = arith.constant 0 : i32
    %c0_i32_0 = arith.constant 0 : i32
    %c0_i32_1 = arith.constant 0 : i32
    return %c0_i32, %c0_i32_0 : i32, i32
  }
  func.func @transform_19(%arg0: i32) -> (i32, i32) {
    %c0_i32 = arith.constant 0 : i32
    %c0_i32_0 = arith.constant 0 : i32
    %c0_i32_1 = arith.constant 0 : i32
    return %c0_i32, %c0_i32_0 : i32, i32
  }
  func.func @transform_20(%arg0: i32) -> (i32, i32) {
    %c0_i32 = arith.constant 0 : i32
    %c0_i32_0 = arith.constant 0 : i32
    %c0_i32_1 = arith.constant 0 : i32
    return %c0_i32, %c0_i32_0 : i32, i32
  }
  func.func @transform_21(%arg0: i32) -> (i32, i32) {
    %c0_i32 = arith.constant 0 : i32
    %c0_i32_0 = arith.constant 0 : i32
    %c0_i32_1 = arith.constant 0 : i32
    return %c0_i32, %c0_i32_0 : i32, i32
  }
  func.func @transform_22(%arg0: i32) -> (i32, i32) {
    %c0_i32 = arith.constant 0 : i32
    %c0_i32_0 = arith.constant 0 : i32
    %c0_i32_1 = arith.constant 0 : i32
    return %c0_i32, %c0_i32_0 : i32, i32
  }
  func.func @transform_23(%arg0: i32) -> (i32, i32) {
    %c0_i32 = arith.constant 0 : i32
    %c0_i32_0 = arith.constant 0 : i32
    %c0_i32_1 = arith.constant 0 : i32
    return %c0_i32, %c0_i32_0 : i32, i32
  }
  func.func @transform_24(%arg0: i32) -> (i32, i32, i32) {
    %c0_i32 = arith.constant 0 : i32
    %c0_i32_0 = arith.constant 0 : i32
    %c0_i32_1 = arith.constant 0 : i32
    return %arg0, %c0_i32, %c0_i32_0 : i32, i32, i32
  }
}

</mosaic_0001>

<llo_original>
// kernel: rec2_forward.1
$region0: #{rec2_forward.1}
  #allocation0 [shape = 'u32[]', space=smem, size = 0x4, offset = 0x4, fixed_abs, tag = 'smem constant byte address 0x4 - core index']
  #allocation1 [shape = 'u32[144,128]{1,0:T(1,128)}', space=vmem, size = 0x12000, scoped, tag = 'internal scratch']
  #allocation2 [shape = 'f32[1,1]{1,0:T(1,128)S(1)}', space=vmem, size = 0x200, scoped, tag = 'scoped memory for rec2_forward.1']
  %s0 = inlined_call_operand.vmem [shape: f32[2,16,256], index: 0, kind: input, shape index: {}]
  %s1 = inlined_call_operand.vmem [shape: bf16[2,16,16], index: 1, kind: input, shape index: {}]
  %s2 = inlined_call_operand.vmem [shape: bf16[256,256], index: 2, kind: input, shape index: {}]
  %s3 = inlined_call_operand.vmem [shape: bf16[256,256], index: 3, kind: input, shape index: {}]
  %s4 = inlined_call_operand.hbm [shape: f32[1,256], index: 4, kind: input, shape index: {}]
  %s5 = inlined_call_operand.vmem [shape: f32[1,256], index: 5, kind: input, shape index: {}]
  %s6 = inlined_call_operand.hbm [shape: bf16[256,256], index: 6, kind: input, shape index: {}]
  %s7 = inlined_call_operand.hbm [shape: bf16[256,256], index: 7, kind: input, shape index: {}]
  %s8 = inlined_call_operand.hbm [shape: f32[1,256], index: 8, kind: input, shape index: {}]
  %s9 = inlined_call_operand.hbm [shape: f32[1,256], index: 9, kind: input, shape index: {}]
  %s10 = inlined_call_operand.hbm [shape: bf16[256,256], index: 10, kind: input, shape index: {}]
  %s11 = inlined_call_operand.hbm [shape: bf16[256,256], index: 11, kind: input, shape index: {}]
  %s12 = inlined_call_operand.hbm [shape: f32[1,256], index: 12, kind: input, shape index: {}]
  %s13 = inlined_call_operand.hbm [shape: f32[1,256], index: 13, kind: input, shape index: {}]
  %s14 = inlined_call_operand.hbm [shape: bf16[256,256], index: 14, kind: input, shape index: {}]
  %s15 = inlined_call_operand.hbm [shape: bf16[256,256], index: 15, kind: input, shape index: {}]
  %s16 = inlined_call_operand.hbm [shape: f32[1,256], index: 16, kind: input, shape index: {}]
  %s17 = inlined_call_operand.hbm [shape: f32[1,256], index: 17, kind: input, shape index: {}]
  %s18 = inlined_call_operand.vmem [shape: bf16[512,256], index: 18, kind: input, shape index: {}]
  %s19 = inlined_call_operand.hbm [shape: f32[1,256], index: 19, kind: input, shape index: {}]
  %s20 = inlined_call_operand.vmem [shape: bf16[256,64], index: 20, kind: input, shape index: {}]
  %s21 = inlined_call_operand.hbm [shape: f32[1,64], index: 21, kind: input, shape index: {}]
  %s22 = inlined_call_operand.hbm [shape: f32[1,64], index: 22, kind: input, shape index: {}]
  %s23 = inlined_call_operand.<no memory space> [shape: f32[1,1], index: 23, kind: input, shape index: {}]
  %s24 = inlined_call_operand.vmem [shape: f32[2,1,1], index: 24, kind: output, shape index: {}]
  %s25 = sld [smem:[#allocation0]]
  $region193: #{rec2_forward.1} parent=0
    _
  %s27 = ssub.s32 1, %s25
  %s28 = scalar_select 0, %s27, %s25
  %v29 = vstv %s23
  %30 = vst [vmem:[#allocation2] sm:$0x1] %v29
  $region1: #{rec2_forward.1} parent=0
    #allocation3 [shape = 'u8[1024]{0}', space=vmem, size = 0x400, scoped, tag = 'input window, operand 4, single buffered']
    #allocation4 [shape = 's32[2]{0}', space=sflag, size = 0x8, scoped, tag = 'scoped memory for rec2_forward.1']
    #allocation5 [shape = 'u8[131072]{0}', space=vmem, size = 0x20000, scoped, tag = 'input window, operand 6, single buffered']
    #allocation6 [shape = 's32[1]{0}', space=sflag, size = 0x4, scoped, tag = 'scoped memory for rec2_forward.1']
    #allocation7 [shape = 'u8[131072]{0}', space=vmem, size = 0x20000, scoped, tag = 'input window, operand 7, single buffered']
    #allocation8 [shape = 'u8[1024]{0}', space=vmem, size = 0x400, scoped, tag = 'input window, operand 8, single buffered']
    #allocation9 [shape = 's32[1]{0}', space=sflag, size = 0x4, scoped, tag = 'scoped memory for rec2_forward.1']
    #allocation10 [shape = 'u8[1024]{0}', space=vmem, size = 0x400, scoped, tag = 'input window, operand 9, single buffered']
    #allocation11 [shape = 'u8[131072]{0}', space=vmem, size = 0x20000, scoped, tag = 'input window, operand 10, single buffered']
    #allocation12 [shape = 's32[1]{0}', space=sflag, size = 0x4, scoped, tag = 'scoped memory for rec2_forward.1']
    #allocation13 [shape = 'u8[131072]{0}', space=vmem, size = 0x20000, scoped, tag = 'input window, operand 11, single buffered']
    #allocation14 [shape = 'u8[1024]{0}', space=vmem, size = 0x400, scoped, tag = 'input window, operand 12, single buffered']
    #allocation15 [shape = 's32[1]{0}', space=sflag, size = 0x4, scoped, tag = 'scoped memory for rec2_forward.1']
    #allocation16 [shape = 'u8[1024]{0}', space=vmem, size = 0x400, scoped, tag = 'input window, operand 13, single buffered']
    #allocation17 [shape = 'u8[131072]{0}', space=vmem, size = 0x20000, scoped, tag = 'input window, operand 14, single buffered']
    #allocation18 [shape = 's32[1]{0}', space=sflag, size = 0x4, scoped, tag = 'scoped memory for rec2_forward.1']
    #allocation19 [shape = 'u8[131072]{0}', space=vmem, size = 0x20000, scoped, tag = 'input window, operand 15, single buffered']
    #allocation20 [shape = 'u8[1024]{0}', space=vmem, size = 0x400, scoped, tag = 'input window, operand 16, single buffered']
    #allocation21 [shape = 's32[1]{0}', space=sflag, size = 0x4, scoped, tag = 'scoped memory for rec2_forward.1']
    #allocation22 [shape = 'u8[1024]{0}', space=vmem, size = 0x400, scoped, tag = 'input window, operand 17, single buffered']
    #allocation23 [shape = 'u8[1024]{0}', space=vmem, size = 0x400, scoped, tag = 'input window, operand 19, single buffered']
    #allocation24 [shape = 's32[1]{0}', space=sflag, size = 0x4, scoped, tag = 'scoped memory for rec2_forward.1']
    #allocation25 [shape = 'u8[512]{0}', space=vmem, size = 0x400, scoped, tag = 'input window, operand 21, single buffered']
    #allocation26 [shape = 'u8[512]{0}', space=vmem, size = 0x400, scoped, tag = 'input window, operand 22, single buffered']
    #allocation27 [shape = 's32[1]{0}', space=sflag, size = 0x4, scoped, tag = 'scoped memory for rec2_forward.1']
    %31 = vsyncpa [#allocation4], 0
    %32 = vsyncpa [#allocation6], 0
    %33 = vsyncpa [#allocation9], 0
    %34 = vsyncpa [#allocation12], 0
    %35 = vsyncpa [#allocation15], 0
    %36 = vsyncpa [#allocation18], 0
    %37 = vsyncpa [#allocation21], 0
    %38 = vsyncpa [#allocation24], 0
    %39 = vsyncpa [#allocation27], 0
    loop: start=0, step=1, limit=4
    $region2: #{rec2_forward.1} parent=1 // loop_pre_header
      _
    $region3: #{rec2_forward.1} parent=1 // loop_header
      %s41 = sphi 0, %s45
      %p42 = scmp.ge.s32.totalorder %s41, 4
      %s51 = sphi 0, %s53
      %s54 = sphi 0, %s51
      %s55 = sphi 0, %s54
      %s71 = sphi 0, %s55
      %s77 = sphi 0, %s79
      %s80 = sphi 0, %s77
      %s81 = sphi 0, %s80
      %s97 = sphi 0, %s81
      %s101 = sphi 0, %s101
      %s103 = sphi 0, %s101
      %s104 = sphi 0, %s103
      %s118 = sphi 0, %s104
      %s122 = sphi 0, %s122
      %s124 = sphi 0, %s122
      %s125 = sphi 0, %s124
      %s139 = sphi 0, %s125
      %s143 = sphi 0, %s143
      %s145 = sphi 0, %s143
      %s146 = sphi 0, %s145
      %s160 = sphi 0, %s146
      %s164 = sphi 0, %s164
      %s166 = sphi 0, %s164
      %s167 = sphi 0, %s166
      %s181 = sphi 0, %s167
      %s185 = sphi 0, %s185
      %s187 = sphi 0, %s185
      %s188 = sphi 0, %s187
      %s202 = sphi 0, %s188
      %s206 = sphi 0, %s206
      %s208 = sphi 0, %s206
      %s209 = sphi 0, %s208
      %s223 = sphi 0, %s209
      %s227 = sphi 0, %s227
      %s229 = sphi 0, %s227
      %s230 = sphi 0, %s229
      %s244 = sphi 0, %s230
      %s248 = sphi 0, %s248
      %s250 = sphi 0, %s248
      %s251 = sphi 0, %s250
      %s265 = sphi 0, %s251
      %s269 = sphi 0, %s269
      %s271 = sphi 0, %s269
      %s272 = sphi 0, %s271
      %s286 = sphi 0, %s272
      %s290 = sphi 0, %s290
      %s292 = sphi 0, %s290
      %s293 = sphi 0, %s292
      %s307 = sphi 0, %s293
      %s311 = sphi 0, %s311
      %s313 = sphi 0, %s311
      %s314 = sphi 0, %s313
      %s328 = sphi 0, %s314
      %s332 = sphi 0, %s332
      %s334 = sphi 0, %s332
      %s335 = sphi 0, %s334
      %s349 = sphi 0, %s335
      %s353 = sphi 0, %s353
      %s355 = sphi 0, %s353
      %s356 = sphi 0, %s355
      %s370 = sphi 0, %s356
      %s374 = sphi 0, %s374
      %s376 = sphi 0, %s374
      %s377 = sphi 0, %s376
      %s391 = sphi 0, %s377
      %s395 = sphi 0, %s395
      %s397 = sphi 0, %s395
      %s398 = sphi 0, %s397
      %s412 = sphi 0, %s398
      %s416 = sphi 0, %s416
      %s418 = sphi 0, %s416
      %s419 = sphi 0, %s418
      %s433 = sphi 0, %s419
      %s437 = sphi 0, %s437
      %s439 = sphi 0, %s437
      %s440 = sphi 0, %s439
      %s454 = sphi 0, %s440
      %s458 = sphi 0, %s458
      %s460 = sphi 0, %s458
      %s461 = sphi 0, %s460
      %s475 = sphi 0, %s461
      %s479 = sphi 0, %s479
      %s481 = sphi 0, %s479
      %s482 = sphi 0, %s481
      %s496 = sphi 0, %s482
      %s500 = sphi 0, %s500
      %s502 = sphi 0, %s500
      %s503 = sphi 0, %s502
      %s517 = sphi 0, %s503
      %s521 = sphi 0, %s521
      %s523 = sphi 0, %s521
      %s524 = sphi 0, %s523
      %s538 = sphi 0, %s524
      %s542 = sphi 0, %s542
      %s544 = sphi 0, %s542
      %s545 = sphi 0, %s544
      %s559 = sphi 0, %s545
      %s565 = sphi 0, %s567
      %s568 = sphi 0, %s565
      %s569 = sphi 0, %s568
      %s585 = sphi 0, %s569
    $region4: #{rec2_forward.1} parent=1 // loop_header_branch
      %44 = sbr.rel (%p42) target = $region8
    $region5: #{rec2_forward.1} parent=1 // loop_body
      %s46 = ssub.s32 %s41, 1
      %s47 = ssub.s32 %s41, 2
      %s48 = sadd.s32 %s41, 1
      %s49 = ssub.s32 %s41, %s48
      %p50 = scmp.eq.s32.totalorder %s49, 0
      %s52 = sadd.s32 %s51, 1
      %s53 = scalar_select %p50, %s51, %s52
      %p56 = pneg %p50
      %p57 = scmp.eq.s32.totalorder %s41, 1
      %p58 = por %p56, %p57
      %p59 = scmp.ne.s32.totalorder %s51, %s54
      %p60 = scmp.eq.s32.totalorder %s41, 0
      %p61 = por %p59, %p60
      %p62 = scmp.ne.s32.totalorder %s51, %s54
      %p63 = scmp.eq.s32.totalorder %s46, 1
      %p64 = por %p62, %p63
      %p65 = scmp.ne.s32.totalorder %s54, %s55
      %p66 = scmp.eq.s32.totalorder %s46, 0
      %p67 = por %p65, %p66
      %p68 = scmp.ne.s32.totalorder %s54, %s55
      %p69 = scmp.eq.s32.totalorder %s47, 1
      %p70 = por %p68, %p69
      %p72 = scmp.ne.s32.totalorder %s55, %s71
      %p73 = scmp.eq.s32.totalorder %s47, 0
      %p74 = por %p72, %p73
      %s75 = ssub.s32 %s41, %s48
      %p76 = scmp.eq.s32.totalorder %s75, 0
      %s78 = sadd.s32 %s77, 1
      %s79 = scalar_select %p76, %s77, %s78
      %p82 = pneg %p76
      %p83 = scmp.eq.s32.totalorder %s41, 1
      %p84 = por %p82, %p83
      %p85 = scmp.ne.s32.totalorder %s77, %s80
      %p86 = scmp.eq.s32.totalorder %s41, 0
      %p87 = por %p85, %p86
      %p88 = scmp.ne.s32.totalorder %s77, %s80
      %p89 = scmp.eq.s32.totalorder %s46, 1
      %p90 = por %p88, %p89
      %p91 = scmp.ne.s32.totalorder %s80, %s81
      %p92 = scmp.eq.s32.totalorder %s46, 0
      %p93 = por %p91, %p92
      %p94 = scmp.ne.s32.totalorder %s80, %s81
      %p95 = scmp.eq.s32.totalorder %s47, 1
      %p96 = por %p94, %p95
      %p98 = scmp.ne.s32.totalorder %s81, %s97
      %p99 = scmp.eq.s32.totalorder %s47, 0
      %p100 = por %p98, %p99
      %s102 = sadd.s32 %s101, 1
      %p105 = scmp.eq.s32.totalorder %s41, 1
      %p106 = scmp.ne.s32.totalorder %s101, %s103
      %p107 = scmp.eq.s32.totalorder %s41, 0
      %p108 = por %p106, %p107
      %p109 = scmp.ne.s32.totalorder %s101, %s103
      %p110 = scmp.eq.s32.totalorder %s46, 1
      %p111 = por %p109, %p110
      %p112 = scmp.ne.s32.totalorder %s103, %s104
      %p113 = scmp.eq.s32.totalorder %s46, 0
      %p114 = por %p112, %p113
      %p115 = scmp.ne.s32.totalorder %s103, %s104
      %p116 = scmp.eq.s32.totalorder %s47, 1
      %p117 = por %p115, %p116
      %p119 = scmp.ne.s32.totalorder %s104, %s118
      %p120 = scmp.eq.s32.totalorder %s47, 0
      %p121 = por %p119, %p120
      %s123 = sadd.s32 %s122, 1
      %p126 = scmp.eq.s32.totalorder %s41, 1
      %p127 = scmp.ne.s32.totalorder %s122, %s124
      %p128 = scmp.eq.s32.totalorder %s41, 0
      %p129 = por %p127, %p128
      %p130 = scmp.ne.s32.totalorder %s122, %s124
      %p131 = scmp.eq.s32.totalorder %s46, 1
      %p132 = por %p130, %p131
      %p133 = scmp.ne.s32.totalorder %s124, %s125
      %p134 = scmp.eq.s32.totalorder %s46, 0
      %p135 = por %p133, %p134
      %p136 = scmp.ne.s32.totalorder %s124, %s125
      %p137 = scmp.eq.s32.totalorder %s47, 1
      %p138 = por %p136, %p137
      %p140 = scmp.ne.s32.totalorder %s125, %s139
      %p141 = scmp.eq.s32.totalorder %s47, 0
      %p142 = por %p140, %p141
      %s144 = sadd.s32 %s143, 1
      %p147 = scmp.eq.s32.totalorder %s41, 1
      %p148 = scmp.ne.s32.totalorder %s143, %s145
      %p149 = scmp.eq.s32.totalorder %s41, 0
      %p150 = por %p148, %p149
      %p151 = scmp.ne.s32.totalorder %s143, %s145
      %p152 = scmp.eq.s32.totalorder %s46, 1
      %p153 = por %p151, %p152
      %p154 = scmp.ne.s32.totalorder %s145, %s146
      %p155 = scmp.eq.s32.totalorder %s46, 0
      %p156 = por %p154, %p155
      %p157 = scmp.ne.s32.totalorder %s145, %s146
      %p158 = scmp.eq.s32.totalorder %s47, 1
      %p159 = por %p157, %p158
      %p161 = scmp.ne.s32.totalorder %s146, %s160
      %p162 = scmp.eq.s32.totalorder %s47, 0
      %p163 = por %p161, %p162
      %s165 = sadd.s32 %s164, 1
      %p168 = scmp.eq.s32.totalorder %s41, 1
      %p169 = scmp.ne.s32.totalorder %s164, %s166
      %p170 = scmp.eq.s32.totalorder %s41, 0
      %p171 = por %p169, %p170
      %p172 = scmp.ne.s32.totalorder %s164, %s166
      %p173 = scmp.eq.s32.totalorder %s46, 1
      %p174 = por %p172, %p173
      %p175 = scmp.ne.s32.totalorder %s166, %s167
      %p176 = scmp.eq.s32.totalorder %s46, 0
      %p177 = por %p175, %p176
      %p178 = scmp.ne.s32.totalorder %s166, %s167
      %p179 = scmp.eq.s32.totalorder %s47, 1
      %p180 = por %p178, %p179
      %p182 = scmp.ne.s32.totalorder %s167, %s181
      %p183 = scmp.eq.s32.totalorder %s47, 0
      %p184 = por %p182, %p183
      %s186 = sadd.s32 %s185, 1
      %p189 = scmp.eq.s32.totalorder %s41, 1
      %p190 = scmp.ne.s32.totalorder %s185, %s187
      %p191 = scmp.eq.s32.totalorder %s41, 0
      %p192 = por %p190, %p191
      %p193 = scmp.ne.s32.totalorder %s185, %s187
      %p194 = scmp.eq.s32.totalorder %s46, 1
      %p195 = por %p193, %p194
      %p196 = scmp.ne.s32.totalorder %s187, %s188
      %p197 = scmp.eq.s32.totalorder %s46, 0
      %p198 = por %p196, %p197
      %p199 = scmp.ne.s32.totalorder %s187, %s188
      %p200 = scmp.eq.s32.totalorder %s47, 1
      %p201 = por %p199, %p200
      %p203 = scmp.ne.s32.totalorder %s188, %s202
      %p204 = scmp.eq.s32.totalorder %s47, 0
      %p205 = por %p203, %p204
      %s207 = sadd.s32 %s206, 1
      %p210 = scmp.eq.s32.totalorder %s41, 1
      %p211 = scmp.ne.s32.totalorder %s206, %s208
      %p212 = scmp.eq.s32.totalorder %s41, 0
      %p213 = por %p211, %p212
      %p214 = scmp.ne.s32.totalorder %s206, %s208
      %p215 = scmp.eq.s32.totalorder %s46, 1
      %p216 = por %p214, %p215
      %p217 = scmp.ne.s32.totalorder %s208, %s209
      %p218 = scmp.eq.s32.totalorder %s46, 0
      %p219 = por %p217, %p218
      %p220 = scmp.ne.s32.totalorder %s208, %s209
      %p221 = scmp.eq.s32.totalorder %s47, 1
      %p222 = por %p220, %p221
      %p224 = scmp.ne.s32.totalorder %s209, %s223
      %p225 = scmp.eq.s32.totalorder %s47, 0
      %p226 = por %p224, %p225
      %s228 = sadd.s32 %s227, 1
      %p231 = scmp.eq.s32.totalorder %s41, 1
      %p232 = scmp.ne.s32.totalorder %s227, %s229
      %p233 = scmp.eq.s32.totalorder %s41, 0
      %p234 = por %p232, %p233
      %p235 = scmp.ne.s32.totalorder %s227, %s229
      %p236 = scmp.eq.s32.totalorder %s46, 1
      %p237 = por %p235, %p236
      %p238 = scmp.ne.s32.totalorder %s229, %s230
      %p239 = scmp.eq.s32.totalorder %s46, 0
      %p240 = por %p238, %p239
      %p241 = scmp.ne.s32.totalorder %s229, %s230
      %p242 = scmp.eq.s32.totalorder %s47, 1
      %p243 = por %p241, %p242
      %p245 = scmp.ne.s32.totalorder %s230, %s244
      %p246 = scmp.eq.s32.totalorder %s47, 0
      %p247 = por %p245, %p246
      %s249 = sadd.s32 %s248, 1
      %p252 = scmp.eq.s32.totalorder %s41, 1
      %p253 = scmp.ne.s32.totalorder %s248, %s250
      %p254 = scmp.eq.s32.totalorder %s41, 0
      %p255 = por %p253, %p254
      %p256 = scmp.ne.s32.totalorder %s248, %s250
      %p257 = scmp.eq.s32.totalorder %s46, 1
      %p258 = por %p256, %p257
      %p259 = scmp.ne.s32.totalorder %s250, %s251
      %p260 = scmp.eq.s32.totalorder %s46, 0
      %p261 = por %p259, %p260
      %p262 = scmp.ne.s32.totalorder %s250, %s251
      %p263 = scmp.eq.s32.totalorder %s47, 1
      %p264 = por %p262, %p263
      %p266 = scmp.ne.s32.totalorder %s251, %s265
      %p267 = scmp.eq.s32.totalorder %s47, 0
      %p268 = por %p266, %p267
      %s270 = sadd.s32 %s269, 1
      %p273 = scmp.eq.s32.totalorder %s41, 1
      %p274 = scmp.ne.s32.totalorder %s269, %s271
      %p275 = scmp.eq.s32.totalorder %s41, 0
      %p276 = por %p274, %p275
      %p277 = scmp.ne.s32.totalorder %s269, %s271
      %p278 = scmp.eq.s32.totalorder %s46, 1
      %p279 = por %p277, %p278
      %p280 = scmp.ne.s32.totalorder %s271, %s272
      %p281 = scmp.eq.s32.totalorder %s46, 0
      %p282 = por %p280, %p281
      %p283 = scmp.ne.s32.totalorder %s271, %s272
      %p284 = scmp.eq.s32.totalorder %s47, 1
      %p285 = por %p283, %p284
      %p287 = scmp.ne.s32.totalorder %s272, %s286
      %p288 = scmp.eq.s32.totalorder %s47, 0
      %p289 = por %p287, %p288
      %s291 = sadd.s32 %s290, 1
      %p294 = scmp.eq.s32.totalorder %s41, 1
      %p295 = scmp.ne.s32.totalorder %s290, %s292
      %p296 = scmp.eq.s32.totalorder %s41, 0
      %p297 = por %p295, %p296
      %p298 = scmp.ne.s32.totalorder %s290, %s292
      %p299 = scmp.eq.s32.totalorder %s46, 1
      %p300 = por %p298, %p299
      %p301 = scmp.ne.s32.totalorder %s292, %s293
      %p302 = scmp.eq.s32.totalorder %s46, 0
      %p303 = por %p301, %p302
      %p304 = scmp.ne.s32.totalorder %s292, %s293
      %p305 = scmp.eq.s32.totalorder %s47, 1
      %p306 = por %p304, %p305
      %p308 = scmp.ne.s32.totalorder %s293, %s307
      %p309 = scmp.eq.s32.totalorder %s47, 0
      %p310 = por %p308, %p309
      %s312 = sadd.s32 %s311, 1
      %p315 = scmp.eq.s32.totalorder %s41, 1
      %p316 = scmp.ne.s32.totalorder %s311, %s313
      %p317 = scmp.eq.s32.totalorder %s41, 0
      %p318 = por %p316, %p317
      %p319 = scmp.ne.s32.totalorder %s311, %s313
      %p320 = scmp.eq.s32.totalorder %s46, 1
      %p321 = por %p319, %p320
      %p322 = scmp.ne.s32.totalorder %s313, %s314
      %p323 = scmp.eq.s32.totalorder %s46, 0
      %p324 = por %p322, %p323
      %p325 = scmp.ne.s32.totalorder %s313, %s314
      %p326 = scmp.eq.s32.totalorder %s47, 1
      %p327 = por %p325, %p326
      %p329 = scmp.ne.s32.totalorder %s314, %s328
      %p330 = scmp.eq.s32.totalorder %s47, 0
      %p331 = por %p329, %p330
      %s333 = sadd.s32 %s332, 1
      %p336 = scmp.eq.s32.totalorder %s41, 1
      %p337 = scmp.ne.s32.totalorder %s332, %s334
      %p338 = scmp.eq.s32.totalorder %s41, 0
      %p339 = por %p337, %p338
      %p340 = scmp.ne.s32.totalorder %s332, %s334
      %p341 = scmp.eq.s32.totalorder %s46, 1
      %p342 = por %p340, %p341
      %p343 = scmp.ne.s32.totalorder %s334, %s335
      %p344 = scmp.eq.s32.totalorder %s46, 0
      %p345 = por %p343, %p344
      %p346 = scmp.ne.s32.totalorder %s334, %s335
      %p347 = scmp.eq.s32.totalorder %s47, 1
      %p348 = por %p346, %p347
      %p350 = scmp.ne.s32.totalorder %s335, %s349
      %p351 = scmp.eq.s32.totalorder %s47, 0
      %p352 = por %p350, %p351
      %s354 = sadd.s32 %s353, 1
      %p357 = scmp.eq.s32.totalorder %s41, 1
      %p358 = scmp.ne.s32.totalorder %s353, %s355
      %p359 = scmp.eq.s32.totalorder %s41, 0
      %p360 = por %p358, %p359
      %p361 = scmp.ne.s32.totalorder %s353, %s355
      %p362 = scmp.eq.s32.totalorder %s46, 1
      %p363 = por %p361, %p362
      %p364 = scmp.ne.s32.totalorder %s355, %s356
      %p365 = scmp.eq.s32.totalorder %s46, 0
      %p366 = por %p364, %p365
      %p367 = scmp.ne.s32.totalorder %s355, %s356
      %p368 = scmp.eq.s32.totalorder %s47, 1
      %p369 = por %p367, %p368
      %p371 = scmp.ne.s32.totalorder %s356, %s370
      %p372 = scmp.eq.s32.totalorder %s47, 0
      %p373 = por %p371, %p372
      %s375 = sadd.s32 %s374, 1
      %p378 = scmp.eq.s32.totalorder %s41, 1
      %p379 = scmp.ne.s32.totalorder %s374, %s376
      %p380 = scmp.eq.s32.totalorder %s41, 0
      %p381 = por %p379, %p380
      %p382 = scmp.ne.s32.totalorder %s374, %s376
      %p383 = scmp.eq.s32.totalorder %s46, 1
      %p384 = por %p382, %p383
      %p385 = scmp.ne.s32.totalorder %s376, %s377
      %p386 = scmp.eq.s32.totalorder %s46, 0
      %p387 = por %p385, %p386
      %p388 = scmp.ne.s32.totalorder %s376, %s377
      %p389 = scmp.eq.s32.totalorder %s47, 1
      %p390 = por %p388, %p389
      %p392 = scmp.ne.s32.totalorder %s377, %s391
      %p393 = scmp.eq.s32.totalorder %s47, 0
      %p394 = por %p392, %p393
      %s396 = sadd.s32 %s395, 1
      %p399 = scmp.eq.s32.totalorder %s41, 1
      %p400 = scmp.ne.s32.totalorder %s395, %s397
      %p401 = scmp.eq.s32.totalorder %s41, 0
      %p402 = por %p400, %p401
      %p403 = scmp.ne.s32.totalorder %s395, %s397
      %p404 = scmp.eq.s32.totalorder %s46, 1
      %p405 = por %p403, %p404
      %p406 = scmp.ne.s32.totalorder %s397, %s398
      %p407 = scmp.eq.s32.totalorder %s46, 0
      %p408 = por %p406, %p407
      %p409 = scmp.ne.s32.totalorder %s397, %s398
      %p410 = scmp.eq.s32.totalorder %s47, 1
      %p411 = por %p409, %p410
      %p413 = scmp.ne.s32.totalorder %s398, %s412
      %p414 = scmp.eq.s32.totalorder %s47, 0
      %p415 = por %p413, %p414
      %s417 = sadd.s32 %s416, 1
      %p420 = scmp.eq.s32.totalorder %s41, 1
      %p421 = scmp.ne.s32.totalorder %s416, %s418
      %p422 = scmp.eq.s32.totalorder %s41, 0
      %p423 = por %p421, %p422
      %p424 = scmp.ne.s32.totalorder %s416, %s418
      %p425 = scmp.eq.s32.totalorder %s46, 1
      %p426 = por %p424, %p425
      %p427 = scmp.ne.s32.totalorder %s418, %s419
      %p428 = scmp.eq.s32.totalorder %s46, 0
      %p429 = por %p427, %p428
      %p430 = scmp.ne.s32.totalorder %s418, %s419
      %p431 = scmp.eq.s32.totalorder %s47, 1
      %p432 = por %p430, %p431
      %p434 = scmp.ne.s32.totalorder %s419, %s433
      %p435 = scmp.eq.s32.totalorder %s47, 0
      %p436 = por %p434, %p435
      %s438 = sadd.s32 %s437, 1
      %p441 = scmp.eq.s32.totalorder %s41, 1
      %p442 = scmp.ne.s32.totalorder %s437, %s439
      %p443 = scmp.eq.s32.totalorder %s41, 0
      %p444 = por %p442, %p443
      %p445 = scmp.ne.s32.totalorder %s437, %s439
      %p446 = scmp.eq.s32.totalorder %s46, 1
      %p447 = por %p445, %p446
      %p448 = scmp.ne.s32.totalorder %s439, %s440
      %p449 = scmp.eq.s32.totalorder %s46, 0
      %p450 = por %p448, %p449
      %p451 = scmp.ne.s32.totalorder %s439, %s440
      %p452 = scmp.eq.s32.totalorder %s47, 1
      %p453 = por %p451, %p452
      %p455 = scmp.ne.s32.totalorder %s440, %s454
      %p456 = scmp.eq.s32.totalorder %s47, 0
      %p457 = por %p455, %p456
      %s459 = sadd.s32 %s458, 1
      %p462 = scmp.eq.s32.totalorder %s41, 1
      %p463 = scmp.ne.s32.totalorder %s458, %s460
      %p464 = scmp.eq.s32.totalorder %s41, 0
      %p465 = por %p463, %p464
      %p466 = scmp.ne.s32.totalorder %s458, %s460
      %p467 = scmp.eq.s32.totalorder %s46, 1
      %p468 = por %p466, %p467
      %p469 = scmp.ne.s32.totalorder %s460, %s461
      %p470 = scmp.eq.s32.totalorder %s46, 0
      %p471 = por %p469, %p470
      %p472 = scmp.ne.s32.totalorder %s460, %s461
      %p473 = scmp.eq.s32.totalorder %s47, 1
      %p474 = por %p472, %p473
      %p476 = scmp.ne.s32.totalorder %s461, %s475
      %p477 = scmp.eq.s32.totalorder %s47, 0
      %p478 = por %p476, %p477
      %s480 = sadd.s32 %s479, 1
      %p483 = scmp.eq.s32.totalorder %s41, 1
      %p484 = scmp.ne.s32.totalorder %s479, %s481
      %p485 = scmp.eq.s32.totalorder %s41, 0
      %p486 = por %p484, %p485
      %p487 = scmp.ne.s32.totalorder %s479, %s481
      %p488 = scmp.eq.s32.totalorder %s46, 1
      %p489 = por %p487, %p488
      %p490 = scmp.ne.s32.totalorder %s481, %s482
      %p491 = scmp.eq.s32.totalorder %s46, 0
      %p492 = por %p490, %p491
      %p493 = scmp.ne.s32.totalorder %s481, %s482
      %p494 = scmp.eq.s32.totalorder %s47, 1
      %p495 = por %p493, %p494
      %p497 = scmp.ne.s32.totalorder %s482, %s496
      %p498 = scmp.eq.s32.totalorder %s47, 0
      %p499 = por %p497, %p498
      %s501 = sadd.s32 %s500, 1
      %p504 = scmp.eq.s32.totalorder %s41, 1
      %p505 = scmp.ne.s32.totalorder %s500, %s502
      %p506 = scmp.eq.s32.totalorder %s41, 0
      %p507 = por %p505, %p506
      %p508 = scmp.ne.s32.totalorder %s500, %s502
      %p509 = scmp.eq.s32.totalorder %s46, 1
      %p510 = por %p508, %p509
      %p511 = scmp.ne.s32.totalorder %s502, %s503
      %p512 = scmp.eq.s32.totalorder %s46, 0
      %p513 = por %p511, %p512
      %p514 = scmp.ne.s32.totalorder %s502, %s503
      %p515 = scmp.eq.s32.totalorder %s47, 1
      %p516 = por %p514, %p515
      %p518 = scmp.ne.s32.totalorder %s503, %s517
      %p519 = scmp.eq.s32.totalorder %s47, 0
      %p520 = por %p518, %p519
      %s522 = sadd.s32 %s521, 1
      %p525 = scmp.eq.s32.totalorder %s41, 1
      %p526 = scmp.ne.s32.totalorder %s521, %s523
      %p527 = scmp.eq.s32.totalorder %s41, 0
      %p528 = por %p526, %p527
      %p529 = scmp.ne.s32.totalorder %s521, %s523
      %p530 = scmp.eq.s32.totalorder %s46, 1
      %p531 = por %p529, %p530
      %p532 = scmp.ne.s32.totalorder %s523, %s524
      %p533 = scmp.eq.s32.totalorder %s46, 0
      %p534 = por %p532, %p533
      %p535 = scmp.ne.s32.totalorder %s523, %s524
      %p536 = scmp.eq.s32.totalorder %s47, 1
      %p537 = por %p535, %p536
      %p539 = scmp.ne.s32.totalorder %s524, %s538
      %p540 = scmp.eq.s32.totalorder %s47, 0
      %p541 = por %p539, %p540
      %s543 = sadd.s32 %s542, 1
      %p546 = scmp.eq.s32.totalorder %s41, 1
      %p547 = scmp.ne.s32.totalorder %s542, %s544
      %p548 = scmp.eq.s32.totalorder %s41, 0
      %p549 = por %p547, %p548
      %p550 = scmp.ne.s32.totalorder %s542, %s544
      %p551 = scmp.eq.s32.totalorder %s46, 1
      %p552 = por %p550, %p551
      %p553 = scmp.ne.s32.totalorder %s544, %s545
      %p554 = scmp.eq.s32.totalorder %s46, 0
      %p555 = por %p553, %p554
      %p556 = scmp.ne.s32.totalorder %s544, %s545
      %p557 = scmp.eq.s32.totalorder %s47, 1
      %p558 = por %p556, %p557
      %p560 = scmp.ne.s32.totalorder %s545, %s559
      %p561 = scmp.eq.s32.totalorder %s47, 0
      %p562 = por %p560, %p561
      %s563 = ssub.s32 %s41, %s48
      %p564 = scmp.eq.s32.totalorder %s563, 0
      %s566 = sadd.s32 %s565, 1
      %s567 = scalar_select %p564, %s565, %s566
      %p570 = pneg %p564
      %p571 = scmp.eq.s32.totalorder %s41, 1
      %p572 = por %p570, %p571
      %p573 = scmp.ne.s32.totalorder %s565, %s568
      %p574 = scmp.eq.s32.totalorder %s41, 0
      %p575 = por %p573, %p574
      %p576 = scmp.ne.s32.totalorder %s565, %s568
      %p577 = scmp.eq.s32.totalorder %s46, 1
      %p578 = por %p576, %p577
      %p579 = scmp.ne.s32.totalorder %s568, %s569
      %p580 = scmp.eq.s32.totalorder %s46, 0
      %p581 = por %p579, %p580
      %p582 = scmp.ne.s32.totalorder %s568, %s569
      %p583 = scmp.eq.s32.totalorder %s47, 1
      %p584 = por %p582, %p583
      %p586 = scmp.ne.s32.totalorder %s569, %s585
      %p587 = scmp.eq.s32.totalorder %s47, 0
      %p588 = por %p586, %p587
      %p589 = scmp.le.s32.totalorder 1, %s41
      %p590 = scmp.lt.s32.totalorder %s41, 3
      %p591 = pnand %p589, %p590
      %p592 = pneg %p591
      // Predicated region
      $region9: #{rec2_forward.1} parent=5 // pred_check
        _
      $region10: #{rec2_forward.1} parent=5 // pred_check_branch
        %594 = sbr.rel (%p591) target = $region12
      $region11: #{rec2_forward.1} parent=5 // pred_region
        %s595 = ssub.s32 %s41, 1
        // Predicated region
        $region13: #{rec2_forward.1} parent=11 // pred_check
          %p596 = pneg %p114
        $region14: #{rec2_forward.1} parent=11 // pred_check_branch
          %598 = sbr.rel (%p596) target = $region16
        $region15: #{rec2_forward.1} parent=11 // pred_region
          _
        $region16: #{rec2_forward.1} parent=11 // pred_fallthru
          _
        // Predicated region
        $region17: #{rec2_forward.1} parent=11 // pred_check
          %p599 = pneg %p135
        $region18: #{rec2_forward.1} parent=11 // pred_check_branch
          %601 = sbr.rel (%p599) target = $region20
        $region19: #{rec2_forward.1} parent=11 // pred_region
          _
        $region20: #{rec2_forward.1} parent=11 // pred_fallthru
          _
        // Predicated region
        $region21: #{rec2_forward.1} parent=11 // pred_check
          %p602 = pneg %p156
        $region22: #{rec2_forward.1} parent=11 // pred_check_branch
          %604 = sbr.rel (%p602) target = $region24
        $region23: #{rec2_forward.1} parent=11 // pred_region
          %s606 = ssub.s32 32, 32
          %607 = vsyncadd [#allocation4], %s606
          %s609 = sshll.u32 [#allocation3], 4
          %s610 = int_to_ptr.vmem [resolvable:$true] %s609
          %612 = dma.hbm_to_vmem [thread:$0]  %s4, 32, %s610, [#allocation4]
        $region24: #{rec2_forward.1} parent=11 // pred_fallthru
          _
        // Predicated region
        $region25: #{rec2_forward.1} parent=11 // pred_check
          %p613 = pneg %p177
        $region26: #{rec2_forward.1} parent=11 // pred_check_branch
          %615 = sbr.rel (%p613) target = $region28
        $region27: #{rec2_forward.1} parent=11 // pred_region
          _
        $region28: #{rec2_forward.1} parent=11 // pred_fallthru
          _
        // Predicated region
        $region29: #{rec2_forward.1} parent=11 // pred_check
          %p616 = pneg %p198
        $region30: #{rec2_forward.1} parent=11 // pred_check_branch
          %618 = sbr.rel (%p616) target = $region32
        $region31: #{rec2_forward.1} parent=11 // pred_region
          %s620 = ssub.s32 4096, 4096
          %621 = vsyncadd [#allocation6], %s620
          %s622 = sshll.u32 [#allocation5], 4
          %s623 = int_to_ptr.vmem [resolvable:$true] %s622
          %628 = dma.hbm_to_vmem [thread:$0]  %s6, 4096, %s623, [#allocation6], 128, 128, 8
        $region32: #{rec2_forward.1} parent=11 // pred_fallthru
          _
        // Predicated region
        $region33: #{rec2_forward.1} parent=11 // pred_check
          %p629 = pneg %p219
        $region34: #{rec2_forward.1} parent=11 // pred_check_branch
          %631 = sbr.rel (%p629) target = $region36
        $region35: #{rec2_forward.1} parent=11 // pred_region
          %s633 = ssub.s32 4096, 4096
          %634 = vsyncadd [#allocation6], %s633
          %s635 = sshll.u32 [#allocation7], 4
          %s636 = int_to_ptr.vmem [resolvable:$true] %s635
          %641 = dma.hbm_to_vmem [thread:$0]  %s7, 4096, %s636, [#allocation6], 128, 128, 8
        $region36: #{rec2_forward.1} parent=11 // pred_fallthru
          _
        // Predicated region
        $region37: #{rec2_forward.1} parent=11 // pred_check
          %p642 = pneg %p240
        $region38: #{rec2_forward.1} parent=11 // pred_check_branch
          %644 = sbr.rel (%p642) target = $region40
        $region39: #{rec2_forward.1} parent=11 // pred_region
          %s646 = ssub.s32 32, 32
          %647 = vsyncadd [#allocation9], %s646
          %s649 = sshll.u32 [#allocation8], 4
          %s650 = int_to_ptr.vmem [resolvable:$true] %s649
          %652 = dma.hbm_to_vmem [thread:$0]  %s8, 32, %s650, [#allocation9]
        $region40: #{rec2_forward.1} parent=11 // pred_fallthru
          _
        // Predicated region
        $region41: #{rec2_forward.1} parent=11 // pred_check
          %p653 = pneg %p261
        $region42: #{rec2_forward.1} parent=11 // pred_check_branch
          %655 = sbr.rel (%p653) target = $region44
        $region43: #{rec2_forward.1} parent=11 // pred_region
          %s657 = ssub.s32 32, 32
          %658 = vsyncadd [#allocation9], %s657
          %s660 = sshll.u32 [#allocation10], 4
          %s661 = int_to_ptr.vmem [resolvable:$true] %s660
          %663 = dma.hbm_to_vmem [thread:$0]  %s9, 32, %s661, [#allocation9]
        $region44: #{rec2_forward.1} parent=11 // pred_fallthru
          _
        // Predicated region
        $region45: #{rec2_forward.1} parent=11 // pred_check
          %p664 = pneg %p282
        $region46: #{rec2_forward.1} parent=11 // pred_check_branch
          %666 = sbr.rel (%p664) target = $region48
        $region47: #{rec2_forward.1} parent=11 // pred_region
          %s668 = ssub.s32 4096, 4096
          %669 = vsyncadd [#allocation12], %s668
          %s670 = sshll.u32 [#allocation11], 4
          %s671 = int_to_ptr.vmem [resolvable:$true] %s670
          %676 = dma.hbm_to_vmem [thread:$0]  %s10, 4096, %s671, [#allocation12], 128, 128, 8
        $region48: #{rec2_forward.1} parent=11 // pred_fallthru
          _
        // Predicated region
        $region49: #{rec2_forward.1} parent=11 // pred_check
          %p677 = pneg %p303
        $region50: #{rec2_forward.1} parent=11 // pred_check_branch
          %679 = sbr.rel (%p677) target = $region52
        $region51: #{rec2_forward.1} parent=11 // pred_region
          %s681 = ssub.s32 4096, 4096
          %682 = vsyncadd [#allocation12], %s681
          %s683 = sshll.u32 [#allocation13], 4
          %s684 = int_to_ptr.vmem [resolvable:$true] %s683
          %689 = dma.hbm_to_vmem [thread:$0]  %s11, 4096, %s684, [#allocation12], 128, 128, 8
        $region52: #{rec2_forward.1} parent=11 // pred_fallthru
          _
        // Predicated region
        $region53: #{rec2_forward.1} parent=11 // pred_check
          %p690 = pneg %p324
        $region54: #{rec2_forward.1} parent=11 // pred_check_branch
          %692 = sbr.rel (%p690) target = $region56
        $region55: #{rec2_forward.1} parent=11 // pred_region
          %s694 = ssub.s32 32, 32
          %695 = vsyncadd [#allocation15], %s694
          %s697 = sshll.u32 [#allocation14], 4
          %s698 = int_to_ptr.vmem [resolvable:$true] %s697
          %700 = dma.hbm_to_vmem [thread:$0]  %s12, 32, %s698, [#allocation15]
        $region56: #{rec2_forward.1} parent=11 // pred_fallthru
          _
        // Predicated region
        $region57: #{rec2_forward.1} parent=11 // pred_check
          %p701 = pneg %p345
        $region58: #{rec2_forward.1} parent=11 // pred_check_branch
          %703 = sbr.rel (%p701) target = $region60
        $region59: #{rec2_forward.1} parent=11 // pred_region
          %s705 = ssub.s32 32, 32
          %706 = vsyncadd [#allocation15], %s705
          %s708 = sshll.u32 [#allocation16], 4
          %s709 = int_to_ptr.vmem [resolvable:$true] %s708
          %711 = dma.hbm_to_vmem [thread:$0]  %s13, 32, %s709, [#allocation15]
        $region60: #{rec2_forward.1} parent=11 // pred_fallthru
          _
        // Predicated region
        $region61: #{rec2_forward.1} parent=11 // pred_check
          %p712 = pneg %p366
        $region62: #{rec2_forward.1} parent=11 // pred_check_branch
          %714 = sbr.rel (%p712) target = $region64
        $region63: #{rec2_forward.1} parent=11 // pred_region
          %s716 = ssub.s32 4096, 4096
          %717 = vsyncadd [#allocation18], %s716
          %s718 = sshll.u32 [#allocation17], 4
          %s719 = int_to_ptr.vmem [resolvable:$true] %s718
          %724 = dma.hbm_to_vmem [thread:$0]  %s14, 4096, %s719, [#allocation18], 128, 128, 8
        $region64: #{rec2_forward.1} parent=11 // pred_fallthru
          _
        // Predicated region
        $region65: #{rec2_forward.1} parent=11 // pred_check
          %p725 = pneg %p387
        $region66: #{rec2_forward.1} parent=11 // pred_check_branch
          %727 = sbr.rel (%p725) target = $region68
        $region67: #{rec2_forward.1} parent=11 // pred_region
          %s729 = ssub.s32 4096, 4096
          %730 = vsyncadd [#allocation18], %s729
          %s731 = sshll.u32 [#allocation19], 4
          %s732 = int_to_ptr.vmem [resolvable:$true] %s731
          %737 = dma.hbm_to_vmem [thread:$0]  %s15, 4096, %s732, [#allocation18], 128, 128, 8
        $region68: #{rec2_forward.1} parent=11 // pred_fallthru
          _
        // Predicated region
        $region69: #{rec2_forward.1} parent=11 // pred_check
          %p738 = pneg %p408
        $region70: #{rec2_forward.1} parent=11 // pred_check_branch
          %740 = sbr.rel (%p738) target = $region72
        $region71: #{rec2_forward.1} parent=11 // pred_region
          %s742 = ssub.s32 32, 32
          %743 = vsyncadd [#allocation21], %s742
          %s745 = sshll.u32 [#allocation20], 4
          %s746 = int_to_ptr.vmem [resolvable:$true] %s745
          %748 = dma.hbm_to_vmem [thread:$0]  %s16, 32, %s746, [#allocation21]
        $region72: #{rec2_forward.1} parent=11 // pred_fallthru
          _
        // Predicated region
        $region73: #{rec2_forward.1} parent=11 // pred_check
          %p749 = pneg %p429
        $region74: #{rec2_forward.1} parent=11 // pred_check_branch
          %751 = sbr.rel (%p749) target = $region76
        $region75: #{rec2_forward.1} parent=11 // pred_region
          %s753 = ssub.s32 32, 32
          %754 = vsyncadd [#allocation21], %s753
          %s756 = sshll.u32 [#allocation22], 4
          %s757 = int_to_ptr.vmem [resolvable:$true] %s756
          %759 = dma.hbm_to_vmem [thread:$0]  %s17, 32, %s757, [#allocation21]
        $region76: #{rec2_forward.1} parent=11 // pred_fallthru
          _
        // Predicated region
        $region77: #{rec2_forward.1} parent=11 // pred_check
          %p760 = pneg %p450
        $region78: #{rec2_forward.1} parent=11 // pred_check_branch
          %762 = sbr.rel (%p760) target = $region80
        $region79: #{rec2_forward.1} parent=11 // pred_region
          _
        $region80: #{rec2_forward.1} parent=11 // pred_fallthru
          _
        // Predicated region
        $region81: #{rec2_forward.1} parent=11 // pred_check
          %p763 = pneg %p471
        $region82: #{rec2_forward.1} parent=11 // pred_check_branch
          %765 = sbr.rel (%p763) target = $region84
        $region83: #{rec2_forward.1} parent=11 // pred_region
          %s767 = ssub.s32 32, 32
          %768 = vsyncadd [#allocation24], %s767
          %s770 = sshll.u32 [#allocation23], 4
          %s771 = int_to_ptr.vmem [resolvable:$true] %s770
          %773 = dma.hbm_to_vmem [thread:$0]  %s19, 32, %s771, [#allocation24]
        $region84: #{rec2_forward.1} parent=11 // pred_fallthru
          _
        // Predicated region
        $region85: #{rec2_forward.1} parent=11 // pred_check
          %p774 = pneg %p492
        $region86: #{rec2_forward.1} parent=11 // pred_check_branch
          %776 = sbr.rel (%p774) target = $region88
        $region87: #{rec2_forward.1} parent=11 // pred_region
          _
        $region88: #{rec2_forward.1} parent=11 // pred_fallthru
          _
        // Predicated region
        $region89: #{rec2_forward.1} parent=11 // pred_check
          %p777 = pneg %p513
        $region90: #{rec2_forward.1} parent=11 // pred_check_branch
          %779 = sbr.rel (%p777) target = $region92
        $region91: #{rec2_forward.1} parent=11 // pred_region
          %s781 = ssub.s32 16, 16
          %782 = vsyncadd [#allocation24], %s781
          %s784 = sshll.u32 [#allocation25], 4
          %s785 = int_to_ptr.vmem [resolvable:$true] %s784
          %787 = dma.hbm_to_vmem [thread:$0]  %s21, 16, %s785, [#allocation24]
        $region92: #{rec2_forward.1} parent=11 // pred_fallthru
          _
        // Predicated region
        $region93: #{rec2_forward.1} parent=11 // pred_check
          %p788 = pneg %p534
        $region94: #{rec2_forward.1} parent=11 // pred_check_branch
          %790 = sbr.rel (%p788) target = $region96
        $region95: #{rec2_forward.1} parent=11 // pred_region
          %s792 = ssub.s32 16, 16
          %793 = vsyncadd [#allocation27], %s792
          %s795 = sshll.u32 [#allocation26], 4
          %s796 = int_to_ptr.vmem [resolvable:$true] %s795
          %798 = dma.hbm_to_vmem [thread:$0]  %s22, 16, %s796, [#allocation27]
        $region96: #{rec2_forward.1} parent=11 // pred_fallthru
          _
        // Predicated region
        $region97: #{rec2_forward.1} parent=11 // pred_check
          %p799 = pneg %p555
        $region98: #{rec2_forward.1} parent=11 // pred_check_branch
          %801 = sbr.rel (%p799) target = $region100
        $region99: #{rec2_forward.1} parent=11 // pred_region
          _
        $region100: #{rec2_forward.1} parent=11 // pred_fallthru
          _
      $region12: #{rec2_forward.1} parent=5 // pred_fallthru
        _
      %p802 = scmp.lt.s32.totalorder %s41, 2
      // Predicated region
      $region101: #{rec2_forward.1} parent=5 // pred_check
        %p803 = pneg %p802
      $region102: #{rec2_forward.1} parent=5 // pred_check_branch
        %805 = sbr.rel (%p803) target = $region104
      $region103: #{rec2_forward.1} parent=5 // pred_region
        // Predicated region
        $region105: #{rec2_forward.1} parent=103 // pred_check
          %p806 = pneg %p61
        $region106: #{rec2_forward.1} parent=103 // pred_check_branch
          %808 = sbr.rel (%p806) target = $region108
        $region107: #{rec2_forward.1} parent=103 // pred_region
          %p809 = scmp.lt.s32.totalorder %s41, 1
          %s810 = scalar_select %p809, %s41, 1
          %s811 = smul.addr %s810, 4
          %s812 = smul.addr %s811, 8
          %s813 = scalar_lea.vmem %s0, %s812
        $region108: #{rec2_forward.1} parent=103 // pred_fallthru
          _
        // Predicated region
        $region109: #{rec2_forward.1} parent=103 // pred_check
          %p814 = pneg %p87
        $region110: #{rec2_forward.1} parent=103 // pred_check_branch
          %816 = sbr.rel (%p814) target = $region112
        $region111: #{rec2_forward.1} parent=103 // pred_region
          %p817 = scmp.lt.s32.totalorder %s41, 1
          %s818 = scalar_select %p817, %s41, 1
          %s819 = smul.addr %s818, 2
          %s820 = smul.addr %s819, 4
          %s821 = scalar_lea.vmem %s1, %s820
        $region112: #{rec2_forward.1} parent=103 // pred_fallthru
          _
      $region104: #{rec2_forward.1} parent=5 // pred_fallthru
        _
      %p822 = scmp.le.s32.totalorder 1, %s41
      %p823 = scmp.lt.s32.totalorder %s41, 3
      %p824 = pnand %p822, %p823
      %p825 = pneg %p824
      // Predicated region
      $region113: #{rec2_forward.1} parent=5 // pred_check
        _
      $region114: #{rec2_forward.1} parent=5 // pred_check_branch
        %827 = sbr.rel (%p824) target = $region116
      $region115: #{rec2_forward.1} parent=5 // pred_region
        %s828 = ssub.s32 %s41, 1
        // Predicated region
        $region117: #{rec2_forward.1} parent=115 // pred_check
          %p829 = pneg %p156
        $region118: #{rec2_forward.1} parent=115 // pred_check_branch
          %831 = sbr.rel (%p829) target = $region120
        $region119: #{rec2_forward.1} parent=115 // pred_region
          %832 = dma.done [#allocation4], 32
        $region120: #{rec2_forward.1} parent=115 // pred_fallthru
          _
        // Predicated region
        $region121: #{rec2_forward.1} parent=115 // pred_check
          %p833 = pneg %p198
        $region122: #{rec2_forward.1} parent=115 // pred_check_branch
          %835 = sbr.rel (%p833) target = $region124
        $region123: #{rec2_forward.1} parent=115 // pred_region
          %836 = dma.done [#allocation6], 4096
        $region124: #{rec2_forward.1} parent=115 // pred_fallthru
          _
        // Predicated region
        $region125: #{rec2_forward.1} parent=115 // pred_check
          %p837 = pneg %p219
        $region126: #{rec2_forward.1} parent=115 // pred_check_branch
          %839 = sbr.rel (%p837) target = $region128
        $region127: #{rec2_forward.1} parent=115 // pred_region
          %840 = dma.done [#allocation6], 4096
        $region128: #{rec2_forward.1} parent=115 // pred_fallthru
          _
        // Predicated region
        $region129: #{rec2_forward.1} parent=115 // pred_check
          %p841 = pneg %p240
        $region130: #{rec2_forward.1} parent=115 // pred_check_branch
          %843 = sbr.rel (%p841) target = $region132
        $region131: #{rec2_forward.1} parent=115 // pred_region
          %844 = dma.done [#allocation9], 32
        $region132: #{rec2_forward.1} parent=115 // pred_fallthru
          _
        // Predicated region
        $region133: #{rec2_forward.1} parent=115 // pred_check
          %p845 = pneg %p261
        $region134: #{rec2_forward.1} parent=115 // pred_check_branch
          %847 = sbr.rel (%p845) target = $region136
        $region135: #{rec2_forward.1} parent=115 // pred_region
          %848 = dma.done [#allocation9], 32
        $region136: #{rec2_forward.1} parent=115 // pred_fallthru
          _
        // Predicated region
        $region137: #{rec2_forward.1} parent=115 // pred_check
          %p849 = pneg %p282
        $region138: #{rec2_forward.1} parent=115 // pred_check_branch
          %851 = sbr.rel (%p849) target = $region140
        $region139: #{rec2_forward.1} parent=115 // pred_region
          %852 = dma.done [#allocation12], 4096
        $region140: #{rec2_forward.1} parent=115 // pred_fallthru
          _
        // Predicated region
        $region141: #{rec2_forward.1} parent=115 // pred_check
          %p853 = pneg %p303
        $region142: #{rec2_forward.1} parent=115 // pred_check_branch
          %855 = sbr.rel (%p853) target = $region144
        $region143: #{rec2_forward.1} parent=115 // pred_region
          %856 = dma.done [#allocation12], 4096
        $region144: #{rec2_forward.1} parent=115 // pred_fallthru
          _
        // Predicated region
        $region145: #{rec2_forward.1} parent=115 // pred_check
          %p857 = pneg %p324
        $region146: #{rec2_forward.1} parent=115 // pred_check_branch
          %859 = sbr.rel (%p857) target = $region148
        $region147: #{rec2_forward.1} parent=115 // pred_region
          %860 = dma.done [#allocation15], 32
        $region148: #{rec2_forward.1} parent=115 // pred_fallthru
          _
        // Predicated region
        $region149: #{rec2_forward.1} parent=115 // pred_check
          %p861 = pneg %p345
        $region150: #{rec2_forward.1} parent=115 // pred_check_branch
          %863 = sbr.rel (%p861) target = $region152
        $region151: #{rec2_forward.1} parent=115 // pred_region
          %864 = dma.done [#allocation15], 32
        $region152: #{rec2_forward.1} parent=115 // pred_fallthru
          _
        // Predicated region
        $region153: #{rec2_forward.1} parent=115 // pred_check
          %p865 = pneg %p366
        $region154: #{rec2_forward.1} parent=115 // pred_check_branch
          %867 = sbr.rel (%p865) target = $region156
        $region155: #{rec2_forward.1} parent=115 // pred_region
          %868 = dma.done [#allocation18], 4096
        $region156: #{rec2_forward.1} parent=115 // pred_fallthru
          _
        // Predicated region
        $region157: #{rec2_forward.1} parent=115 // pred_check
          %p869 = pneg %p387
        $region158: #{rec2_forward.1} parent=115 // pred_check_branch
          %871 = sbr.rel (%p869) target = $region160
        $region159: #{rec2_forward.1} parent=115 // pred_region
          %872 = dma.done [#allocation18], 4096
        $region160: #{rec2_forward.1} parent=115 // pred_fallthru
          _
        // Predicated region
        $region161: #{rec2_forward.1} parent=115 // pred_check
          %p873 = pneg %p408
        $region162: #{rec2_forward.1} parent=115 // pred_check_branch
          %875 = sbr.rel (%p873) target = $region164
        $region163: #{rec2_forward.1} parent=115 // pred_region
          %876 = dma.done [#allocation21], 32
        $region164: #{rec2_forward.1} parent=115 // pred_fallthru
          _
        // Predicated region
        $region165: #{rec2_forward.1} parent=115 // pred_check
          %p877 = pneg %p429
        $region166: #{rec2_forward.1} parent=115 // pred_check_branch
          %879 = sbr.rel (%p877) target = $region168
        $region167: #{rec2_forward.1} parent=115 // pred_region
          %880 = dma.done [#allocation21], 32
        $region168: #{rec2_forward.1} parent=115 // pred_fallthru
          _
        // Predicated region
        $region169: #{rec2_forward.1} parent=115 // pred_check
          %p881 = pneg %p471
        $region170: #{rec2_forward.1} parent=115 // pred_check_branch
          %883 = sbr.rel (%p881) target = $region172
        $region171: #{rec2_forward.1} parent=115 // pred_region
          %884 = dma.done [#allocation24], 32
        $region172: #{rec2_forward.1} parent=115 // pred_fallthru
          _
        // Predicated region
        $region173: #{rec2_forward.1} parent=115 // pred_check
          %p885 = pneg %p513
        $region174: #{rec2_forward.1} parent=115 // pred_check_branch
          %887 = sbr.rel (%p885) target = $region176
        $region175: #{rec2_forward.1} parent=115 // pred_region
          %888 = dma.done [#allocation24], 16
        $region176: #{rec2_forward.1} parent=115 // pred_fallthru
          _
        // Predicated region
        $region177: #{rec2_forward.1} parent=115 // pred_check
          %p889 = pneg %p534
        $region178: #{rec2_forward.1} parent=115 // pred_check_branch
          %891 = sbr.rel (%p889) target = $region180
        $region179: #{rec2_forward.1} parent=115 // pred_region
          %892 = dma.done [#allocation27], 16
        $region180: #{rec2_forward.1} parent=115 // pred_fallthru
          _
        %p893 = scmp.lt.s32.totalorder %s46, 1
        %s894 = scalar_select %p893, %s46, 1
        %s895 = smul.addr %s894, 4
        %s896 = smul.addr %s895, 8
        %s897 = scalar_lea.vmem %s0, %s896
        %p898 = pneg %p67
        %p899 = pneg %p64
        %p900 = scmp.lt.s32.totalorder %s46, 1
        %s901 = scalar_select %p900, %s46, 1
        %s902 = smul.addr %s901, 2
        %s903 = smul.addr %s902, 4
        %s904 = scalar_lea.vmem %s1, %s903
        %p905 = pneg %p93
        %p906 = pneg %p90
        %p907 = pneg %p114
        %p908 = pneg %p111
        %p909 = pneg %p135
        %p910 = pneg %p132
        %p911 = pneg %p156
        %p912 = pneg %p153
        %p913 = pneg %p177
        %p914 = pneg %p174
        %p915 = pneg %p198
        %p916 = pneg %p195
        %p917 = pneg %p219
        %p918 = pneg %p216
        %p919 = pneg %p240
        %p920 = pneg %p237
        %p921 = pneg %p261
        %p922 = pneg %p258
        %p923 = pneg %p282
        %p924 = pneg %p279
        %p925 = pneg %p303
        %p926 = pneg %p300
        %p927 = pneg %p324
        %p928 = pneg %p321
        %p929 = pneg %p345
        %p930 = pneg %p342
        %p931 = pneg %p366
        %p932 = pneg %p363
        %p933 = pneg %p387
        %p934 = pneg %p384
        %p935 = pneg %p408
        %p936 = pneg %p405
        %p937 = pneg %p429
        %p938 = pneg %p426
        %p939 = pneg %p450
        %p940 = pneg %p447
        %p941 = pneg %p471
        %p942 = pneg %p468
        %p943 = pneg %p492
        %p944 = pneg %p489
        %p945 = pneg %p513
        %p946 = pneg %p510
        %p947 = pneg %p534
        %p948 = pneg %p531
        %p949 = pneg %p555
        %p950 = pneg %p552
        %p951 = pneg %p581
        %p952 = pneg %p578
        %p953 = scmp.lt.s32.totalorder %s46, 1
        %s954 = scalar_select %p953, %s46, 1
        %s955 = scalar_lea.vmem %s24, %s954
        %p956 = scmp.lt.s32.totalorder %s46, 1
        %s957 = scalar_select %p956, %s46, 1
        %s958 = smul.addr %s957, 4
        %s959 = smul.addr %s958, 8
        %s960 = scalar_lea.vmem %s0, %s959
        %p961 = scmp.lt.s32.totalorder %s46, 1
        %s962 = scalar_select %p961, %s46, 1
        %s963 = smul.addr %s962, 2
        %s964 = smul.addr %s963, 4
        %s965 = scalar_lea.vmem %s1, %s964
        %p966 = scmp.lt.s32.totalorder %s46, 1
        %s967 = scalar_select %p966, %s46, 1
        %s968 = scalar_lea.vmem %s24, %s967
        %v970 = vld [vmem:[%s960] sm:$0xff]
        %v971 = vld [vmem:[%s960 + $0x8] sm:$0xff]
        %v972 = vld [vmem:[%s960 + $0x10] sm:$0xff]
        %v973 = vld [vmem:[%s960 + $0x18] sm:$0xff]
        %v974 = vld [vmem:[%s965] sm:$0xf]
        %v975 = vld [vmem:[%s965 + $0x4] sm:$0xf]
        %v976 = vpack.c.bf16 %v972, %v970
        %v977 = vpack.c.bf16 %v973, %v971
        %v980 = vunpack.c.l.b16 %v974
        %v981 = vunpack.c.l.b16 %v975
        %v982 = vpack.c.b16 %v981, %v980
        %vm983 = vcmask 130048
        %v985 = vsel %vm983, %v982, 0
        %987 = vmatprep.subr.bf16.mxu0 %v977
        %988 = vmatpush1.bf16.msra.mxu0 %v976
        %989 = vmatprep.subr.bf16.mxu0 0
        %990 = vmatpush1.bf16.msra.mxu0 0
        %991 = vmatprep.subr.bf16.mxu0 0
        %992 = vmatpush1.bf16.msra.mxu0 0
        %993 = vmatprep.subr.bf16.mxu0 0
        %994 = vmatpush1.bf16.msra.mxu0 0
        %995 = vmatprep.subr.bf16.mxu0 0
        %996 = vmatpush1.bf16.msra.mxu0 0
        %997 = vmatprep.subr.bf16.mxu0 0
        %998 = vmatpush1.bf16.msra.mxu0 0
        %999 = vmatprep.subr.bf16.mxu0 0
        %1000 = vmatpush1.bf16.msra.mxu0 0
        %1001 = vmatprep.subr.bf16.mxu0 0
        %1002 = vmatpush1.bf16.msra.mxu0 0
        %1003 = vmatprep.subr.bf16.mxu0 0
        %1004 = vmatpush1.bf16.msra.mxu0 0
        %1005 = vmatprep.subr.bf16.mxu0 0
        %1006 = vmatpush1.bf16.msra.mxu0 0
        %1007 = vmatprep.subr.bf16.mxu0 0
        %1008 = vmatpush1.bf16.msra.mxu0 0
        %1009 = vmatprep.subr.bf16.mxu0 0
        %1010 = vmatpush1.bf16.msra.mxu0 0
        %1011 = vmatprep.subr.bf16.mxu0 0
        %1012 = vmatpush1.bf16.msra.mxu0 0
        %1013 = vmatprep.subr.bf16.mxu0 0
        %1014 = vmatpush1.bf16.msra.mxu0 0
        %1015 = vmatprep.subr.bf16.mxu0 0
        %1016 = vmatpush1.bf16.msra.mxu0 0
        %1017 = vmatprep.subr.bf16.mxu0 0
        %1018 = vmatpush1.bf16.msra.mxu0 0
        %1019 = vmatprep.mubr.bf16.mxu0 0
        %1020 = vmatmul.mubr.bf16.gmra.mrb[0].mxu0 %v985
        %v1021 = vpop.f32.mrb[0].mxu0
        %v1022 = vadd.f32 0.0, %v1021
        %v1023 = vpop.f32.mrb[0].mxu0
        %v1024 = vadd.f32 0.0, %v1023
        %v1025 = vpop.f32.mrb[0].mxu0
        %v1026 = vadd.f32 0.0, %v1025
        %v1027 = vpop.f32.mrb[0].mxu0
        %v1028 = vadd.f32 0.0, %v1027
        %1029 = vdwg.mxu0
        %v1030 = vld [vmem:[%s2] sm:$0xff]
        %v1031 = vld [vmem:[%s2 + $0x8] sm:$0xff]
        %v1032 = vld [vmem:[%s2 + $0x10] sm:$0xff]
        %v1033 = vld [vmem:[%s2 + $0x18] sm:$0xff]
        %v1034 = vld [vmem:[%s2 + $0x20] sm:$0xff]
        %v1035 = vld [vmem:[%s2 + $0x28] sm:$0xff]
        %v1036 = vld [vmem:[%s2 + $0x30] sm:$0xff]
        %v1037 = vld [vmem:[%s2 + $0x38] sm:$0xff]
        %v1038 = vld [vmem:[%s2 + $0x40] sm:$0xff]
        %v1039 = vld [vmem:[%s2 + $0x48] sm:$0xff]
        %v1040 = vld [vmem:[%s2 + $0x50] sm:$0xff]
        %v1041 = vld [vmem:[%s2 + $0x58] sm:$0xff]
        %v1042 = vld [vmem:[%s2 + $0x60] sm:$0xff]
        %v1043 = vld [vmem:[%s2 + $0x68] sm:$0xff]
        %v1044 = vld [vmem:[%s2 + $0x70] sm:$0xff]
        %v1045 = vld [vmem:[%s2 + $0x78] sm:$0xff]
        %v1046 = vld [vmem:[%s2 + $0x80] sm:$0xff]
        %v1047 = vld [vmem:[%s2 + $0x88] sm:$0xff]
        %v1048 = vld [vmem:[%s2 + $0x90] sm:$0xff]
        %v1049 = vld [vmem:[%s2 + $0x98] sm:$0xff]
        %v1050 = vld [vmem:[%s2 + $0xa0] sm:$0xff]
        %v1051 = vld [vmem:[%s2 + $0xa8] sm:$0xff]
        %v1052 = vld [vmem:[%s2 + $0xb0] sm:$0xff]
        %v1053 = vld [vmem:[%s2 + $0xb8] sm:$0xff]
        %v1054 = vld [vmem:[%s2 + $0xc0] sm:$0xff]
        %v1055 = vld [vmem:[%s2 + $0xc8] sm:$0xff]
        %v1056 = vld [vmem:[%s2 + $0xd0] sm:$0xff]
        %v1057 = vld [vmem:[%s2 + $0xd8] sm:$0xff]
        %v1058 = vld [vmem:[%s2 + $0xe0] sm:$0xff]
        %v1059 = vld [vmem:[%s2 + $0xe8] sm:$0xff]
        %v1060 = vld [vmem:[%s2 + $0xf0] sm:$0xff]
        %v1061 = vld [vmem:[%s2 + $0xf8] sm:$0xff]
        %v1062 = vpack.c.bf16 %v1026, %v1022
        %v1063 = vpack.c.bf16 %v1028, %v1024
        %v1064 = vld [vmem:[%s3] sm:$0xff]
        %v1065 = vld [vmem:[%s3 + $0x8] sm:$0xff]
        %v1066 = vld [vmem:[%s3 + $0x10] sm:$0xff]
        %v1067 = vld [vmem:[%s3 + $0x18] sm:$0xff]
        %v1068 = vld [vmem:[%s3 + $0x20] sm:$0xff]
        %v1069 = vld [vmem:[%s3 + $0x28] sm:$0xff]
        %v1070 = vld [vmem:[%s3 + $0x30] sm:$0xff]
        %v1071 = vld [vmem:[%s3 + $0x38] sm:$0xff]
        %v1072 = vld [vmem:[%s3 + $0x40] sm:$0xff]
        %v1073 = vld [vmem:[%s3 + $0x48] sm:$0xff]
        %v1074 = vld [vmem:[%s3 + $0x50] sm:$0xff]
        %v1075 = vld [vmem:[%s3 + $0x58] sm:$0xff]
        %v1076 = vld [vmem:[%s3 + $0x60] sm:$0xff]
        %v1077 = vld [vmem:[%s3 + $0x68] sm:$0xff]
        %v1078 = vld [vmem:[%s3 + $0x70] sm:$0xff]
        %v1079 = vld [vmem:[%s3 + $0x78] sm:$0xff]
        %v1080 = vld [vmem:[%s3 + $0x80] sm:$0xff]
        %v1081 = vld [vmem:[%s3 + $0x88] sm:$0xff]
        %v1082 = vld [vmem:[%s3 + $0x90] sm:$0xff]
        %v1083 = vld [vmem:[%s3 + $0x98] sm:$0xff]
        %v1084 = vld [vmem:[%s3 + $0xa0] sm:$0xff]
        %v1085 = vld [vmem:[%s3 + $0xa8] sm:$0xff]
        %v1086 = vld [vmem:[%s3 + $0xb0] sm:$0xff]
        %v1087 = vld [vmem:[%s3 + $0xb8] sm:$0xff]
        %v1088 = vld [vmem:[%s3 + $0xc0] sm:$0xff]
        %v1089 = vld [vmem:[%s3 + $0xc8] sm:$0xff]
        %v1090 = vld [vmem:[%s3 + $0xd0] sm:$0xff]
        %v1091 = vld [vmem:[%s3 + $0xd8] sm:$0xff]
        %v1092 = vld [vmem:[%s3 + $0xe0] sm:$0xff]
        %v1093 = vld [vmem:[%s3 + $0xe8] sm:$0xff]
        %v1094 = vld [vmem:[%s3 + $0xf0] sm:$0xff]
        %v1095 = vld [vmem:[%s3 + $0xf8] sm:$0xff]
        %v1128 = vunpack.c.l.b16 %v1064
        %v1129 = vunpack.c.h.b16 %v1064
        %v1130 = vunpack.c.l.b16 %v1065
        %v1131 = vunpack.c.h.b16 %v1065
        %v1132 = vunpack.c.l.b16 %v1066
        %v1133 = vunpack.c.h.b16 %v1066
        %v1134 = vunpack.c.l.b16 %v1067
        %v1135 = vunpack.c.h.b16 %v1067
        %v1136 = vunpack.c.l.b16 %v1068
        %v1137 = vunpack.c.h.b16 %v1068
        %v1138 = vunpack.c.l.b16 %v1069
        %v1139 = vunpack.c.h.b16 %v1069
        %v1140 = vunpack.c.l.b16 %v1070
        %v1141 = vunpack.c.h.b16 %v1070
        %v1142 = vunpack.c.l.b16 %v1071
        %v1143 = vunpack.c.h.b16 %v1071
        %v1144 = vunpack.c.l.b16 %v1072
        %v1145 = vunpack.c.h.b16 %v1072
        %v1146 = vunpack.c.l.b16 %v1073
        %v1147 = vunpack.c.h.b16 %v1073
        %v1148 = vunpack.c.l.b16 %v1074
        %v1149 = vunpack.c.h.b16 %v1074
        %v1150 = vunpack.c.l.b16 %v1075
        %v1151 = vunpack.c.h.b16 %v1075
        %v1152 = vunpack.c.l.b16 %v1076
        %v1153 = vunpack.c.h.b16 %v1076
        %v1154 = vunpack.c.l.b16 %v1077
        %v1155 = vunpack.c.h.b16 %v1077
        %v1156 = vunpack.c.l.b16 %v1078
        %v1157 = vunpack.c.h.b16 %v1078
        %v1158 = vunpack.c.l.b16 %v1079
        %v1159 = vunpack.c.h.b16 %v1079
        %v1160 = vunpack.c.l.b16 %v1080
        %v1161 = vunpack.c.h.b16 %v1080
        %v1162 = vunpack.c.l.b16 %v1081
        %v1163 = vunpack.c.h.b16 %v1081
        %v1164 = vunpack.c.l.b16 %v1082
        %v1165 = vunpack.c.h.b16 %v1082
        %v1166 = vunpack.c.l.b16 %v1083
        %v1167 = vunpack.c.h.b16 %v1083
        %v1168 = vunpack.c.l.b16 %v1084
        %v1169 = vunpack.c.h.b16 %v1084
        %v1170 = vunpack.c.l.b16 %v1085
        %v1171 = vunpack.c.h.b16 %v1085
        %v1172 = vunpack.c.l.b16 %v1086
        %v1173 = vunpack.c.h.b16 %v1086
        %v1174 = vunpack.c.l.b16 %v1087
        %v1175 = vunpack.c.h.b16 %v1087
        %v1176 = vunpack.c.l.b16 %v1088
        %v1177 = vunpack.c.h.b16 %v1088
        %v1178 = vunpack.c.l.b16 %v1089
        %v1179 = vunpack.c.h.b16 %v1089
        %v1180 = vunpack.c.l.b16 %v1090
        %v1181 = vunpack.c.h.b16 %v1090
        %v1182 = vunpack.c.l.b16 %v1091
        %v1183 = vunpack.c.h.b16 %v1091
        %v1184 = vunpack.c.l.b16 %v1092
        %v1185 = vunpack.c.h.b16 %v1092
        %v1186 = vunpack.c.l.b16 %v1093
        %v1187 = vunpack.c.h.b16 %v1093
        %v1188 = vunpack.c.l.b16 %v1094
        %v1189 = vunpack.c.h.b16 %v1094
        %v1190 = vunpack.c.l.b16 %v1095
        %v1191 = vunpack.c.h.b16 %v1095
        %v1192 = vpack.c.b16 %v1130, %v1128
        %v1193 = vpack.c.b16 %v1131, %v1129
        %v1194 = vpack.c.b16 %v1134, %v1132
        %v1195 = vpack.c.b16 %v1135, %v1133
        %v1196 = vpack.c.b16 %v1138, %v1136
        %v1197 = vpack.c.b16 %v1139, %v1137
        %v1198 = vpack.c.b16 %v1142, %v1140
        %v1199 = vpack.c.b16 %v1143, %v1141
        %v1200 = vpack.c.b16 %v1146, %v1144
        %v1201 = vpack.c.b16 %v1147, %v1145
        %v1202 = vpack.c.b16 %v1150, %v1148
        %v1203 = vpack.c.b16 %v1151, %v1149
        %v1204 = vpack.c.b16 %v1154, %v1152
        %v1205 = vpack.c.b16 %v1155, %v1153
        %v1206 = vpack.c.b16 %v1158, %v1156
        %v1207 = vpack.c.b16 %v1159, %v1157
        %v1208 = vpack.c.b16 %v1162, %v1160
        %v1209 = vpack.c.b16 %v1163, %v1161
        %v1210 = vpack.c.b16 %v1166, %v1164
        %v1211 = vpack.c.b16 %v1167, %v1165
        %v1212 = vpack.c.b16 %v1170, %v1168
        %v1213 = vpack.c.b16 %v1171, %v1169
        %v1214 = vpack.c.b16 %v1174, %v1172
        %v1215 = vpack.c.b16 %v1175, %v1173
        %v1216 = vpack.c.b16 %v1178, %v1176
        %v1217 = vpack.c.b16 %v1179, %v1177
        %v1218 = vpack.c.b16 %v1182, %v1180
        %v1219 = vpack.c.b16 %v1183, %v1181
        %v1220 = vpack.c.b16 %v1186, %v1184
        %v1221 = vpack.c.b16 %v1187, %v1185
        %v1222 = vpack.c.b16 %v1190, %v1188
        %v1223 = vpack.c.b16 %v1191, %v1189
        %1256 = vmatprep.subr.bf16.mxu0 %v1193
        %1257 = vmatpush1.bf16.msra.mxu0 %v1192
        %1258 = vmatprep.subr.bf16.mxu0 %v1195
        %1259 = vmatpush1.bf16.msra.mxu0 %v1194
        %1260 = vmatprep.subr.bf16.mxu0 %v1197
        %1261 = vmatpush1.bf16.msra.mxu0 %v1196
        %1262 = vmatprep.subr.bf16.mxu0 %v1199
        %1263 = vmatpush1.bf16.msra.mxu0 %v1198
        %1264 = vmatprep.subr.bf16.mxu0 %v1201
        %1265 = vmatpush1.bf16.msra.mxu0 %v1200
        %1266 = vmatprep.subr.bf16.mxu0 %v1203
        %1267 = vmatpush1.bf16.msra.mxu0 %v1202
        %1268 = vmatprep.subr.bf16.mxu0 %v1205
        %1269 = vmatpush1.bf16.msra.mxu0 %v1204
        %1270 = vmatprep.subr.bf16.mxu0 %v1207
        %1271 = vmatpush1.bf16.msra.mxu0 %v1206
        %1272 = vmatprep.subr.bf16.mxu0 %v1209
        %1273 = vmatpush1.bf16.msra.mxu0 %v1208
        %1274 = vmatprep.subr.bf16.mxu0 %v1211
        %1275 = vmatpush1.bf16.msra.mxu0 %v1210
        %1276 = vmatprep.subr.bf16.mxu0 %v1213
        %1277 = vmatpush1.bf16.msra.mxu0 %v1212
        %1278 = vmatprep.subr.bf16.mxu0 %v1215
        %1279 = vmatpush1.bf16.msra.mxu0 %v1214
        %1280 = vmatprep.subr.bf16.mxu0 %v1217
        %1281 = vmatpush1.bf16.msra.mxu0 %v1216
        %1282 = vmatprep.subr.bf16.mxu0 %v1219
        %1283 = vmatpush1.bf16.msra.mxu0 %v1218
        %1284 = vmatprep.subr.bf16.mxu0 %v1221
        %1285 = vmatpush1.bf16.msra.mxu0 %v1220
        %1286 = vmatprep.subr.bf16.mxu0 %v1223
        %1287 = vmatpush1.bf16.msra.mxu0 %v1222
        %1288 = vmatprep.mubr.bf16.mxu0 %v1063
        %1289 = vmatmul.mubr.bf16.gmra.mrb[0].mxu0 %v1062
        %v1290 = vpop.f32.mrb[0].mxu0
        %v1291 = vadd.f32 0.0, %v1290
        %v1292 = vpop.f32.mrb[0].mxu0
        %v1293 = vadd.f32 0.0, %v1292
        %v1294 = vpop.f32.mrb[0].mxu0
        %v1295 = vadd.f32 0.0, %v1294
        %v1296 = vpop.f32.mrb[0].mxu0
        %v1297 = vadd.f32 0.0, %v1296
        %1298 = vdwg.mxu0
        %v1331 = vunpack.c.l.b16 %v1030
        %v1332 = vunpack.c.h.b16 %v1030
        %v1333 = vunpack.c.l.b16 %v1031
        %v1334 = vunpack.c.h.b16 %v1031
        %v1335 = vunpack.c.l.b16 %v1032
        %v1336 = vunpack.c.h.b16 %v1032
        %v1337 = vunpack.c.l.b16 %v1033
        %v1338 = vunpack.c.h.b16 %v1033
        %v1339 = vunpack.c.l.b16 %v1034
        %v1340 = vunpack.c.h.b16 %v1034
        %v1341 = vunpack.c.l.b16 %v1035
        %v1342 = vunpack.c.h.b16 %v1035
        %v1343 = vunpack.c.l.b16 %v1036
        %v1344 = vunpack.c.h.b16 %v1036
        %v1345 = vunpack.c.l.b16 %v1037
        %v1346 = vunpack.c.h.b16 %v1037
        %v1347 = vunpack.c.l.b16 %v1038
        %v1348 = vunpack.c.h.b16 %v1038
        %v1349 = vunpack.c.l.b16 %v1039
        %v1350 = vunpack.c.h.b16 %v1039
        %v1351 = vunpack.c.l.b16 %v1040
        %v1352 = vunpack.c.h.b16 %v1040
        %v1353 = vunpack.c.l.b16 %v1041
        %v1354 = vunpack.c.h.b16 %v1041
        %v1355 = vunpack.c.l.b16 %v1042
        %v1356 = vunpack.c.h.b16 %v1042
        %v1357 = vunpack.c.l.b16 %v1043
        %v1358 = vunpack.c.h.b16 %v1043
        %v1359 = vunpack.c.l.b16 %v1044
        %v1360 = vunpack.c.h.b16 %v1044
        %v1361 = vunpack.c.l.b16 %v1045
        %v1362 = vunpack.c.h.b16 %v1045
        %v1363 = vunpack.c.l.b16 %v1046
        %v1364 = vunpack.c.h.b16 %v1046
        %v1365 = vunpack.c.l.b16 %v1047
        %v1366 = vunpack.c.h.b16 %v1047
        %v1367 = vunpack.c.l.b16 %v1048
        %v1368 = vunpack.c.h.b16 %v1048
        %v1369 = vunpack.c.l.b16 %v1049
        %v1370 = vunpack.c.h.b16 %v1049
        %v1371 = vunpack.c.l.b16 %v1050
        %v1372 = vunpack.c.h.b16 %v1050
        %v1373 = vunpack.c.l.b16 %v1051
        %v1374 = vunpack.c.h.b16 %v1051
        %v1375 = vunpack.c.l.b16 %v1052
        %v1376 = vunpack.c.h.b16 %v1052
        %v1377 = vunpack.c.l.b16 %v1053
        %v1378 = vunpack.c.h.b16 %v1053
        %v1379 = vunpack.c.l.b16 %v1054
        %v1380 = vunpack.c.h.b16 %v1054
        %v1381 = vunpack.c.l.b16 %v1055
        %v1382 = vunpack.c.h.b16 %v1055
        %v1383 = vunpack.c.l.b16 %v1056
        %v1384 = vunpack.c.h.b16 %v1056
        %v1385 = vunpack.c.l.b16 %v1057
        %v1386 = vunpack.c.h.b16 %v1057
        %v1387 = vunpack.c.l.b16 %v1058
        %v1388 = vunpack.c.h.b16 %v1058
        %v1389 = vunpack.c.l.b16 %v1059
        %v1390 = vunpack.c.h.b16 %v1059
        %v1391 = vunpack.c.l.b16 %v1060
        %v1392 = vunpack.c.h.b16 %v1060
        %v1393 = vunpack.c.l.b16 %v1061
        %v1394 = vunpack.c.h.b16 %v1061
        %v1395 = vpack.c.b16 %v1333, %v1331
        %v1396 = vpack.c.b16 %v1334, %v1332
        %v1397 = vpack.c.b16 %v1337, %v1335
        %v1398 = vpack.c.b16 %v1338, %v1336
        %v1399 = vpack.c.b16 %v1341, %v1339
        %v1400 = vpack.c.b16 %v1342, %v1340
        %v1401 = vpack.c.b16 %v1345, %v1343
        %v1402 = vpack.c.b16 %v1346, %v1344
        %v1403 = vpack.c.b16 %v1349, %v1347
        %v1404 = vpack.c.b16 %v1350, %v1348
        %v1405 = vpack.c.b16 %v1353, %v1351
        %v1406 = vpack.c.b16 %v1354, %v1352
        %v1407 = vpack.c.b16 %v1357, %v1355
        %v1408 = vpack.c.b16 %v1358, %v1356
        %v1409 = vpack.c.b16 %v1361, %v1359
        %v1410 = vpack.c.b16 %v1362, %v1360
        %v1411 = vpack.c.b16 %v1365, %v1363
        %v1412 = vpack.c.b16 %v1366, %v1364
        %v1413 = vpack.c.b16 %v1369, %v1367
        %v1414 = vpack.c.b16 %v1370, %v1368
        %v1415 = vpack.c.b16 %v1373, %v1371
        %v1416 = vpack.c.b16 %v1374, %v1372
        %v1417 = vpack.c.b16 %v1377, %v1375
        %v1418 = vpack.c.b16 %v1378, %v1376
        %v1419 = vpack.c.b16 %v1381, %v1379
        %v1420 = vpack.c.b16 %v1382, %v1380
        %v1421 = vpack.c.b16 %v1385, %v1383
        %v1422 = vpack.c.b16 %v1386, %v1384
        %v1423 = vpack.c.b16 %v1389, %v1387
        %v1424 = vpack.c.b16 %v1390, %v1388
        %v1425 = vpack.c.b16 %v1393, %v1391
        %v1426 = vpack.c.b16 %v1394, %v1392
        %1459 = vmatprep.subr.bf16.mxu0 %v1396
        %1460 = vmatpush1.bf16.msra.mxu0 %v1395
        %1461 = vmatprep.subr.bf16.mxu0 %v1398
        %1462 = vmatpush1.bf16.msra.mxu0 %v1397
        %1463 = vmatprep.subr.bf16.mxu0 %v1400
        %1464 = vmatpush1.bf16.msra.mxu0 %v1399
        %1465 = vmatprep.subr.bf16.mxu0 %v1402
        %1466 = vmatpush1.bf16.msra.mxu0 %v1401
        %1467 = vmatprep.subr.bf16.mxu0 %v1404
        %1468 = vmatpush1.bf16.msra.mxu0 %v1403
        %1469 = vmatprep.subr.bf16.mxu0 %v1406
        %1470 = vmatpush1.bf16.msra.mxu0 %v1405
        %1471 = vmatprep.subr.bf16.mxu0 %v1408
        %1472 = vmatpush1.bf16.msra.mxu0 %v1407
        %1473 = vmatprep.subr.bf16.mxu0 %v1410
        %1474 = vmatpush1.bf16.msra.mxu0 %v1409
        %1475 = vmatprep.subr.bf16.mxu0 %v1412
        %1476 = vmatpush1.bf16.msra.mxu0 %v1411
        %1477 = vmatprep.subr.bf16.mxu0 %v1414
        %1478 = vmatpush1.bf16.msra.mxu0 %v1413
        %1479 = vmatprep.subr.bf16.mxu0 %v1416
        %1480 = vmatpush1.bf16.msra.mxu0 %v1415
        %1481 = vmatprep.subr.bf16.mxu0 %v1418
        %1482 = vmatpush1.bf16.msra.mxu0 %v1417
        %1483 = vmatprep.subr.bf16.mxu0 %v1420
        %1484 = vmatpush1.bf16.msra.mxu0 %v1419
        %1485 = vmatprep.subr.bf16.mxu0 %v1422
        %1486 = vmatpush1.bf16.msra.mxu0 %v1421
        %1487 = vmatprep.subr.bf16.mxu0 %v1424
        %1488 = vmatpush1.bf16.msra.mxu0 %v1423
        %1489 = vmatprep.subr.bf16.mxu0 %v1426
        %1490 = vmatpush1.bf16.msra.mxu0 %v1425
        %1491 = vmatprep.mubr.bf16.mxu0 %v977
        %1492 = vmatmul.mubr.bf16.gmra.mrb[0].mxu0 %v976
        %v1493 = vpop.f32.mrb[0].mxu0
        %v1494 = vadd.f32 %v1291, %v1493
        %v1495 = vpop.f32.mrb[0].mxu0
        %v1496 = vadd.f32 %v1293, %v1495
        %v1497 = vpop.f32.mrb[0].mxu0
        %v1498 = vadd.f32 %v1295, %v1497
        %v1499 = vpop.f32.mrb[0].mxu0
        %v1500 = vadd.f32 %v1297, %v1499
        %1501 = vdwg.mxu0
        %v1502 = vld [vmem:[#allocation3] sm:$0x3]
        %v1504 = vlaneseq
        %v1505 = vshrl.u32 %v1504, 7
        %v1506 = vsub.s32 0, %v1505
        %v1507 = vrot.slane %v1502, %v1506
        %v1508 = vlaneseq
        %v1509 = vshrl.u32 %v1508, 7
        %v1510 = vsub.s32 1, %v1509
        %v1511 = vrot.slane %v1502, %v1510
        %v1514 = vadd.f32 %v1494, %v1507
        %v1515 = vadd.f32 %v1496, %v1511
        %v1516 = vadd.f32 %v1498, %v1507
        %v1517 = vadd.f32 %v1500, %v1511
        %v1518 = vmax.f32 %v1514, 0.0
        %v1519 = vmax.f32 %v1515, 0.0
        %v1520 = vmax.f32 %v1516, 0.0
        %v1521 = vmax.f32 %v1517, 0.0
        %v1522 = vld [vmem:[%s5] sm:$0x3]
        %v1524 = vlaneseq
        %v1525 = vshrl.u32 %v1524, 7
        %v1526 = vsub.s32 0, %v1525
        %v1527 = vrot.slane %v1522, %v1526
        %v1528 = vlaneseq
        %v1529 = vshrl.u32 %v1528, 7
        %v1530 = vsub.s32 1, %v1529
        %v1531 = vrot.slane %v1522, %v1530
        %v1534 = vmul.f32 %v1518, %v1527
        %v1535 = vmul.f32 %v1519, %v1531
        %v1536 = vmul.f32 %v1520, %v1527
        %v1537 = vmul.f32 %v1521, %v1531
        %v1538 = vadd.f32 %v1534, %v1535
        %1539 = vadd.xlane.f32.xlu0 %v1538
        %v1540 = vpop.xlane.xlu0 %1539
        %v1541 = vadd.f32 %v1536, %v1537
        %1542 = vadd.xlane.f32.xlu0 %v1541
        %v1543 = vpop.xlane.xlu0 %1542
        %v1544 = vmul.f32 %v1522, %v1522
        %v1546 = vlaneseq
        %v1547 = vshrl.u32 %v1546, 7
        %v1548 = vsub.s32 0, %v1547
        %v1549 = vrot.slane %v1544, %v1548
        %v1550 = vlaneseq
        %v1551 = vshrl.u32 %v1550, 7
        %v1552 = vsub.s32 1, %v1551
        %v1553 = vrot.slane %v1544, %v1552
        %vm1556 = vcmask 1040384
        %v1557 = vsel %vm1556, %v1549, 0.0
        %v1558 = vsel %vm1556, %v1553, 0.0
        %v1559 = vadd.f32 %v1557, %v1558
        %1560 = vadd.xlane.f32.xlu0 %v1559
        %v1561 = vpop.xlane.xlu0 %1560
        %v1562 = vrot.slane %v1561, 4
        %v1563 = vadd.f32 %v1561, %v1562
        %v1564 = vrot.slane %v1563, 2
        %v1565 = vadd.f32 %v1563, %v1564
        %v1566 = vrot.slane %v1565, 1
        %v1567 = vadd.f32 %v1565, %v1566
        %s1568 = vtos %v1567
        %v1569 = vstv %s1568
        %v1570 = vrsqrt.pop %v1569
        %s1571 = vtos %v1570
        %v1572 = vstv %s1571
        %v1573 = vmul.f32 %v1540, %v1572
        %v1574 = vmul.f32 %v1543, %v1572
        %v1575 = vtanh.pop %v1573
        %v1576 = vtanh.pop %v1574
        %v1577 = vlaneseq
        %v1578 = vshrl.u32 %v1577, 7
        %v1579 = vadd.s32 %v1578, 8
        %v1580 = vcvt.s32.f32 %v1578
        %v1581 = vcvt.s32.f32 %v1579
        %v1582 = vmax.f32 %v1575, %v1576
        %v1583 = vrot.slane %v1582, 4
        %v1584 = vmax.f32 %v1582, %v1583
        %v1585 = vrot.slane %v1584, 2
        %v1586 = vmax.f32 %v1584, %v1585
        %v1587 = vrot.slane %v1586, 1
        %v1588 = vmax.f32 %v1586, %v1587
        %vm1589 = vcmp.eq.f32.partialorder %v1575, %v1588
        %vm1590 = vcmp.eq.f32.partialorder %v1576, %v1588
        %v1591 = vsel %vm1589, %v1580, 16.0
        %v1592 = vsel %vm1590, %v1581, 16.0
        %v1593 = vmin.f32 %v1591, %v1592
        %v1594 = vrot.slane %v1593, 4
        %v1595 = vmin.f32 %v1593, %v1594
        %v1596 = vrot.slane %v1595, 2
        %v1597 = vmin.f32 %v1595, %v1596
        %v1598 = vrot.slane %v1597, 1
        %v1599 = vmin.f32 %v1597, %v1598
        %vm1600 = vcmp.eq.f32.partialorder %v1580, %v1599
        %vm1601 = vcmp.eq.f32.partialorder %v1581, %v1599
        %vm1602 = vmxor %vm1600, 1
        %vm1603 = vmxor %vm1601, 1
        %v1604 = vsel %vm1602, %v1575, -3e+38
        %v1605 = vsel %vm1603, %v1576, -3e+38
        %v1606 = vmax.f32 %v1604, %v1605
        %v1607 = vrot.slane %v1606, 4
        %v1608 = vmax.f32 %v1606, %v1607
        %v1609 = vrot.slane %v1608, 2
        %v1610 = vmax.f32 %v1608, %v1609
        %v1611 = vrot.slane %v1610, 1
        %v1612 = vmax.f32 %v1610, %v1611
        %vm1613 = vcmp.eq.f32.partialorder %v1604, %v1612
        %vm1614 = vcmp.eq.f32.partialorder %v1605, %v1612
        %v1615 = vsel %vm1613, %v1580, 16.0
        %v1616 = vsel %vm1614, %v1581, 16.0
        %v1617 = vmin.f32 %v1615, %v1616
        %v1618 = vrot.slane %v1617, 4
        %v1619 = vmin.f32 %v1617, %v1618
        %v1620 = vrot.slane %v1619, 2
        %v1621 = vmin.f32 %v1619, %v1620
        %v1622 = vrot.slane %v1621, 1
        %v1623 = vmin.f32 %v1621, %v1622
        %vm1624 = vcmp.eq.f32.partialorder %v1580, %v1623
        %vm1625 = vcmp.eq.f32.partialorder %v1581, %v1623
        %vm1626 = vmor %vm1600, %vm1624
        %vm1627 = vmor %vm1601, %vm1625
        %vm1628 = vmxor %vm1624, 1
        %vm1629 = vmxor %vm1625, 1
        %vm1630 = vmand %vm1602, %vm1628
        %vm1631 = vmand %vm1603, %vm1629
        %v1632 = vsel %vm1630, %v1575, -3e+38
        %v1633 = vsel %vm1631, %v1576, -3e+38
        %v1634 = vmax.f32 %v1632, %v1633
        %v1635 = vrot.slane %v1634, 4
        %v1636 = vmax.f32 %v1634, %v1635
        %v1637 = vrot.slane %v1636, 2
        %v1638 = vmax.f32 %v1636, %v1637
        %v1639 = vrot.slane %v1638, 1
        %v1640 = vmax.f32 %v1638, %v1639
        %vm1641 = vcmp.eq.f32.partialorder %v1632, %v1640
        %vm1642 = vcmp.eq.f32.partialorder %v1633, %v1640
        %v1643 = vsel %vm1641, %v1580, 16.0
        %v1644 = vsel %vm1642, %v1581, 16.0
        %v1645 = vmin.f32 %v1643, %v1644
        %v1646 = vrot.slane %v1645, 4
        %v1647 = vmin.f32 %v1645, %v1646
        %v1648 = vrot.slane %v1647, 2
        %v1649 = vmin.f32 %v1647, %v1648
        %v1650 = vrot.slane %v1649, 1
        %v1651 = vmin.f32 %v1649, %v1650
        %vm1652 = vcmp.eq.f32.partialorder %v1580, %v1651
        %vm1653 = vcmp.eq.f32.partialorder %v1581, %v1651
        %vm1654 = vmor %vm1626, %vm1652
        %vm1655 = vmor %vm1627, %vm1653
        %vm1656 = vmxor %vm1652, 1
        %vm1657 = vmxor %vm1653, 1
        %vm1658 = vmand %vm1630, %vm1656
        %vm1659 = vmand %vm1631, %vm1657
        %v1660 = vsel %vm1658, %v1575, -3e+38
        %v1661 = vsel %vm1659, %v1576, -3e+38
        %v1662 = vmax.f32 %v1660, %v1661
        %v1663 = vrot.slane %v1662, 4
        %v1664 = vmax.f32 %v1662, %v1663
        %v1665 = vrot.slane %v1664, 2
        %v1666 = vmax.f32 %v1664, %v1665
        %v1667 = vrot.slane %v1666, 1
        %v1668 = vmax.f32 %v1666, %v1667
        %vm1669 = vcmp.eq.f32.partialorder %v1660, %v1668
        %vm1670 = vcmp.eq.f32.partialorder %v1661, %v1668
        %v1671 = vsel %vm1669, %v1580, 16.0
        %v1672 = vsel %vm1670, %v1581, 16.0
        %v1673 = vmin.f32 %v1671, %v1672
        %v1674 = vrot.slane %v1673, 4
        %v1675 = vmin.f32 %v1673, %v1674
        %v1676 = vrot.slane %v1675, 2
        %v1677 = vmin.f32 %v1675, %v1676
        %v1678 = vrot.slane %v1677, 1
        %v1679 = vmin.f32 %v1677, %v1678
        %vm1680 = vcmp.eq.f32.partialorder %v1580, %v1679
        %vm1681 = vcmp.eq.f32.partialorder %v1581, %v1679
        %vm1682 = vmor %vm1654, %vm1680
        %vm1683 = vmor %vm1655, %vm1681
        %vm1684 = vmxor %vm1680, 1
        %vm1685 = vmxor %vm1681, 1
        %vm1686 = vmand %vm1658, %vm1684
        %vm1687 = vmand %vm1659, %vm1685
        %v1688 = vsel %vm1686, %v1575, -3e+38
        %v1689 = vsel %vm1687, %v1576, -3e+38
        %v1690 = vmax.f32 %v1688, %v1689
        %v1691 = vrot.slane %v1690, 4
        %v1692 = vmax.f32 %v1690, %v1691
        %v1693 = vrot.slane %v1692, 2
        %v1694 = vmax.f32 %v1692, %v1693
        %v1695 = vrot.slane %v1694, 1
        %v1696 = vmax.f32 %v1694, %v1695
        %vm1697 = vcmp.eq.f32.partialorder %v1688, %v1696
        %vm1698 = vcmp.eq.f32.partialorder %v1689, %v1696
        %v1699 = vsel %vm1697, %v1580, 16.0
        %v1700 = vsel %vm1698, %v1581, 16.0
        %v1701 = vmin.f32 %v1699, %v1700
        %v1702 = vrot.slane %v1701, 4
        %v1703 = vmin.f32 %v1701, %v1702
        %v1704 = vrot.slane %v1703, 2
        %v1705 = vmin.f32 %v1703, %v1704
        %v1706 = vrot.slane %v1705, 1
        %v1707 = vmin.f32 %v1705, %v1706
        %vm1708 = vcmp.eq.f32.partialorder %v1580, %v1707
        %vm1709 = vcmp.eq.f32.partialorder %v1581, %v1707
        %vm1710 = vmor %vm1682, %vm1708
        %vm1711 = vmor %vm1683, %vm1709
        %vm1712 = vmxor %vm1708, 1
        %vm1713 = vmxor %vm1709, 1
        %vm1714 = vmand %vm1686, %vm1712
        %vm1715 = vmand %vm1687, %vm1713
        %v1716 = vsel %vm1714, %v1575, -3e+38
        %v1717 = vsel %vm1715, %v1576, -3e+38
        %v1718 = vmax.f32 %v1716, %v1717
        %v1719 = vrot.slane %v1718, 4
        %v1720 = vmax.f32 %v1718, %v1719
        %v1721 = vrot.slane %v1720, 2
        %v1722 = vmax.f32 %v1720, %v1721
        %v1723 = vrot.slane %v1722, 1
        %v1724 = vmax.f32 %v1722, %v1723
        %vm1725 = vcmp.eq.f32.partialorder %v1716, %v1724
        %vm1726 = vcmp.eq.f32.partialorder %v1717, %v1724
        %v1727 = vsel %vm1725, %v1580, 16.0
        %v1728 = vsel %vm1726, %v1581, 16.0
        %v1729 = vmin.f32 %v1727, %v1728
        %v1730 = vrot.slane %v1729, 4
        %v1731 = vmin.f32 %v1729, %v1730
        %v1732 = vrot.slane %v1731, 2
        %v1733 = vmin.f32 %v1731, %v1732
        %v1734 = vrot.slane %v1733, 1
        %v1735 = vmin.f32 %v1733, %v1734
        %vm1736 = vcmp.eq.f32.partialorder %v1580, %v1735
        %vm1737 = vcmp.eq.f32.partialorder %v1581, %v1735
        %vm1738 = vmor %vm1710, %vm1736
        %vm1739 = vmor %vm1711, %vm1737
        %vm1740 = vmxor %vm1736, 1
        %vm1741 = vmxor %vm1737, 1
        %vm1742 = vmand %vm1714, %vm1740
        %vm1743 = vmand %vm1715, %vm1741
        %v1744 = vsel %vm1742, %v1575, -3e+38
        %v1745 = vsel %vm1743, %v1576, -3e+38
        %v1746 = vmax.f32 %v1744, %v1745
        %v1747 = vrot.slane %v1746, 4
        %v1748 = vmax.f32 %v1746, %v1747
        %v1749 = vrot.slane %v1748, 2
        %v1750 = vmax.f32 %v1748, %v1749
        %v1751 = vrot.slane %v1750, 1
        %v1752 = vmax.f32 %v1750, %v1751
        %vm1753 = vcmp.eq.f32.partialorder %v1744, %v1752
        %vm1754 = vcmp.eq.f32.partialorder %v1745, %v1752
        %v1755 = vsel %vm1753, %v1580, 16.0
        %v1756 = vsel %vm1754, %v1581, 16.0
        %v1757 = vmin.f32 %v1755, %v1756
        %v1758 = vrot.slane %v1757, 4
        %v1759 = vmin.f32 %v1757, %v1758
        %v1760 = vrot.slane %v1759, 2
        %v1761 = vmin.f32 %v1759, %v1760
        %v1762 = vrot.slane %v1761, 1
        %v1763 = vmin.f32 %v1761, %v1762
        %vm1764 = vcmp.eq.f32.partialorder %v1580, %v1763
        %vm1765 = vcmp.eq.f32.partialorder %v1581, %v1763
        %vm1766 = vmor %vm1738, %vm1764
        %vm1767 = vmor %vm1739, %vm1765
        %vm1768 = vmxor %vm1764, 1
        %vm1769 = vmxor %vm1765, 1
        %vm1770 = vmand %vm1742, %vm1768
        %vm1771 = vmand %vm1743, %vm1769
        %v1772 = vsel %vm1770, %v1575, -3e+38
        %v1773 = vsel %vm1771, %v1576, -3e+38
        %v1774 = vmax.f32 %v1772, %v1773
        %v1775 = vrot.slane %v1774, 4
        %v1776 = vmax.f32 %v1774, %v1775
        %v1777 = vrot.slane %v1776, 2
        %v1778 = vmax.f32 %v1776, %v1777
        %v1779 = vrot.slane %v1778, 1
        %v1780 = vmax.f32 %v1778, %v1779
        %vm1781 = vcmp.eq.f32.partialorder %v1772, %v1780
        %vm1782 = vcmp.eq.f32.partialorder %v1773, %v1780
        %v1783 = vsel %vm1781, %v1580, 16.0
        %v1784 = vsel %vm1782, %v1581, 16.0
        %v1785 = vmin.f32 %v1783, %v1784
        %v1786 = vrot.slane %v1785, 4
        %v1787 = vmin.f32 %v1785, %v1786
        %v1788 = vrot.slane %v1787, 2
        %v1789 = vmin.f32 %v1787, %v1788
        %v1790 = vrot.slane %v1789, 1
        %v1791 = vmin.f32 %v1789, %v1790
        %vm1792 = vcmp.eq.f32.partialorder %v1580, %v1791
        %vm1793 = vcmp.eq.f32.partialorder %v1581, %v1791
        %vm1794 = vmor %vm1766, %vm1792
        %vm1795 = vmor %vm1767, %vm1793
        %vm1796 = vmxor %vm1792, 1
        %vm1797 = vmxor %vm1793, 1
        %vm1798 = vmand %vm1770, %vm1796
        %vm1799 = vmand %vm1771, %vm1797
        %v1800 = vsel %vm1798, %v1575, -3e+38
        %v1801 = vsel %vm1799, %v1576, -3e+38
        %v1802 = vmax.f32 %v1800, %v1801
        %v1803 = vrot.slane %v1802, 4
        %v1804 = vmax.f32 %v1802, %v1803
        %v1805 = vrot.slane %v1804, 2
        %v1806 = vmax.f32 %v1804, %v1805
        %v1807 = vrot.slane %v1806, 1
        %v1808 = vmax.f32 %v1806, %v1807
        %vm1809 = vcmp.eq.f32.partialorder %v1800, %v1808
        %vm1810 = vcmp.eq.f32.partialorder %v1801, %v1808
        %v1811 = vsel %vm1809, %v1580, 16.0
        %v1812 = vsel %vm1810, %v1581, 16.0
        %v1813 = vmin.f32 %v1811, %v1812
        %v1814 = vrot.slane %v1813, 4
        %v1815 = vmin.f32 %v1813, %v1814
        %v1816 = vrot.slane %v1815, 2
        %v1817 = vmin.f32 %v1815, %v1816
        %v1818 = vrot.slane %v1817, 1
        %v1819 = vmin.f32 %v1817, %v1818
        %vm1820 = vcmp.eq.f32.partialorder %v1580, %v1819
        %vm1821 = vcmp.eq.f32.partialorder %v1581, %v1819
        %vm1822 = vmor %vm1794, %vm1820
        %vm1823 = vmor %vm1795, %vm1821
        %vm1824 = vmxor %vm1820, 1
        %vm1825 = vmxor %vm1821, 1
        %vm1826 = vmand %vm1798, %vm1824
        %vm1827 = vmand %vm1799, %vm1825
        %v1828 = vsel %vm1826, %v1575, -3e+38
        %v1829 = vsel %vm1827, %v1576, -3e+38
        %v1830 = vmax.f32 %v1828, %v1829
        %v1831 = vrot.slane %v1830, 4
        %v1832 = vmax.f32 %v1830, %v1831
        %v1833 = vrot.slane %v1832, 2
        %v1834 = vmax.f32 %v1832, %v1833
        %v1835 = vrot.slane %v1834, 1
        %v1836 = vmax.f32 %v1834, %v1835
        %vm1837 = vcmp.eq.f32.partialorder %v1828, %v1836
        %vm1838 = vcmp.eq.f32.partialorder %v1829, %v1836
        %v1839 = vsel %vm1837, %v1580, 16.0
        %v1840 = vsel %vm1838, %v1581, 16.0
        %v1841 = vmin.f32 %v1839, %v1840
        %v1842 = vrot.slane %v1841, 4
        %v1843 = vmin.f32 %v1841, %v1842
        %v1844 = vrot.slane %v1843, 2
        %v1845 = vmin.f32 %v1843, %v1844
        %v1846 = vrot.slane %v1845, 1
        %v1847 = vmin.f32 %v1845, %v1846
        %vm1848 = vcmp.eq.f32.partialorder %v1580, %v1847
        %vm1849 = vcmp.eq.f32.partialorder %v1581, %v1847
        %vm1850 = vmor %vm1822, %vm1848
        %vm1851 = vmor %vm1823, %vm1849
        %vm1852 = vmxor %vm1848, 1
        %vm1853 = vmxor %vm1849, 1
        %vm1854 = vmand %vm1826, %vm1852
        %vm1855 = vmand %vm1827, %vm1853
        %v1856 = vsel %vm1854, %v1575, -3e+38
        %v1857 = vsel %vm1855, %v1576, -3e+38
        %v1858 = vmax.f32 %v1856, %v1857
        %v1859 = vrot.slane %v1858, 4
        %v1860 = vmax.f32 %v1858, %v1859
        %v1861 = vrot.slane %v1860, 2
        %v1862 = vmax.f32 %v1860, %v1861
        %v1863 = vrot.slane %v1862, 1
        %v1864 = vmax.f32 %v1862, %v1863
        %vm1865 = vcmp.eq.f32.partialorder %v1856, %v1864
        %vm1866 = vcmp.eq.f32.partialorder %v1857, %v1864
        %v1867 = vsel %vm1865, %v1580, 16.0
        %v1868 = vsel %vm1866, %v1581, 16.0
        %v1869 = vmin.f32 %v1867, %v1868
        %v1870 = vrot.slane %v1869, 4
        %v1871 = vmin.f32 %v1869, %v1870
        %v1872 = vrot.slane %v1871, 2
        %v1873 = vmin.f32 %v1871, %v1872
        %v1874 = vrot.slane %v1873, 1
        %v1875 = vmin.f32 %v1873, %v1874
        %vm1876 = vcmp.eq.f32.partialorder %v1580, %v1875
        %vm1877 = vcmp.eq.f32.partialorder %v1581, %v1875
        %vm1878 = vmor %vm1850, %vm1876
        %vm1879 = vmor %vm1851, %vm1877
        %vm1880 = vmxor %vm1876, 1
        %vm1881 = vmxor %vm1877, 1
        %vm1882 = vmand %vm1854, %vm1880
        %vm1883 = vmand %vm1855, %vm1881
        %v1884 = vsel %vm1882, %v1575, -3e+38
        %v1885 = vsel %vm1883, %v1576, -3e+38
        %v1886 = vmax.f32 %v1884, %v1885
        %v1887 = vrot.slane %v1886, 4
        %v1888 = vmax.f32 %v1886, %v1887
        %v1889 = vrot.slane %v1888, 2
        %v1890 = vmax.f32 %v1888, %v1889
        %v1891 = vrot.slane %v1890, 1
        %v1892 = vmax.f32 %v1890, %v1891
        %vm1893 = vcmp.eq.f32.partialorder %v1884, %v1892
        %vm1894 = vcmp.eq.f32.partialorder %v1885, %v1892
        %v1895 = vsel %vm1893, %v1580, 16.0
        %v1896 = vsel %vm1894, %v1581, 16.0
        %v1897 = vmin.f32 %v1895, %v1896
        %v1898 = vrot.slane %v1897, 4
        %v1899 = vmin.f32 %v1897, %v1898
        %v1900 = vrot.slane %v1899, 2
        %v1901 = vmin.f32 %v1899, %v1900
        %v1902 = vrot.slane %v1901, 1
        %v1903 = vmin.f32 %v1901, %v1902
        %vm1904 = vcmp.eq.f32.partialorder %v1580, %v1903
        %vm1905 = vcmp.eq.f32.partialorder %v1581, %v1903
        %vm1906 = vmor %vm1878, %vm1904
        %vm1907 = vmor %vm1879, %vm1905
        %vm1908 = vmxor %vm1904, 1
        %vm1909 = vmxor %vm1905, 1
        %vm1910 = vmand %vm1882, %vm1908
        %vm1911 = vmand %vm1883, %vm1909
        %v1912 = vsel %vm1910, %v1575, -3e+38
        %v1913 = vsel %vm1911, %v1576, -3e+38
        %v1914 = vmax.f32 %v1912, %v1913
        %v1915 = vrot.slane %v1914, 4
        %v1916 = vmax.f32 %v1914, %v1915
        %v1917 = vrot.slane %v1916, 2
        %v1918 = vmax.f32 %v1916, %v1917
        %v1919 = vrot.slane %v1918, 1
        %v1920 = vmax.f32 %v1918, %v1919
        %vm1921 = vcmp.eq.f32.partialorder %v1912, %v1920
        %vm1922 = vcmp.eq.f32.partialorder %v1913, %v1920
        %v1923 = vsel %vm1921, %v1580, 16.0
        %v1924 = vsel %vm1922, %v1581, 16.0
        %v1925 = vmin.f32 %v1923, %v1924
        %v1926 = vrot.slane %v1925, 4
        %v1927 = vmin.f32 %v1925, %v1926
        %v1928 = vrot.slane %v1927, 2
        %v1929 = vmin.f32 %v1927, %v1928
        %v1930 = vrot.slane %v1929, 1
        %v1931 = vmin.f32 %v1929, %v1930
        %vm1932 = vcmp.eq.f32.partialorder %v1580, %v1931
        %vm1933 = vcmp.eq.f32.partialorder %v1581, %v1931
        %vm1934 = vmor %vm1906, %vm1932
        %vm1935 = vmor %vm1907, %vm1933
        %v1936 = vsel %vm1934, %v1575, 0.0
        %v1937 = vsel %vm1935, %v1576, 0.0
        %v1938 = vmul.f32 %v1518, %v1936
        %v1939 = vmul.f32 %v1519, %v1936
        %v1940 = vmul.f32 %v1520, %v1937
        %v1941 = vmul.f32 %v1521, %v1937
        %v1942 = vsel %vm1934, 1, 0
        %v1943 = vsel %vm1935, 1, 0
        %vm1944 = vcmp.eq.s32.totalorder %v1942, 1
        %vm1945 = vcmp.eq.s32.totalorder %v1943, 1
        %v1946 = vsel %vm1944, %v1938, -3e+38
        %v1947 = vsel %vm1944, %v1939, -3e+38
        %v1948 = vsel %vm1945, %v1940, -3e+38
        %v1949 = vsel %vm1945, %v1941, -3e+38
        %v1950 = vmax.f32 %v1946, %v1948
        %v1951 = vrot.slane %v1950, 4
        %v1952 = vmax.f32 %v1950, %v1951
        %v1953 = vrot.slane %v1952, 2
        %v1954 = vmax.f32 %v1952, %v1953
        %v1955 = vrot.slane %v1954, 1
        %v1956 = vmax.f32 %v1954, %v1955
        %v1957 = vmax.f32 %v1947, %v1949
        %v1958 = vrot.slane %v1957, 4
        %v1959 = vmax.f32 %v1957, %v1958
        %v1960 = vrot.slane %v1959, 2
        %v1961 = vmax.f32 %v1959, %v1960
        %v1962 = vrot.slane %v1961, 1
        %v1963 = vmax.f32 %v1961, %v1962
        %v1964 = vadd.f32 %v1956, 0.0
        %v1965 = vadd.f32 %v1963, 0.0
        %v1966 = vadd.f32 %v1938, %v1940
        %v1967 = vrot.slane %v1966, 4
        %v1968 = vadd.f32 %v1966, %v1967
        %v1969 = vrot.slane %v1968, 2
        %v1970 = vadd.f32 %v1968, %v1969
        %v1971 = vrot.slane %v1970, 1
        %v1972 = vadd.f32 %v1970, %v1971
        %v1973 = vadd.f32 %v1939, %v1941
        %v1974 = vrot.slane %v1973, 4
        %v1975 = vadd.f32 %v1973, %v1974
        %v1976 = vrot.slane %v1975, 2
        %v1977 = vadd.f32 %v1975, %v1976
        %v1978 = vrot.slane %v1977, 1
        %v1979 = vadd.f32 %v1977, %v1978
        %v1980 = vmul.f32 %v1972, 0.07692308
        %v1981 = vmul.f32 %v1979, 0.07692308
        %v1982 = vadd.f32 %v1980, 0.0
        %v1983 = vadd.f32 %v1981, 0.0
        %v1984 = vpack.c.bf16 %v1940, %v1938
        %v1985 = vpack.c.bf16 %v1941, %v1939
        %1986 = vmatprep.subr.bf16.mxu0 %v1985
        %1987 = vmatpush1.bf16.msra.mxu0 %v1984
        %1988 = vmatprep.subr.bf16.mxu0 0
        %1989 = vmatpush1.bf16.msra.mxu0 0
        %1990 = vmatprep.subr.bf16.mxu0 0
        %1991 = vmatpush1.bf16.msra.mxu0 0
        %1992 = vmatprep.subr.bf16.mxu0 0
        %1993 = vmatpush1.bf16.msra.mxu0 0
        %1994 = vmatprep.subr.bf16.mxu0 0
        %1995 = vmatpush1.bf16.msra.mxu0 0
        %1996 = vmatprep.subr.bf16.mxu0 0
        %1997 = vmatpush1.bf16.msra.mxu0 0
        %1998 = vmatprep.subr.bf16.mxu0 0
        %1999 = vmatpush1.bf16.msra.mxu0 0
        %2000 = vmatprep.subr.bf16.mxu0 0
        %2001 = vmatpush1.bf16.msra.mxu0 0
        %2002 = vmatprep.subr.bf16.mxu0 0
        %2003 = vmatpush1.bf16.msra.mxu0 0
        %2004 = vmatprep.subr.bf16.mxu0 0
        %2005 = vmatpush1.bf16.msra.mxu0 0
        %2006 = vmatprep.subr.bf16.mxu0 0
        %2007 = vmatpush1.bf16.msra.mxu0 0
        %2008 = vmatprep.subr.bf16.mxu0 0
        %2009 = vmatpush1.bf16.msra.mxu0 0
        %2010 = vmatprep.subr.bf16.mxu0 0
        %2011 = vmatpush1.bf16.msra.mxu0 0
        %2012 = vmatprep.subr.bf16.mxu0 0
        %2013 = vmatpush1.bf16.msra.mxu0 0
        %2014 = vmatprep.subr.bf16.mxu0 0
        %2015 = vmatpush1.bf16.msra.mxu0 0
        %2016 = vmatprep.subr.bf16.mxu0 0
        %2017 = vmatpush1.bf16.msra.mxu0 0
        %2018 = vmatprep.mubr.bf16.mxu0 0
        %2019 = vmatmul.mubr.bf16.gmra.mrb[0].mxu0 %v985
        %v2020 = vpop.f32.mrb[0].mxu0
        %v2021 = vadd.f32 0.0, %v2020
        %v2022 = vpop.f32.mrb[0].mxu0
        %v2023 = vadd.f32 0.0, %v2022
        %v2024 = vpop.f32.mrb[0].mxu0
        %v2025 = vadd.f32 0.0, %v2024
        %v2026 = vpop.f32.mrb[0].mxu0
        %v2027 = vadd.f32 0.0, %v2026
        %2028 = vdwg.mxu0
        %v2029 = vld [vmem:[#allocation5] sm:$0xff]
        %v2030 = vld [vmem:[#allocation5 + $0x8] sm:$0xff]
        %v2031 = vld [vmem:[#allocation5 + $0x10] sm:$0xff]
        %v2032 = vld [vmem:[#allocation5 + $0x18] sm:$0xff]
        %v2033 = vld [vmem:[#allocation5 + $0x20] sm:$0xff]
        %v2034 = vld [vmem:[#allocation5 + $0x28] sm:$0xff]
        %v2035 = vld [vmem:[#allocation5 + $0x30] sm:$0xff]
        %v2036 = vld [vmem:[#allocation5 + $0x38] sm:$0xff]
        %v2037 = vld [vmem:[#allocation5 + $0x40] sm:$0xff]
        %v2038 = vld [vmem:[#allocation5 + $0x48] sm:$0xff]
        %v2039 = vld [vmem:[#allocation5 + $0x50] sm:$0xff]
        %v2040 = vld [vmem:[#allocation5 + $0x58] sm:$0xff]
        %v2041 = vld [vmem:[#allocation5 + $0x60] sm:$0xff]
        %v2042 = vld [vmem:[#allocation5 + $0x68] sm:$0xff]
        %v2043 = vld [vmem:[#allocation5 + $0x70] sm:$0xff]
        %v2044 = vld [vmem:[#allocation5 + $0x78] sm:$0xff]
        %v2045 = vld [vmem:[#allocation5 + $0x80] sm:$0xff]
        %v2046 = vld [vmem:[#allocation5 + $0x88] sm:$0xff]
        %v2047 = vld [vmem:[#allocation5 + $0x90] sm:$0xff]
        %v2048 = vld [vmem:[#allocation5 + $0x98] sm:$0xff]
        %v2049 = vld [vmem:[#allocation5 + $0xa0] sm:$0xff]
        %v2050 = vld [vmem:[#allocation5 + $0xa8] sm:$0xff]
        %v2051 = vld [vmem:[#allocation5 + $0xb0] sm:$0xff]
        %v2052 = vld [vmem:[#allocation5 + $0xb8] sm:$0xff]
        %v2053 = vld [vmem:[#allocation5 + $0xc0] sm:$0xff]
        %v2054 = vld [vmem:[#allocation5 + $0xc8] sm:$0xff]
        %v2055 = vld [vmem:[#allocation5 + $0xd0] sm:$0xff]
        %v2056 = vld [vmem:[#allocation5 + $0xd8] sm:$0xff]
        %v2057 = vld [vmem:[#allocation5 + $0xe0] sm:$0xff]
        %v2058 = vld [vmem:[#allocation5 + $0xe8] sm:$0xff]
        %v2059 = vld [vmem:[#allocation5 + $0xf0] sm:$0xff]
        %v2060 = vld [vmem:[#allocation5 + $0xf8] sm:$0xff]
        %v2061 = vpack.c.bf16 %v2025, %v2021
        %v2062 = vpack.c.bf16 %v2027, %v2023
        %v2063 = vld [vmem:[#allocation7] sm:$0xff]
        %v2064 = vld [vmem:[#allocation7 + $0x8] sm:$0xff]
        %v2065 = vld [vmem:[#allocation7 + $0x10] sm:$0xff]
        %v2066 = vld [vmem:[#allocation7 + $0x18] sm:$0xff]
        %v2067 = vld [vmem:[#allocation7 + $0x20] sm:$0xff]
        %v2068 = vld [vmem:[#allocation7 + $0x28] sm:$0xff]
        %v2069 = vld [vmem:[#allocation7 + $0x30] sm:$0xff]
        %v2070 = vld [vmem:[#allocation7 + $0x38] sm:$0xff]
        %v2071 = vld [vmem:[#allocation7 + $0x40] sm:$0xff]
        %v2072 = vld [vmem:[#allocation7 + $0x48] sm:$0xff]
        %v2073 = vld [vmem:[#allocation7 + $0x50] sm:$0xff]
        %v2074 = vld [vmem:[#allocation7 + $0x58] sm:$0xff]
        %v2075 = vld [vmem:[#allocation7 + $0x60] sm:$0xff]
        %v2076 = vld [vmem:[#allocation7 + $0x68] sm:$0xff]
        %v2077 = vld [vmem:[#allocation7 + $0x70] sm:$0xff]
        %v2078 = vld [vmem:[#allocation7 + $0x78] sm:$0xff]
        %v2079 = vld [vmem:[#allocation7 + $0x80] sm:$0xff]
        %v2080 = vld [vmem:[#allocation7 + $0x88] sm:$0xff]
        %v2081 = vld [vmem:[#allocation7 + $0x90] sm:$0xff]
        %v2082 = vld [vmem:[#allocation7 + $0x98] sm:$0xff]
        %v2083 = vld [vmem:[#allocation7 + $0xa0] sm:$0xff]
        %v2084 = vld [vmem:[#allocation7 + $0xa8] sm:$0xff]
        %v2085 = vld [vmem:[#allocation7 + $0xb0] sm:$0xff]
        %v2086 = vld [vmem:[#allocation7 + $0xb8] sm:$0xff]
        %v2087 = vld [vmem:[#allocation7 + $0xc0] sm:$0xff]
        %v2088 = vld [vmem:[#allocation7 + $0xc8] sm:$0xff]
        %v2089 = vld [vmem:[#allocation7 + $0xd0] sm:$0xff]
        %v2090 = vld [vmem:[#allocation7 + $0xd8] sm:$0xff]
        %v2091 = vld [vmem:[#allocation7 + $0xe0] sm:$0xff]
        %v2092 = vld [vmem:[#allocation7 + $0xe8] sm:$0xff]
        %v2093 = vld [vmem:[#allocation7 + $0xf0] sm:$0xff]
        %v2094 = vld [vmem:[#allocation7 + $0xf8] sm:$0xff]
        %v2127 = vunpack.c.l.b16 %v2063
        %v2128 = vunpack.c.h.b16 %v2063
        %v2129 = vunpack.c.l.b16 %v2064
        %v2130 = vunpack.c.h.b16 %v2064
        %v2131 = vunpack.c.l.b16 %v2065
        %v2132 = vunpack.c.h.b16 %v2065
        %v2133 = vunpack.c.l.b16 %v2066
        %v2134 = vunpack.c.h.b16 %v2066
        %v2135 = vunpack.c.l.b16 %v2067
        %v2136 = vunpack.c.h.b16 %v2067
        %v2137 = vunpack.c.l.b16 %v2068
        %v2138 = vunpack.c.h.b16 %v2068
        %v2139 = vunpack.c.l.b16 %v2069
        %v2140 = vunpack.c.h.b16 %v2069
        %v2141 = vunpack.c.l.b16 %v2070
        %v2142 = vunpack.c.h.b16 %v2070
        %v2143 = vunpack.c.l.b16 %v2071
        %v2144 = vunpack.c.h.b16 %v2071
        %v2145 = vunpack.c.l.b16 %v2072
        %v2146 = vunpack.c.h.b16 %v2072
        %v2147 = vunpack.c.l.b16 %v2073
        %v2148 = vunpack.c.h.b16 %v2073
        %v2149 = vunpack.c.l.b16 %v2074
        %v2150 = vunpack.c.h.b16 %v2074
        %v2151 = vunpack.c.l.b16 %v2075
        %v2152 = vunpack.c.h.b16 %v2075
        %v2153 = vunpack.c.l.b16 %v2076
        %v2154 = vunpack.c.h.b16 %v2076
        %v2155 = vunpack.c.l.b16 %v2077
        %v2156 = vunpack.c.h.b16 %v2077
        %v2157 = vunpack.c.l.b16 %v2078
        %v2158 = vunpack.c.h.b16 %v2078
        %v2159 = vunpack.c.l.b16 %v2079
        %v2160 = vunpack.c.h.b16 %v2079
        %v2161 = vunpack.c.l.b16 %v2080
        %v2162 = vunpack.c.h.b16 %v2080
        %v2163 = vunpack.c.l.b16 %v2081
        %v2164 = vunpack.c.h.b16 %v2081
        %v2165 = vunpack.c.l.b16 %v2082
        %v2166 = vunpack.c.h.b16 %v2082
        %v2167 = vunpack.c.l.b16 %v2083
        %v2168 = vunpack.c.h.b16 %v2083
        %v2169 = vunpack.c.l.b16 %v2084
        %v2170 = vunpack.c.h.b16 %v2084
        %v2171 = vunpack.c.l.b16 %v2085
        %v2172 = vunpack.c.h.b16 %v2085
        %v2173 = vunpack.c.l.b16 %v2086
        %v2174 = vunpack.c.h.b16 %v2086
        %v2175 = vunpack.c.l.b16 %v2087
        %v2176 = vunpack.c.h.b16 %v2087
        %v2177 = vunpack.c.l.b16 %v2088
        %v2178 = vunpack.c.h.b16 %v2088
        %v2179 = vunpack.c.l.b16 %v2089
        %v2180 = vunpack.c.h.b16 %v2089
        %v2181 = vunpack.c.l.b16 %v2090
        %v2182 = vunpack.c.h.b16 %v2090
        %v2183 = vunpack.c.l.b16 %v2091
        %v2184 = vunpack.c.h.b16 %v2091
        %v2185 = vunpack.c.l.b16 %v2092
        %v2186 = vunpack.c.h.b16 %v2092
        %v2187 = vunpack.c.l.b16 %v2093
        %v2188 = vunpack.c.h.b16 %v2093
        %v2189 = vunpack.c.l.b16 %v2094
        %v2190 = vunpack.c.h.b16 %v2094
        %v2191 = vpack.c.b16 %v2129, %v2127
        %v2192 = vpack.c.b16 %v2130, %v2128
        %v2193 = vpack.c.b16 %v2133, %v2131
        %v2194 = vpack.c.b16 %v2134, %v2132
        %v2195 = vpack.c.b16 %v2137, %v2135
        %v2196 = vpack.c.b16 %v2138, %v2136
        %v2197 = vpack.c.b16 %v2141, %v2139
        %v2198 = vpack.c.b16 %v2142, %v2140
        %v2199 = vpack.c.b16 %v2145, %v2143
        %v2200 = vpack.c.b16 %v2146, %v2144
        %v2201 = vpack.c.b16 %v2149, %v2147
        %v2202 = vpack.c.b16 %v2150, %v2148
        %v2203 = vpack.c.b16 %v2153, %v2151
        %v2204 = vpack.c.b16 %v2154, %v2152
        %v2205 = vpack.c.b16 %v2157, %v2155
        %v2206 = vpack.c.b16 %v2158, %v2156
        %v2207 = vpack.c.b16 %v2161, %v2159
        %v2208 = vpack.c.b16 %v2162, %v2160
        %v2209 = vpack.c.b16 %v2165, %v2163
        %v2210 = vpack.c.b16 %v2166, %v2164
        %v2211 = vpack.c.b16 %v2169, %v2167
        %v2212 = vpack.c.b16 %v2170, %v2168
        %v2213 = vpack.c.b16 %v2173, %v2171
        %v2214 = vpack.c.b16 %v2174, %v2172
        %v2215 = vpack.c.b16 %v2177, %v2175
        %v2216 = vpack.c.b16 %v2178, %v2176
        %v2217 = vpack.c.b16 %v2181, %v2179
        %v2218 = vpack.c.b16 %v2182, %v2180
        %v2219 = vpack.c.b16 %v2185, %v2183
        %v2220 = vpack.c.b16 %v2186, %v2184
        %v2221 = vpack.c.b16 %v2189, %v2187
        %v2222 = vpack.c.b16 %v2190, %v2188
        %2255 = vmatprep.subr.bf16.mxu0 %v2192
        %2256 = vmatpush1.bf16.msra.mxu0 %v2191
        %2257 = vmatprep.subr.bf16.mxu0 %v2194
        %2258 = vmatpush1.bf16.msra.mxu0 %v2193
        %2259 = vmatprep.subr.bf16.mxu0 %v2196
        %2260 = vmatpush1.bf16.msra.mxu0 %v2195
        %2261 = vmatprep.subr.bf16.mxu0 %v2198
        %2262 = vmatpush1.bf16.msra.mxu0 %v2197
        %2263 = vmatprep.subr.bf16.mxu0 %v2200
        %2264 = vmatpush1.bf16.msra.mxu0 %v2199
        %2265 = vmatprep.subr.bf16.mxu0 %v2202
        %2266 = vmatpush1.bf16.msra.mxu0 %v2201
        %2267 = vmatprep.subr.bf16.mxu0 %v2204
        %2268 = vmatpush1.bf16.msra.mxu0 %v2203
        %2269 = vmatprep.subr.bf16.mxu0 %v2206
        %2270 = vmatpush1.bf16.msra.mxu0 %v2205
        %2271 = vmatprep.subr.bf16.mxu0 %v2208
        %2272 = vmatpush1.bf16.msra.mxu0 %v2207
        %2273 = vmatprep.subr.bf16.mxu0 %v2210
        %2274 = vmatpush1.bf16.msra.mxu0 %v2209
        %2275 = vmatprep.subr.bf16.mxu0 %v2212
        %2276 = vmatpush1.bf16.msra.mxu0 %v2211
        %2277 = vmatprep.subr.bf16.mxu0 %v2214
        %2278 = vmatpush1.bf16.msra.mxu0 %v2213
        %2279 = vmatprep.subr.bf16.mxu0 %v2216
        %2280 = vmatpush1.bf16.msra.mxu0 %v2215
        %2281 = vmatprep.subr.bf16.mxu0 %v2218
        %2282 = vmatpush1.bf16.msra.mxu0 %v2217
        %2283 = vmatprep.subr.bf16.mxu0 %v2220
        %2284 = vmatpush1.bf16.msra.mxu0 %v2219
        %2285 = vmatprep.subr.bf16.mxu0 %v2222
        %2286 = vmatpush1.bf16.msra.mxu0 %v2221
        %2287 = vmatprep.mubr.bf16.mxu0 %v2062
        %2288 = vmatmul.mubr.bf16.gmra.mrb[0].mxu0 %v2061
        %v2289 = vpop.f32.mrb[0].mxu0
        %v2290 = vadd.f32 0.0, %v2289
        %v2291 = vpop.f32.mrb[0].mxu0
        %v2292 = vadd.f32 0.0, %v2291
        %v2293 = vpop.f32.mrb[0].mxu0
        %v2294 = vadd.f32 0.0, %v2293
        %v2295 = vpop.f32.mrb[0].mxu0
        %v2296 = vadd.f32 0.0, %v2295
        %2297 = vdwg.mxu0
        %v2330 = vunpack.c.l.b16 %v2029
        %v2331 = vunpack.c.h.b16 %v2029
        %v2332 = vunpack.c.l.b16 %v2030
        %v2333 = vunpack.c.h.b16 %v2030
        %v2334 = vunpack.c.l.b16 %v2031
        %v2335 = vunpack.c.h.b16 %v2031
        %v2336 = vunpack.c.l.b16 %v2032
        %v2337 = vunpack.c.h.b16 %v2032
        %v2338 = vunpack.c.l.b16 %v2033
        %v2339 = vunpack.c.h.b16 %v2033
        %v2340 = vunpack.c.l.b16 %v2034
        %v2341 = vunpack.c.h.b16 %v2034
        %v2342 = vunpack.c.l.b16 %v2035
        %v2343 = vunpack.c.h.b16 %v2035
        %v2344 = vunpack.c.l.b16 %v2036
        %v2345 = vunpack.c.h.b16 %v2036
        %v2346 = vunpack.c.l.b16 %v2037
        %v2347 = vunpack.c.h.b16 %v2037
        %v2348 = vunpack.c.l.b16 %v2038
        %v2349 = vunpack.c.h.b16 %v2038
        %v2350 = vunpack.c.l.b16 %v2039
        %v2351 = vunpack.c.h.b16 %v2039
        %v2352 = vunpack.c.l.b16 %v2040
        %v2353 = vunpack.c.h.b16 %v2040
        %v2354 = vunpack.c.l.b16 %v2041
        %v2355 = vunpack.c.h.b16 %v2041
        %v2356 = vunpack.c.l.b16 %v2042
        %v2357 = vunpack.c.h.b16 %v2042
        %v2358 = vunpack.c.l.b16 %v2043
        %v2359 = vunpack.c.h.b16 %v2043
        %v2360 = vunpack.c.l.b16 %v2044
        %v2361 = vunpack.c.h.b16 %v2044
        %v2362 = vunpack.c.l.b16 %v2045
        %v2363 = vunpack.c.h.b16 %v2045
        %v2364 = vunpack.c.l.b16 %v2046
        %v2365 = vunpack.c.h.b16 %v2046
        %v2366 = vunpack.c.l.b16 %v2047
        %v2367 = vunpack.c.h.b16 %v2047
        %v2368 = vunpack.c.l.b16 %v2048
        %v2369 = vunpack.c.h.b16 %v2048
        %v2370 = vunpack.c.l.b16 %v2049
        %v2371 = vunpack.c.h.b16 %v2049
        %v2372 = vunpack.c.l.b16 %v2050
        %v2373 = vunpack.c.h.b16 %v2050
        %v2374 = vunpack.c.l.b16 %v2051
        %v2375 = vunpack.c.h.b16 %v2051
        %v2376 = vunpack.c.l.b16 %v2052
        %v2377 = vunpack.c.h.b16 %v2052
        %v2378 = vunpack.c.l.b16 %v2053
        %v2379 = vunpack.c.h.b16 %v2053
        %v2380 = vunpack.c.l.b16 %v2054
        %v2381 = vunpack.c.h.b16 %v2054
        %v2382 = vunpack.c.l.b16 %v2055
        %v2383 = vunpack.c.h.b16 %v2055
        %v2384 = vunpack.c.l.b16 %v2056
        %v2385 = vunpack.c.h.b16 %v2056
        %v2386 = vunpack.c.l.b16 %v2057
        %v2387 = vunpack.c.h.b16 %v2057
        %v2388 = vunpack.c.l.b16 %v2058
        %v2389 = vunpack.c.h.b16 %v2058
        %v2390 = vunpack.c.l.b16 %v2059
        %v2391 = vunpack.c.h.b16 %v2059
        %v2392 = vunpack.c.l.b16 %v2060
        %v2393 = vunpack.c.h.b16 %v2060
        %v2394 = vpack.c.b16 %v2332, %v2330
        %v2395 = vpack.c.b16 %v2333, %v2331
        %v2396 = vpack.c.b16 %v2336, %v2334
        %v2397 = vpack.c.b16 %v2337, %v2335
        %v2398 = vpack.c.b16 %v2340, %v2338
        %v2399 = vpack.c.b16 %v2341, %v2339
        %v2400 = vpack.c.b16 %v2344, %v2342
        %v2401 = vpack.c.b16 %v2345, %v2343
        %v2402 = vpack.c.b16 %v2348, %v2346
        %v2403 = vpack.c.b16 %v2349, %v2347
        %v2404 = vpack.c.b16 %v2352, %v2350
        %v2405 = vpack.c.b16 %v2353, %v2351
        %v2406 = vpack.c.b16 %v2356, %v2354
        %v2407 = vpack.c.b16 %v2357, %v2355
        %v2408 = vpack.c.b16 %v2360, %v2358
        %v2409 = vpack.c.b16 %v2361, %v2359
        %v2410 = vpack.c.b16 %v2364, %v2362
        %v2411 = vpack.c.b16 %v2365, %v2363
        %v2412 = vpack.c.b16 %v2368, %v2366
        %v2413 = vpack.c.b16 %v2369, %v2367
        %v2414 = vpack.c.b16 %v2372, %v2370
        %v2415 = vpack.c.b16 %v2373, %v2371
        %v2416 = vpack.c.b16 %v2376, %v2374
        %v2417 = vpack.c.b16 %v2377, %v2375
        %v2418 = vpack.c.b16 %v2380, %v2378
        %v2419 = vpack.c.b16 %v2381, %v2379
        %v2420 = vpack.c.b16 %v2384, %v2382
        %v2421 = vpack.c.b16 %v2385, %v2383
        %v2422 = vpack.c.b16 %v2388, %v2386
        %v2423 = vpack.c.b16 %v2389, %v2387
        %v2424 = vpack.c.b16 %v2392, %v2390
        %v2425 = vpack.c.b16 %v2393, %v2391
        %2458 = vmatprep.subr.bf16.mxu0 %v2395
        %2459 = vmatpush1.bf16.msra.mxu0 %v2394
        %2460 = vmatprep.subr.bf16.mxu0 %v2397
        %2461 = vmatpush1.bf16.msra.mxu0 %v2396
        %2462 = vmatprep.subr.bf16.mxu0 %v2399
        %2463 = vmatpush1.bf16.msra.mxu0 %v2398
        %2464 = vmatprep.subr.bf16.mxu0 %v2401
        %2465 = vmatpush1.bf16.msra.mxu0 %v2400
        %2466 = vmatprep.subr.bf16.mxu0 %v2403
        %2467 = vmatpush1.bf16.msra.mxu0 %v2402
        %2468 = vmatprep.subr.bf16.mxu0 %v2405
        %2469 = vmatpush1.bf16.msra.mxu0 %v2404
        %2470 = vmatprep.subr.bf16.mxu0 %v2407
        %2471 = vmatpush1.bf16.msra.mxu0 %v2406
        %2472 = vmatprep.subr.bf16.mxu0 %v2409
        %2473 = vmatpush1.bf16.msra.mxu0 %v2408
        %2474 = vmatprep.subr.bf16.mxu0 %v2411
        %2475 = vmatpush1.bf16.msra.mxu0 %v2410
        %2476 = vmatprep.subr.bf16.mxu0 %v2413
        %2477 = vmatpush1.bf16.msra.mxu0 %v2412
        %2478 = vmatprep.subr.bf16.mxu0 %v2415
        %2479 = vmatpush1.bf16.msra.mxu0 %v2414
        %2480 = vmatprep.subr.bf16.mxu0 %v2417
        %2481 = vmatpush1.bf16.msra.mxu0 %v2416
        %2482 = vmatprep.subr.bf16.mxu0 %v2419
        %2483 = vmatpush1.bf16.msra.mxu0 %v2418
        %2484 = vmatprep.subr.bf16.mxu0 %v2421
        %2485 = vmatpush1.bf16.msra.mxu0 %v2420
        %2486 = vmatprep.subr.bf16.mxu0 %v2423
        %2487 = vmatpush1.bf16.msra.mxu0 %v2422
        %2488 = vmatprep.subr.bf16.mxu0 %v2425
        %2489 = vmatpush1.bf16.msra.mxu0 %v2424
        %2490 = vmatprep.mubr.bf16.mxu0 %v1985
        %2491 = vmatmul.mubr.bf16.gmra.mrb[0].mxu0 %v1984
        %v2492 = vpop.f32.mrb[0].mxu0
        %v2493 = vadd.f32 %v2290, %v2492
        %v2494 = vpop.f32.mrb[0].mxu0
        %v2495 = vadd.f32 %v2292, %v2494
        %v2496 = vpop.f32.mrb[0].mxu0
        %v2497 = vadd.f32 %v2294, %v2496
        %v2498 = vpop.f32.mrb[0].mxu0
        %v2499 = vadd.f32 %v2296, %v2498
        %2500 = vdwg.mxu0
        %v2501 = vld [vmem:[#allocation8] sm:$0x3]
        %v2503 = vlaneseq
        %v2504 = vshrl.u32 %v2503, 7
        %v2505 = vsub.s32 0, %v2504
        %v2506 = vrot.slane %v2501, %v2505
        %v2507 = vlaneseq
        %v2508 = vshrl.u32 %v2507, 7
        %v2509 = vsub.s32 1, %v2508
        %v2510 = vrot.slane %v2501, %v2509
        %v2513 = vadd.f32 %v2493, %v2506
        %v2514 = vadd.f32 %v2495, %v2510
        %v2515 = vadd.f32 %v2497, %v2506
        %v2516 = vadd.f32 %v2499, %v2510
        %v2517 = vmax.f32 %v2513, 0.0
        %v2518 = vmax.f32 %v2514, 0.0
        %v2519 = vmax.f32 %v2515, 0.0
        %v2520 = vmax.f32 %v2516, 0.0
        %v2521 = vld [vmem:[#allocation10] sm:$0x3]
        %v2523 = vlaneseq
        %v2524 = vshrl.u32 %v2523, 7
        %v2525 = vsub.s32 0, %v2524
        %v2526 = vrot.slane %v2521, %v2525
        %v2527 = vlaneseq
        %v2528 = vshrl.u32 %v2527, 7
        %v2529 = vsub.s32 1, %v2528
        %v2530 = vrot.slane %v2521, %v2529
        %v2533 = vmul.f32 %v2517, %v2526
        %v2534 = vmul.f32 %v2518, %v2530
        %v2535 = vmul.f32 %v2519, %v2526
        %v2536 = vmul.f32 %v2520, %v2530
        %v2537 = vadd.f32 %v2533, %v2534
        %2538 = vadd.xlane.f32.xlu0 %v2537
        %v2539 = vpop.xlane.xlu0 %2538
        %v2540 = vadd.f32 %v2535, %v2536
        %2541 = vadd.xlane.f32.xlu0 %v2540
        %v2542 = vpop.xlane.xlu0 %2541
        %v2543 = vmul.f32 %v2521, %v2521
        %v2545 = vlaneseq
        %v2546 = vshrl.u32 %v2545, 7
        %v2547 = vsub.s32 0, %v2546
        %v2548 = vrot.slane %v2543, %v2547
        %v2549 = vlaneseq
        %v2550 = vshrl.u32 %v2549, 7
        %v2551 = vsub.s32 1, %v2550
        %v2552 = vrot.slane %v2543, %v2551
        %v2555 = vsel %vm1556, %v2548, 0.0
        %v2556 = vsel %vm1556, %v2552, 0.0
        %v2557 = vadd.f32 %v2555, %v2556
        %2558 = vadd.xlane.f32.xlu0 %v2557
        %v2559 = vpop.xlane.xlu0 %2558
        %v2560 = vrot.slane %v2559, 4
        %v2561 = vadd.f32 %v2559, %v2560
        %v2562 = vrot.slane %v2561, 2
        %v2563 = vadd.f32 %v2561, %v2562
        %v2564 = vrot.slane %v2563, 1
        %v2565 = vadd.f32 %v2563, %v2564
        %s2566 = vtos %v2565
        %v2567 = vstv %s2566
        %v2568 = vrsqrt.pop %v2567
        %s2569 = vtos %v2568
        %v2570 = vstv %s2569
        %v2571 = vmul.f32 %v2539, %v2570
        %v2572 = vmul.f32 %v2542, %v2570
        %v2573 = vtanh.pop %v2571
        %v2574 = vtanh.pop %v2572
        %v2575 = vsel %vm1934, %v2573, -3e+38
        %v2576 = vsel %vm1935, %v2574, -3e+38
        %v2577 = vmax.f32 %v2575, %v2576
        %v2578 = vrot.slane %v2577, 4
        %v2579 = vmax.f32 %v2577, %v2578
        %v2580 = vrot.slane %v2579, 2
        %v2581 = vmax.f32 %v2579, %v2580
        %v2582 = vrot.slane %v2581, 1
        %v2583 = vmax.f32 %v2581, %v2582
        %vm2584 = vcmp.eq.f32.partialorder %v2575, %v2583
        %vm2585 = vcmp.eq.f32.partialorder %v2576, %v2583
        %v2586 = vsel %vm2584, %v1580, 16.0
        %v2587 = vsel %vm2585, %v1581, 16.0
        %v2588 = vmin.f32 %v2586, %v2587
        %v2589 = vrot.slane %v2588, 4
        %v2590 = vmin.f32 %v2588, %v2589
        %v2591 = vrot.slane %v2590, 2
        %v2592 = vmin.f32 %v2590, %v2591
        %v2593 = vrot.slane %v2592, 1
        %v2594 = vmin.f32 %v2592, %v2593
        %vm2595 = vcmp.eq.f32.partialorder %v1580, %v2594
        %vm2596 = vcmp.eq.f32.partialorder %v1581, %v2594
        %vm2597 = vmxor %vm2595, 1
        %vm2598 = vmxor %vm2596, 1
        %v2599 = vsel %vm2597, %v2575, -3e+38
        %v2600 = vsel %vm2598, %v2576, -3e+38
        %v2601 = vmax.f32 %v2599, %v2600
        %v2602 = vrot.slane %v2601, 4
        %v2603 = vmax.f32 %v2601, %v2602
        %v2604 = vrot.slane %v2603, 2
        %v2605 = vmax.f32 %v2603, %v2604
        %v2606 = vrot.slane %v2605, 1
        %v2607 = vmax.f32 %v2605, %v2606
        %vm2608 = vcmp.eq.f32.partialorder %v2599, %v2607
        %vm2609 = vcmp.eq.f32.partialorder %v2600, %v2607
        %v2610 = vsel %vm2608, %v1580, 16.0
        %v2611 = vsel %vm2609, %v1581, 16.0
        %v2612 = vmin.f32 %v2610, %v2611
        %v2613 = vrot.slane %v2612, 4
        %v2614 = vmin.f32 %v2612, %v2613
        %v2615 = vrot.slane %v2614, 2
        %v2616 = vmin.f32 %v2614, %v2615
        %v2617 = vrot.slane %v2616, 1
        %v2618 = vmin.f32 %v2616, %v2617
        %vm2619 = vcmp.eq.f32.partialorder %v1580, %v2618
        %vm2620 = vcmp.eq.f32.partialorder %v1581, %v2618
        %vm2621 = vmor %vm2595, %vm2619
        %vm2622 = vmor %vm2596, %vm2620
        %vm2623 = vmxor %vm2619, 1
        %vm2624 = vmxor %vm2620, 1
        %vm2625 = vmand %vm2597, %vm2623
        %vm2626 = vmand %vm2598, %vm2624
        %v2627 = vsel %vm2625, %v2575, -3e+38
        %v2628 = vsel %vm2626, %v2576, -3e+38
        %v2629 = vmax.f32 %v2627, %v2628
        %v2630 = vrot.slane %v2629, 4
        %v2631 = vmax.f32 %v2629, %v2630
        %v2632 = vrot.slane %v2631, 2
        %v2633 = vmax.f32 %v2631, %v2632
        %v2634 = vrot.slane %v2633, 1
        %v2635 = vmax.f32 %v2633, %v2634
        %vm2636 = vcmp.eq.f32.partialorder %v2627, %v2635
        %vm2637 = vcmp.eq.f32.partialorder %v2628, %v2635
        %v2638 = vsel %vm2636, %v1580, 16.0
        %v2639 = vsel %vm2637, %v1581, 16.0
        %v2640 = vmin.f32 %v2638, %v2639
        %v2641 = vrot.slane %v2640, 4
        %v2642 = vmin.f32 %v2640, %v2641
        %v2643 = vrot.slane %v2642, 2
        %v2644 = vmin.f32 %v2642, %v2643
        %v2645 = vrot.slane %v2644, 1
        %v2646 = vmin.f32 %v2644, %v2645
        %vm2647 = vcmp.eq.f32.partialorder %v1580, %v2646
        %vm2648 = vcmp.eq.f32.partialorder %v1581, %v2646
        %vm2649 = vmor %vm2621, %vm2647
        %vm2650 = vmor %vm2622, %vm2648
        %vm2651 = vmxor %vm2647, 1
        %vm2652 = vmxor %vm2648, 1
        %vm2653 = vmand %vm2625, %vm2651
        %vm2654 = vmand %vm2626, %vm2652
        %v2655 = vsel %vm2653, %v2575, -3e+38
        %v2656 = vsel %vm2654, %v2576, -3e+38
        %v2657 = vmax.f32 %v2655, %v2656
        %v2658 = vrot.slane %v2657, 4
        %v2659 = vmax.f32 %v2657, %v2658
        %v2660 = vrot.slane %v2659, 2
        %v2661 = vmax.f32 %v2659, %v2660
        %v2662 = vrot.slane %v2661, 1
        %v2663 = vmax.f32 %v2661, %v2662
        %vm2664 = vcmp.eq.f32.partialorder %v2655, %v2663
        %vm2665 = vcmp.eq.f32.partialorder %v2656, %v2663
        %v2666 = vsel %vm2664, %v1580, 16.0
        %v2667 = vsel %vm2665, %v1581, 16.0
        %v2668 = vmin.f32 %v2666, %v2667
        %v2669 = vrot.slane %v2668, 4
        %v2670 = vmin.f32 %v2668, %v2669
        %v2671 = vrot.slane %v2670, 2
        %v2672 = vmin.f32 %v2670, %v2671
        %v2673 = vrot.slane %v2672, 1
        %v2674 = vmin.f32 %v2672, %v2673
        %vm2675 = vcmp.eq.f32.partialorder %v1580, %v2674
        %vm2676 = vcmp.eq.f32.partialorder %v1581, %v2674
        %vm2677 = vmor %vm2649, %vm2675
        %vm2678 = vmor %vm2650, %vm2676
        %vm2679 = vmxor %vm2675, 1
        %vm2680 = vmxor %vm2676, 1
        %vm2681 = vmand %vm2653, %vm2679
        %vm2682 = vmand %vm2654, %vm2680
        %v2683 = vsel %vm2681, %v2575, -3e+38
        %v2684 = vsel %vm2682, %v2576, -3e+38
        %v2685 = vmax.f32 %v2683, %v2684
        %v2686 = vrot.slane %v2685, 4
        %v2687 = vmax.f32 %v2685, %v2686
        %v2688 = vrot.slane %v2687, 2
        %v2689 = vmax.f32 %v2687, %v2688
        %v2690 = vrot.slane %v2689, 1
        %v2691 = vmax.f32 %v2689, %v2690
        %vm2692 = vcmp.eq.f32.partialorder %v2683, %v2691
        %vm2693 = vcmp.eq.f32.partialorder %v2684, %v2691
        %v2694 = vsel %vm2692, %v1580, 16.0
        %v2695 = vsel %vm2693, %v1581, 16.0
        %v2696 = vmin.f32 %v2694, %v2695
        %v2697 = vrot.slane %v2696, 4
        %v2698 = vmin.f32 %v2696, %v2697
        %v2699 = vrot.slane %v2698, 2
        %v2700 = vmin.f32 %v2698, %v2699
        %v2701 = vrot.slane %v2700, 1
        %v2702 = vmin.f32 %v2700, %v2701
        %vm2703 = vcmp.eq.f32.partialorder %v1580, %v2702
        %vm2704 = vcmp.eq.f32.partialorder %v1581, %v2702
        %vm2705 = vmor %vm2677, %vm2703
        %vm2706 = vmor %vm2678, %vm2704
        %vm2707 = vmxor %vm2703, 1
        %vm2708 = vmxor %vm2704, 1
        %vm2709 = vmand %vm2681, %vm2707
        %vm2710 = vmand %vm2682, %vm2708
        %v2711 = vsel %vm2709, %v2575, -3e+38
        %v2712 = vsel %vm2710, %v2576, -3e+38
        %v2713 = vmax.f32 %v2711, %v2712
        %v2714 = vrot.slane %v2713, 4
        %v2715 = vmax.f32 %v2713, %v2714
        %v2716 = vrot.slane %v2715, 2
        %v2717 = vmax.f32 %v2715, %v2716
        %v2718 = vrot.slane %v2717, 1
        %v2719 = vmax.f32 %v2717, %v2718
        %vm2720 = vcmp.eq.f32.partialorder %v2711, %v2719
        %vm2721 = vcmp.eq.f32.partialorder %v2712, %v2719
        %v2722 = vsel %vm2720, %v1580, 16.0
        %v2723 = vsel %vm2721, %v1581, 16.0
        %v2724 = vmin.f32 %v2722, %v2723
        %v2725 = vrot.slane %v2724, 4
        %v2726 = vmin.f32 %v2724, %v2725
        %v2727 = vrot.slane %v2726, 2
        %v2728 = vmin.f32 %v2726, %v2727
        %v2729 = vrot.slane %v2728, 1
        %v2730 = vmin.f32 %v2728, %v2729
        %vm2731 = vcmp.eq.f32.partialorder %v1580, %v2730
        %vm2732 = vcmp.eq.f32.partialorder %v1581, %v2730
        %vm2733 = vmor %vm2705, %vm2731
        %vm2734 = vmor %vm2706, %vm2732
        %vm2735 = vmxor %vm2731, 1
        %vm2736 = vmxor %vm2732, 1
        %vm2737 = vmand %vm2709, %vm2735
        %vm2738 = vmand %vm2710, %vm2736
        %v2739 = vsel %vm2737, %v2575, -3e+38
        %v2740 = vsel %vm2738, %v2576, -3e+38
        %v2741 = vmax.f32 %v2739, %v2740
        %v2742 = vrot.slane %v2741, 4
        %v2743 = vmax.f32 %v2741, %v2742
        %v2744 = vrot.slane %v2743, 2
        %v2745 = vmax.f32 %v2743, %v2744
        %v2746 = vrot.slane %v2745, 1
        %v2747 = vmax.f32 %v2745, %v2746
        %vm2748 = vcmp.eq.f32.partialorder %v2739, %v2747
        %vm2749 = vcmp.eq.f32.partialorder %v2740, %v2747
        %v2750 = vsel %vm2748, %v1580, 16.0
        %v2751 = vsel %vm2749, %v1581, 16.0
        %v2752 = vmin.f32 %v2750, %v2751
        %v2753 = vrot.slane %v2752, 4
        %v2754 = vmin.f32 %v2752, %v2753
        %v2755 = vrot.slane %v2754, 2
        %v2756 = vmin.f32 %v2754, %v2755
        %v2757 = vrot.slane %v2756, 1
        %v2758 = vmin.f32 %v2756, %v2757
        %vm2759 = vcmp.eq.f32.partialorder %v1580, %v2758
        %vm2760 = vcmp.eq.f32.partialorder %v1581, %v2758
        %vm2761 = vmor %vm2733, %vm2759
        %vm2762 = vmor %vm2734, %vm2760
        %vm2763 = vmxor %vm2759, 1
        %vm2764 = vmxor %vm2760, 1
        %vm2765 = vmand %vm2737, %vm2763
        %vm2766 = vmand %vm2738, %vm2764
        %v2767 = vsel %vm2765, %v2575, -3e+38
        %v2768 = vsel %vm2766, %v2576, -3e+38
        %v2769 = vmax.f32 %v2767, %v2768
        %v2770 = vrot.slane %v2769, 4
        %v2771 = vmax.f32 %v2769, %v2770
        %v2772 = vrot.slane %v2771, 2
        %v2773 = vmax.f32 %v2771, %v2772
        %v2774 = vrot.slane %v2773, 1
        %v2775 = vmax.f32 %v2773, %v2774
        %vm2776 = vcmp.eq.f32.partialorder %v2767, %v2775
        %vm2777 = vcmp.eq.f32.partialorder %v2768, %v2775
        %v2778 = vsel %vm2776, %v1580, 16.0
        %v2779 = vsel %vm2777, %v1581, 16.0
        %v2780 = vmin.f32 %v2778, %v2779
        %v2781 = vrot.slane %v2780, 4
        %v2782 = vmin.f32 %v2780, %v2781
        %v2783 = vrot.slane %v2782, 2
        %v2784 = vmin.f32 %v2782, %v2783
        %v2785 = vrot.slane %v2784, 1
        %v2786 = vmin.f32 %v2784, %v2785
        %vm2787 = vcmp.eq.f32.partialorder %v1580, %v2786
        %vm2788 = vcmp.eq.f32.partialorder %v1581, %v2786
        %vm2789 = vmor %vm2761, %vm2787
        %vm2790 = vmor %vm2762, %vm2788
        %vm2791 = vmxor %vm2787, 1
        %vm2792 = vmxor %vm2788, 1
        %vm2793 = vmand %vm2765, %vm2791
        %vm2794 = vmand %vm2766, %vm2792
        %v2795 = vsel %vm2793, %v2575, -3e+38
        %v2796 = vsel %vm2794, %v2576, -3e+38
        %v2797 = vmax.f32 %v2795, %v2796
        %v2798 = vrot.slane %v2797, 4
        %v2799 = vmax.f32 %v2797, %v2798
        %v2800 = vrot.slane %v2799, 2
        %v2801 = vmax.f32 %v2799, %v2800
        %v2802 = vrot.slane %v2801, 1
        %v2803 = vmax.f32 %v2801, %v2802
        %vm2804 = vcmp.eq.f32.partialorder %v2795, %v2803
        %vm2805 = vcmp.eq.f32.partialorder %v2796, %v2803
        %v2806 = vsel %vm2804, %v1580, 16.0
        %v2807 = vsel %vm2805, %v1581, 16.0
        %v2808 = vmin.f32 %v2806, %v2807
        %v2809 = vrot.slane %v2808, 4
        %v2810 = vmin.f32 %v2808, %v2809
        %v2811 = vrot.slane %v2810, 2
        %v2812 = vmin.f32 %v2810, %v2811
        %v2813 = vrot.slane %v2812, 1
        %v2814 = vmin.f32 %v2812, %v2813
        %vm2815 = vcmp.eq.f32.partialorder %v1580, %v2814
        %vm2816 = vcmp.eq.f32.partialorder %v1581, %v2814
        %vm2817 = vmor %vm2789, %vm2815
        %vm2818 = vmor %vm2790, %vm2816
        %vm2819 = vmxor %vm2815, 1
        %vm2820 = vmxor %vm2816, 1
        %vm2821 = vmand %vm2793, %vm2819
        %vm2822 = vmand %vm2794, %vm2820
        %v2823 = vsel %vm2821, %v2575, -3e+38
        %v2824 = vsel %vm2822, %v2576, -3e+38
        %v2825 = vmax.f32 %v2823, %v2824
        %v2826 = vrot.slane %v2825, 4
        %v2827 = vmax.f32 %v2825, %v2826
        %v2828 = vrot.slane %v2827, 2
        %v2829 = vmax.f32 %v2827, %v2828
        %v2830 = vrot.slane %v2829, 1
        %v2831 = vmax.f32 %v2829, %v2830
        %vm2832 = vcmp.eq.f32.partialorder %v2823, %v2831
        %vm2833 = vcmp.eq.f32.partialorder %v2824, %v2831
        %v2834 = vsel %vm2832, %v1580, 16.0
        %v2835 = vsel %vm2833, %v1581, 16.0
        %v2836 = vmin.f32 %v2834, %v2835
        %v2837 = vrot.slane %v2836, 4
        %v2838 = vmin.f32 %v2836, %v2837
        %v2839 = vrot.slane %v2838, 2
        %v2840 = vmin.f32 %v2838, %v2839
        %v2841 = vrot.slane %v2840, 1
        %v2842 = vmin.f32 %v2840, %v2841
        %vm2843 = vcmp.eq.f32.partialorder %v1580, %v2842
        %vm2844 = vcmp.eq.f32.partialorder %v1581, %v2842
        %vm2845 = vmor %vm2817, %vm2843
        %vm2846 = vmor %vm2818, %vm2844
        %vm2847 = vmxor %vm2843, 1
        %vm2848 = vmxor %vm2844, 1
        %vm2849 = vmand %vm2821, %vm2847
        %vm2850 = vmand %vm2822, %vm2848
        %v2851 = vsel %vm2849, %v2575, -3e+38
        %v2852 = vsel %vm2850, %v2576, -3e+38
        %v2853 = vmax.f32 %v2851, %v2852
        %v2854 = vrot.slane %v2853, 4
        %v2855 = vmax.f32 %v2853, %v2854
        %v2856 = vrot.slane %v2855, 2
        %v2857 = vmax.f32 %v2855, %v2856
        %v2858 = vrot.slane %v2857, 1
        %v2859 = vmax.f32 %v2857, %v2858
        %vm2860 = vcmp.eq.f32.partialorder %v2851, %v2859
        %vm2861 = vcmp.eq.f32.partialorder %v2852, %v2859
        %v2862 = vsel %vm2860, %v1580, 16.0
        %v2863 = vsel %vm2861, %v1581, 16.0
        %v2864 = vmin.f32 %v2862, %v2863
        %v2865 = vrot.slane %v2864, 4
        %v2866 = vmin.f32 %v2864, %v2865
        %v2867 = vrot.slane %v2866, 2
        %v2868 = vmin.f32 %v2866, %v2867
        %v2869 = vrot.slane %v2868, 1
        %v2870 = vmin.f32 %v2868, %v2869
        %vm2871 = vcmp.eq.f32.partialorder %v1580, %v2870
        %vm2872 = vcmp.eq.f32.partialorder %v1581, %v2870
        %vm2873 = vmor %vm2845, %vm2871
        %vm2874 = vmor %vm2846, %vm2872
        %v2875 = vsel %vm2873, %v2573, 0.0
        %v2876 = vsel %vm2874, %v2574, 0.0
        %v2877 = vmul.f32 %v2517, %v2875
        %v2878 = vmul.f32 %v2518, %v2875
        %v2879 = vmul.f32 %v2519, %v2876
        %v2880 = vmul.f32 %v2520, %v2876
        %v2881 = vsel %vm2873, 1, 0
        %v2882 = vsel %vm2874, 1, 0
        %vm2883 = vcmp.eq.s32.totalorder %v2881, 1
        %vm2884 = vcmp.eq.s32.totalorder %v2882, 1
        %v2885 = vsel %vm2883, %v2877, -3e+38
        %v2886 = vsel %vm2883, %v2878, -3e+38
        %v2887 = vsel %vm2884, %v2879, -3e+38
        %v2888 = vsel %vm2884, %v2880, -3e+38
        %v2889 = vmax.f32 %v2885, %v2887
        %v2890 = vrot.slane %v2889, 4
        %v2891 = vmax.f32 %v2889, %v2890
        %v2892 = vrot.slane %v2891, 2
        %v2893 = vmax.f32 %v2891, %v2892
        %v2894 = vrot.slane %v2893, 1
        %v2895 = vmax.f32 %v2893, %v2894
        %v2896 = vmax.f32 %v2886, %v2888
        %v2897 = vrot.slane %v2896, 4
        %v2898 = vmax.f32 %v2896, %v2897
        %v2899 = vrot.slane %v2898, 2
        %v2900 = vmax.f32 %v2898, %v2899
        %v2901 = vrot.slane %v2900, 1
        %v2902 = vmax.f32 %v2900, %v2901
        %v2903 = vadd.f32 %v1964, %v2895
        %v2904 = vadd.f32 %v1965, %v2902
        %v2905 = vadd.f32 %v2877, %v2879
        %v2906 = vrot.slane %v2905, 4
        %v2907 = vadd.f32 %v2905, %v2906
        %v2908 = vrot.slane %v2907, 2
        %v2909 = vadd.f32 %v2907, %v2908
        %v2910 = vrot.slane %v2909, 1
        %v2911 = vadd.f32 %v2909, %v2910
        %v2912 = vadd.f32 %v2878, %v2880
        %v2913 = vrot.slane %v2912, 4
        %v2914 = vadd.f32 %v2912, %v2913
        %v2915 = vrot.slane %v2914, 2
        %v2916 = vadd.f32 %v2914, %v2915
        %v2917 = vrot.slane %v2916, 1
        %v2918 = vadd.f32 %v2916, %v2917
        %v2919 = vmul.f32 %v2911, 0.09090909
        %v2920 = vmul.f32 %v2918, 0.09090909
        %v2921 = vadd.f32 %v1982, %v2919
        %v2922 = vadd.f32 %v1983, %v2920
        %v2923 = vpack.c.bf16 %v2879, %v2877
        %v2924 = vpack.c.bf16 %v2880, %v2878
        %2925 = vmatprep.subr.bf16.mxu0 %v2924
        %2926 = vmatpush1.bf16.msra.mxu0 %v2923
        %2927 = vmatprep.subr.bf16.mxu0 0
        %2928 = vmatpush1.bf16.msra.mxu0 0
        %2929 = vmatprep.subr.bf16.mxu0 0
        %2930 = vmatpush1.bf16.msra.mxu0 0
        %2931 = vmatprep.subr.bf16.mxu0 0
        %2932 = vmatpush1.bf16.msra.mxu0 0
        %2933 = vmatprep.subr.bf16.mxu0 0
        %2934 = vmatpush1.bf16.msra.mxu0 0
        %2935 = vmatprep.subr.bf16.mxu0 0
        %2936 = vmatpush1.bf16.msra.mxu0 0
        %2937 = vmatprep.subr.bf16.mxu0 0
        %2938 = vmatpush1.bf16.msra.mxu0 0
        %2939 = vmatprep.subr.bf16.mxu0 0
        %2940 = vmatpush1.bf16.msra.mxu0 0
        %2941 = vmatprep.subr.bf16.mxu0 0
        %2942 = vmatpush1.bf16.msra.mxu0 0
        %2943 = vmatprep.subr.bf16.mxu0 0
        %2944 = vmatpush1.bf16.msra.mxu0 0
        %2945 = vmatprep.subr.bf16.mxu0 0
        %2946 = vmatpush1.bf16.msra.mxu0 0
        %2947 = vmatprep.subr.bf16.mxu0 0
        %2948 = vmatpush1.bf16.msra.mxu0 0
        %2949 = vmatprep.subr.bf16.mxu0 0
        %2950 = vmatpush1.bf16.msra.mxu0 0
        %2951 = vmatprep.subr.bf16.mxu0 0
        %2952 = vmatpush1.bf16.msra.mxu0 0
        %2953 = vmatprep.subr.bf16.mxu0 0
        %2954 = vmatpush1.bf16.msra.mxu0 0
        %2955 = vmatprep.subr.bf16.mxu0 0
        %2956 = vmatpush1.bf16.msra.mxu0 0
        %2957 = vmatprep.mubr.bf16.mxu0 0
        %2958 = vmatmul.mubr.bf16.gmra.mrb[0].mxu0 %v985
        %v2959 = vpop.f32.mrb[0].mxu0
        %v2960 = vadd.f32 0.0, %v2959
        %v2961 = vpop.f32.mrb[0].mxu0
        %v2962 = vadd.f32 0.0, %v2961
        %v2963 = vpop.f32.mrb[0].mxu0
        %v2964 = vadd.f32 0.0, %v2963
        %v2965 = vpop.f32.mrb[0].mxu0
        %v2966 = vadd.f32 0.0, %v2965
        %2967 = vdwg.mxu0
        %v2968 = vld [vmem:[#allocation11] sm:$0xff]
        %v2969 = vld [vmem:[#allocation11 + $0x8] sm:$0xff]
        %v2970 = vld [vmem:[#allocation11 + $0x10] sm:$0xff]
        %v2971 = vld [vmem:[#allocation11 + $0x18] sm:$0xff]
        %v2972 = vld [vmem:[#allocation11 + $0x20] sm:$0xff]
        %v2973 = vld [vmem:[#allocation11 + $0x28] sm:$0xff]
        %v2974 = vld [vmem:[#allocation11 + $0x30] sm:$0xff]
        %v2975 = vld [vmem:[#allocation11 + $0x38] sm:$0xff]
        %v2976 = vld [vmem:[#allocation11 + $0x40] sm:$0xff]
        %v2977 = vld [vmem:[#allocation11 + $0x48] sm:$0xff]
        %v2978 = vld [vmem:[#allocation11 + $0x50] sm:$0xff]
        %v2979 = vld [vmem:[#allocation11 + $0x58] sm:$0xff]
        %v2980 = vld [vmem:[#allocation11 + $0x60] sm:$0xff]
        %v2981 = vld [vmem:[#allocation11 + $0x68] sm:$0xff]
        %v2982 = vld [vmem:[#allocation11 + $0x70] sm:$0xff]
        %v2983 = vld [vmem:[#allocation11 + $0x78] sm:$0xff]
        %v2984 = vld [vmem:[#allocation11 + $0x80] sm:$0xff]
        %v2985 = vld [vmem:[#allocation11 + $0x88] sm:$0xff]
        %v2986 = vld [vmem:[#allocation11 + $0x90] sm:$0xff]
        %v2987 = vld [vmem:[#allocation11 + $0x98] sm:$0xff]
        %v2988 = vld [vmem:[#allocation11 + $0xa0] sm:$0xff]
        %v2989 = vld [vmem:[#allocation11 + $0xa8] sm:$0xff]
        %v2990 = vld [vmem:[#allocation11 + $0xb0] sm:$0xff]
        %v2991 = vld [vmem:[#allocation11 + $0xb8] sm:$0xff]
        %v2992 = vld [vmem:[#allocation11 + $0xc0] sm:$0xff]
        %v2993 = vld [vmem:[#allocation11 + $0xc8] sm:$0xff]
        %v2994 = vld [vmem:[#allocation11 + $0xd0] sm:$0xff]
        %v2995 = vld [vmem:[#allocation11 + $0xd8] sm:$0xff]
        %v2996 = vld [vmem:[#allocation11 + $0xe0] sm:$0xff]
        %v2997 = vld [vmem:[#allocation11 + $0xe8] sm:$0xff]
        %v2998 = vld [vmem:[#allocation11 + $0xf0] sm:$0xff]
        %v2999 = vld [vmem:[#allocation11 + $0xf8] sm:$0xff]
        %v3000 = vpack.c.bf16 %v2964, %v2960
        %v3001 = vpack.c.bf16 %v2966, %v2962
        %v3002 = vld [vmem:[#allocation13] sm:$0xff]
        %v3003 = vld [vmem:[#allocation13 + $0x8] sm:$0xff]
        %v3004 = vld [vmem:[#allocation13 + $0x10] sm:$0xff]
        %v3005 = vld [vmem:[#allocation13 + $0x18] sm:$0xff]
        %v3006 = vld [vmem:[#allocation13 + $0x20] sm:$0xff]
        %v3007 = vld [vmem:[#allocation13 + $0x28] sm:$0xff]
        %v3008 = vld [vmem:[#allocation13 + $0x30] sm:$0xff]
        %v3009 = vld [vmem:[#allocation13 + $0x38] sm:$0xff]
        %v3010 = vld [vmem:[#allocation13 + $0x40] sm:$0xff]
        %v3011 = vld [vmem:[#allocation13 + $0x48] sm:$0xff]
        %v3012 = vld [vmem:[#allocation13 + $0x50] sm:$0xff]
        %v3013 = vld [vmem:[#allocation13 + $0x58] sm:$0xff]
        %v3014 = vld [vmem:[#allocation13 + $0x60] sm:$0xff]
        %v3015 = vld [vmem:[#allocation13 + $0x68] sm:$0xff]
        %v3016 = vld [vmem:[#allocation13 + $0x70] sm:$0xff]
        %v3017 = vld [vmem:[#allocation13 + $0x78] sm:$0xff]
        %v3018 = vld [vmem:[#allocation13 + $0x80] sm:$0xff]
        %v3019 = vld [vmem:[#allocation13 + $0x88] sm:$0xff]
        %v3020 = vld [vmem:[#allocation13 + $0x90] sm:$0xff]
        %v3021 = vld [vmem:[#allocation13 + $0x98] sm:$0xff]
        %v3022 = vld [vmem:[#allocation13 + $0xa0] sm:$0xff]
        %v3023 = vld [vmem:[#allocation13 + $0xa8] sm:$0xff]
        %v3024 = vld [vmem:[#allocation13 + $0xb0] sm:$0xff]
        %v3025 = vld [vmem:[#allocation13 + $0xb8] sm:$0xff]
        %v3026 = vld [vmem:[#allocation13 + $0xc0] sm:$0xff]
        %v3027 = vld [vmem:[#allocation13 + $0xc8] sm:$0xff]
        %v3028 = vld [vmem:[#allocation13 + $0xd0] sm:$0xff]
        %v3029 = vld [vmem:[#allocation13 + $0xd8] sm:$0xff]
        %v3030 = vld [vmem:[#allocation13 + $0xe0] sm:$0xff]
        %v3031 = vld [vmem:[#allocation13 + $0xe8] sm:$0xff]
        %v3032 = vld [vmem:[#allocation13 + $0xf0] sm:$0xff]
        %v3033 = vld [vmem:[#allocation13 + $0xf8] sm:$0xff]
        %v3066 = vunpack.c.l.b16 %v3002
        %v3067 = vunpack.c.h.b16 %v3002
        %v3068 = vunpack.c.l.b16 %v3003
        %v3069 = vunpack.c.h.b16 %v3003
        %v3070 = vunpack.c.l.b16 %v3004
        %v3071 = vunpack.c.h.b16 %v3004
        %v3072 = vunpack.c.l.b16 %v3005
        %v3073 = vunpack.c.h.b16 %v3005
        %v3074 = vunpack.c.l.b16 %v3006
        %v3075 = vunpack.c.h.b16 %v3006
        %v3076 = vunpack.c.l.b16 %v3007
        %v3077 = vunpack.c.h.b16 %v3007
        %v3078 = vunpack.c.l.b16 %v3008
        %v3079 = vunpack.c.h.b16 %v3008
        %v3080 = vunpack.c.l.b16 %v3009
        %v3081 = vunpack.c.h.b16 %v3009
        %v3082 = vunpack.c.l.b16 %v3010
        %v3083 = vunpack.c.h.b16 %v3010
        %v3084 = vunpack.c.l.b16 %v3011
        %v3085 = vunpack.c.h.b16 %v3011
        %v3086 = vunpack.c.l.b16 %v3012
        %v3087 = vunpack.c.h.b16 %v3012
        %v3088 = vunpack.c.l.b16 %v3013
        %v3089 = vunpack.c.h.b16 %v3013
        %v3090 = vunpack.c.l.b16 %v3014
        %v3091 = vunpack.c.h.b16 %v3014
        %v3092 = vunpack.c.l.b16 %v3015
        %v3093 = vunpack.c.h.b16 %v3015
        %v3094 = vunpack.c.l.b16 %v3016
        %v3095 = vunpack.c.h.b16 %v3016
        %v3096 = vunpack.c.l.b16 %v3017
        %v3097 = vunpack.c.h.b16 %v3017
        %v3098 = vunpack.c.l.b16 %v3018
        %v3099 = vunpack.c.h.b16 %v3018
        %v3100 = vunpack.c.l.b16 %v3019
        %v3101 = vunpack.c.h.b16 %v3019
        %v3102 = vunpack.c.l.b16 %v3020
        %v3103 = vunpack.c.h.b16 %v3020
        %v3104 = vunpack.c.l.b16 %v3021
        %v3105 = vunpack.c.h.b16 %v3021
        %v3106 = vunpack.c.l.b16 %v3022
        %v3107 = vunpack.c.h.b16 %v3022
        %v3108 = vunpack.c.l.b16 %v3023
        %v3109 = vunpack.c.h.b16 %v3023
        %v3110 = vunpack.c.l.b16 %v3024
        %v3111 = vunpack.c.h.b16 %v3024
        %v3112 = vunpack.c.l.b16 %v3025
        %v3113 = vunpack.c.h.b16 %v3025
        %v3114 = vunpack.c.l.b16 %v3026
        %v3115 = vunpack.c.h.b16 %v3026
        %v3116 = vunpack.c.l.b16 %v3027
        %v3117 = vunpack.c.h.b16 %v3027
        %v3118 = vunpack.c.l.b16 %v3028
        %v3119 = vunpack.c.h.b16 %v3028
        %v3120 = vunpack.c.l.b16 %v3029
        %v3121 = vunpack.c.h.b16 %v3029
        %v3122 = vunpack.c.l.b16 %v3030
        %v3123 = vunpack.c.h.b16 %v3030
        %v3124 = vunpack.c.l.b16 %v3031
        %v3125 = vunpack.c.h.b16 %v3031
        %v3126 = vunpack.c.l.b16 %v3032
        %v3127 = vunpack.c.h.b16 %v3032
        %v3128 = vunpack.c.l.b16 %v3033
        %v3129 = vunpack.c.h.b16 %v3033
        %v3130 = vpack.c.b16 %v3068, %v3066
        %v3131 = vpack.c.b16 %v3069, %v3067
        %v3132 = vpack.c.b16 %v3072, %v3070
        %v3133 = vpack.c.b16 %v3073, %v3071
        %v3134 = vpack.c.b16 %v3076, %v3074
        %v3135 = vpack.c.b16 %v3077, %v3075
        %v3136 = vpack.c.b16 %v3080, %v3078
        %v3137 = vpack.c.b16 %v3081, %v3079
        %v3138 = vpack.c.b16 %v3084, %v3082
        %v3139 = vpack.c.b16 %v3085, %v3083
        %v3140 = vpack.c.b16 %v3088, %v3086
        %v3141 = vpack.c.b16 %v3089, %v3087
        %v3142 = vpack.c.b16 %v3092, %v3090
        %v3143 = vpack.c.b16 %v3093, %v3091
        %v3144 = vpack.c.b16 %v3096, %v3094
        %v3145 = vpack.c.b16 %v3097, %v3095
        %v3146 = vpack.c.b16 %v3100, %v3098
        %v3147 = vpack.c.b16 %v3101, %v3099
        %v3148 = vpack.c.b16 %v3104, %v3102
        %v3149 = vpack.c.b16 %v3105, %v3103
        %v3150 = vpack.c.b16 %v3108, %v3106
        %v3151 = vpack.c.b16 %v3109, %v3107
        %v3152 = vpack.c.b16 %v3112, %v3110
        %v3153 = vpack.c.b16 %v3113, %v3111
        %v3154 = vpack.c.b16 %v3116, %v3114
        %v3155 = vpack.c.b16 %v3117, %v3115
        %v3156 = vpack.c.b16 %v3120, %v3118
        %v3157 = vpack.c.b16 %v3121, %v3119
        %v3158 = vpack.c.b16 %v3124, %v3122
        %v3159 = vpack.c.b16 %v3125, %v3123
        %v3160 = vpack.c.b16 %v3128, %v3126
        %v3161 = vpack.c.b16 %v3129, %v3127
        %3194 = vmatprep.subr.bf16.mxu0 %v3131
        %3195 = vmatpush1.bf16.msra.mxu0 %v3130
        %3196 = vmatprep.subr.bf16.mxu0 %v3133
        %3197 = vmatpush1.bf16.msra.mxu0 %v3132
        %3198 = vmatprep.subr.bf16.mxu0 %v3135
        %3199 = vmatpush1.bf16.msra.mxu0 %v3134
        %3200 = vmatprep.subr.bf16.mxu0 %v3137
        %3201 = vmatpush1.bf16.msra.mxu0 %v3136
        %3202 = vmatprep.subr.bf16.mxu0 %v3139
        %3203 = vmatpush1.bf16.msra.mxu0 %v3138
        %3204 = vmatprep.subr.bf16.mxu0 %v3141
        %3205 = vmatpush1.bf16.msra.mxu0 %v3140
        %3206 = vmatprep.subr.bf16.mxu0 %v3143
        %3207 = vmatpush1.bf16.msra.mxu0 %v3142
        %3208 = vmatprep.subr.bf16.mxu0 %v3145
        %3209 = vmatpush1.bf16.msra.mxu0 %v3144
        %3210 = vmatprep.subr.bf16.mxu0 %v3147
        %3211 = vmatpush1.bf16.msra.mxu0 %v3146
        %3212 = vmatprep.subr.bf16.mxu0 %v3149
        %3213 = vmatpush1.bf16.msra.mxu0 %v3148
        %3214 = vmatprep.subr.bf16.mxu0 %v3151
        %3215 = vmatpush1.bf16.msra.mxu0 %v3150
        %3216 = vmatprep.subr.bf16.mxu0 %v3153
        %3217 = vmatpush1.bf16.msra.mxu0 %v3152
        %3218 = vmatprep.subr.bf16.mxu0 %v3155
        %3219 = vmatpush1.bf16.msra.mxu0 %v3154
        %3220 = vmatprep.subr.bf16.mxu0 %v3157
        %3221 = vmatpush1.bf16.msra.mxu0 %v3156
        %3222 = vmatprep.subr.bf16.mxu0 %v3159
        %3223 = vmatpush1.bf16.msra.mxu0 %v3158
        %3224 = vmatprep.subr.bf16.mxu0 %v3161
        %3225 = vmatpush1.bf16.msra.mxu0 %v3160
        %3226 = vmatprep.mubr.bf16.mxu0 %v3001
        %3227 = vmatmul.mubr.bf16.gmra.mrb[0].mxu0 %v3000
        %v3228 = vpop.f32.mrb[0].mxu0
        %v3229 = vadd.f32 0.0, %v3228
        %v3230 = vpop.f32.mrb[0].mxu0
        %v3231 = vadd.f32 0.0, %v3230
        %v3232 = vpop.f32.mrb[0].mxu0
        %v3233 = vadd.f32 0.0, %v3232
        %v3234 = vpop.f32.mrb[0].mxu0
        %v3235 = vadd.f32 0.0, %v3234
        %3236 = vdwg.mxu0
        %v3269 = vunpack.c.l.b16 %v2968
        %v3270 = vunpack.c.h.b16 %v2968
        %v3271 = vunpack.c.l.b16 %v2969
        %v3272 = vunpack.c.h.b16 %v2969
        %v3273 = vunpack.c.l.b16 %v2970
        %v3274 = vunpack.c.h.b16 %v2970
        %v3275 = vunpack.c.l.b16 %v2971
        %v3276 = vunpack.c.h.b16 %v2971
        %v3277 = vunpack.c.l.b16 %v2972
        %v3278 = vunpack.c.h.b16 %v2972
        %v3279 = vunpack.c.l.b16 %v2973
        %v3280 = vunpack.c.h.b16 %v2973
        %v3281 = vunpack.c.l.b16 %v2974
        %v3282 = vunpack.c.h.b16 %v2974
        %v3283 = vunpack.c.l.b16 %v2975
        %v3284 = vunpack.c.h.b16 %v2975
        %v3285 = vunpack.c.l.b16 %v2976
        %v3286 = vunpack.c.h.b16 %v2976
        %v3287 = vunpack.c.l.b16 %v2977
        %v3288 = vunpack.c.h.b16 %v2977
        %v3289 = vunpack.c.l.b16 %v2978
        %v3290 = vunpack.c.h.b16 %v2978
        %v3291 = vunpack.c.l.b16 %v2979
        %v3292 = vunpack.c.h.b16 %v2979
        %v3293 = vunpack.c.l.b16 %v2980
        %v3294 = vunpack.c.h.b16 %v2980
        %v3295 = vunpack.c.l.b16 %v2981
        %v3296 = vunpack.c.h.b16 %v2981
        %v3297 = vunpack.c.l.b16 %v2982
        %v3298 = vunpack.c.h.b16 %v2982
        %v3299 = vunpack.c.l.b16 %v2983
        %v3300 = vunpack.c.h.b16 %v2983
        %v3301 = vunpack.c.l.b16 %v2984
        %v3302 = vunpack.c.h.b16 %v2984
        %v3303 = vunpack.c.l.b16 %v2985
        %v3304 = vunpack.c.h.b16 %v2985
        %v3305 = vunpack.c.l.b16 %v2986
        %v3306 = vunpack.c.h.b16 %v2986
        %v3307 = vunpack.c.l.b16 %v2987
        %v3308 = vunpack.c.h.b16 %v2987
        %v3309 = vunpack.c.l.b16 %v2988
        %v3310 = vunpack.c.h.b16 %v2988
        %v3311 = vunpack.c.l.b16 %v2989
        %v3312 = vunpack.c.h.b16 %v2989
        %v3313 = vunpack.c.l.b16 %v2990
        %v3314 = vunpack.c.h.b16 %v2990
        %v3315 = vunpack.c.l.b16 %v2991
        %v3316 = vunpack.c.h.b16 %v2991
        %v3317 = vunpack.c.l.b16 %v2992
        %v3318 = vunpack.c.h.b16 %v2992
        %v3319 = vunpack.c.l.b16 %v2993
        %v3320 = vunpack.c.h.b16 %v2993
        %v3321 = vunpack.c.l.b16 %v2994
        %v3322 = vunpack.c.h.b16 %v2994
        %v3323 = vunpack.c.l.b16 %v2995
        %v3324 = vunpack.c.h.b16 %v2995
        %v3325 = vunpack.c.l.b16 %v2996
        %v3326 = vunpack.c.h.b16 %v2996
        %v3327 = vunpack.c.l.b16 %v2997
        %v3328 = vunpack.c.h.b16 %v2997
        %v3329 = vunpack.c.l.b16 %v2998
        %v3330 = vunpack.c.h.b16 %v2998
        %v3331 = vunpack.c.l.b16 %v2999
        %v3332 = vunpack.c.h.b16 %v2999
        %v3333 = vpack.c.b16 %v3271, %v3269
        %v3334 = vpack.c.b16 %v3272, %v3270
        %v3335 = vpack.c.b16 %v3275, %v3273
        %v3336 = vpack.c.b16 %v3276, %v3274
        %v3337 = vpack.c.b16 %v3279, %v3277
        %v3338 = vpack.c.b16 %v3280, %v3278
        %v3339 = vpack.c.b16 %v3283, %v3281
        %v3340 = vpack.c.b16 %v3284, %v3282
        %v3341 = vpack.c.b16 %v3287, %v3285
        %v3342 = vpack.c.b16 %v3288, %v3286
        %v3343 = vpack.c.b16 %v3291, %v3289
        %v3344 = vpack.c.b16 %v3292, %v3290
        %v3345 = vpack.c.b16 %v3295, %v3293
        %v3346 = vpack.c.b16 %v3296, %v3294
        %v3347 = vpack.c.b16 %v3299, %v3297
        %v3348 = vpack.c.b16 %v3300, %v3298
        %v3349 = vpack.c.b16 %v3303, %v3301
        %v3350 = vpack.c.b16 %v3304, %v3302
        %v3351 = vpack.c.b16 %v3307, %v3305
        %v3352 = vpack.c.b16 %v3308, %v3306
        %v3353 = vpack.c.b16 %v3311, %v3309
        %v3354 = vpack.c.b16 %v3312, %v3310
        %v3355 = vpack.c.b16 %v3315, %v3313
        %v3356 = vpack.c.b16 %v3316, %v3314
        %v3357 = vpack.c.b16 %v3319, %v3317
        %v3358 = vpack.c.b16 %v3320, %v3318
        %v3359 = vpack.c.b16 %v3323, %v3321
        %v3360 = vpack.c.b16 %v3324, %v3322
        %v3361 = vpack.c.b16 %v3327, %v3325
        %v3362 = vpack.c.b16 %v3328, %v3326
        %v3363 = vpack.c.b16 %v3331, %v3329
        %v3364 = vpack.c.b16 %v3332, %v3330
        %3397 = vmatprep.subr.bf16.mxu0 %v3334
        %3398 = vmatpush1.bf16.msra.mxu0 %v3333
        %3399 = vmatprep.subr.bf16.mxu0 %v3336
        %3400 = vmatpush1.bf16.msra.mxu0 %v3335
        %3401 = vmatprep.subr.bf16.mxu0 %v3338
        %3402 = vmatpush1.bf16.msra.mxu0 %v3337
        %3403 = vmatprep.subr.bf16.mxu0 %v3340
        %3404 = vmatpush1.bf16.msra.mxu0 %v3339
        %3405 = vmatprep.subr.bf16.mxu0 %v3342
        %3406 = vmatpush1.bf16.msra.mxu0 %v3341
        %3407 = vmatprep.subr.bf16.mxu0 %v3344
        %3408 = vmatpush1.bf16.msra.mxu0 %v3343
        %3409 = vmatprep.subr.bf16.mxu0 %v3346
        %3410 = vmatpush1.bf16.msra.mxu0 %v3345
        %3411 = vmatprep.subr.bf16.mxu0 %v3348
        %3412 = vmatpush1.bf16.msra.mxu0 %v3347
        %3413 = vmatprep.subr.bf16.mxu0 %v3350
        %3414 = vmatpush1.bf16.msra.mxu0 %v3349
        %3415 = vmatprep.subr.bf16.mxu0 %v3352
        %3416 = vmatpush1.bf16.msra.mxu0 %v3351
        %3417 = vmatprep.subr.bf16.mxu0 %v3354
        %3418 = vmatpush1.bf16.msra.mxu0 %v3353
        %3419 = vmatprep.subr.bf16.mxu0 %v3356
        %3420 = vmatpush1.bf16.msra.mxu0 %v3355
        %3421 = vmatprep.subr.bf16.mxu0 %v3358
        %3422 = vmatpush1.bf16.msra.mxu0 %v3357
        %3423 = vmatprep.subr.bf16.mxu0 %v3360
        %3424 = vmatpush1.bf16.msra.mxu0 %v3359
        %3425 = vmatprep.subr.bf16.mxu0 %v3362
        %3426 = vmatpush1.bf16.msra.mxu0 %v3361
        %3427 = vmatprep.subr.bf16.mxu0 %v3364
        %3428 = vmatpush1.bf16.msra.mxu0 %v3363
        %3429 = vmatprep.mubr.bf16.mxu0 %v2924
        %3430 = vmatmul.mubr.bf16.gmra.mrb[0].mxu0 %v2923
        %v3431 = vpop.f32.mrb[0].mxu0
        %v3432 = vadd.f32 %v3229, %v3431
        %v3433 = vpop.f32.mrb[0].mxu0
        %v3434 = vadd.f32 %v3231, %v3433
        %v3435 = vpop.f32.mrb[0].mxu0
        %v3436 = vadd.f32 %v3233, %v3435
        %v3437 = vpop.f32.mrb[0].mxu0
        %v3438 = vadd.f32 %v3235, %v3437
        %3439 = vdwg.mxu0
        %v3440 = vld [vmem:[#allocation14] sm:$0x3]
        %v3442 = vlaneseq
        %v3443 = vshrl.u32 %v3442, 7
        %v3444 = vsub.s32 0, %v3443
        %v3445 = vrot.slane %v3440, %v3444
        %v3446 = vlaneseq
        %v3447 = vshrl.u32 %v3446, 7
        %v3448 = vsub.s32 1, %v3447
        %v3449 = vrot.slane %v3440, %v3448
        %v3452 = vadd.f32 %v3432, %v3445
        %v3453 = vadd.f32 %v3434, %v3449
        %v3454 = vadd.f32 %v3436, %v3445
        %v3455 = vadd.f32 %v3438, %v3449
        %v3456 = vmax.f32 %v3452, 0.0
        %v3457 = vmax.f32 %v3453, 0.0
        %v3458 = vmax.f32 %v3454, 0.0
        %v3459 = vmax.f32 %v3455, 0.0
        %v3460 = vld [vmem:[#allocation16] sm:$0x3]
        %v3462 = vlaneseq
        %v3463 = vshrl.u32 %v3462, 7
        %v3464 = vsub.s32 0, %v3463
        %v3465 = vrot.slane %v3460, %v3464
        %v3466 = vlaneseq
        %v3467 = vshrl.u32 %v3466, 7
        %v3468 = vsub.s32 1, %v3467
        %v3469 = vrot.slane %v3460, %v3468
        %v3472 = vmul.f32 %v3456, %v3465
        %v3473 = vmul.f32 %v3457, %v3469
        %v3474 = vmul.f32 %v3458, %v3465
        %v3475 = vmul.f32 %v3459, %v3469
        %v3476 = vadd.f32 %v3472, %v3473
        %3477 = vadd.xlane.f32.xlu0 %v3476
        %v3478 = vpop.xlane.xlu0 %3477
        %v3479 = vadd.f32 %v3474, %v3475
        %3480 = vadd.xlane.f32.xlu0 %v3479
        %v3481 = vpop.xlane.xlu0 %3480
        %v3482 = vmul.f32 %v3460, %v3460
        %v3484 = vlaneseq
        %v3485 = vshrl.u32 %v3484, 7
        %v3486 = vsub.s32 0, %v3485
        %v3487 = vrot.slane %v3482, %v3486
        %v3488 = vlaneseq
        %v3489 = vshrl.u32 %v3488, 7
        %v3490 = vsub.s32 1, %v3489
        %v3491 = vrot.slane %v3482, %v3490
        %v3494 = vsel %vm1556, %v3487, 0.0
        %v3495 = vsel %vm1556, %v3491, 0.0
        %v3496 = vadd.f32 %v3494, %v3495
        %3497 = vadd.xlane.f32.xlu0 %v3496
        %v3498 = vpop.xlane.xlu0 %3497
        %v3499 = vrot.slane %v3498, 4
        %v3500 = vadd.f32 %v3498, %v3499
        %v3501 = vrot.slane %v3500, 2
        %v3502 = vadd.f32 %v3500, %v3501
        %v3503 = vrot.slane %v3502, 1
        %v3504 = vadd.f32 %v3502, %v3503
        %s3505 = vtos %v3504
        %v3506 = vstv %s3505
        %v3507 = vrsqrt.pop %v3506
        %s3508 = vtos %v3507
        %v3509 = vstv %s3508
        %v3510 = vmul.f32 %v3478, %v3509
        %v3511 = vmul.f32 %v3481, %v3509
        %v3512 = vtanh.pop %v3510
        %v3513 = vtanh.pop %v3511
        %v3514 = vsel %vm2873, %v3512, -3e+38
        %v3515 = vsel %vm2874, %v3513, -3e+38
        %v3516 = vmax.f32 %v3514, %v3515
        %v3517 = vrot.slane %v3516, 4
        %v3518 = vmax.f32 %v3516, %v3517
        %v3519 = vrot.slane %v3518, 2
        %v3520 = vmax.f32 %v3518, %v3519
        %v3521 = vrot.slane %v3520, 1
        %v3522 = vmax.f32 %v3520, %v3521
        %vm3523 = vcmp.eq.f32.partialorder %v3514, %v3522
        %vm3524 = vcmp.eq.f32.partialorder %v3515, %v3522
        %v3525 = vsel %vm3523, %v1580, 16.0
        %v3526 = vsel %vm3524, %v1581, 16.0
        %v3527 = vmin.f32 %v3525, %v3526
        %v3528 = vrot.slane %v3527, 4
        %v3529 = vmin.f32 %v3527, %v3528
        %v3530 = vrot.slane %v3529, 2
        %v3531 = vmin.f32 %v3529, %v3530
        %v3532 = vrot.slane %v3531, 1
        %v3533 = vmin.f32 %v3531, %v3532
        %vm3534 = vcmp.eq.f32.partialorder %v1580, %v3533
        %vm3535 = vcmp.eq.f32.partialorder %v1581, %v3533
        %vm3536 = vmxor %vm3534, 1
        %vm3537 = vmxor %vm3535, 1
        %v3538 = vsel %vm3536, %v3514, -3e+38
        %v3539 = vsel %vm3537, %v3515, -3e+38
        %v3540 = vmax.f32 %v3538, %v3539
        %v3541 = vrot.slane %v3540, 4
        %v3542 = vmax.f32 %v3540, %v3541
        %v3543 = vrot.slane %v3542, 2
        %v3544 = vmax.f32 %v3542, %v3543
        %v3545 = vrot.slane %v3544, 1
        %v3546 = vmax.f32 %v3544, %v3545
        %vm3547 = vcmp.eq.f32.partialorder %v3538, %v3546
        %vm3548 = vcmp.eq.f32.partialorder %v3539, %v3546
        %v3549 = vsel %vm3547, %v1580, 16.0
        %v3550 = vsel %vm3548, %v1581, 16.0
        %v3551 = vmin.f32 %v3549, %v3550
        %v3552 = vrot.slane %v3551, 4
        %v3553 = vmin.f32 %v3551, %v3552
        %v3554 = vrot.slane %v3553, 2
        %v3555 = vmin.f32 %v3553, %v3554
        %v3556 = vrot.slane %v3555, 1
        %v3557 = vmin.f32 %v3555, %v3556
        %vm3558 = vcmp.eq.f32.partialorder %v1580, %v3557
        %vm3559 = vcmp.eq.f32.partialorder %v1581, %v3557
        %vm3560 = vmor %vm3534, %vm3558
        %vm3561 = vmor %vm3535, %vm3559
        %vm3562 = vmxor %vm3558, 1
        %vm3563 = vmxor %vm3559, 1
        %vm3564 = vmand %vm3536, %vm3562
        %vm3565 = vmand %vm3537, %vm3563
        %v3566 = vsel %vm3564, %v3514, -3e+38
        %v3567 = vsel %vm3565, %v3515, -3e+38
        %v3568 = vmax.f32 %v3566, %v3567
        %v3569 = vrot.slane %v3568, 4
        %v3570 = vmax.f32 %v3568, %v3569
        %v3571 = vrot.slane %v3570, 2
        %v3572 = vmax.f32 %v3570, %v3571
        %v3573 = vrot.slane %v3572, 1
        %v3574 = vmax.f32 %v3572, %v3573
        %vm3575 = vcmp.eq.f32.partialorder %v3566, %v3574
        %vm3576 = vcmp.eq.f32.partialorder %v3567, %v3574
        %v3577 = vsel %vm3575, %v1580, 16.0
        %v3578 = vsel %vm3576, %v1581, 16.0
        %v3579 = vmin.f32 %v3577, %v3578
        %v3580 = vrot.slane %v3579, 4
        %v3581 = vmin.f32 %v3579, %v3580
        %v3582 = vrot.slane %v3581, 2
        %v3583 = vmin.f32 %v3581, %v3582
        %v3584 = vrot.slane %v3583, 1
        %v3585 = vmin.f32 %v3583, %v3584
        %vm3586 = vcmp.eq.f32.partialorder %v1580, %v3585
        %vm3587 = vcmp.eq.f32.partialorder %v1581, %v3585
        %vm3588 = vmor %vm3560, %vm3586
        %vm3589 = vmor %vm3561, %vm3587
        %vm3590 = vmxor %vm3586, 1
        %vm3591 = vmxor %vm3587, 1
        %vm3592 = vmand %vm3564, %vm3590
        %vm3593 = vmand %vm3565, %vm3591
        %v3594 = vsel %vm3592, %v3514, -3e+38
        %v3595 = vsel %vm3593, %v3515, -3e+38
        %v3596 = vmax.f32 %v3594, %v3595
        %v3597 = vrot.slane %v3596, 4
        %v3598 = vmax.f32 %v3596, %v3597
        %v3599 = vrot.slane %v3598, 2
        %v3600 = vmax.f32 %v3598, %v3599
        %v3601 = vrot.slane %v3600, 1
        %v3602 = vmax.f32 %v3600, %v3601
        %vm3603 = vcmp.eq.f32.partialorder %v3594, %v3602
        %vm3604 = vcmp.eq.f32.partialorder %v3595, %v3602
        %v3605 = vsel %vm3603, %v1580, 16.0
        %v3606 = vsel %vm3604, %v1581, 16.0
        %v3607 = vmin.f32 %v3605, %v3606
        %v3608 = vrot.slane %v3607, 4
        %v3609 = vmin.f32 %v3607, %v3608
        %v3610 = vrot.slane %v3609, 2
        %v3611 = vmin.f32 %v3609, %v3610
        %v3612 = vrot.slane %v3611, 1
        %v3613 = vmin.f32 %v3611, %v3612
        %vm3614 = vcmp.eq.f32.partialorder %v1580, %v3613
        %vm3615 = vcmp.eq.f32.partialorder %v1581, %v3613
        %vm3616 = vmor %vm3588, %vm3614
        %vm3617 = vmor %vm3589, %vm3615
        %vm3618 = vmxor %vm3614, 1
        %vm3619 = vmxor %vm3615, 1
        %vm3620 = vmand %vm3592, %vm3618
        %vm3621 = vmand %vm3593, %vm3619
        %v3622 = vsel %vm3620, %v3514, -3e+38
        %v3623 = vsel %vm3621, %v3515, -3e+38
        %v3624 = vmax.f32 %v3622, %v3623
        %v3625 = vrot.slane %v3624, 4
        %v3626 = vmax.f32 %v3624, %v3625
        %v3627 = vrot.slane %v3626, 2
        %v3628 = vmax.f32 %v3626, %v3627
        %v3629 = vrot.slane %v3628, 1
        %v3630 = vmax.f32 %v3628, %v3629
        %vm3631 = vcmp.eq.f32.partialorder %v3622, %v3630
        %vm3632 = vcmp.eq.f32.partialorder %v3623, %v3630
        %v3633 = vsel %vm3631, %v1580, 16.0
        %v3634 = vsel %vm3632, %v1581, 16.0
        %v3635 = vmin.f32 %v3633, %v3634
        %v3636 = vrot.slane %v3635, 4
        %v3637 = vmin.f32 %v3635, %v3636
        %v3638 = vrot.slane %v3637, 2
        %v3639 = vmin.f32 %v3637, %v3638
        %v3640 = vrot.slane %v3639, 1
        %v3641 = vmin.f32 %v3639, %v3640
        %vm3642 = vcmp.eq.f32.partialorder %v1580, %v3641
        %vm3643 = vcmp.eq.f32.partialorder %v1581, %v3641
        %vm3644 = vmor %vm3616, %vm3642
        %vm3645 = vmor %vm3617, %vm3643
        %vm3646 = vmxor %vm3642, 1
        %vm3647 = vmxor %vm3643, 1
        %vm3648 = vmand %vm3620, %vm3646
        %vm3649 = vmand %vm3621, %vm3647
        %v3650 = vsel %vm3648, %v3514, -3e+38
        %v3651 = vsel %vm3649, %v3515, -3e+38
        %v3652 = vmax.f32 %v3650, %v3651
        %v3653 = vrot.slane %v3652, 4
        %v3654 = vmax.f32 %v3652, %v3653
        %v3655 = vrot.slane %v3654, 2
        %v3656 = vmax.f32 %v3654, %v3655
        %v3657 = vrot.slane %v3656, 1
        %v3658 = vmax.f32 %v3656, %v3657
        %vm3659 = vcmp.eq.f32.partialorder %v3650, %v3658
        %vm3660 = vcmp.eq.f32.partialorder %v3651, %v3658
        %v3661 = vsel %vm3659, %v1580, 16.0
        %v3662 = vsel %vm3660, %v1581, 16.0
        %v3663 = vmin.f32 %v3661, %v3662
        %v3664 = vrot.slane %v3663, 4
        %v3665 = vmin.f32 %v3663, %v3664
        %v3666 = vrot.slane %v3665, 2
        %v3667 = vmin.f32 %v3665, %v3666
        %v3668 = vrot.slane %v3667, 1
        %v3669 = vmin.f32 %v3667, %v3668
        %vm3670 = vcmp.eq.f32.partialorder %v1580, %v3669
        %vm3671 = vcmp.eq.f32.partialorder %v1581, %v3669
        %vm3672 = vmor %vm3644, %vm3670
        %vm3673 = vmor %vm3645, %vm3671
        %vm3674 = vmxor %vm3670, 1
        %vm3675 = vmxor %vm3671, 1
        %vm3676 = vmand %vm3648, %vm3674
        %vm3677 = vmand %vm3649, %vm3675
        %v3678 = vsel %vm3676, %v3514, -3e+38
        %v3679 = vsel %vm3677, %v3515, -3e+38
        %v3680 = vmax.f32 %v3678, %v3679
        %v3681 = vrot.slane %v3680, 4
        %v3682 = vmax.f32 %v3680, %v3681
        %v3683 = vrot.slane %v3682, 2
        %v3684 = vmax.f32 %v3682, %v3683
        %v3685 = vrot.slane %v3684, 1
        %v3686 = vmax.f32 %v3684, %v3685
        %vm3687 = vcmp.eq.f32.partialorder %v3678, %v3686
        %vm3688 = vcmp.eq.f32.partialorder %v3679, %v3686
        %v3689 = vsel %vm3687, %v1580, 16.0
        %v3690 = vsel %vm3688, %v1581, 16.0
        %v3691 = vmin.f32 %v3689, %v3690
        %v3692 = vrot.slane %v3691, 4
        %v3693 = vmin.f32 %v3691, %v3692
        %v3694 = vrot.slane %v3693, 2
        %v3695 = vmin.f32 %v3693, %v3694
        %v3696 = vrot.slane %v3695, 1
        %v3697 = vmin.f32 %v3695, %v3696
        %vm3698 = vcmp.eq.f32.partialorder %v1580, %v3697
        %vm3699 = vcmp.eq.f32.partialorder %v1581, %v3697
        %vm3700 = vmor %vm3672, %vm3698
        %vm3701 = vmor %vm3673, %vm3699
        %vm3702 = vmxor %vm3698, 1
        %vm3703 = vmxor %vm3699, 1
        %vm3704 = vmand %vm3676, %vm3702
        %vm3705 = vmand %vm3677, %vm3703
        %v3706 = vsel %vm3704, %v3514, -3e+38
        %v3707 = vsel %vm3705, %v3515, -3e+38
        %v3708 = vmax.f32 %v3706, %v3707
        %v3709 = vrot.slane %v3708, 4
        %v3710 = vmax.f32 %v3708, %v3709
        %v3711 = vrot.slane %v3710, 2
        %v3712 = vmax.f32 %v3710, %v3711
        %v3713 = vrot.slane %v3712, 1
        %v3714 = vmax.f32 %v3712, %v3713
        %vm3715 = vcmp.eq.f32.partialorder %v3706, %v3714
        %vm3716 = vcmp.eq.f32.partialorder %v3707, %v3714
        %v3717 = vsel %vm3715, %v1580, 16.0
        %v3718 = vsel %vm3716, %v1581, 16.0
        %v3719 = vmin.f32 %v3717, %v3718
        %v3720 = vrot.slane %v3719, 4
        %v3721 = vmin.f32 %v3719, %v3720
        %v3722 = vrot.slane %v3721, 2
        %v3723 = vmin.f32 %v3721, %v3722
        %v3724 = vrot.slane %v3723, 1
        %v3725 = vmin.f32 %v3723, %v3724
        %vm3726 = vcmp.eq.f32.partialorder %v1580, %v3725
        %vm3727 = vcmp.eq.f32.partialorder %v1581, %v3725
        %vm3728 = vmor %vm3700, %vm3726
        %vm3729 = vmor %vm3701, %vm3727
        %vm3730 = vmxor %vm3726, 1
        %vm3731 = vmxor %vm3727, 1
        %vm3732 = vmand %vm3704, %vm3730
        %vm3733 = vmand %vm3705, %vm3731
        %v3734 = vsel %vm3732, %v3514, -3e+38
        %v3735 = vsel %vm3733, %v3515, -3e+38
        %v3736 = vmax.f32 %v3734, %v3735
        %v3737 = vrot.slane %v3736, 4
        %v3738 = vmax.f32 %v3736, %v3737
        %v3739 = vrot.slane %v3738, 2
        %v3740 = vmax.f32 %v3738, %v3739
        %v3741 = vrot.slane %v3740, 1
        %v3742 = vmax.f32 %v3740, %v3741
        %vm3743 = vcmp.eq.f32.partialorder %v3734, %v3742
        %vm3744 = vcmp.eq.f32.partialorder %v3735, %v3742
        %v3745 = vsel %vm3743, %v1580, 16.0
        %v3746 = vsel %vm3744, %v1581, 16.0
        %v3747 = vmin.f32 %v3745, %v3746
        %v3748 = vrot.slane %v3747, 4
        %v3749 = vmin.f32 %v3747, %v3748
        %v3750 = vrot.slane %v3749, 2
        %v3751 = vmin.f32 %v3749, %v3750
        %v3752 = vrot.slane %v3751, 1
        %v3753 = vmin.f32 %v3751, %v3752
        %vm3754 = vcmp.eq.f32.partialorder %v1580, %v3753
        %vm3755 = vcmp.eq.f32.partialorder %v1581, %v3753
        %vm3756 = vmor %vm3728, %vm3754
        %vm3757 = vmor %vm3729, %vm3755
        %v3758 = vsel %vm3756, %v3512, 0.0
        %v3759 = vsel %vm3757, %v3513, 0.0
        %v3760 = vmul.f32 %v3456, %v3758
        %v3761 = vmul.f32 %v3457, %v3758
        %v3762 = vmul.f32 %v3458, %v3759
        %v3763 = vmul.f32 %v3459, %v3759
        %v3764 = vsel %vm3756, 1, 0
        %v3765 = vsel %vm3757, 1, 0
        %vm3766 = vcmp.eq.s32.totalorder %v3764, 1
        %vm3767 = vcmp.eq.s32.totalorder %v3765, 1
        %v3768 = vsel %vm3766, %v3760, -3e+38
        %v3769 = vsel %vm3766, %v3761, -3e+38
        %v3770 = vsel %vm3767, %v3762, -3e+38
        %v3771 = vsel %vm3767, %v3763, -3e+38
        %v3772 = vmax.f32 %v3768, %v3770
        %v3773 = vrot.slane %v3772, 4
        %v3774 = vmax.f32 %v3772, %v3773
        %v3775 = vrot.slane %v3774, 2
        %v3776 = vmax.f32 %v3774, %v3775
        %v3777 = vrot.slane %v3776, 1
        %v3778 = vmax.f32 %v3776, %v3777
        %v3779 = vmax.f32 %v3769, %v3771
        %v3780 = vrot.slane %v3779, 4
        %v3781 = vmax.f32 %v3779, %v3780
        %v3782 = vrot.slane %v3781, 2
        %v3783 = vmax.f32 %v3781, %v3782
        %v3784 = vrot.slane %v3783, 1
        %v3785 = vmax.f32 %v3783, %v3784
        %v3786 = vadd.f32 %v2903, %v3778
        %v3787 = vadd.f32 %v2904, %v3785
        %v3788 = vadd.f32 %v3760, %v3762
        %v3789 = vrot.slane %v3788, 4
        %v3790 = vadd.f32 %v3788, %v3789
        %v3791 = vrot.slane %v3790, 2
        %v3792 = vadd.f32 %v3790, %v3791
        %v3793 = vrot.slane %v3792, 1
        %v3794 = vadd.f32 %v3792, %v3793
        %v3795 = vadd.f32 %v3761, %v3763
        %v3796 = vrot.slane %v3795, 4
        %v3797 = vadd.f32 %v3795, %v3796
        %v3798 = vrot.slane %v3797, 2
        %v3799 = vadd.f32 %v3797, %v3798
        %v3800 = vrot.slane %v3799, 1
        %v3801 = vadd.f32 %v3799, %v3800
        %v3802 = vmul.f32 %v3794, 0.11111111
        %v3803 = vmul.f32 %v3801, 0.11111111
        %v3804 = vadd.f32 %v2921, %v3802
        %v3805 = vadd.f32 %v2922, %v3803
        %v3806 = vpack.c.bf16 %v3762, %v3760
        %v3807 = vpack.c.bf16 %v3763, %v3761
        %3808 = vmatprep.subr.bf16.mxu0 %v3807
        %3809 = vmatpush1.bf16.msra.mxu0 %v3806
        %3810 = vmatprep.subr.bf16.mxu0 0
        %3811 = vmatpush1.bf16.msra.mxu0 0
        %3812 = vmatprep.subr.bf16.mxu0 0
        %3813 = vmatpush1.bf16.msra.mxu0 0
        %3814 = vmatprep.subr.bf16.mxu0 0
        %3815 = vmatpush1.bf16.msra.mxu0 0
        %3816 = vmatprep.subr.bf16.mxu0 0
        %3817 = vmatpush1.bf16.msra.mxu0 0
        %3818 = vmatprep.subr.bf16.mxu0 0
        %3819 = vmatpush1.bf16.msra.mxu0 0
        %3820 = vmatprep.subr.bf16.mxu0 0
        %3821 = vmatpush1.bf16.msra.mxu0 0
        %3822 = vmatprep.subr.bf16.mxu0 0
        %3823 = vmatpush1.bf16.msra.mxu0 0
        %3824 = vmatprep.subr.bf16.mxu0 0
        %3825 = vmatpush1.bf16.msra.mxu0 0
        %3826 = vmatprep.subr.bf16.mxu0 0
        %3827 = vmatpush1.bf16.msra.mxu0 0
        %3828 = vmatprep.subr.bf16.mxu0 0
        %3829 = vmatpush1.bf16.msra.mxu0 0
        %3830 = vmatprep.subr.bf16.mxu0 0
        %3831 = vmatpush1.bf16.msra.mxu0 0
        %3832 = vmatprep.subr.bf16.mxu0 0
        %3833 = vmatpush1.bf16.msra.mxu0 0
        %3834 = vmatprep.subr.bf16.mxu0 0
        %3835 = vmatpush1.bf16.msra.mxu0 0
        %3836 = vmatprep.subr.bf16.mxu0 0
        %3837 = vmatpush1.bf16.msra.mxu0 0
        %3838 = vmatprep.subr.bf16.mxu0 0
        %3839 = vmatpush1.bf16.msra.mxu0 0
        %3840 = vmatprep.mubr.bf16.mxu0 0
        %3841 = vmatmul.mubr.bf16.gmra.mrb[0].mxu0 %v985
        %v3842 = vpop.f32.mrb[0].mxu0
        %v3843 = vadd.f32 0.0, %v3842
        %v3844 = vpop.f32.mrb[0].mxu0
        %v3845 = vadd.f32 0.0, %v3844
        %v3846 = vpop.f32.mrb[0].mxu0
        %v3847 = vadd.f32 0.0, %v3846
        %v3848 = vpop.f32.mrb[0].mxu0
        %v3849 = vadd.f32 0.0, %v3848
        %3850 = vdwg.mxu0
        %v3851 = vld [vmem:[#allocation17] sm:$0xff]
        %v3852 = vld [vmem:[#allocation17 + $0x8] sm:$0xff]
        %v3853 = vld [vmem:[#allocation17 + $0x10] sm:$0xff]
        %v3854 = vld [vmem:[#allocation17 + $0x18] sm:$0xff]
        %v3855 = vld [vmem:[#allocation17 + $0x20] sm:$0xff]
        %v3856 = vld [vmem:[#allocation17 + $0x28] sm:$0xff]
        %v3857 = vld [vmem:[#allocation17 + $0x30] sm:$0xff]
        %v3858 = vld [vmem:[#allocation17 + $0x38] sm:$0xff]
        %v3859 = vld [vmem:[#allocation17 + $0x40] sm:$0xff]
        %v3860 = vld [vmem:[#allocation17 + $0x48] sm:$0xff]
        %v3861 = vld [vmem:[#allocation17 + $0x50] sm:$0xff]
        %v3862 = vld [vmem:[#allocation17 + $0x58] sm:$0xff]
        %v3863 = vld [vmem:[#allocation17 + $0x60] sm:$0xff]
        %v3864 = vld [vmem:[#allocation17 + $0x68] sm:$0xff]
        %v3865 = vld [vmem:[#allocation17 + $0x70] sm:$0xff]
        %v3866 = vld [vmem:[#allocation17 + $0x78] sm:$0xff]
        %v3867 = vld [vmem:[#allocation17 + $0x80] sm:$0xff]
        %v3868 = vld [vmem:[#allocation17 + $0x88] sm:$0xff]
        %v3869 = vld [vmem:[#allocation17 + $0x90] sm:$0xff]
        %v3870 = vld [vmem:[#allocation17 + $0x98] sm:$0xff]
        %v3871 = vld [vmem:[#allocation17 + $0xa0] sm:$0xff]
        %v3872 = vld [vmem:[#allocation17 + $0xa8] sm:$0xff]
        %v3873 = vld [vmem:[#allocation17 + $0xb0] sm:$0xff]
        %v3874 = vld [vmem:[#allocation17 + $0xb8] sm:$0xff]
        %v3875 = vld [vmem:[#allocation17 + $0xc0] sm:$0xff]
        %v3876 = vld [vmem:[#allocation17 + $0xc8] sm:$0xff]
        %v3877 = vld [vmem:[#allocation17 + $0xd0] sm:$0xff]
        %v3878 = vld [vmem:[#allocation17 + $0xd8] sm:$0xff]
        %v3879 = vld [vmem:[#allocation17 + $0xe0] sm:$0xff]
        %v3880 = vld [vmem:[#allocation17 + $0xe8] sm:$0xff]
        %v3881 = vld [vmem:[#allocation17 + $0xf0] sm:$0xff]
        %v3882 = vld [vmem:[#allocation17 + $0xf8] sm:$0xff]
        %v3883 = vpack.c.bf16 %v3847, %v3843
        %v3884 = vpack.c.bf16 %v3849, %v3845
        %v3885 = vld [vmem:[#allocation19] sm:$0xff]
        %v3886 = vld [vmem:[#allocation19 + $0x8] sm:$0xff]
        %v3887 = vld [vmem:[#allocation19 + $0x10] sm:$0xff]
        %v3888 = vld [vmem:[#allocation19 + $0x18] sm:$0xff]
        %v3889 = vld [vmem:[#allocation19 + $0x20] sm:$0xff]
        %v3890 = vld [vmem:[#allocation19 + $0x28] sm:$0xff]
        %v3891 = vld [vmem:[#allocation19 + $0x30] sm:$0xff]
        %v3892 = vld [vmem:[#allocation19 + $0x38] sm:$0xff]
        %v3893 = vld [vmem:[#allocation19 + $0x40] sm:$0xff]
        %v3894 = vld [vmem:[#allocation19 + $0x48] sm:$0xff]
        %v3895 = vld [vmem:[#allocation19 + $0x50] sm:$0xff]
        %v3896 = vld [vmem:[#allocation19 + $0x58] sm:$0xff]
        %v3897 = vld [vmem:[#allocation19 + $0x60] sm:$0xff]
        %v3898 = vld [vmem:[#allocation19 + $0x68] sm:$0xff]
        %v3899 = vld [vmem:[#allocation19 + $0x70] sm:$0xff]
        %v3900 = vld [vmem:[#allocation19 + $0x78] sm:$0xff]
        %v3901 = vld [vmem:[#allocation19 + $0x80] sm:$0xff]
        %v3902 = vld [vmem:[#allocation19 + $0x88] sm:$0xff]
        %v3903 = vld [vmem:[#allocation19 + $0x90] sm:$0xff]
        %v3904 = vld [vmem:[#allocation19 + $0x98] sm:$0xff]
        %v3905 = vld [vmem:[#allocation19 + $0xa0] sm:$0xff]
        %v3906 = vld [vmem:[#allocation19 + $0xa8] sm:$0xff]
        %v3907 = vld [vmem:[#allocation19 + $0xb0] sm:$0xff]
        %v3908 = vld [vmem:[#allocation19 + $0xb8] sm:$0xff]
        %v3909 = vld [vmem:[#allocation19 + $0xc0] sm:$0xff]
        %v3910 = vld [vmem:[#allocation19 + $0xc8] sm:$0xff]
        %v3911 = vld [vmem:[#allocation19 + $0xd0] sm:$0xff]
        %v3912 = vld [vmem:[#allocation19 + $0xd8] sm:$0xff]
        %v3913 = vld [vmem:[#allocation19 + $0xe0] sm:$0xff]
        %v3914 = vld [vmem:[#allocation19 + $0xe8] sm:$0xff]
        %v3915 = vld [vmem:[#allocation19 + $0xf0] sm:$0xff]
        %v3916 = vld [vmem:[#allocation19 + $0xf8] sm:$0xff]
        %v3949 = vunpack.c.l.b16 %v3885
        %v3950 = vunpack.c.h.b16 %v3885
        %v3951 = vunpack.c.l.b16 %v3886
        %v3952 = vunpack.c.h.b16 %v3886
        %v3953 = vunpack.c.l.b16 %v3887
        %v3954 = vunpack.c.h.b16 %v3887
        %v3955 = vunpack.c.l.b16 %v3888
        %v3956 = vunpack.c.h.b16 %v3888
        %v3957 = vunpack.c.l.b16 %v3889
        %v3958 = vunpack.c.h.b16 %v3889
        %v3959 = vunpack.c.l.b16 %v3890
        %v3960 = vunpack.c.h.b16 %v3890
        %v3961 = vunpack.c.l.b16 %v3891
        %v3962 = vunpack.c.h.b16 %v3891
        %v3963 = vunpack.c.l.b16 %v3892
        %v3964 = vunpack.c.h.b16 %v3892
        %v3965 = vunpack.c.l.b16 %v3893
        %v3966 = vunpack.c.h.b16 %v3893
        %v3967 = vunpack.c.l.b16 %v3894
        %v3968 = vunpack.c.h.b16 %v3894
        %v3969 = vunpack.c.l.b16 %v3895
        %v3970 = vunpack.c.h.b16 %v3895
        %v3971 = vunpack.c.l.b16 %v3896
        %v3972 = vunpack.c.h.b16 %v3896
        %v3973 = vunpack.c.l.b16 %v3897
        %v3974 = vunpack.c.h.b16 %v3897
        %v3975 = vunpack.c.l.b16 %v3898
        %v3976 = vunpack.c.h.b16 %v3898
        %v3977 = vunpack.c.l.b16 %v3899
        %v3978 = vunpack.c.h.b16 %v3899
        %v3979 = vunpack.c.l.b16 %v3900
        %v3980 = vunpack.c.h.b16 %v3900
        %v3981 = vunpack.c.l.b16 %v3901
        %v3982 = vunpack.c.h.b16 %v3901
        %v3983 = vunpack.c.l.b16 %v3902
        %v3984 = vunpack.c.h.b16 %v3902
        %v3985 = vunpack.c.l.b16 %v3903
        %v3986 = vunpack.c.h.b16 %v3903
        %v3987 = vunpack.c.l.b16 %v3904
        %v3988 = vunpack.c.h.b16 %v3904
        %v3989 = vunpack.c.l.b16 %v3905
        %v3990 = vunpack.c.h.b16 %v3905
        %v3991 = vunpack.c.l.b16 %v3906
        %v3992 = vunpack.c.h.b16 %v3906
        %v3993 = vunpack.c.l.b16 %v3907
        %v3994 = vunpack.c.h.b16 %v3907
        %v3995 = vunpack.c.l.b16 %v3908
        %v3996 = vunpack.c.h.b16 %v3908
        %v3997 = vunpack.c.l.b16 %v3909
        %v3998 = vunpack.c.h.b16 %v3909
        %v3999 = vunpack.c.l.b16 %v3910
        %v4000 = vunpack.c.h.b16 %v3910
        %v4001 = vunpack.c.l.b16 %v3911
        %v4002 = vunpack.c.h.b16 %v3911
        %v4003 = vunpack.c.l.b16 %v3912
        %v4004 = vunpack.c.h.b16 %v3912
        %v4005 = vunpack.c.l.b16 %v3913
        %v4006 = vunpack.c.h.b16 %v3913
        %v4007 = vunpack.c.l.b16 %v3914
        %v4008 = vunpack.c.h.b16 %v3914
        %v4009 = vunpack.c.l.b16 %v3915
        %v4010 = vunpack.c.h.b16 %v3915
        %v4011 = vunpack.c.l.b16 %v3916
        %v4012 = vunpack.c.h.b16 %v3916
        %v4013 = vpack.c.b16 %v3951, %v3949
        %v4014 = vpack.c.b16 %v3952, %v3950
        %v4015 = vpack.c.b16 %v3955, %v3953
        %v4016 = vpack.c.b16 %v3956, %v3954
        %v4017 = vpack.c.b16 %v3959, %v3957
        %v4018 = vpack.c.b16 %v3960, %v3958
        %v4019 = vpack.c.b16 %v3963, %v3961
        %v4020 = vpack.c.b16 %v3964, %v3962
        %v4021 = vpack.c.b16 %v3967, %v3965
        %v4022 = vpack.c.b16 %v3968, %v3966
        %v4023 = vpack.c.b16 %v3971, %v3969
        %v4024 = vpack.c.b16 %v3972, %v3970
        %v4025 = vpack.c.b16 %v3975, %v3973
        %v4026 = vpack.c.b16 %v3976, %v3974
        %v4027 = vpack.c.b16 %v3979, %v3977
        %v4028 = vpack.c.b16 %v3980, %v3978
        %v4029 = vpack.c.b16 %v3983, %v3981
        %v4030 = vpack.c.b16 %v3984, %v3982
        %v4031 = vpack.c.b16 %v3987, %v3985
        %v4032 = vpack.c.b16 %v3988, %v3986
        %v4033 = vpack.c.b16 %v3991, %v3989
        %v4034 = vpack.c.b16 %v3992, %v3990
        %v4035 = vpack.c.b16 %v3995, %v3993
        %v4036 = vpack.c.b16 %v3996, %v3994
        %v4037 = vpack.c.b16 %v3999, %v3997
        %v4038 = vpack.c.b16 %v4000, %v3998
        %v4039 = vpack.c.b16 %v4003, %v4001
        %v4040 = vpack.c.b16 %v4004, %v4002
        %v4041 = vpack.c.b16 %v4007, %v4005
        %v4042 = vpack.c.b16 %v4008, %v4006
        %v4043 = vpack.c.b16 %v4011, %v4009
        %v4044 = vpack.c.b16 %v4012, %v4010
        %4077 = vmatprep.subr.bf16.mxu0 %v4014
        %4078 = vmatpush1.bf16.msra.mxu0 %v4013
        %4079 = vmatprep.subr.bf16.mxu0 %v4016
        %4080 = vmatpush1.bf16.msra.mxu0 %v4015
        %4081 = vmatprep.subr.bf16.mxu0 %v4018
        %4082 = vmatpush1.bf16.msra.mxu0 %v4017
        %4083 = vmatprep.subr.bf16.mxu0 %v4020
        %4084 = vmatpush1.bf16.msra.mxu0 %v4019
        %4085 = vmatprep.subr.bf16.mxu0 %v4022
        %4086 = vmatpush1.bf16.msra.mxu0 %v4021
        %4087 = vmatprep.subr.bf16.mxu0 %v4024
        %4088 = vmatpush1.bf16.msra.mxu0 %v4023
        %4089 = vmatprep.subr.bf16.mxu0 %v4026
        %4090 = vmatpush1.bf16.msra.mxu0 %v4025
        %4091 = vmatprep.subr.bf16.mxu0 %v4028
        %4092 = vmatpush1.bf16.msra.mxu0 %v4027
        %4093 = vmatprep.subr.bf16.mxu0 %v4030
        %4094 = vmatpush1.bf16.msra.mxu0 %v4029
        %4095 = vmatprep.subr.bf16.mxu0 %v4032
        %4096 = vmatpush1.bf16.msra.mxu0 %v4031
        %4097 = vmatprep.subr.bf16.mxu0 %v4034
        %4098 = vmatpush1.bf16.msra.mxu0 %v4033
        %4099 = vmatprep.subr.bf16.mxu0 %v4036
        %4100 = vmatpush1.bf16.msra.mxu0 %v4035
        %4101 = vmatprep.subr.bf16.mxu0 %v4038
        %4102 = vmatpush1.bf16.msra.mxu0 %v4037
        %4103 = vmatprep.subr.bf16.mxu0 %v4040
        %4104 = vmatpush1.bf16.msra.mxu0 %v4039
        %4105 = vmatprep.subr.bf16.mxu0 %v4042
        %4106 = vmatpush1.bf16.msra.mxu0 %v4041
        %4107 = vmatprep.subr.bf16.mxu0 %v4044
        %4108 = vmatpush1.bf16.msra.mxu0 %v4043
        %4109 = vmatprep.mubr.bf16.mxu0 %v3884
        %4110 = vmatmul.mubr.bf16.gmra.mrb[0].mxu0 %v3883
        %v4111 = vpop.f32.mrb[0].mxu0
        %v4112 = vadd.f32 0.0, %v4111
        %v4113 = vpop.f32.mrb[0].mxu0
        %v4114 = vadd.f32 0.0, %v4113
        %v4115 = vpop.f32.mrb[0].mxu0
        %v4116 = vadd.f32 0.0, %v4115
        %v4117 = vpop.f32.mrb[0].mxu0
        %v4118 = vadd.f32 0.0, %v4117
        %4119 = vdwg.mxu0
        %v4152 = vunpack.c.l.b16 %v3851
        %v4153 = vunpack.c.h.b16 %v3851
        %v4154 = vunpack.c.l.b16 %v3852
        %v4155 = vunpack.c.h.b16 %v3852
        %v4156 = vunpack.c.l.b16 %v3853
        %v4157 = vunpack.c.h.b16 %v3853
        %v4158 = vunpack.c.l.b16 %v3854
        %v4159 = vunpack.c.h.b16 %v3854
        %v4160 = vunpack.c.l.b16 %v3855
        %v4161 = vunpack.c.h.b16 %v3855
        %v4162 = vunpack.c.l.b16 %v3856
        %v4163 = vunpack.c.h.b16 %v3856
        %v4164 = vunpack.c.l.b16 %v3857
        %v4165 = vunpack.c.h.b16 %v3857
        %v4166 = vunpack.c.l.b16 %v3858
        %v4167 = vunpack.c.h.b16 %v3858
        %v4168 = vunpack.c.l.b16 %v3859
        %v4169 = vunpack.c.h.b16 %v3859
        %v4170 = vunpack.c.l.b16 %v3860
        %v4171 = vunpack.c.h.b16 %v3860
        %v4172 = vunpack.c.l.b16 %v3861
        %v4173 = vunpack.c.h.b16 %v3861
        %v4174 = vunpack.c.l.b16 %v3862
        %v4175 = vunpack.c.h.b16 %v3862
        %v4176 = vunpack.c.l.b16 %v3863
        %v4177 = vunpack.c.h.b16 %v3863
        %v4178 = vunpack.c.l.b16 %v3864
        %v4179 = vunpack.c.h.b16 %v3864
        %v4180 = vunpack.c.l.b16 %v3865
        %v4181 = vunpack.c.h.b16 %v3865
        %v4182 = vunpack.c.l.b16 %v3866
        %v4183 = vunpack.c.h.b16 %v3866
        %v4184 = vunpack.c.l.b16 %v3867
        %v4185 = vunpack.c.h.b16 %v3867
        %v4186 = vunpack.c.l.b16 %v3868
        %v4187 = vunpack.c.h.b16 %v3868
        %v4188 = vunpack.c.l.b16 %v3869
        %v4189 = vunpack.c.h.b16 %v3869
        %v4190 = vunpack.c.l.b16 %v3870
        %v4191 = vunpack.c.h.b16 %v3870
        %v4192 = vunpack.c.l.b16 %v3871
        %v4193 = vunpack.c.h.b16 %v3871
        %v4194 = vunpack.c.l.b16 %v3872
        %v4195 = vunpack.c.h.b16 %v3872
        %v4196 = vunpack.c.l.b16 %v3873
        %v4197 = vunpack.c.h.b16 %v3873
        %v4198 = vunpack.c.l.b16 %v3874
        %v4199 = vunpack.c.h.b16 %v3874
        %v4200 = vunpack.c.l.b16 %v3875
        %v4201 = vunpack.c.h.b16 %v3875
        %v4202 = vunpack.c.l.b16 %v3876
        %v4203 = vunpack.c.h.b16 %v3876
        %v4204 = vunpack.c.l.b16 %v3877
        %v4205 = vunpack.c.h.b16 %v3877
        %v4206 = vunpack.c.l.b16 %v3878
        %v4207 = vunpack.c.h.b16 %v3878
        %v4208 = vunpack.c.l.b16 %v3879
        %v4209 = vunpack.c.h.b16 %v3879
        %v4210 = vunpack.c.l.b16 %v3880
        %v4211 = vunpack.c.h.b16 %v3880
        %v4212 = vunpack.c.l.b16 %v3881
        %v4213 = vunpack.c.h.b16 %v3881
        %v4214 = vunpack.c.l.b16 %v3882
        %v4215 = vunpack.c.h.b16 %v3882
        %v4216 = vpack.c.b16 %v4154, %v4152
        %v4217 = vpack.c.b16 %v4155, %v4153
        %v4218 = vpack.c.b16 %v4158, %v4156
        %v4219 = vpack.c.b16 %v4159, %v4157
        %v4220 = vpack.c.b16 %v4162, %v4160
        %v4221 = vpack.c.b16 %v4163, %v4161
        %v4222 = vpack.c.b16 %v4166, %v4164
        %v4223 = vpack.c.b16 %v4167, %v4165
        %v4224 = vpack.c.b16 %v4170, %v4168
        %v4225 = vpack.c.b16 %v4171, %v4169
        %v4226 = vpack.c.b16 %v4174, %v4172
        %v4227 = vpack.c.b16 %v4175, %v4173
        %v4228 = vpack.c.b16 %v4178, %v4176
        %v4229 = vpack.c.b16 %v4179, %v4177
        %v4230 = vpack.c.b16 %v4182, %v4180
        %v4231 = vpack.c.b16 %v4183, %v4181
        %v4232 = vpack.c.b16 %v4186, %v4184
        %v4233 = vpack.c.b16 %v4187, %v4185
        %v4234 = vpack.c.b16 %v4190, %v4188
        %v4235 = vpack.c.b16 %v4191, %v4189
        %v4236 = vpack.c.b16 %v4194, %v4192
        %v4237 = vpack.c.b16 %v4195, %v4193
        %v4238 = vpack.c.b16 %v4198, %v4196
        %v4239 = vpack.c.b16 %v4199, %v4197
        %v4240 = vpack.c.b16 %v4202, %v4200
        %v4241 = vpack.c.b16 %v4203, %v4201
        %v4242 = vpack.c.b16 %v4206, %v4204
        %v4243 = vpack.c.b16 %v4207, %v4205
        %v4244 = vpack.c.b16 %v4210, %v4208
        %v4245 = vpack.c.b16 %v4211, %v4209
        %v4246 = vpack.c.b16 %v4214, %v4212
        %v4247 = vpack.c.b16 %v4215, %v4213
        %4280 = vmatprep.subr.bf16.mxu0 %v4217
        %4281 = vmatpush1.bf16.msra.mxu0 %v4216
        %4282 = vmatprep.subr.bf16.mxu0 %v4219
        %4283 = vmatpush1.bf16.msra.mxu0 %v4218
        %4284 = vmatprep.subr.bf16.mxu0 %v4221
        %4285 = vmatpush1.bf16.msra.mxu0 %v4220
        %4286 = vmatprep.subr.bf16.mxu0 %v4223
        %4287 = vmatpush1.bf16.msra.mxu0 %v4222
        %4288 = vmatprep.subr.bf16.mxu0 %v4225
        %4289 = vmatpush1.bf16.msra.mxu0 %v4224
        %4290 = vmatprep.subr.bf16.mxu0 %v4227
        %4291 = vmatpush1.bf16.msra.mxu0 %v4226
        %4292 = vmatprep.subr.bf16.mxu0 %v4229
        %4293 = vmatpush1.bf16.msra.mxu0 %v4228
        %4294 = vmatprep.subr.bf16.mxu0 %v4231
        %4295 = vmatpush1.bf16.msra.mxu0 %v4230
        %4296 = vmatprep.subr.bf16.mxu0 %v4233
        %4297 = vmatpush1.bf16.msra.mxu0 %v4232
        %4298 = vmatprep.subr.bf16.mxu0 %v4235
        %4299 = vmatpush1.bf16.msra.mxu0 %v4234
        %4300 = vmatprep.subr.bf16.mxu0 %v4237
        %4301 = vmatpush1.bf16.msra.mxu0 %v4236
        %4302 = vmatprep.subr.bf16.mxu0 %v4239
        %4303 = vmatpush1.bf16.msra.mxu0 %v4238
        %4304 = vmatprep.subr.bf16.mxu0 %v4241
        %4305 = vmatpush1.bf16.msra.mxu0 %v4240
        %4306 = vmatprep.subr.bf16.mxu0 %v4243
        %4307 = vmatpush1.bf16.msra.mxu0 %v4242
        %4308 = vmatprep.subr.bf16.mxu0 %v4245
        %4309 = vmatpush1.bf16.msra.mxu0 %v4244
        %4310 = vmatprep.subr.bf16.mxu0 %v4247
        %4311 = vmatpush1.bf16.msra.mxu0 %v4246
        %4312 = vmatprep.mubr.bf16.mxu0 %v3807
        %4313 = vmatmul.mubr.bf16.gmra.mrb[0].mxu0 %v3806
        %v4314 = vpop.f32.mrb[0].mxu0
        %v4315 = vadd.f32 %v4112, %v4314
        %v4316 = vpop.f32.mrb[0].mxu0
        %v4317 = vadd.f32 %v4114, %v4316
        %v4318 = vpop.f32.mrb[0].mxu0
        %v4319 = vadd.f32 %v4116, %v4318
        %v4320 = vpop.f32.mrb[0].mxu0
        %v4321 = vadd.f32 %v4118, %v4320
        %4322 = vdwg.mxu0
        %v4323 = vld [vmem:[#allocation20] sm:$0x3]
        %v4325 = vlaneseq
        %v4326 = vshrl.u32 %v4325, 7
        %v4327 = vsub.s32 0, %v4326
        %v4328 = vrot.slane %v4323, %v4327
        %v4329 = vlaneseq
        %v4330 = vshrl.u32 %v4329, 7
        %v4331 = vsub.s32 1, %v4330
        %v4332 = vrot.slane %v4323, %v4331
        %v4335 = vadd.f32 %v4315, %v4328
        %v4336 = vadd.f32 %v4317, %v4332
        %v4337 = vadd.f32 %v4319, %v4328
        %v4338 = vadd.f32 %v4321, %v4332
        %v4339 = vmax.f32 %v4335, 0.0
        %v4340 = vmax.f32 %v4336, 0.0
        %v4341 = vmax.f32 %v4337, 0.0
        %v4342 = vmax.f32 %v4338, 0.0
        %v4343 = vld [vmem:[#allocation22] sm:$0x3]
        %v4345 = vlaneseq
        %v4346 = vshrl.u32 %v4345, 7
        %v4347 = vsub.s32 0, %v4346
        %v4348 = vrot.slane %v4343, %v4347
        %v4349 = vlaneseq
        %v4350 = vshrl.u32 %v4349, 7
        %v4351 = vsub.s32 1, %v4350
        %v4352 = vrot.slane %v4343, %v4351
        %v4355 = vmul.f32 %v4339, %v4348
        %v4356 = vmul.f32 %v4340, %v4352
        %v4357 = vmul.f32 %v4341, %v4348
        %v4358 = vmul.f32 %v4342, %v4352
        %v4359 = vadd.f32 %v4355, %v4356
        %4360 = vadd.xlane.f32.xlu0 %v4359
        %v4361 = vpop.xlane.xlu0 %4360
        %v4362 = vadd.f32 %v4357, %v4358
        %4363 = vadd.xlane.f32.xlu0 %v4362
        %v4364 = vpop.xlane.xlu0 %4363
        %v4365 = vmul.f32 %v4343, %v4343
        %v4367 = vlaneseq
        %v4368 = vshrl.u32 %v4367, 7
        %v4369 = vsub.s32 0, %v4368
        %v4370 = vrot.slane %v4365, %v4369
        %v4371 = vlaneseq
        %v4372 = vshrl.u32 %v4371, 7
        %v4373 = vsub.s32 1, %v4372
        %v4374 = vrot.slane %v4365, %v4373
        %v4377 = vsel %vm1556, %v4370, 0.0
        %v4378 = vsel %vm1556, %v4374, 0.0
        %v4379 = vadd.f32 %v4377, %v4378
        %4380 = vadd.xlane.f32.xlu0 %v4379
        %v4381 = vpop.xlane.xlu0 %4380
        %v4382 = vrot.slane %v4381, 4
        %v4383 = vadd.f32 %v4381, %v4382
        %v4384 = vrot.slane %v4383, 2
        %v4385 = vadd.f32 %v4383, %v4384
        %v4386 = vrot.slane %v4385, 1
        %v4387 = vadd.f32 %v4385, %v4386
        %s4388 = vtos %v4387
        %v4389 = vstv %s4388
        %v4390 = vrsqrt.pop %v4389
        %s4391 = vtos %v4390
        %v4392 = vstv %s4391
        %v4393 = vmul.f32 %v4361, %v4392
        %v4394 = vmul.f32 %v4364, %v4392
        %v4395 = vtanh.pop %v4393
        %v4396 = vtanh.pop %v4394
        %v4397 = vsel %vm3756, %v4395, -3e+38
        %v4398 = vsel %vm3757, %v4396, -3e+38
        %v4399 = vmax.f32 %v4397, %v4398
        %v4400 = vrot.slane %v4399, 4
        %v4401 = vmax.f32 %v4399, %v4400
        %v4402 = vrot.slane %v4401, 2
        %v4403 = vmax.f32 %v4401, %v4402
        %v4404 = vrot.slane %v4403, 1
        %v4405 = vmax.f32 %v4403, %v4404
        %vm4406 = vcmp.eq.f32.partialorder %v4397, %v4405
        %vm4407 = vcmp.eq.f32.partialorder %v4398, %v4405
        %v4408 = vsel %vm4406, %v1580, 16.0
        %v4409 = vsel %vm4407, %v1581, 16.0
        %v4410 = vmin.f32 %v4408, %v4409
        %v4411 = vrot.slane %v4410, 4
        %v4412 = vmin.f32 %v4410, %v4411
        %v4413 = vrot.slane %v4412, 2
        %v4414 = vmin.f32 %v4412, %v4413
        %v4415 = vrot.slane %v4414, 1
        %v4416 = vmin.f32 %v4414, %v4415
        %vm4417 = vcmp.eq.f32.partialorder %v1580, %v4416
        %vm4418 = vcmp.eq.f32.partialorder %v1581, %v4416
        %vm4419 = vmxor %vm4417, 1
        %vm4420 = vmxor %vm4418, 1
        %v4421 = vsel %vm4419, %v4397, -3e+38
        %v4422 = vsel %vm4420, %v4398, -3e+38
        %v4423 = vmax.f32 %v4421, %v4422
        %v4424 = vrot.slane %v4423, 4
        %v4425 = vmax.f32 %v4423, %v4424
        %v4426 = vrot.slane %v4425, 2
        %v4427 = vmax.f32 %v4425, %v4426
        %v4428 = vrot.slane %v4427, 1
        %v4429 = vmax.f32 %v4427, %v4428
        %vm4430 = vcmp.eq.f32.partialorder %v4421, %v4429
        %vm4431 = vcmp.eq.f32.partialorder %v4422, %v4429
        %v4432 = vsel %vm4430, %v1580, 16.0
        %v4433 = vsel %vm4431, %v1581, 16.0
        %v4434 = vmin.f32 %v4432, %v4433
        %v4435 = vrot.slane %v4434, 4
        %v4436 = vmin.f32 %v4434, %v4435
        %v4437 = vrot.slane %v4436, 2
        %v4438 = vmin.f32 %v4436, %v4437
        %v4439 = vrot.slane %v4438, 1
        %v4440 = vmin.f32 %v4438, %v4439
        %vm4441 = vcmp.eq.f32.partialorder %v1580, %v4440
        %vm4442 = vcmp.eq.f32.partialorder %v1581, %v4440
        %vm4443 = vmor %vm4417, %vm4441
        %vm4444 = vmor %vm4418, %vm4442
        %vm4445 = vmxor %vm4441, 1
        %vm4446 = vmxor %vm4442, 1
        %vm4447 = vmand %vm4419, %vm4445
        %vm4448 = vmand %vm4420, %vm4446
        %v4449 = vsel %vm4447, %v4397, -3e+38
        %v4450 = vsel %vm4448, %v4398, -3e+38
        %v4451 = vmax.f32 %v4449, %v4450
        %v4452 = vrot.slane %v4451, 4
        %v4453 = vmax.f32 %v4451, %v4452
        %v4454 = vrot.slane %v4453, 2
        %v4455 = vmax.f32 %v4453, %v4454
        %v4456 = vrot.slane %v4455, 1
        %v4457 = vmax.f32 %v4455, %v4456
        %vm4458 = vcmp.eq.f32.partialorder %v4449, %v4457
        %vm4459 = vcmp.eq.f32.partialorder %v4450, %v4457
        %v4460 = vsel %vm4458, %v1580, 16.0
        %v4461 = vsel %vm4459, %v1581, 16.0
        %v4462 = vmin.f32 %v4460, %v4461
        %v4463 = vrot.slane %v4462, 4
        %v4464 = vmin.f32 %v4462, %v4463
        %v4465 = vrot.slane %v4464, 2
        %v4466 = vmin.f32 %v4464, %v4465
        %v4467 = vrot.slane %v4466, 1
        %v4468 = vmin.f32 %v4466, %v4467
        %vm4469 = vcmp.eq.f32.partialorder %v1580, %v4468
        %vm4470 = vcmp.eq.f32.partialorder %v1581, %v4468
        %vm4471 = vmor %vm4443, %vm4469
        %vm4472 = vmor %vm4444, %vm4470
        %vm4473 = vmxor %vm4469, 1
        %vm4474 = vmxor %vm4470, 1
        %vm4475 = vmand %vm4447, %vm4473
        %vm4476 = vmand %vm4448, %vm4474
        %v4477 = vsel %vm4475, %v4397, -3e+38
        %v4478 = vsel %vm4476, %v4398, -3e+38
        %v4479 = vmax.f32 %v4477, %v4478
        %v4480 = vrot.slane %v4479, 4
        %v4481 = vmax.f32 %v4479, %v4480
        %v4482 = vrot.slane %v4481, 2
        %v4483 = vmax.f32 %v4481, %v4482
        %v4484 = vrot.slane %v4483, 1
        %v4485 = vmax.f32 %v4483, %v4484
        %vm4486 = vcmp.eq.f32.partialorder %v4477, %v4485
        %vm4487 = vcmp.eq.f32.partialorder %v4478, %v4485
        %v4488 = vsel %vm4486, %v1580, 16.0
        %v4489 = vsel %vm4487, %v1581, 16.0
        %v4490 = vmin.f32 %v4488, %v4489
        %v4491 = vrot.slane %v4490, 4
        %v4492 = vmin.f32 %v4490, %v4491
        %v4493 = vrot.slane %v4492, 2
        %v4494 = vmin.f32 %v4492, %v4493
        %v4495 = vrot.slane %v4494, 1
        %v4496 = vmin.f32 %v4494, %v4495
        %vm4497 = vcmp.eq.f32.partialorder %v1580, %v4496
        %vm4498 = vcmp.eq.f32.partialorder %v1581, %v4496
        %vm4499 = vmor %vm4471, %vm4497
        %vm4500 = vmor %vm4472, %vm4498
        %vm4501 = vmxor %vm4497, 1
        %vm4502 = vmxor %vm4498, 1
        %vm4503 = vmand %vm4475, %vm4501
        %vm4504 = vmand %vm4476, %vm4502
        %v4505 = vsel %vm4503, %v4397, -3e+38
        %v4506 = vsel %vm4504, %v4398, -3e+38
        %v4507 = vmax.f32 %v4505, %v4506
        %v4508 = vrot.slane %v4507, 4
        %v4509 = vmax.f32 %v4507, %v4508
        %v4510 = vrot.slane %v4509, 2
        %v4511 = vmax.f32 %v4509, %v4510
        %v4512 = vrot.slane %v4511, 1
        %v4513 = vmax.f32 %v4511, %v4512
        %vm4514 = vcmp.eq.f32.partialorder %v4505, %v4513
        %vm4515 = vcmp.eq.f32.partialorder %v4506, %v4513
        %v4516 = vsel %vm4514, %v1580, 16.0
        %v4517 = vsel %vm4515, %v1581, 16.0
        %v4518 = vmin.f32 %v4516, %v4517
        %v4519 = vrot.slane %v4518, 4
        %v4520 = vmin.f32 %v4518, %v4519
        %v4521 = vrot.slane %v4520, 2
        %v4522 = vmin.f32 %v4520, %v4521
        %v4523 = vrot.slane %v4522, 1
        %v4524 = vmin.f32 %v4522, %v4523
        %vm4525 = vcmp.eq.f32.partialorder %v1580, %v4524
        %vm4526 = vcmp.eq.f32.partialorder %v1581, %v4524
        %vm4527 = vmor %vm4499, %vm4525
        %vm4528 = vmor %vm4500, %vm4526
        %vm4529 = vmxor %vm4525, 1
        %vm4530 = vmxor %vm4526, 1
        %vm4531 = vmand %vm4503, %vm4529
        %vm4532 = vmand %vm4504, %vm4530
        %v4533 = vsel %vm4531, %v4397, -3e+38
        %v4534 = vsel %vm4532, %v4398, -3e+38
        %v4535 = vmax.f32 %v4533, %v4534
        %v4536 = vrot.slane %v4535, 4
        %v4537 = vmax.f32 %v4535, %v4536
        %v4538 = vrot.slane %v4537, 2
        %v4539 = vmax.f32 %v4537, %v4538
        %v4540 = vrot.slane %v4539, 1
        %v4541 = vmax.f32 %v4539, %v4540
        %vm4542 = vcmp.eq.f32.partialorder %v4533, %v4541
        %vm4543 = vcmp.eq.f32.partialorder %v4534, %v4541
        %v4544 = vsel %vm4542, %v1580, 16.0
        %v4545 = vsel %vm4543, %v1581, 16.0
        %v4546 = vmin.f32 %v4544, %v4545
        %v4547 = vrot.slane %v4546, 4
        %v4548 = vmin.f32 %v4546, %v4547
        %v4549 = vrot.slane %v4548, 2
        %v4550 = vmin.f32 %v4548, %v4549
        %v4551 = vrot.slane %v4550, 1
        %v4552 = vmin.f32 %v4550, %v4551
        %vm4553 = vcmp.eq.f32.partialorder %v1580, %v4552
        %vm4554 = vcmp.eq.f32.partialorder %v1581, %v4552
        %vm4555 = vmor %vm4527, %vm4553
        %vm4556 = vmor %vm4528, %vm4554
        %vm4557 = vmxor %vm4553, 1
        %vm4558 = vmxor %vm4554, 1
        %vm4559 = vmand %vm4531, %vm4557
        %vm4560 = vmand %vm4532, %vm4558
        %v4561 = vsel %vm4559, %v4397, -3e+38
        %v4562 = vsel %vm4560, %v4398, -3e+38
        %v4563 = vmax.f32 %v4561, %v4562
        %v4564 = vrot.slane %v4563, 4
        %v4565 = vmax.f32 %v4563, %v4564
        %v4566 = vrot.slane %v4565, 2
        %v4567 = vmax.f32 %v4565, %v4566
        %v4568 = vrot.slane %v4567, 1
        %v4569 = vmax.f32 %v4567, %v4568
        %vm4570 = vcmp.eq.f32.partialorder %v4561, %v4569
        %vm4571 = vcmp.eq.f32.partialorder %v4562, %v4569
        %v4572 = vsel %vm4570, %v1580, 16.0
        %v4573 = vsel %vm4571, %v1581, 16.0
        %v4574 = vmin.f32 %v4572, %v4573
        %v4575 = vrot.slane %v4574, 4
        %v4576 = vmin.f32 %v4574, %v4575
        %v4577 = vrot.slane %v4576, 2
        %v4578 = vmin.f32 %v4576, %v4577
        %v4579 = vrot.slane %v4578, 1
        %v4580 = vmin.f32 %v4578, %v4579
        %vm4581 = vcmp.eq.f32.partialorder %v1580, %v4580
        %vm4582 = vcmp.eq.f32.partialorder %v1581, %v4580
        %vm4583 = vmor %vm4555, %vm4581
        %vm4584 = vmor %vm4556, %vm4582
        %vm4585 = vmxor %vm4581, 1
        %vm4586 = vmxor %vm4582, 1
        %vm4587 = vmand %vm4559, %vm4585
        %vm4588 = vmand %vm4560, %vm4586
        %v4589 = vsel %vm4587, %v4397, -3e+38
        %v4590 = vsel %vm4588, %v4398, -3e+38
        %v4591 = vmax.f32 %v4589, %v4590
        %v4592 = vrot.slane %v4591, 4
        %v4593 = vmax.f32 %v4591, %v4592
        %v4594 = vrot.slane %v4593, 2
        %v4595 = vmax.f32 %v4593, %v4594
        %v4596 = vrot.slane %v4595, 1
        %v4597 = vmax.f32 %v4595, %v4596
        %vm4598 = vcmp.eq.f32.partialorder %v4589, %v4597
        %vm4599 = vcmp.eq.f32.partialorder %v4590, %v4597
        %v4600 = vsel %vm4598, %v1580, 16.0
        %v4601 = vsel %vm4599, %v1581, 16.0
        %v4602 = vmin.f32 %v4600, %v4601
        %v4603 = vrot.slane %v4602, 4
        %v4604 = vmin.f32 %v4602, %v4603
        %v4605 = vrot.slane %v4604, 2
        %v4606 = vmin.f32 %v4604, %v4605
        %v4607 = vrot.slane %v4606, 1
        %v4608 = vmin.f32 %v4606, %v4607
        %vm4609 = vcmp.eq.f32.partialorder %v1580, %v4608
        %vm4610 = vcmp.eq.f32.partialorder %v1581, %v4608
        %vm4611 = vmor %vm4583, %vm4609
        %vm4612 = vmor %vm4584, %vm4610
        %v4613 = vsel %vm4611, %v4395, 0.0
        %v4614 = vsel %vm4612, %v4396, 0.0
        %v4615 = vmul.f32 %v4339, %v4613
        %v4616 = vmul.f32 %v4340, %v4613
        %v4617 = vmul.f32 %v4341, %v4614
        %v4618 = vmul.f32 %v4342, %v4614
        %v4619 = vsel %vm4611, 1, 0
        %v4620 = vsel %vm4612, 1, 0
        %vm4621 = vcmp.eq.s32.totalorder %v4619, 1
        %vm4622 = vcmp.eq.s32.totalorder %v4620, 1
        %v4623 = vsel %vm4621, %v4615, -3e+38
        %v4624 = vsel %vm4621, %v4616, -3e+38
        %v4625 = vsel %vm4622, %v4617, -3e+38
        %v4626 = vsel %vm4622, %v4618, -3e+38
        %v4627 = vmax.f32 %v4623, %v4625
        %v4628 = vrot.slane %v4627, 4
        %v4629 = vmax.f32 %v4627, %v4628
        %v4630 = vrot.slane %v4629, 2
        %v4631 = vmax.f32 %v4629, %v4630
        %v4632 = vrot.slane %v4631, 1
        %v4633 = vmax.f32 %v4631, %v4632
        %v4634 = vmax.f32 %v4624, %v4626
        %v4635 = vrot.slane %v4634, 4
        %v4636 = vmax.f32 %v4634, %v4635
        %v4637 = vrot.slane %v4636, 2
        %v4638 = vmax.f32 %v4636, %v4637
        %v4639 = vrot.slane %v4638, 1
        %v4640 = vmax.f32 %v4638, %v4639
        %v4641 = vadd.f32 %v3786, %v4633
        %v4642 = vadd.f32 %v3787, %v4640
        %v4643 = vadd.f32 %v4615, %v4617
        %v4644 = vrot.slane %v4643, 4
        %v4645 = vadd.f32 %v4643, %v4644
        %v4646 = vrot.slane %v4645, 2
        %v4647 = vadd.f32 %v4645, %v4646
        %v4648 = vrot.slane %v4647, 1
        %v4649 = vadd.f32 %v4647, %v4648
        %v4650 = vadd.f32 %v4616, %v4618
        %v4651 = vrot.slane %v4650, 4
        %v4652 = vadd.f32 %v4650, %v4651
        %v4653 = vrot.slane %v4652, 2
        %v4654 = vadd.f32 %v4652, %v4653
        %v4655 = vrot.slane %v4654, 1
        %v4656 = vadd.f32 %v4654, %v4655
        %v4657 = vmul.f32 %v4649, 0.125
        %v4658 = vmul.f32 %v4656, 0.125
        %v4659 = vadd.f32 %v3804, %v4657
        %v4660 = vadd.f32 %v3805, %v4658
        %v4661 = vpack.c.bf16 %v4641, %v4641
        %v4662 = vpack.c.bf16 %v4642, %v4642
        %v4663 = vpack.c.bf16 %v4659, %v4659
        %v4664 = vpack.c.bf16 %v4660, %v4660
        %v4665 = vld [vmem:[%s18] sm:$0xff]
        %v4666 = vld [vmem:[%s18 + $0x8] sm:$0xff]
        %v4667 = vld [vmem:[%s18 + $0x10] sm:$0xff]
        %v4668 = vld [vmem:[%s18 + $0x18] sm:$0xff]
        %v4669 = vld [vmem:[%s18 + $0x20] sm:$0xff]
        %v4670 = vld [vmem:[%s18 + $0x28] sm:$0xff]
        %v4671 = vld [vmem:[%s18 + $0x30] sm:$0xff]
        %v4672 = vld [vmem:[%s18 + $0x38] sm:$0xff]
        %v4673 = vld [vmem:[%s18 + $0x40] sm:$0xff]
        %v4674 = vld [vmem:[%s18 + $0x48] sm:$0xff]
        %v4675 = vld [vmem:[%s18 + $0x50] sm:$0xff]
        %v4676 = vld [vmem:[%s18 + $0x58] sm:$0xff]
        %v4677 = vld [vmem:[%s18 + $0x60] sm:$0xff]
        %v4678 = vld [vmem:[%s18 + $0x68] sm:$0xff]
        %v4679 = vld [vmem:[%s18 + $0x70] sm:$0xff]
        %v4680 = vld [vmem:[%s18 + $0x78] sm:$0xff]
        %v4681 = vld [vmem:[%s18 + $0x80] sm:$0xff]
        %v4682 = vld [vmem:[%s18 + $0x88] sm:$0xff]
        %v4683 = vld [vmem:[%s18 + $0x90] sm:$0xff]
        %v4684 = vld [vmem:[%s18 + $0x98] sm:$0xff]
        %v4685 = vld [vmem:[%s18 + $0xa0] sm:$0xff]
        %v4686 = vld [vmem:[%s18 + $0xa8] sm:$0xff]
        %v4687 = vld [vmem:[%s18 + $0xb0] sm:$0xff]
        %v4688 = vld [vmem:[%s18 + $0xb8] sm:$0xff]
        %v4689 = vld [vmem:[%s18 + $0xc0] sm:$0xff]
        %v4690 = vld [vmem:[%s18 + $0xc8] sm:$0xff]
        %v4691 = vld [vmem:[%s18 + $0xd0] sm:$0xff]
        %v4692 = vld [vmem:[%s18 + $0xd8] sm:$0xff]
        %v4693 = vld [vmem:[%s18 + $0xe0] sm:$0xff]
        %v4694 = vld [vmem:[%s18 + $0xe8] sm:$0xff]
        %v4695 = vld [vmem:[%s18 + $0xf0] sm:$0xff]
        %v4696 = vld [vmem:[%s18 + $0xf8] sm:$0xff]
        %v4697 = vld [vmem:[%s18 + $0x100] sm:$0xff]
        %v4698 = vld [vmem:[%s18 + $0x108] sm:$0xff]
        %v4699 = vld [vmem:[%s18 + $0x110] sm:$0xff]
        %v4700 = vld [vmem:[%s18 + $0x118] sm:$0xff]
        %v4701 = vld [vmem:[%s18 + $0x120] sm:$0xff]
        %v4702 = vld [vmem:[%s18 + $0x128] sm:$0xff]
        %v4703 = vld [vmem:[%s18 + $0x130] sm:$0xff]
        %v4704 = vld [vmem:[%s18 + $0x138] sm:$0xff]
        %v4705 = vld [vmem:[%s18 + $0x140] sm:$0xff]
        %v4706 = vld [vmem:[%s18 + $0x148] sm:$0xff]
        %v4707 = vld [vmem:[%s18 + $0x150] sm:$0xff]
        %v4708 = vld [vmem:[%s18 + $0x158] sm:$0xff]
        %v4709 = vld [vmem:[%s18 + $0x160] sm:$0xff]
        %v4710 = vld [vmem:[%s18 + $0x168] sm:$0xff]
        %v4711 = vld [vmem:[%s18 + $0x170] sm:$0xff]
        %v4712 = vld [vmem:[%s18 + $0x178] sm:$0xff]
        %v4713 = vld [vmem:[%s18 + $0x180] sm:$0xff]
        %v4714 = vld [vmem:[%s18 + $0x188] sm:$0xff]
        %v4715 = vld [vmem:[%s18 + $0x190] sm:$0xff]
        %v4716 = vld [vmem:[%s18 + $0x198] sm:$0xff]
        %v4717 = vld [vmem:[%s18 + $0x1a0] sm:$0xff]
        %v4718 = vld [vmem:[%s18 + $0x1a8] sm:$0xff]
        %v4719 = vld [vmem:[%s18 + $0x1b0] sm:$0xff]
        %v4720 = vld [vmem:[%s18 + $0x1b8] sm:$0xff]
        %v4721 = vld [vmem:[%s18 + $0x1c0] sm:$0xff]
        %v4722 = vld [vmem:[%s18 + $0x1c8] sm:$0xff]
        %v4723 = vld [vmem:[%s18 + $0x1d0] sm:$0xff]
        %v4724 = vld [vmem:[%s18 + $0x1d8] sm:$0xff]
        %v4725 = vld [vmem:[%s18 + $0x1e0] sm:$0xff]
        %v4726 = vld [vmem:[%s18 + $0x1e8] sm:$0xff]
        %v4727 = vld [vmem:[%s18 + $0x1f0] sm:$0xff]
        %v4728 = vld [vmem:[%s18 + $0x1f8] sm:$0xff]
        %v4761 = vunpack.c.l.b16 %v4697
        %v4762 = vunpack.c.h.b16 %v4697
        %v4763 = vunpack.c.l.b16 %v4698
        %v4764 = vunpack.c.h.b16 %v4698
        %v4765 = vunpack.c.l.b16 %v4699
        %v4766 = vunpack.c.h.b16 %v4699
        %v4767 = vunpack.c.l.b16 %v4700
        %v4768 = vunpack.c.h.b16 %v4700
        %v4769 = vunpack.c.l.b16 %v4701
        %v4770 = vunpack.c.h.b16 %v4701
        %v4771 = vunpack.c.l.b16 %v4702
        %v4772 = vunpack.c.h.b16 %v4702
        %v4773 = vunpack.c.l.b16 %v4703
        %v4774 = vunpack.c.h.b16 %v4703
        %v4775 = vunpack.c.l.b16 %v4704
        %v4776 = vunpack.c.h.b16 %v4704
        %v4777 = vunpack.c.l.b16 %v4705
        %v4778 = vunpack.c.h.b16 %v4705
        %v4779 = vunpack.c.l.b16 %v4706
        %v4780 = vunpack.c.h.b16 %v4706
        %v4781 = vunpack.c.l.b16 %v4707
        %v4782 = vunpack.c.h.b16 %v4707
        %v4783 = vunpack.c.l.b16 %v4708
        %v4784 = vunpack.c.h.b16 %v4708
        %v4785 = vunpack.c.l.b16 %v4709
        %v4786 = vunpack.c.h.b16 %v4709
        %v4787 = vunpack.c.l.b16 %v4710
        %v4788 = vunpack.c.h.b16 %v4710
        %v4789 = vunpack.c.l.b16 %v4711
        %v4790 = vunpack.c.h.b16 %v4711
        %v4791 = vunpack.c.l.b16 %v4712
        %v4792 = vunpack.c.h.b16 %v4712
        %v4793 = vunpack.c.l.b16 %v4713
        %v4794 = vunpack.c.h.b16 %v4713
        %v4795 = vunpack.c.l.b16 %v4714
        %v4796 = vunpack.c.h.b16 %v4714
        %v4797 = vunpack.c.l.b16 %v4715
        %v4798 = vunpack.c.h.b16 %v4715
        %v4799 = vunpack.c.l.b16 %v4716
        %v4800 = vunpack.c.h.b16 %v4716
        %v4801 = vunpack.c.l.b16 %v4717
        %v4802 = vunpack.c.h.b16 %v4717
        %v4803 = vunpack.c.l.b16 %v4718
        %v4804 = vunpack.c.h.b16 %v4718
        %v4805 = vunpack.c.l.b16 %v4719
        %v4806 = vunpack.c.h.b16 %v4719
        %v4807 = vunpack.c.l.b16 %v4720
        %v4808 = vunpack.c.h.b16 %v4720
        %v4809 = vunpack.c.l.b16 %v4721
        %v4810 = vunpack.c.h.b16 %v4721
        %v4811 = vunpack.c.l.b16 %v4722
        %v4812 = vunpack.c.h.b16 %v4722
        %v4813 = vunpack.c.l.b16 %v4723
        %v4814 = vunpack.c.h.b16 %v4723
        %v4815 = vunpack.c.l.b16 %v4724
        %v4816 = vunpack.c.h.b16 %v4724
        %v4817 = vunpack.c.l.b16 %v4725
        %v4818 = vunpack.c.h.b16 %v4725
        %v4819 = vunpack.c.l.b16 %v4726
        %v4820 = vunpack.c.h.b16 %v4726
        %v4821 = vunpack.c.l.b16 %v4727
        %v4822 = vunpack.c.h.b16 %v4727
        %v4823 = vunpack.c.l.b16 %v4728
        %v4824 = vunpack.c.h.b16 %v4728
        %v4825 = vpack.c.b16 %v4763, %v4761
        %v4826 = vpack.c.b16 %v4764, %v4762
        %v4827 = vpack.c.b16 %v4767, %v4765
        %v4828 = vpack.c.b16 %v4768, %v4766
        %v4829 = vpack.c.b16 %v4771, %v4769
        %v4830 = vpack.c.b16 %v4772, %v4770
        %v4831 = vpack.c.b16 %v4775, %v4773
        %v4832 = vpack.c.b16 %v4776, %v4774
        %v4833 = vpack.c.b16 %v4779, %v4777
        %v4834 = vpack.c.b16 %v4780, %v4778
        %v4835 = vpack.c.b16 %v4783, %v4781
        %v4836 = vpack.c.b16 %v4784, %v4782
        %v4837 = vpack.c.b16 %v4787, %v4785
        %v4838 = vpack.c.b16 %v4788, %v4786
        %v4839 = vpack.c.b16 %v4791, %v4789
        %v4840 = vpack.c.b16 %v4792, %v4790
        %v4841 = vpack.c.b16 %v4795, %v4793
        %v4842 = vpack.c.b16 %v4796, %v4794
        %v4843 = vpack.c.b16 %v4799, %v4797
        %v4844 = vpack.c.b16 %v4800, %v4798
        %v4845 = vpack.c.b16 %v4803, %v4801
        %v4846 = vpack.c.b16 %v4804, %v4802
        %v4847 = vpack.c.b16 %v4807, %v4805
        %v4848 = vpack.c.b16 %v4808, %v4806
        %v4849 = vpack.c.b16 %v4811, %v4809
        %v4850 = vpack.c.b16 %v4812, %v4810
        %v4851 = vpack.c.b16 %v4815, %v4813
        %v4852 = vpack.c.b16 %v4816, %v4814
        %v4853 = vpack.c.b16 %v4819, %v4817
        %v4854 = vpack.c.b16 %v4820, %v4818
        %v4855 = vpack.c.b16 %v4823, %v4821
        %v4856 = vpack.c.b16 %v4824, %v4822
        %4889 = vmatprep.subr.bf16.mxu0 %v4826
        %4890 = vmatpush1.bf16.msra.mxu0 %v4825
        %4891 = vmatprep.subr.bf16.mxu0 %v4828
        %4892 = vmatpush1.bf16.msra.mxu0 %v4827
        %4893 = vmatprep.subr.bf16.mxu0 %v4830
        %4894 = vmatpush1.bf16.msra.mxu0 %v4829
        %4895 = vmatprep.subr.bf16.mxu0 %v4832
        %4896 = vmatpush1.bf16.msra.mxu0 %v4831
        %4897 = vmatprep.subr.bf16.mxu0 %v4834
        %4898 = vmatpush1.bf16.msra.mxu0 %v4833
        %4899 = vmatprep.subr.bf16.mxu0 %v4836
        %4900 = vmatpush1.bf16.msra.mxu0 %v4835
        %4901 = vmatprep.subr.bf16.mxu0 %v4838
        %4902 = vmatpush1.bf16.msra.mxu0 %v4837
        %4903 = vmatprep.subr.bf16.mxu0 %v4840
        %4904 = vmatpush1.bf16.msra.mxu0 %v4839
        %4905 = vmatprep.subr.bf16.mxu0 %v4842
        %4906 = vmatpush1.bf16.msra.mxu0 %v4841
        %4907 = vmatprep.subr.bf16.mxu0 %v4844
        %4908 = vmatpush1.bf16.msra.mxu0 %v4843
        %4909 = vmatprep.subr.bf16.mxu0 %v4846
        %4910 = vmatpush1.bf16.msra.mxu0 %v4845
        %4911 = vmatprep.subr.bf16.mxu0 %v4848
        %4912 = vmatpush1.bf16.msra.mxu0 %v4847
        %4913 = vmatprep.subr.bf16.mxu0 %v4850
        %4914 = vmatpush1.bf16.msra.mxu0 %v4849
        %4915 = vmatprep.subr.bf16.mxu0 %v4852
        %4916 = vmatpush1.bf16.msra.mxu0 %v4851
        %4917 = vmatprep.subr.bf16.mxu0 %v4854
        %4918 = vmatpush1.bf16.msra.mxu0 %v4853
        %4919 = vmatprep.subr.bf16.mxu0 %v4856
        %4920 = vmatpush1.bf16.msra.mxu0 %v4855
        %4921 = vmatprep.mubr.bf16.mxu0 %v4664
        %4922 = vmatmul.mubr.bf16.gmra.mrb[0].mxu0 %v4663
        %v4923 = vpop.f32.mrb[0].mxu0
        %v4924 = vadd.f32 0.0, %v4923
        %v4925 = vpop.f32.mrb[0].mxu0
        %v4926 = vadd.f32 0.0, %v4925
        %v4927 = vpop.f32.mrb[0].mxu0
        %v4928 = vpop.f32.mrb[0].mxu0
        %4929 = vdwg.mxu0
        %v4962 = vunpack.c.l.b16 %v4665
        %v4963 = vunpack.c.h.b16 %v4665
        %v4964 = vunpack.c.l.b16 %v4666
        %v4965 = vunpack.c.h.b16 %v4666
        %v4966 = vunpack.c.l.b16 %v4667
        %v4967 = vunpack.c.h.b16 %v4667
        %v4968 = vunpack.c.l.b16 %v4668
        %v4969 = vunpack.c.h.b16 %v4668
        %v4970 = vunpack.c.l.b16 %v4669
        %v4971 = vunpack.c.h.b16 %v4669
        %v4972 = vunpack.c.l.b16 %v4670
        %v4973 = vunpack.c.h.b16 %v4670
        %v4974 = vunpack.c.l.b16 %v4671
        %v4975 = vunpack.c.h.b16 %v4671
        %v4976 = vunpack.c.l.b16 %v4672
        %v4977 = vunpack.c.h.b16 %v4672
        %v4978 = vunpack.c.l.b16 %v4673
        %v4979 = vunpack.c.h.b16 %v4673
        %v4980 = vunpack.c.l.b16 %v4674
        %v4981 = vunpack.c.h.b16 %v4674
        %v4982 = vunpack.c.l.b16 %v4675
        %v4983 = vunpack.c.h.b16 %v4675
        %v4984 = vunpack.c.l.b16 %v4676
        %v4985 = vunpack.c.h.b16 %v4676
        %v4986 = vunpack.c.l.b16 %v4677
        %v4987 = vunpack.c.h.b16 %v4677
        %v4988 = vunpack.c.l.b16 %v4678
        %v4989 = vunpack.c.h.b16 %v4678
        %v4990 = vunpack.c.l.b16 %v4679
        %v4991 = vunpack.c.h.b16 %v4679
        %v4992 = vunpack.c.l.b16 %v4680
        %v4993 = vunpack.c.h.b16 %v4680
        %v4994 = vunpack.c.l.b16 %v4681
        %v4995 = vunpack.c.h.b16 %v4681
        %v4996 = vunpack.c.l.b16 %v4682
        %v4997 = vunpack.c.h.b16 %v4682
        %v4998 = vunpack.c.l.b16 %v4683
        %v4999 = vunpack.c.h.b16 %v4683
        %v5000 = vunpack.c.l.b16 %v4684
        %v5001 = vunpack.c.h.b16 %v4684
        %v5002 = vunpack.c.l.b16 %v4685
        %v5003 = vunpack.c.h.b16 %v4685
        %v5004 = vunpack.c.l.b16 %v4686
        %v5005 = vunpack.c.h.b16 %v4686
        %v5006 = vunpack.c.l.b16 %v4687
        %v5007 = vunpack.c.h.b16 %v4687
        %v5008 = vunpack.c.l.b16 %v4688
        %v5009 = vunpack.c.h.b16 %v4688
        %v5010 = vunpack.c.l.b16 %v4689
        %v5011 = vunpack.c.h.b16 %v4689
        %v5012 = vunpack.c.l.b16 %v4690
        %v5013 = vunpack.c.h.b16 %v4690
        %v5014 = vunpack.c.l.b16 %v4691
        %v5015 = vunpack.c.h.b16 %v4691
        %v5016 = vunpack.c.l.b16 %v4692
        %v5017 = vunpack.c.h.b16 %v4692
        %v5018 = vunpack.c.l.b16 %v4693
        %v5019 = vunpack.c.h.b16 %v4693
        %v5020 = vunpack.c.l.b16 %v4694
        %v5021 = vunpack.c.h.b16 %v4694
        %v5022 = vunpack.c.l.b16 %v4695
        %v5023 = vunpack.c.h.b16 %v4695
        %v5024 = vunpack.c.l.b16 %v4696
        %v5025 = vunpack.c.h.b16 %v4696
        %v5026 = vpack.c.b16 %v4964, %v4962
        %v5027 = vpack.c.b16 %v4965, %v4963
        %v5028 = vpack.c.b16 %v4968, %v4966
        %v5029 = vpack.c.b16 %v4969, %v4967
        %v5030 = vpack.c.b16 %v4972, %v4970
        %v5031 = vpack.c.b16 %v4973, %v4971
        %v5032 = vpack.c.b16 %v4976, %v4974
        %v5033 = vpack.c.b16 %v4977, %v4975
        %v5034 = vpack.c.b16 %v4980, %v4978
        %v5035 = vpack.c.b16 %v4981, %v4979
        %v5036 = vpack.c.b16 %v4984, %v4982
        %v5037 = vpack.c.b16 %v4985, %v4983
        %v5038 = vpack.c.b16 %v4988, %v4986
        %v5039 = vpack.c.b16 %v4989, %v4987
        %v5040 = vpack.c.b16 %v4992, %v4990
        %v5041 = vpack.c.b16 %v4993, %v4991
        %v5042 = vpack.c.b16 %v4996, %v4994
        %v5043 = vpack.c.b16 %v4997, %v4995
        %v5044 = vpack.c.b16 %v5000, %v4998
        %v5045 = vpack.c.b16 %v5001, %v4999
        %v5046 = vpack.c.b16 %v5004, %v5002
        %v5047 = vpack.c.b16 %v5005, %v5003
        %v5048 = vpack.c.b16 %v5008, %v5006
        %v5049 = vpack.c.b16 %v5009, %v5007
        %v5050 = vpack.c.b16 %v5012, %v5010
        %v5051 = vpack.c.b16 %v5013, %v5011
        %v5052 = vpack.c.b16 %v5016, %v5014
        %v5053 = vpack.c.b16 %v5017, %v5015
        %v5054 = vpack.c.b16 %v5020, %v5018
        %v5055 = vpack.c.b16 %v5021, %v5019
        %v5056 = vpack.c.b16 %v5024, %v5022
        %v5057 = vpack.c.b16 %v5025, %v5023
        %5090 = vmatprep.subr.bf16.mxu0 %v5027
        %5091 = vmatpush1.bf16.msra.mxu0 %v5026
        %5092 = vmatprep.subr.bf16.mxu0 %v5029
        %5093 = vmatpush1.bf16.msra.mxu0 %v5028
        %5094 = vmatprep.subr.bf16.mxu0 %v5031
        %5095 = vmatpush1.bf16.msra.mxu0 %v5030
        %5096 = vmatprep.subr.bf16.mxu0 %v5033
        %5097 = vmatpush1.bf16.msra.mxu0 %v5032
        %5098 = vmatprep.subr.bf16.mxu0 %v5035
        %5099 = vmatpush1.bf16.msra.mxu0 %v5034
        %5100 = vmatprep.subr.bf16.mxu0 %v5037
        %5101 = vmatpush1.bf16.msra.mxu0 %v5036
        %5102 = vmatprep.subr.bf16.mxu0 %v5039
        %5103 = vmatpush1.bf16.msra.mxu0 %v5038
        %5104 = vmatprep.subr.bf16.mxu0 %v5041
        %5105 = vmatpush1.bf16.msra.mxu0 %v5040
        %5106 = vmatprep.subr.bf16.mxu0 %v5043
        %5107 = vmatpush1.bf16.msra.mxu0 %v5042
        %5108 = vmatprep.subr.bf16.mxu0 %v5045
        %5109 = vmatpush1.bf16.msra.mxu0 %v5044
        %5110 = vmatprep.subr.bf16.mxu0 %v5047
        %5111 = vmatpush1.bf16.msra.mxu0 %v5046
        %5112 = vmatprep.subr.bf16.mxu0 %v5049
        %5113 = vmatpush1.bf16.msra.mxu0 %v5048
        %5114 = vmatprep.subr.bf16.mxu0 %v5051
        %5115 = vmatpush1.bf16.msra.mxu0 %v5050
        %5116 = vmatprep.subr.bf16.mxu0 %v5053
        %5117 = vmatpush1.bf16.msra.mxu0 %v5052
        %5118 = vmatprep.subr.bf16.mxu0 %v5055
        %5119 = vmatpush1.bf16.msra.mxu0 %v5054
        %5120 = vmatprep.subr.bf16.mxu0 %v5057
        %5121 = vmatpush1.bf16.msra.mxu0 %v5056
        %5122 = vmatprep.mubr.bf16.mxu0 %v4662
        %5123 = vmatmul.mubr.bf16.gmra.mrb[0].mxu0 %v4661
        %v5124 = vpop.f32.mrb[0].mxu0
        %v5125 = vadd.f32 %v4924, %v5124
        %v5126 = vpop.f32.mrb[0].mxu0
        %v5127 = vadd.f32 %v4926, %v5126
        %v5128 = vpop.f32.mrb[0].mxu0
        %v5129 = vpop.f32.mrb[0].mxu0
        %5130 = vdwg.mxu0
        %v5131 = vld [vmem:[#allocation23] sm:$0x3]
        %v5133 = vlaneseq
        %v5134 = vshrl.u32 %v5133, 7
        %v5135 = vsub.s32 0, %v5134
        %v5136 = vrot.slane %v5131, %v5135
        %v5137 = vlaneseq
        %v5138 = vshrl.u32 %v5137, 7
        %v5139 = vsub.s32 1, %v5138
        %v5140 = vrot.slane %v5131, %v5139
        %v5143 = vadd.f32 %v5125, %v5136
        %v5144 = vadd.f32 %v5127, %v5140
        %v5145 = vmax.f32 %v5143, 0.0
        %v5146 = vmax.f32 %v5144, 0.0
        %v5147 = vpack.c.bf16 %v5145, %v5145
        %v5148 = vpack.c.bf16 %v5146, %v5146
        %v5149 = vld [vmem:[%s20] sm:$0xf]
        %v5150 = vld [vmem:[%s20 + $0x4] sm:$0xf]
        %v5151 = vld [vmem:[%s20 + $0x8] sm:$0xf]
        %v5152 = vld [vmem:[%s20 + $0xc] sm:$0xf]
        %v5153 = vld [vmem:[%s20 + $0x10] sm:$0xf]
        %v5154 = vld [vmem:[%s20 + $0x14] sm:$0xf]
        %v5155 = vld [vmem:[%s20 + $0x18] sm:$0xf]
        %v5156 = vld [vmem:[%s20 + $0x1c] sm:$0xf]
        %v5157 = vld [vmem:[%s20 + $0x20] sm:$0xf]
        %v5158 = vld [vmem:[%s20 + $0x24] sm:$0xf]
        %v5159 = vld [vmem:[%s20 + $0x28] sm:$0xf]
        %v5160 = vld [vmem:[%s20 + $0x2c] sm:$0xf]
        %v5161 = vld [vmem:[%s20 + $0x30] sm:$0xf]
        %v5162 = vld [vmem:[%s20 + $0x34] sm:$0xf]
        %v5163 = vld [vmem:[%s20 + $0x38] sm:$0xf]
        %v5164 = vld [vmem:[%s20 + $0x3c] sm:$0xf]
        %v5165 = vld [vmem:[%s20 + $0x40] sm:$0xf]
        %v5166 = vld [vmem:[%s20 + $0x44] sm:$0xf]
        %v5167 = vld [vmem:[%s20 + $0x48] sm:$0xf]
        %v5168 = vld [vmem:[%s20 + $0x4c] sm:$0xf]
        %v5169 = vld [vmem:[%s20 + $0x50] sm:$0xf]
        %v5170 = vld [vmem:[%s20 + $0x54] sm:$0xf]
        %v5171 = vld [vmem:[%s20 + $0x58] sm:$0xf]
        %v5172 = vld [vmem:[%s20 + $0x5c] sm:$0xf]
        %v5173 = vld [vmem:[%s20 + $0x60] sm:$0xf]
        %v5174 = vld [vmem:[%s20 + $0x64] sm:$0xf]
        %v5175 = vld [vmem:[%s20 + $0x68] sm:$0xf]
        %v5176 = vld [vmem:[%s20 + $0x6c] sm:$0xf]
        %v5177 = vld [vmem:[%s20 + $0x70] sm:$0xf]
        %v5178 = vld [vmem:[%s20 + $0x74] sm:$0xf]
        %v5179 = vld [vmem:[%s20 + $0x78] sm:$0xf]
        %v5180 = vld [vmem:[%s20 + $0x7c] sm:$0xf]
        %v5181 = vld [vmem:[#allocation25] sm:$0x1]
        %v5183 = vlaneseq
        %v5184 = vshrl.u32 %v5183, 7
        %v5185 = vsub.s32 0, %v5184
        %v5186 = vrot.slane %v5181, %v5185
        %v5220 = vunpack.c.l.b16 %v5149
        %v5221 = vunpack.c.l.b16 %v5150
        %v5222 = vunpack.c.l.b16 %v5151
        %v5223 = vunpack.c.l.b16 %v5152
        %v5224 = vunpack.c.l.b16 %v5153
        %v5225 = vunpack.c.l.b16 %v5154
        %v5226 = vunpack.c.l.b16 %v5155
        %v5227 = vunpack.c.l.b16 %v5156
        %v5228 = vunpack.c.l.b16 %v5157
        %v5229 = vunpack.c.l.b16 %v5158
        %v5230 = vunpack.c.l.b16 %v5159
        %v5231 = vunpack.c.l.b16 %v5160
        %v5232 = vunpack.c.l.b16 %v5161
        %v5233 = vunpack.c.l.b16 %v5162
        %v5234 = vunpack.c.l.b16 %v5163
        %v5235 = vunpack.c.l.b16 %v5164
        %v5236 = vunpack.c.l.b16 %v5165
        %v5237 = vunpack.c.l.b16 %v5166
        %v5238 = vunpack.c.l.b16 %v5167
        %v5239 = vunpack.c.l.b16 %v5168
        %v5240 = vunpack.c.l.b16 %v5169
        %v5241 = vunpack.c.l.b16 %v5170
        %v5242 = vunpack.c.l.b16 %v5171
        %v5243 = vunpack.c.l.b16 %v5172
        %v5244 = vunpack.c.l.b16 %v5173
        %v5245 = vunpack.c.l.b16 %v5174
        %v5246 = vunpack.c.l.b16 %v5175
        %v5247 = vunpack.c.l.b16 %v5176
        %v5248 = vunpack.c.l.b16 %v5177
        %v5249 = vunpack.c.l.b16 %v5178
        %v5250 = vunpack.c.l.b16 %v5179
        %v5251 = vunpack.c.l.b16 %v5180
        %v5252 = vpack.c.b16 %v5221, %v5220
        %v5253 = vpack.c.b16 %v5223, %v5222
        %v5254 = vpack.c.b16 %v5225, %v5224
        %v5255 = vpack.c.b16 %v5227, %v5226
        %v5256 = vpack.c.b16 %v5229, %v5228
        %v5257 = vpack.c.b16 %v5231, %v5230
        %v5258 = vpack.c.b16 %v5233, %v5232
        %v5259 = vpack.c.b16 %v5235, %v5234
        %v5260 = vpack.c.b16 %v5237, %v5236
        %v5261 = vpack.c.b16 %v5239, %v5238
        %v5262 = vpack.c.b16 %v5241, %v5240
        %v5263 = vpack.c.b16 %v5243, %v5242
        %v5264 = vpack.c.b16 %v5245, %v5244
        %v5265 = vpack.c.b16 %v5247, %v5246
        %v5266 = vpack.c.b16 %v5249, %v5248
        %v5267 = vpack.c.b16 %v5251, %v5250
        %5284 = vmatprep.subr.bf16.mxu0 0
        %5285 = vmatpush1.bf16.msra.mxu0 %v5252
        %5286 = vmatprep.subr.bf16.mxu0 0
        %5287 = vmatpush1.bf16.msra.mxu0 %v5253
        %5288 = vmatprep.subr.bf16.mxu0 0
        %5289 = vmatpush1.bf16.msra.mxu0 %v5254
        %5290 = vmatprep.subr.bf16.mxu0 0
        %5291 = vmatpush1.bf16.msra.mxu0 %v5255
        %5292 = vmatprep.subr.bf16.mxu0 0
        %5293 = vmatpush1.bf16.msra.mxu0 %v5256
        %5294 = vmatprep.subr.bf16.mxu0 0
        %5295 = vmatpush1.bf16.msra.mxu0 %v5257
        %5296 = vmatprep.subr.bf16.mxu0 0
        %5297 = vmatpush1.bf16.msra.mxu0 %v5258
        %5298 = vmatprep.subr.bf16.mxu0 0
        %5299 = vmatpush1.bf16.msra.mxu0 %v5259
        %5300 = vmatprep.subr.bf16.mxu0 0
        %5301 = vmatpush1.bf16.msra.mxu0 %v5260
        %5302 = vmatprep.subr.bf16.mxu0 0
        %5303 = vmatpush1.bf16.msra.mxu0 %v5261
        %5304 = vmatprep.subr.bf16.mxu0 0
        %5305 = vmatpush1.bf16.msra.mxu0 %v5262
        %5306 = vmatprep.subr.bf16.mxu0 0
        %5307 = vmatpush1.bf16.msra.mxu0 %v5263
        %5308 = vmatprep.subr.bf16.mxu0 0
        %5309 = vmatpush1.bf16.msra.mxu0 %v5264
        %5310 = vmatprep.subr.bf16.mxu0 0
        %5311 = vmatpush1.bf16.msra.mxu0 %v5265
        %5312 = vmatprep.subr.bf16.mxu0 0
        %5313 = vmatpush1.bf16.msra.mxu0 %v5266
        %5314 = vmatprep.subr.bf16.mxu0 0
        %5315 = vmatpush1.bf16.msra.mxu0 %v5267
        %5316 = vmatprep.mubr.bf16.mxu0 %v5148
        %5317 = vmatmul.mubr.bf16.gmra.mrb[0].mxu0 %v5147
        %v5318 = vpop.f32.mrb[0].mxu0
        %v5319 = vadd.f32 %v5186, %v5318
        %v5320 = vpop.f32.mrb[0].mxu0
        %v5321 = vpop.f32.mrb[0].mxu0
        %v5322 = vpop.f32.mrb[0].mxu0
        %5323 = vdwg.mxu0
        %v5324 = vmax.f32 %v5319, 0.0
        %v5325 = vld [vmem:[#allocation26] sm:$0x1]
        %v5327 = vlaneseq
        %v5328 = vshrl.u32 %v5327, 7
        %v5329 = vsub.s32 0, %v5328
        %v5330 = vrot.slane %v5325, %v5329
        %v5332 = vmul.f32 %v5324, %v5330
        %vm5333 = vcmask 523264
        %v5334 = vsel %vm5333, %v5332, 0.0
        %5335 = vadd.xlane.f32.xlu0 %v5334
        %v5336 = vpop.xlane.xlu0 %5335
        %v5337 = vld [vmem:[#allocation2] sm:$0x1]
        %v5339 = vlaneseq
        %v5340 = vshrl.u32 %v5339, 7
        %v5341 = vsub.s32 0, %v5340
        %v5342 = vrot.slane %v5337, %v5341
        %v5344 = vadd.f32 %v5336, %v5342
        %v5345 = vxor.u32 %v5344, 2147483648
        %v5346 = vmul.f32 %v5345, 1.442695
        %v5347 = vpow.pop %v5346
        %v5348 = vadd.f32 %v5347, 1.0
        %v5349 = vrcp.pop %v5348
        %v5350 = vmul.f32 1.0, %v5349
        %vm5351 = vcmask 0
        %5352 = vst.msk [vmem:[%s968] sm:$0x1] %vm5351, %v5350
        %p5353 = scmp.lt.s32.totalorder %s46, 1
        %s5354 = scalar_select %p5353, %s46, 1
        %s5355 = scalar_lea.vmem %s24, %s5354
        // Predicated region
        $region181: #{rec2_forward.1} parent=115 // pred_check
          %p5356 = pneg %p578
        $region182: #{rec2_forward.1} parent=115 // pred_check_branch
          %5358 = sbr.rel (%p5356) target = $region184
        $region183: #{rec2_forward.1} parent=115 // pred_region
          _
        $region184: #{rec2_forward.1} parent=115 // pred_fallthru
          _
      $region116: #{rec2_forward.1} parent=5 // pred_fallthru
        _
      %p5359 = scmp.le.s32.totalorder 2, %s41
      // Predicated region
      $region185: #{rec2_forward.1} parent=5 // pred_check
        %p5360 = pneg %p5359
      $region186: #{rec2_forward.1} parent=5 // pred_check_branch
        %5362 = sbr.rel (%p5360) target = $region188
      $region187: #{rec2_forward.1} parent=5 // pred_region
        %s5363 = ssub.s32 %s41, 2
        // Predicated region
        $region189: #{rec2_forward.1} parent=187 // pred_check
          %p5364 = pneg %p584
        $region190: #{rec2_forward.1} parent=187 // pred_check_branch
          %5366 = sbr.rel (%p5364) target = $region192
        $region191: #{rec2_forward.1} parent=187 // pred_region
          %p5367 = scmp.lt.s32.totalorder %s47, 1
          %s5368 = scalar_select %p5367, %s47, 1
          %s5369 = scalar_lea.vmem %s24, %s5368
        $region192: #{rec2_forward.1} parent=187 // pred_fallthru
          _
      $region188: #{rec2_forward.1} parent=5 // pred_fallthru
        _
    $region6: #{rec2_forward.1} parent=1 // loop_footer
      %s45 = sadd.s32 1, %s41
    $region7: #{rec2_forward.1} parent=1 // loop_footer_branch
      %40 = sbr.rel target = $region3
    $region8: #{rec2_forward.1} parent=1 // loop_exit
      _
    %5370 = vsyncpa [#allocation4], 1
    %s5371 = scalar_lea.sflag [#allocation4], 1
    %5372 = vsyncpa %s5371, 1
    %5373 = vsyncpa [#allocation6], 1
    %5374 = vsyncpa [#allocation9], 1
    %5375 = vsyncpa [#allocation12], 1
    %5376 = vsyncpa [#allocation15], 1
    %5377 = vsyncpa [#allocation18], 1
    %5378 = vsyncpa [#allocation21], 1
    %5379 = vsyncpa [#allocation24], 1
    %5380 = vsyncpa [#allocation27], 1

</llo_original>
